<compile_context>
chip_gen: v7x
topology: tpu7x:2x2x1
jax: 0.10.0
libtpu: 0.0.40
codegen_flags: <defaults>
</compile_context>

<pallas_src>
import numpy as np
import jax
import jax.numpy as jnp
from jax import lax
from jax.experimental import pallas as pl
from jax.experimental.pallas import tpu as pltpu


# --------------------------- host-side constants ---------------------------

def _conv_bn_constants(w, gamma, beta, mean, var, eps, stride, Hi, Wi):
    """w: (3, 3, Cin, Cout) conv weight (HWIO layout).

    Returns A (3, Ho, Hi), C (3, Wi*Cin, Wo*Cout), b (1, Wo*Cout), Ho, Wo
    such that  conv_bn(x) = sum_dh (A_dh @ x) @ C_dh + b   (per depth slice),
    with x laid out as a 2-D (Hi, Wi*Cin) slab (w-major, c-minor).
    """
    Cin, Cout = int(w.shape[2]), int(w.shape[3])
    Ho = (Hi + 2 - 3) // stride + 1
    Wo = (Wi + 2 - 3) // stride + 1

    scale = gamma / np.sqrt(var + eps)            # eval-mode BN fold
    shift = beta - mean * scale
    ws = w * scale[None, None, None, :]           # fold BN scale into weights

    # vertical tap / stride / zero-padding row-selection matrices
    A = np.zeros((3, Ho, Hi), np.float32)
    for dh in range(3):
        for ho in range(Ho):
            h = stride * ho + dh - 1
            if 0 <= h < Hi:
                A[dh, ho, h] = 1.0

    # horizontal taps + channel mixing, scattered into (w, wo) block structure
    C = np.zeros((3, Wi * Cin, Wo * Cout), np.float32)
    for dh in range(3):
        for dw in range(3):
            for wo in range(Wo):
                wc = stride * wo + dw - 1
                if 0 <= wc < Wi:
                    C[dh, wc * Cin:(wc + 1) * Cin,
                          wo * Cout:(wo + 1) * Cout] += ws[dh, dw]

    b = np.tile(shift.astype(np.float32), Wo)[None, :]        # (1, Wo*Cout)
    return A, C, b, Ho, Wo


def init_params(key, D, H, W, eps=1e-5):
    """Deterministic synthetic weights matching CliceCls.__init__ shapes.

    D is the stacking factor (depth slices per grid step); the selection
    matrices are built block-diagonal over D.
    """
    layers, ref_layers = [], []
    channel, next_channel = 1, 16
    Hi, Wi = H, W
    cout_last = 16
    eye_d = np.eye(D, dtype=np.float32)

    for _ in range(5):
        for (cin, cout, stride) in ((channel, next_channel, 2),
                                    (next_channel, next_channel, 1)):
            key, k1, k2, k3 = jax.random.split(key, 4)
            w = np.asarray(jax.random.normal(k1, (3, 3, cin, cout),
                                             jnp.float32)) * np.sqrt(2.0 / (9 * cin))
            gamma = 1.0 + 0.1 * np.asarray(jax.random.normal(k2, (cout,), jnp.float32))
            beta = 0.1 * np.asarray(jax.random.normal(k3, (cout,), jnp.float32))
            ref_layers.append((w, gamma, beta, stride))

            A, C, b, Ho, Wo = _conv_bn_constants(
                w, gamma, beta,
                np.zeros(cout, np.float32),       # running_mean (eval mode)
                np.ones(cout, np.float32),        # running_var  (eval mode)
                eps, stride, Hi, Wi)

            # stack D depth slices along sublanes -> block-diagonal selection
            A_stk = np.stack([np.kron(eye_d, A[dh]) for dh in range(3)])
            eye_o = np.eye(D * Ho, dtype=np.float32)
            taps = tuple(
                (dh, bool(Ho == Hi and np.array_equal(A_stk[dh], eye_o)))
                for dh in range(3) if A[dh].any())

            layers.append(dict(A=jnp.asarray(A_stk, jnp.bfloat16),   # 0/1: exact
                               C=jnp.asarray(C, jnp.bfloat16),
                               b=jnp.asarray(b, jnp.float32),
                               taps=taps))
            Hi, Wi = Ho, Wo
            cout_last = cout
        channel, next_channel = next_channel, 2 * next_channel

    # epilogue: spatial mean = (S @ y) @ pool, with S the per-slice H-sum and
    # pool the per-channel W-sum carrying the 1/(Hf*Wf) normalisation.
    S = np.kron(eye_d, np.ones((1, Hi), np.float32))               # (D, D*Hf)
    pool = (np.kron(np.ones((Wi, 1), np.float32),
                    np.eye(cout_last, dtype=np.float32)) / float(Hi * Wi))
    use_smat = not (S.shape[0] == S.shape[1]
                    and np.array_equal(S, np.eye(S.shape[0], dtype=np.float32)))
    use_pool = not (pool.shape[0] == pool.shape[1]
                    and np.array_equal(pool, np.eye(pool.shape[0],
                                                    dtype=np.float32)))
    return dict(layers=layers,
                smat=jnp.asarray(S, jnp.float32), use_smat=use_smat,
                pool=jnp.asarray(pool, jnp.float32), use_pool=use_pool,
                out_channels=cout_last, eps=eps, ref_layers=ref_layers)


# ------------------------------ fused kernel -------------------------------

def _make_fused_kernel(layer_taps, n_layers, use_smat, use_pool):
    """layer_taps: per layer, tuple of (dh, is_identity) for non-zero taps."""

    def kernel(*refs):
        x_ref, t_ref = refs[0], refs[1]
        prm = refs[2:2 + 3 * n_layers]
        idx = 2 + 3 * n_layers
        s_ref = None
        pool_ref = None
        if use_smat:
            s_ref = refs[idx]; idx += 1
        if use_pool:
            pool_ref = refs[idx]; idx += 1
        out_ref = refs[idx]
        tmax_ref = refs[idx + 1]

        # -- fused target spatial max: (Ct*D, Ht*Wt) -> (Ct*D, 1) --
        tmax_ref[0] = jnp.max(t_ref[0], axis=-1, keepdims=True)

        # -- 10 x (3x3 conv + BN + ReLU), D slices stacked, VMEM resident --
        x = x_ref[0].astype(jnp.bfloat16)            # (D*Hi, Wi*Cin)
        y = None
        for l in range(n_layers):
            a_ref = prm[3 * l]
            c_ref = prm[3 * l + 1]
            b_ref = prm[3 * l + 2]
            acc = None
            for dh, is_identity in layer_taps[l]:
                if is_identity:
                    u = x                            # A_dh == I: skip matmul
                else:
                    u = jnp.dot(a_ref[dh], x,
                                preferred_element_type=jnp.float32
                                ).astype(jnp.bfloat16)
                z = jnp.dot(u, c_ref[dh], preferred_element_type=jnp.float32)
                acc = z if acc is None else acc + z
            y = jnp.maximum(acc + b_ref[...], 0.0)   # BN shift + ReLU (f32)
            x = y.astype(jnp.bfloat16)               # (D*Ho, Wo*Cout)

        # -- fused spatial-mean epilogue: (D*Hf, Wf*C) -> (D, C), lane-dense --
        s = (jnp.dot(s_ref[...], y, preferred_element_type=jnp.float32)
             if use_smat else y)
        out = (jnp.dot(s, pool_ref[...], preferred_element_type=jnp.float32)
               if use_pool else s)
        out_ref[0] = out.astype(out_ref.dtype)

    return kernel


# ------------------------------ forward glue -------------------------------

def clice_cls_forward(arr, target, params):
    layers = params['layers']
    Cf = params['out_channels']
    use_smat, use_pool = params['use_smat'], params['use_pool']
    N, Cin, D, H, W = arr.shape
    _, Ct, Dt, Ht, Wt = target.shape
    n_layers = len(layers)

    # NCDHW -> per-batch stacked slabs:
    #   x (N, D*H, W*Cin)   rows d-major/h-minor, cols w-major/c-minor
    #   t (N, Ct*D, Ht*Wt)
    x = jnp.transpose(arr, (0, 2, 3, 4, 1)).reshape(N, D * H, W * Cin)
    t = target.reshape(N, Ct * Dt, Ht * Wt)

    operands = [x, t]
    in_specs = [pl.BlockSpec((1, D * H, W * Cin), lambda g: (g, 0, 0)),
                pl.BlockSpec((1, Ct * Dt, Ht * Wt), lambda g: (g, 0, 0))]
    for lyr in layers:
        operands += [lyr['A'], lyr['C'], lyr['b']]
        in_specs += [pl.BlockSpec(lyr['A'].shape, lambda g: (0, 0, 0)),
                     pl.BlockSpec(lyr['C'].shape, lambda g: (0, 0, 0)),
                     pl.BlockSpec(lyr['b'].shape, lambda g: (0, 0))]
    if use_smat:
        operands.append(params['smat'])
        in_specs.append(pl.BlockSpec(params['smat'].shape, lambda g: (0, 0)))
    if use_pool:
        operands.append(params['pool'])
        in_specs.append(pl.BlockSpec(params['pool'].shape, lambda g: (0, 0)))

    kernel = _make_fused_kernel(tuple(l['taps'] for l in layers),
                                n_layers, use_smat, use_pool)

    out, tmax = pl.pallas_call(
        kernel,
        out_shape=(jax.ShapeDtypeStruct((N, D, Cf), jnp.float32),
                   jax.ShapeDtypeStruct((N, Ct * Dt, 1), jnp.float32)),
        grid_spec=pltpu.PrefetchScalarGridSpec(
            num_scalar_prefetch=0,
            grid=(N,),
            in_specs=in_specs,
            out_specs=[pl.BlockSpec((1, D, Cf), lambda g: (g, 0, 0)),
                       pl.BlockSpec((1, Ct * Dt, 1), lambda g: (g, 0, 0))]),
        compiler_params=pltpu.CompilerParams(
            dimension_semantics=("parallel",),
            vmem_limit_bytes=32 * 1024 * 1024),
    )(*operands)

    out = jnp.transpose(out, (0, 2, 1))           # (N, Cf, D)
    tmax = tmax.reshape(N, Ct, Dt)                # (N, Ct, D)
    return out, tmax


# ---------------------------- pure-JAX reference ----------------------------

def reference_forward(arr, target, params):
    eps = params['eps']
    N, Cin, D, H, W = arr.shape
    x = jnp.transpose(arr, (0, 2, 3, 4, 1)).reshape(N * D, H, W, Cin)
    for (w, gamma, beta, stride) in params['ref_layers']:
        y = lax.conv_general_dilated(
            x, jnp.asarray(w), window_strides=(stride, stride),
            padding=((1, 1), (1, 1)),
            dimension_numbers=('NHWC', 'HWIO', 'NHWC'))
        scale = jnp.asarray(gamma / np.sqrt(1.0 + eps))   # mean=0, var=1 fold
        x = jnp.maximum(y * scale + jnp.asarray(beta), 0.0)
    cf = x.shape[-1]
    out = x.mean(axis=(1, 2)).reshape(N, D, cf).transpose(0, 2, 1)
    tmax = target.max(axis=(3, 4))
    return out, tmax


# --------------------------------- driver ----------------------------------

if __name__ == "__main__":
    key = jax.random.PRNGKey(0)
    kp, ka, kt = jax.random.split(key, 3)

    N, D, H, W = 2, 2, 32, 32
    params = init_params(kp, D=D, H=H, W=W)

    # arr: (N, C=1, D, H, W); target: (N, 1, D, H, W)  (PyTorch NCDHW)
    arr = jax.random.normal(ka, (N, 1, D, H, W), jnp.float32)
    target = (jax.random.uniform(kt, (N, 1, D, H, W), jnp.float32) > 0.5
              ).astype(jnp.float32)

    fwd = jax.jit(lambda a, t: clice_cls_forward(a, t, params))
    out, tmax = fwd(arr, target)
    jax.block_until_ready((out, tmax))

    assert out.shape == (N, 256, D), out.shape
    assert tmax.shape == (N, 1, D), tmax.shape

    # correctness vs. a pure-JAX lax.conv reference (bf16 kernel tolerance)
    out_r, tmax_r = reference_forward(arr, target, params)
    np.testing.assert_allclose(np.asarray(tmax), np.asarray(tmax_r),
                               rtol=0.0, atol=0.0)
    np.testing.assert_allclose(np.asarray(out), np.asarray(out_r),
                               rtol=2e-1, atol=2e-1)

    print("KERNEL_OK")
</pallas_src>

<mosaic_0001>
module attributes {stable_mosaic.version = 11 : i64} {
  func.func @kernel(%arg0: i32, %arg1: memref<1x64x32xf32, #tpu.memory_space<vmem>>, %arg2: memref<1x2x1024xf32, #tpu.memory_space<vmem>>, %arg3: memref<3x32x64xbf16, #tpu.memory_space<vmem>>, %arg4: memref<3x32x256xbf16, #tpu.memory_space<vmem>>, %arg5: memref<1x256xf32, #tpu.memory_space<vmem>>, %arg6: memref<3x32x32xbf16, #tpu.memory_space<vmem>>, %arg7: memref<3x256x256xbf16, #tpu.memory_space<vmem>>, %arg8: memref<1x256xf32, #tpu.memory_space<vmem>>, %arg9: memref<3x16x32xbf16, #tpu.memory_space<vmem>>, %arg10: memref<3x256x256xbf16, #tpu.memory_space<vmem>>, %arg11: memref<1x256xf32, #tpu.memory_space<vmem>>, %arg12: memref<3x16x16xbf16, #tpu.memory_space<vmem>>, %arg13: memref<3x256x256xbf16, #tpu.memory_space<vmem>>, %arg14: memref<1x256xf32, #tpu.memory_space<vmem>>, %arg15: memref<3x8x16xbf16, #tpu.memory_space<vmem>>, %arg16: memref<3x256x256xbf16, #tpu.memory_space<vmem>>, %arg17: memref<1x256xf32, #tpu.memory_space<vmem>>, %arg18: memref<3x8x8xbf16, #tpu.memory_space<vmem>>, %arg19: memref<3x256x256xbf16, #tpu.memory_space<vmem>>, %arg20: memref<1x256xf32, #tpu.memory_space<vmem>>, %arg21: memref<3x4x8xbf16, #tpu.memory_space<vmem>>, %arg22: memref<3x256x256xbf16, #tpu.memory_space<vmem>>, %arg23: memref<1x256xf32, #tpu.memory_space<vmem>>, %arg24: memref<3x4x4xbf16, #tpu.memory_space<vmem>>, %arg25: memref<3x256x256xbf16, #tpu.memory_space<vmem>>, %arg26: memref<1x256xf32, #tpu.memory_space<vmem>>, %arg27: memref<3x2x4xbf16, #tpu.memory_space<vmem>>, %arg28: memref<3x256x256xbf16, #tpu.memory_space<vmem>>, %arg29: memref<1x256xf32, #tpu.memory_space<vmem>>, %arg30: memref<3x2x2xbf16, #tpu.memory_space<vmem>>, %arg31: memref<3x256x256xbf16, #tpu.memory_space<vmem>>, %arg32: memref<1x256xf32, #tpu.memory_space<vmem>>, %arg33: memref<1x2x256xf32, #tpu.memory_space<vmem>>, %arg34: memref<1x2x1xf32, #tpu.memory_space<vmem>>) attributes {dimension_semantics = [#tpu.dimension_semantics<parallel>], iteration_bounds = array<i64: 2>, scalar_prefetch = 0 : i64, scratch_operands = 0 : i64, tpu.core_type = #tpu.core_type<tc>, window_params = [{transform_indices = @transform_0, window_bounds = array<i64: 1, 64, 32>}, {transform_indices = @transform_1, window_bounds = array<i64: 1, 2, 1024>}, {pipeline_mode = #tpu.pipeline_mode<synchronous>, transform_indices = @transform_2, window_bounds = array<i64: 3, 32, 64>}, {pipeline_mode = #tpu.pipeline_mode<synchronous>, transform_indices = @transform_3, window_bounds = array<i64: 3, 32, 256>}, {pipeline_mode = #tpu.pipeline_mode<synchronous>, transform_indices = @transform_4, window_bounds = array<i64: 1, 256>}, {pipeline_mode = #tpu.pipeline_mode<synchronous>, transform_indices = @transform_5, window_bounds = array<i64: 3, 32, 32>}, {pipeline_mode = #tpu.pipeline_mode<synchronous>, transform_indices = @transform_6, window_bounds = array<i64: 3, 256, 256>}, {pipeline_mode = #tpu.pipeline_mode<synchronous>, transform_indices = @transform_7, window_bounds = array<i64: 1, 256>}, {pipeline_mode = #tpu.pipeline_mode<synchronous>, transform_indices = @transform_8, window_bounds = array<i64: 3, 16, 32>}, {pipeline_mode = #tpu.pipeline_mode<synchronous>, transform_indices = @transform_9, window_bounds = array<i64: 3, 256, 256>}, {pipeline_mode = #tpu.pipeline_mode<synchronous>, transform_indices = @transform_10, window_bounds = array<i64: 1, 256>}, {pipeline_mode = #tpu.pipeline_mode<synchronous>, transform_indices = @transform_11, window_bounds = array<i64: 3, 16, 16>}, {pipeline_mode = #tpu.pipeline_mode<synchronous>, transform_indices = @transform_12, window_bounds = array<i64: 3, 256, 256>}, {pipeline_mode = #tpu.pipeline_mode<synchronous>, transform_indices = @transform_13, window_bounds = array<i64: 1, 256>}, {pipeline_mode = #tpu.pipeline_mode<synchronous>, transform_indices = @transform_14, window_bounds = array<i64: 3, 8, 16>}, {pipeline_mode = #tpu.pipeline_mode<synchronous>, transform_indices = @transform_15, window_bounds = array<i64: 3, 256, 256>}, {pipeline_mode = #tpu.pipeline_mode<synchronous>, transform_indices = @transform_16, window_bounds = array<i64: 1, 256>}, {pipeline_mode = #tpu.pipeline_mode<synchronous>, transform_indices = @transform_17, window_bounds = array<i64: 3, 8, 8>}, {pipeline_mode = #tpu.pipeline_mode<synchronous>, transform_indices = @transform_18, window_bounds = array<i64: 3, 256, 256>}, {pipeline_mode = #tpu.pipeline_mode<synchronous>, transform_indices = @transform_19, window_bounds = array<i64: 1, 256>}, {pipeline_mode = #tpu.pipeline_mode<synchronous>, transform_indices = @transform_20, window_bounds = array<i64: 3, 4, 8>}, {pipeline_mode = #tpu.pipeline_mode<synchronous>, transform_indices = @transform_21, window_bounds = array<i64: 3, 256, 256>}, {pipeline_mode = #tpu.pipeline_mode<synchronous>, transform_indices = @transform_22, window_bounds = array<i64: 1, 256>}, {pipeline_mode = #tpu.pipeline_mode<synchronous>, transform_indices = @transform_23, window_bounds = array<i64: 3, 4, 4>}, {pipeline_mode = #tpu.pipeline_mode<synchronous>, transform_indices = @transform_24, window_bounds = array<i64: 3, 256, 256>}, {pipeline_mode = #tpu.pipeline_mode<synchronous>, transform_indices = @transform_25, window_bounds = array<i64: 1, 256>}, {pipeline_mode = #tpu.pipeline_mode<synchronous>, transform_indices = @transform_26, window_bounds = array<i64: 3, 2, 4>}, {pipeline_mode = #tpu.pipeline_mode<synchronous>, transform_indices = @transform_27, window_bounds = array<i64: 3, 256, 256>}, {pipeline_mode = #tpu.pipeline_mode<synchronous>, transform_indices = @transform_28, window_bounds = array<i64: 1, 256>}, {pipeline_mode = #tpu.pipeline_mode<synchronous>, transform_indices = @transform_29, window_bounds = array<i64: 3, 2, 2>}, {pipeline_mode = #tpu.pipeline_mode<synchronous>, transform_indices = @transform_30, window_bounds = array<i64: 3, 256, 256>}, {pipeline_mode = #tpu.pipeline_mode<synchronous>, transform_indices = @transform_31, window_bounds = array<i64: 1, 256>}, {transform_indices = @transform_32, window_bounds = array<i64: 1, 2, 256>}, {transform_indices = @transform_33, window_bounds = array<i64: 1, 2, 1>}]} {
    %c0 = arith.constant 0 : index
    %c0_0 = arith.constant 0 : index
    %c0_1 = arith.constant 0 : index
    %0 = vector.load %arg2[%c0, %c0_0, %c0_1] : memref<1x2x1024xf32, #tpu.memory_space<vmem>>, vector<1x2x1024xf32>
    %1 = vector.shape_cast %0 : vector<1x2x1024xf32> to vector<2x1024xf32>
    %cst = arith.constant dense<0xFF800000> : vector<2xf32>
    %2 = vector.multi_reduction <maximumf>, %1, %cst [1] : vector<2x1024xf32> to vector<2xf32>
    %3 = vector.shape_cast %2 : vector<2xf32> to vector<2x1xf32>
    %c0_2 = arith.constant 0 : index
    %c0_3 = arith.constant 0 : index
    %c0_4 = arith.constant 0 : index
    %4 = vector.load %arg34[%c0_2, %c0_3, %c0_4] : memref<1x2x1xf32, #tpu.memory_space<vmem>>, vector<1x2x1xf32>
    %5 = vector.shape_cast %4 : vector<1x2x1xf32> to vector<2x1xf32>
    %6 = vector.shape_cast %3 : vector<2x1xf32> to vector<1x2x1xf32>
    tpu.vector_store %arg34[%c0_2, %c0_3, %c0_4], %6 {strides = array<i32>} : memref<1x2x1xf32, #tpu.memory_space<vmem>>, vector<1x2x1xf32>,
    %c0_5 = arith.constant 0 : index
    %c0_6 = arith.constant 0 : index
    %c0_7 = arith.constant 0 : index
    %7 = vector.load %arg1[%c0_5, %c0_6, %c0_7] : memref<1x64x32xf32, #tpu.memory_space<vmem>>, vector<1x64x32xf32>
    %8 = vector.shape_cast %7 : vector<1x64x32xf32> to vector<64x32xf32>
    %9 = arith.truncf %8 : vector<64x32xf32> to vector<64x32xbf16>
    %c0_8 = arith.constant 0 : index
    %c0_9 = arith.constant 0 : index
    %c0_10 = arith.constant 0 : index
    %10 = vector.load %arg3[%c0_8, %c0_9, %c0_10] : memref<3x32x64xbf16, #tpu.memory_space<vmem>>, vector<1x32x64xbf16>
    %11 = vector.shape_cast %10 : vector<1x32x64xbf16> to vector<32x64xbf16>
    %cst_11 = arith.constant dense<0.000000e+00> : vector<32x32xf32>
    %12 = tpu.matmul %11, %9, %cst_11 {dimension_numbers = #tpu.dot_dimension_numbers<[1], [0], [0], [1], [0, 0, 1, 1], [], []>} : vector<32x64xbf16>, vector<64x32xbf16>, vector<32x32xf32> -> vector<32x32xf32>
    %13 = arith.truncf %12 : vector<32x32xf32> to vector<32x32xbf16>
    %c0_12 = arith.constant 0 : index
    %c0_13 = arith.constant 0 : index
    %c0_14 = arith.constant 0 : index
    %14 = vector.load %arg4[%c0_12, %c0_13, %c0_14] : memref<3x32x256xbf16, #tpu.memory_space<vmem>>, vector<1x32x256xbf16>
    %15 = vector.shape_cast %14 : vector<1x32x256xbf16> to vector<32x256xbf16>
    %cst_15 = arith.constant dense<0.000000e+00> : vector<32x256xf32>
    %16 = tpu.matmul %13, %15, %cst_15 {dimension_numbers = #tpu.dot_dimension_numbers<[1], [0], [0], [1], [0, 0, 1, 1], [], []>} : vector<32x32xbf16>, vector<32x256xbf16>, vector<32x256xf32> -> vector<32x256xf32>
    %c1 = arith.constant 1 : index
    %c0_16 = arith.constant 0 : index
    %c0_17 = arith.constant 0 : index
    %17 = vector.load %arg3[%c1, %c0_16, %c0_17] : memref<3x32x64xbf16, #tpu.memory_space<vmem>>, vector<1x32x64xbf16>
    %18 = vector.shape_cast %17 : vector<1x32x64xbf16> to vector<32x64xbf16>
    %cst_18 = arith.constant dense<0.000000e+00> : vector<32x32xf32>
    %19 = tpu.matmul %18, %9, %cst_18 {dimension_numbers = #tpu.dot_dimension_numbers<[1], [0], [0], [1], [0, 0, 1, 1], [], []>} : vector<32x64xbf16>, vector<64x32xbf16>, vector<32x32xf32> -> vector<32x32xf32>
    %20 = arith.truncf %19 : vector<32x32xf32> to vector<32x32xbf16>
    %c1_19 = arith.constant 1 : index
    %c0_20 = arith.constant 0 : index
    %c0_21 = arith.constant 0 : index
    %21 = vector.load %arg4[%c1_19, %c0_20, %c0_21] : memref<3x32x256xbf16, #tpu.memory_space<vmem>>, vector<1x32x256xbf16>
    %22 = vector.shape_cast %21 : vector<1x32x256xbf16> to vector<32x256xbf16>
    %cst_22 = arith.constant dense<0.000000e+00> : vector<32x256xf32>
    %23 = tpu.matmul %20, %22, %cst_22 {dimension_numbers = #tpu.dot_dimension_numbers<[1], [0], [0], [1], [0, 0, 1, 1], [], []>} : vector<32x32xbf16>, vector<32x256xbf16>, vector<32x256xf32> -> vector<32x256xf32>
    %24 = arith.addf %16, %23 : vector<32x256xf32>
    %c2 = arith.constant 2 : index
    %c0_23 = arith.constant 0 : index
    %c0_24 = arith.constant 0 : index
    %25 = vector.load %arg3[%c2, %c0_23, %c0_24] : memref<3x32x64xbf16, #tpu.memory_space<vmem>>, vector<1x32x64xbf16>
    %26 = vector.shape_cast %25 : vector<1x32x64xbf16> to vector<32x64xbf16>
    %cst_25 = arith.constant dense<0.000000e+00> : vector<32x32xf32>
    %27 = tpu.matmul %26, %9, %cst_25 {dimension_numbers = #tpu.dot_dimension_numbers<[1], [0], [0], [1], [0, 0, 1, 1], [], []>} : vector<32x64xbf16>, vector<64x32xbf16>, vector<32x32xf32> -> vector<32x32xf32>
    %28 = arith.truncf %27 : vector<32x32xf32> to vector<32x32xbf16>
    %c2_26 = arith.constant 2 : index
    %c0_27 = arith.constant 0 : index
    %c0_28 = arith.constant 0 : index
    %29 = vector.load %arg4[%c2_26, %c0_27, %c0_28] : memref<3x32x256xbf16, #tpu.memory_space<vmem>>, vector<1x32x256xbf16>
    %30 = vector.shape_cast %29 : vector<1x32x256xbf16> to vector<32x256xbf16>
    %cst_29 = arith.constant dense<0.000000e+00> : vector<32x256xf32>
    %31 = tpu.matmul %28, %30, %cst_29 {dimension_numbers = #tpu.dot_dimension_numbers<[1], [0], [0], [1], [0, 0, 1, 1], [], []>} : vector<32x32xbf16>, vector<32x256xbf16>, vector<32x256xf32> -> vector<32x256xf32>
    %32 = arith.addf %24, %31 : vector<32x256xf32>
    %c0_30 = arith.constant 0 : index
    %c0_31 = arith.constant 0 : index
    %33 = vector.load %arg5[%c0_30, %c0_31] : memref<1x256xf32, #tpu.memory_space<vmem>>, vector<1x256xf32>
    %34 = vector.broadcast %33 : vector<1x256xf32> to vector<32x256xf32>
    %35 = arith.addf %32, %34 : vector<32x256xf32>
    %cst_32 = arith.constant 0.000000e+00 : f32
    %36 = vector.broadcast %cst_32 : f32 to vector<32x256xf32>
    %37 = arith.maximumf %35, %36 : vector<32x256xf32>
    %38 = arith.truncf %37 : vector<32x256xf32> to vector<32x256xbf16>
    %c0_33 = arith.constant 0 : index
    %c0_34 = arith.constant 0 : index
    %c0_35 = arith.constant 0 : index
    %39 = vector.load %arg6[%c0_33, %c0_34, %c0_35] : memref<3x32x32xbf16, #tpu.memory_space<vmem>>, vector<1x32x32xbf16>
    %40 = vector.shape_cast %39 : vector<1x32x32xbf16> to vector<32x32xbf16>
    %cst_36 = arith.constant dense<0.000000e+00> : vector<32x256xf32>
    %41 = tpu.matmul %40, %38, %cst_36 {dimension_numbers = #tpu.dot_dimension_numbers<[1], [0], [0], [1], [0, 0, 1, 1], [], []>} : vector<32x32xbf16>, vector<32x256xbf16>, vector<32x256xf32> -> vector<32x256xf32>
    %42 = arith.truncf %41 : vector<32x256xf32> to vector<32x256xbf16>
    %c0_37 = arith.constant 0 : index
    %c0_38 = arith.constant 0 : index
    %c0_39 = arith.constant 0 : index
    %43 = vector.load %arg7[%c0_37, %c0_38, %c0_39] : memref<3x256x256xbf16, #tpu.memory_space<vmem>>, vector<1x256x256xbf16>
    %44 = vector.shape_cast %43 : vector<1x256x256xbf16> to vector<256x256xbf16>
    %cst_40 = arith.constant dense<0.000000e+00> : vector<32x256xf32>
    %45 = tpu.matmul %42, %44, %cst_40 {dimension_numbers = #tpu.dot_dimension_numbers<[1], [0], [0], [1], [0, 0, 1, 1], [], []>} : vector<32x256xbf16>, vector<256x256xbf16>, vector<32x256xf32> -> vector<32x256xf32>
    %c1_41 = arith.constant 1 : index
    %c0_42 = arith.constant 0 : index
    %c0_43 = arith.constant 0 : index
    %46 = vector.load %arg7[%c1_41, %c0_42, %c0_43] : memref<3x256x256xbf16, #tpu.memory_space<vmem>>, vector<1x256x256xbf16>
    %47 = vector.shape_cast %46 : vector<1x256x256xbf16> to vector<256x256xbf16>
    %cst_44 = arith.constant dense<0.000000e+00> : vector<32x256xf32>
    %48 = tpu.matmul %38, %47, %cst_44 {dimension_numbers = #tpu.dot_dimension_numbers<[1], [0], [0], [1], [0, 0, 1, 1], [], []>} : vector<32x256xbf16>, vector<256x256xbf16>, vector<32x256xf32> -> vector<32x256xf32>
    %49 = arith.addf %45, %48 : vector<32x256xf32>
    %c2_45 = arith.constant 2 : index
    %c0_46 = arith.constant 0 : index
    %c0_47 = arith.constant 0 : index
    %50 = vector.load %arg6[%c2_45, %c0_46, %c0_47] : memref<3x32x32xbf16, #tpu.memory_space<vmem>>, vector<1x32x32xbf16>
    %51 = vector.shape_cast %50 : vector<1x32x32xbf16> to vector<32x32xbf16>
    %cst_48 = arith.constant dense<0.000000e+00> : vector<32x256xf32>
    %52 = tpu.matmul %51, %38, %cst_48 {dimension_numbers = #tpu.dot_dimension_numbers<[1], [0], [0], [1], [0, 0, 1, 1], [], []>} : vector<32x32xbf16>, vector<32x256xbf16>, vector<32x256xf32> -> vector<32x256xf32>
    %53 = arith.truncf %52 : vector<32x256xf32> to vector<32x256xbf16>
    %c2_49 = arith.constant 2 : index
    %c0_50 = arith.constant 0 : index
    %c0_51 = arith.constant 0 : index
    %54 = vector.load %arg7[%c2_49, %c0_50, %c0_51] : memref<3x256x256xbf16, #tpu.memory_space<vmem>>, vector<1x256x256xbf16>
    %55 = vector.shape_cast %54 : vector<1x256x256xbf16> to vector<256x256xbf16>
    %cst_52 = arith.constant dense<0.000000e+00> : vector<32x256xf32>
    %56 = tpu.matmul %53, %55, %cst_52 {dimension_numbers = #tpu.dot_dimension_numbers<[1], [0], [0], [1], [0, 0, 1, 1], [], []>} : vector<32x256xbf16>, vector<256x256xbf16>, vector<32x256xf32> -> vector<32x256xf32>
    %57 = arith.addf %49, %56 : vector<32x256xf32>
    %c0_53 = arith.constant 0 : index
    %c0_54 = arith.constant 0 : index
    %58 = vector.load %arg8[%c0_53, %c0_54] : memref<1x256xf32, #tpu.memory_space<vmem>>, vector<1x256xf32>
    %59 = vector.broadcast %58 : vector<1x256xf32> to vector<32x256xf32>
    %60 = arith.addf %57, %59 : vector<32x256xf32>
    %cst_55 = arith.constant 0.000000e+00 : f32
    %61 = vector.broadcast %cst_55 : f32 to vector<32x256xf32>
    %62 = arith.maximumf %60, %61 : vector<32x256xf32>
    %63 = arith.truncf %62 : vector<32x256xf32> to vector<32x256xbf16>
    %c0_56 = arith.constant 0 : index
    %c0_57 = arith.constant 0 : index
    %c0_58 = arith.constant 0 : index
    %64 = vector.load %arg9[%c0_56, %c0_57, %c0_58] : memref<3x16x32xbf16, #tpu.memory_space<vmem>>, vector<1x16x32xbf16>
    %65 = vector.shape_cast %64 : vector<1x16x32xbf16> to vector<16x32xbf16>
    %cst_59 = arith.constant dense<0.000000e+00> : vector<16x256xf32>
    %66 = tpu.matmul %65, %63, %cst_59 {dimension_numbers = #tpu.dot_dimension_numbers<[1], [0], [0], [1], [0, 0, 1, 1], [], []>} : vector<16x32xbf16>, vector<32x256xbf16>, vector<16x256xf32> -> vector<16x256xf32>
    %67 = arith.truncf %66 : vector<16x256xf32> to vector<16x256xbf16>
    %c0_60 = arith.constant 0 : index
    %c0_61 = arith.constant 0 : index
    %c0_62 = arith.constant 0 : index
    %68 = vector.load %arg10[%c0_60, %c0_61, %c0_62] : memref<3x256x256xbf16, #tpu.memory_space<vmem>>, vector<1x256x256xbf16>
    %69 = vector.shape_cast %68 : vector<1x256x256xbf16> to vector<256x256xbf16>
    %cst_63 = arith.constant dense<0.000000e+00> : vector<16x256xf32>
    %70 = tpu.matmul %67, %69, %cst_63 {dimension_numbers = #tpu.dot_dimension_numbers<[1], [0], [0], [1], [0, 0, 1, 1], [], []>} : vector<16x256xbf16>, vector<256x256xbf16>, vector<16x256xf32> -> vector<16x256xf32>
    %c1_64 = arith.constant 1 : index
    %c0_65 = arith.constant 0 : index
    %c0_66 = arith.constant 0 : index
    %71 = vector.load %arg9[%c1_64, %c0_65, %c0_66] : memref<3x16x32xbf16, #tpu.memory_space<vmem>>, vector<1x16x32xbf16>
    %72 = vector.shape_cast %71 : vector<1x16x32xbf16> to vector<16x32xbf16>
    %cst_67 = arith.constant dense<0.000000e+00> : vector<16x256xf32>
    %73 = tpu.matmul %72, %63, %cst_67 {dimension_numbers = #tpu.dot_dimension_numbers<[1], [0], [0], [1], [0, 0, 1, 1], [], []>} : vector<16x32xbf16>, vector<32x256xbf16>, vector<16x256xf32> -> vector<16x256xf32>
    %74 = arith.truncf %73 : vector<16x256xf32> to vector<16x256xbf16>
    %c1_68 = arith.constant 1 : index
    %c0_69 = arith.constant 0 : index
    %c0_70 = arith.constant 0 : index
    %75 = vector.load %arg10[%c1_68, %c0_69, %c0_70] : memref<3x256x256xbf16, #tpu.memory_space<vmem>>, vector<1x256x256xbf16>
    %76 = vector.shape_cast %75 : vector<1x256x256xbf16> to vector<256x256xbf16>
    %cst_71 = arith.constant dense<0.000000e+00> : vector<16x256xf32>
    %77 = tpu.matmul %74, %76, %cst_71 {dimension_numbers = #tpu.dot_dimension_numbers<[1], [0], [0], [1], [0, 0, 1, 1], [], []>} : vector<16x256xbf16>, vector<256x256xbf16>, vector<16x256xf32> -> vector<16x256xf32>
    %78 = arith.addf %70, %77 : vector<16x256xf32>
    %c2_72 = arith.constant 2 : index
    %c0_73 = arith.constant 0 : index
    %c0_74 = arith.constant 0 : index
    %79 = vector.load %arg9[%c2_72, %c0_73, %c0_74] : memref<3x16x32xbf16, #tpu.memory_space<vmem>>, vector<1x16x32xbf16>
    %80 = vector.shape_cast %79 : vector<1x16x32xbf16> to vector<16x32xbf16>
    %cst_75 = arith.constant dense<0.000000e+00> : vector<16x256xf32>
    %81 = tpu.matmul %80, %63, %cst_75 {dimension_numbers = #tpu.dot_dimension_numbers<[1], [0], [0], [1], [0, 0, 1, 1], [], []>} : vector<16x32xbf16>, vector<32x256xbf16>, vector<16x256xf32> -> vector<16x256xf32>
    %82 = arith.truncf %81 : vector<16x256xf32> to vector<16x256xbf16>
    %c2_76 = arith.constant 2 : index
    %c0_77 = arith.constant 0 : index
    %c0_78 = arith.constant 0 : index
    %83 = vector.load %arg10[%c2_76, %c0_77, %c0_78] : memref<3x256x256xbf16, #tpu.memory_space<vmem>>, vector<1x256x256xbf16>
    %84 = vector.shape_cast %83 : vector<1x256x256xbf16> to vector<256x256xbf16>
    %cst_79 = arith.constant dense<0.000000e+00> : vector<16x256xf32>
    %85 = tpu.matmul %82, %84, %cst_79 {dimension_numbers = #tpu.dot_dimension_numbers<[1], [0], [0], [1], [0, 0, 1, 1], [], []>} : vector<16x256xbf16>, vector<256x256xbf16>, vector<16x256xf32> -> vector<16x256xf32>
    %86 = arith.addf %78, %85 : vector<16x256xf32>
    %c0_80 = arith.constant 0 : index
    %c0_81 = arith.constant 0 : index
    %87 = vector.load %arg11[%c0_80, %c0_81] : memref<1x256xf32, #tpu.memory_space<vmem>>, vector<1x256xf32>
    %88 = vector.broadcast %87 : vector<1x256xf32> to vector<16x256xf32>
    %89 = arith.addf %86, %88 : vector<16x256xf32>
    %cst_82 = arith.constant 0.000000e+00 : f32
    %90 = vector.broadcast %cst_82 : f32 to vector<16x256xf32>
    %91 = arith.maximumf %89, %90 : vector<16x256xf32>
    %92 = arith.truncf %91 : vector<16x256xf32> to vector<16x256xbf16>
    %c0_83 = arith.constant 0 : index
    %c0_84 = arith.constant 0 : index
    %c0_85 = arith.constant 0 : index
    %93 = vector.load %arg12[%c0_83, %c0_84, %c0_85] : memref<3x16x16xbf16, #tpu.memory_space<vmem>>, vector<1x16x16xbf16>
    %94 = vector.shape_cast %93 : vector<1x16x16xbf16> to vector<16x16xbf16>
    %cst_86 = arith.constant dense<0.000000e+00> : vector<16x256xf32>
    %95 = tpu.matmul %94, %92, %cst_86 {dimension_numbers = #tpu.dot_dimension_numbers<[1], [0], [0], [1], [0, 0, 1, 1], [], []>} : vector<16x16xbf16>, vector<16x256xbf16>, vector<16x256xf32> -> vector<16x256xf32>
    %96 = arith.truncf %95 : vector<16x256xf32> to vector<16x256xbf16>
    %c0_87 = arith.constant 0 : index
    %c0_88 = arith.constant 0 : index
    %c0_89 = arith.constant 0 : index
    %97 = vector.load %arg13[%c0_87, %c0_88, %c0_89] : memref<3x256x256xbf16, #tpu.memory_space<vmem>>, vector<1x256x256xbf16>
    %98 = vector.shape_cast %97 : vector<1x256x256xbf16> to vector<256x256xbf16>
    %cst_90 = arith.constant dense<0.000000e+00> : vector<16x256xf32>
    %99 = tpu.matmul %96, %98, %cst_90 {dimension_numbers = #tpu.dot_dimension_numbers<[1], [0], [0], [1], [0, 0, 1, 1], [], []>} : vector<16x256xbf16>, vector<256x256xbf16>, vector<16x256xf32> -> vector<16x256xf32>
    %c1_91 = arith.constant 1 : index
    %c0_92 = arith.constant 0 : index
    %c0_93 = arith.constant 0 : index
    %100 = vector.load %arg13[%c1_91, %c0_92, %c0_93] : memref<3x256x256xbf16, #tpu.memory_space<vmem>>, vector<1x256x256xbf16>
    %101 = vector.shape_cast %100 : vector<1x256x256xbf16> to vector<256x256xbf16>
    %cst_94 = arith.constant dense<0.000000e+00> : vector<16x256xf32>
    %102 = tpu.matmul %92, %101, %cst_94 {dimension_numbers = #tpu.dot_dimension_numbers<[1], [0], [0], [1], [0, 0, 1, 1], [], []>} : vector<16x256xbf16>, vector<256x256xbf16>, vector<16x256xf32> -> vector<16x256xf32>
    %103 = arith.addf %99, %102 : vector<16x256xf32>
    %c2_95 = arith.constant 2 : index
    %c0_96 = arith.constant 0 : index
    %c0_97 = arith.constant 0 : index
    %104 = vector.load %arg12[%c2_95, %c0_96, %c0_97] : memref<3x16x16xbf16, #tpu.memory_space<vmem>>, vector<1x16x16xbf16>
    %105 = vector.shape_cast %104 : vector<1x16x16xbf16> to vector<16x16xbf16>
    %cst_98 = arith.constant dense<0.000000e+00> : vector<16x256xf32>
    %106 = tpu.matmul %105, %92, %cst_98 {dimension_numbers = #tpu.dot_dimension_numbers<[1], [0], [0], [1], [0, 0, 1, 1], [], []>} : vector<16x16xbf16>, vector<16x256xbf16>, vector<16x256xf32> -> vector<16x256xf32>
    %107 = arith.truncf %106 : vector<16x256xf32> to vector<16x256xbf16>
    %c2_99 = arith.constant 2 : index
    %c0_100 = arith.constant 0 : index
    %c0_101 = arith.constant 0 : index
    %108 = vector.load %arg13[%c2_99, %c0_100, %c0_101] : memref<3x256x256xbf16, #tpu.memory_space<vmem>>, vector<1x256x256xbf16>
    %109 = vector.shape_cast %108 : vector<1x256x256xbf16> to vector<256x256xbf16>
    %cst_102 = arith.constant dense<0.000000e+00> : vector<16x256xf32>
    %110 = tpu.matmul %107, %109, %cst_102 {dimension_numbers = #tpu.dot_dimension_numbers<[1], [0], [0], [1], [0, 0, 1, 1], [], []>} : vector<16x256xbf16>, vector<256x256xbf16>, vector<16x256xf32> -> vector<16x256xf32>
    %111 = arith.addf %103, %110 : vector<16x256xf32>
    %c0_103 = arith.constant 0 : index
    %c0_104 = arith.constant 0 : index
    %112 = vector.load %arg14[%c0_103, %c0_104] : memref<1x256xf32, #tpu.memory_space<vmem>>, vector<1x256xf32>
    %113 = vector.broadcast %112 : vector<1x256xf32> to vector<16x256xf32>
    %114 = arith.addf %111, %113 : vector<16x256xf32>
    %cst_105 = arith.constant 0.000000e+00 : f32
    %115 = vector.broadcast %cst_105 : f32 to vector<16x256xf32>
    %116 = arith.maximumf %114, %115 : vector<16x256xf32>
    %117 = arith.truncf %116 : vector<16x256xf32> to vector<16x256xbf16>
    %c0_106 = arith.constant 0 : index
    %c0_107 = arith.constant 0 : index
    %c0_108 = arith.constant 0 : index
    %118 = vector.load %arg15[%c0_106, %c0_107, %c0_108] : memref<3x8x16xbf16, #tpu.memory_space<vmem>>, vector<1x8x16xbf16>
    %119 = vector.shape_cast %118 : vector<1x8x16xbf16> to vector<8x16xbf16>
    %cst_109 = arith.constant dense<0.000000e+00> : vector<8x256xf32>
    %120 = tpu.matmul %119, %117, %cst_109 {dimension_numbers = #tpu.dot_dimension_numbers<[1], [0], [0], [1], [0, 0, 1, 1], [], []>} : vector<8x16xbf16>, vector<16x256xbf16>, vector<8x256xf32> -> vector<8x256xf32>
    %121 = arith.truncf %120 : vector<8x256xf32> to vector<8x256xbf16>
    %c0_110 = arith.constant 0 : index
    %c0_111 = arith.constant 0 : index
    %c0_112 = arith.constant 0 : index
    %122 = vector.load %arg16[%c0_110, %c0_111, %c0_112] : memref<3x256x256xbf16, #tpu.memory_space<vmem>>, vector<1x256x256xbf16>
    %123 = vector.shape_cast %122 : vector<1x256x256xbf16> to vector<256x256xbf16>
    %cst_113 = arith.constant dense<0.000000e+00> : vector<8x256xf32>
    %124 = tpu.matmul %121, %123, %cst_113 {dimension_numbers = #tpu.dot_dimension_numbers<[1], [0], [0], [1], [0, 0, 1, 1], [], []>} : vector<8x256xbf16>, vector<256x256xbf16>, vector<8x256xf32> -> vector<8x256xf32>
    %c1_114 = arith.constant 1 : index
    %c0_115 = arith.constant 0 : index
    %c0_116 = arith.constant 0 : index
    %125 = vector.load %arg15[%c1_114, %c0_115, %c0_116] : memref<3x8x16xbf16, #tpu.memory_space<vmem>>, vector<1x8x16xbf16>
    %126 = vector.shape_cast %125 : vector<1x8x16xbf16> to vector<8x16xbf16>
    %cst_117 = arith.constant dense<0.000000e+00> : vector<8x256xf32>
    %127 = tpu.matmul %126, %117, %cst_117 {dimension_numbers = #tpu.dot_dimension_numbers<[1], [0], [0], [1], [0, 0, 1, 1], [], []>} : vector<8x16xbf16>, vector<16x256xbf16>, vector<8x256xf32> -> vector<8x256xf32>
    %128 = arith.truncf %127 : vector<8x256xf32> to vector<8x256xbf16>
    %c1_118 = arith.constant 1 : index
    %c0_119 = arith.constant 0 : index
    %c0_120 = arith.constant 0 : index
    %129 = vector.load %arg16[%c1_118, %c0_119, %c0_120] : memref<3x256x256xbf16, #tpu.memory_space<vmem>>, vector<1x256x256xbf16>
    %130 = vector.shape_cast %129 : vector<1x256x256xbf16> to vector<256x256xbf16>
    %cst_121 = arith.constant dense<0.000000e+00> : vector<8x256xf32>
    %131 = tpu.matmul %128, %130, %cst_121 {dimension_numbers = #tpu.dot_dimension_numbers<[1], [0], [0], [1], [0, 0, 1, 1], [], []>} : vector<8x256xbf16>, vector<256x256xbf16>, vector<8x256xf32> -> vector<8x256xf32>
    %132 = arith.addf %124, %131 : vector<8x256xf32>
    %c2_122 = arith.constant 2 : index
    %c0_123 = arith.constant 0 : index
    %c0_124 = arith.constant 0 : index
    %133 = vector.load %arg15[%c2_122, %c0_123, %c0_124] : memref<3x8x16xbf16, #tpu.memory_space<vmem>>, vector<1x8x16xbf16>
    %134 = vector.shape_cast %133 : vector<1x8x16xbf16> to vector<8x16xbf16>
    %cst_125 = arith.constant dense<0.000000e+00> : vector<8x256xf32>
    %135 = tpu.matmul %134, %117, %cst_125 {dimension_numbers = #tpu.dot_dimension_numbers<[1], [0], [0], [1], [0, 0, 1, 1], [], []>} : vector<8x16xbf16>, vector<16x256xbf16>, vector<8x256xf32> -> vector<8x256xf32>
    %136 = arith.truncf %135 : vector<8x256xf32> to vector<8x256xbf16>
    %c2_126 = arith.constant 2 : index
    %c0_127 = arith.constant 0 : index
    %c0_128 = arith.constant 0 : index
    %137 = vector.load %arg16[%c2_126, %c0_127, %c0_128] : memref<3x256x256xbf16, #tpu.memory_space<vmem>>, vector<1x256x256xbf16>
    %138 = vector.shape_cast %137 : vector<1x256x256xbf16> to vector<256x256xbf16>
    %cst_129 = arith.constant dense<0.000000e+00> : vector<8x256xf32>
    %139 = tpu.matmul %136, %138, %cst_129 {dimension_numbers = #tpu.dot_dimension_numbers<[1], [0], [0], [1], [0, 0, 1, 1], [], []>} : vector<8x256xbf16>, vector<256x256xbf16>, vector<8x256xf32> -> vector<8x256xf32>
    %140 = arith.addf %132, %139 : vector<8x256xf32>
    %c0_130 = arith.constant 0 : index
    %c0_131 = arith.constant 0 : index
    %141 = vector.load %arg17[%c0_130, %c0_131] : memref<1x256xf32, #tpu.memory_space<vmem>>, vector<1x256xf32>
    %142 = vector.broadcast %141 : vector<1x256xf32> to vector<8x256xf32>
    %143 = arith.addf %140, %142 : vector<8x256xf32>
    %cst_132 = arith.constant 0.000000e+00 : f32
    %144 = vector.broadcast %cst_132 : f32 to vector<8x256xf32>
    %145 = arith.maximumf %143, %144 : vector<8x256xf32>
    %146 = arith.truncf %145 : vector<8x256xf32> to vector<8x256xbf16>
    %c0_133 = arith.constant 0 : index
    %c0_134 = arith.constant 0 : index
    %c0_135 = arith.constant 0 : index
    %147 = vector.load %arg18[%c0_133, %c0_134, %c0_135] : memref<3x8x8xbf16, #tpu.memory_space<vmem>>, vector<1x8x8xbf16>
    %148 = vector.shape_cast %147 : vector<1x8x8xbf16> to vector<8x8xbf16>
    %cst_136 = arith.constant dense<0.000000e+00> : vector<8x256xf32>
    %149 = tpu.matmul %148, %146, %cst_136 {dimension_numbers = #tpu.dot_dimension_numbers<[1], [0], [0], [1], [0, 0, 1, 1], [], []>} : vector<8x8xbf16>, vector<8x256xbf16>, vector<8x256xf32> -> vector<8x256xf32>
    %150 = arith.truncf %149 : vector<8x256xf32> to vector<8x256xbf16>
    %c0_137 = arith.constant 0 : index
    %c0_138 = arith.constant 0 : index
    %c0_139 = arith.constant 0 : index
    %151 = vector.load %arg19[%c0_137, %c0_138, %c0_139] : memref<3x256x256xbf16, #tpu.memory_space<vmem>>, vector<1x256x256xbf16>
    %152 = vector.shape_cast %151 : vector<1x256x256xbf16> to vector<256x256xbf16>
    %cst_140 = arith.constant dense<0.000000e+00> : vector<8x256xf32>
    %153 = tpu.matmul %150, %152, %cst_140 {dimension_numbers = #tpu.dot_dimension_numbers<[1], [0], [0], [1], [0, 0, 1, 1], [], []>} : vector<8x256xbf16>, vector<256x256xbf16>, vector<8x256xf32> -> vector<8x256xf32>
    %c1_141 = arith.constant 1 : index
    %c0_142 = arith.constant 0 : index
    %c0_143 = arith.constant 0 : index
    %154 = vector.load %arg19[%c1_141, %c0_142, %c0_143] : memref<3x256x256xbf16, #tpu.memory_space<vmem>>, vector<1x256x256xbf16>
    %155 = vector.shape_cast %154 : vector<1x256x256xbf16> to vector<256x256xbf16>
    %cst_144 = arith.constant dense<0.000000e+00> : vector<8x256xf32>
    %156 = tpu.matmul %146, %155, %cst_144 {dimension_numbers = #tpu.dot_dimension_numbers<[1], [0], [0], [1], [0, 0, 1, 1], [], []>} : vector<8x256xbf16>, vector<256x256xbf16>, vector<8x256xf32> -> vector<8x256xf32>
    %157 = arith.addf %153, %156 : vector<8x256xf32>
    %c2_145 = arith.constant 2 : index
    %c0_146 = arith.constant 0 : index
    %c0_147 = arith.constant 0 : index
    %158 = vector.load %arg18[%c2_145, %c0_146, %c0_147] : memref<3x8x8xbf16, #tpu.memory_space<vmem>>, vector<1x8x8xbf16>
    %159 = vector.shape_cast %158 : vector<1x8x8xbf16> to vector<8x8xbf16>
    %cst_148 = arith.constant dense<0.000000e+00> : vector<8x256xf32>
    %160 = tpu.matmul %159, %146, %cst_148 {dimension_numbers = #tpu.dot_dimension_numbers<[1], [0], [0], [1], [0, 0, 1, 1], [], []>} : vector<8x8xbf16>, vector<8x256xbf16>, vector<8x256xf32> -> vector<8x256xf32>
    %161 = arith.truncf %160 : vector<8x256xf32> to vector<8x256xbf16>
    %c2_149 = arith.constant 2 : index
    %c0_150 = arith.constant 0 : index
    %c0_151 = arith.constant 0 : index
    %162 = vector.load %arg19[%c2_149, %c0_150, %c0_151] : memref<3x256x256xbf16, #tpu.memory_space<vmem>>, vector<1x256x256xbf16>
    %163 = vector.shape_cast %162 : vector<1x256x256xbf16> to vector<256x256xbf16>
    %cst_152 = arith.constant dense<0.000000e+00> : vector<8x256xf32>
    %164 = tpu.matmul %161, %163, %cst_152 {dimension_numbers = #tpu.dot_dimension_numbers<[1], [0], [0], [1], [0, 0, 1, 1], [], []>} : vector<8x256xbf16>, vector<256x256xbf16>, vector<8x256xf32> -> vector<8x256xf32>
    %165 = arith.addf %157, %164 : vector<8x256xf32>
    %c0_153 = arith.constant 0 : index
    %c0_154 = arith.constant 0 : index
    %166 = vector.load %arg20[%c0_153, %c0_154] : memref<1x256xf32, #tpu.memory_space<vmem>>, vector<1x256xf32>
    %167 = vector.broadcast %166 : vector<1x256xf32> to vector<8x256xf32>
    %168 = arith.addf %165, %167 : vector<8x256xf32>
    %cst_155 = arith.constant 0.000000e+00 : f32
    %169 = vector.broadcast %cst_155 : f32 to vector<8x256xf32>
    %170 = arith.maximumf %168, %169 : vector<8x256xf32>
    %171 = arith.truncf %170 : vector<8x256xf32> to vector<8x256xbf16>
    %c0_156 = arith.constant 0 : index
    %c0_157 = arith.constant 0 : index
    %c0_158 = arith.constant 0 : index
    %172 = vector.load %arg21[%c0_156, %c0_157, %c0_158] : memref<3x4x8xbf16, #tpu.memory_space<vmem>>, vector<1x4x8xbf16>
    %173 = vector.shape_cast %172 : vector<1x4x8xbf16> to vector<4x8xbf16>
    %cst_159 = arith.constant dense<0.000000e+00> : vector<4x256xf32>
    %174 = tpu.matmul %173, %171, %cst_159 {dimension_numbers = #tpu.dot_dimension_numbers<[1], [0], [0], [1], [0, 0, 1, 1], [], []>} : vector<4x8xbf16>, vector<8x256xbf16>, vector<4x256xf32> -> vector<4x256xf32>
    %175 = arith.truncf %174 : vector<4x256xf32> to vector<4x256xbf16>
    %c0_160 = arith.constant 0 : index
    %c0_161 = arith.constant 0 : index
    %c0_162 = arith.constant 0 : index
    %176 = vector.load %arg22[%c0_160, %c0_161, %c0_162] : memref<3x256x256xbf16, #tpu.memory_space<vmem>>, vector<1x256x256xbf16>
    %177 = vector.shape_cast %176 : vector<1x256x256xbf16> to vector<256x256xbf16>
    %cst_163 = arith.constant dense<0.000000e+00> : vector<4x256xf32>
    %178 = tpu.matmul %175, %177, %cst_163 {dimension_numbers = #tpu.dot_dimension_numbers<[1], [0], [0], [1], [0, 0, 1, 1], [], []>} : vector<4x256xbf16>, vector<256x256xbf16>, vector<4x256xf32> -> vector<4x256xf32>
    %c1_164 = arith.constant 1 : index
    %c0_165 = arith.constant 0 : index
    %c0_166 = arith.constant 0 : index
    %179 = vector.load %arg21[%c1_164, %c0_165, %c0_166] : memref<3x4x8xbf16, #tpu.memory_space<vmem>>, vector<1x4x8xbf16>
    %180 = vector.shape_cast %179 : vector<1x4x8xbf16> to vector<4x8xbf16>
    %cst_167 = arith.constant dense<0.000000e+00> : vector<4x256xf32>
    %181 = tpu.matmul %180, %171, %cst_167 {dimension_numbers = #tpu.dot_dimension_numbers<[1], [0], [0], [1], [0, 0, 1, 1], [], []>} : vector<4x8xbf16>, vector<8x256xbf16>, vector<4x256xf32> -> vector<4x256xf32>
    %182 = arith.truncf %181 : vector<4x256xf32> to vector<4x256xbf16>
    %c1_168 = arith.constant 1 : index
    %c0_169 = arith.constant 0 : index
    %c0_170 = arith.constant 0 : index
    %183 = vector.load %arg22[%c1_168, %c0_169, %c0_170] : memref<3x256x256xbf16, #tpu.memory_space<vmem>>, vector<1x256x256xbf16>
    %184 = vector.shape_cast %183 : vector<1x256x256xbf16> to vector<256x256xbf16>
    %cst_171 = arith.constant dense<0.000000e+00> : vector<4x256xf32>
    %185 = tpu.matmul %182, %184, %cst_171 {dimension_numbers = #tpu.dot_dimension_numbers<[1], [0], [0], [1], [0, 0, 1, 1], [], []>} : vector<4x256xbf16>, vector<256x256xbf16>, vector<4x256xf32> -> vector<4x256xf32>
    %186 = arith.addf %178, %185 : vector<4x256xf32>
    %c2_172 = arith.constant 2 : index
    %c0_173 = arith.constant 0 : index
    %c0_174 = arith.constant 0 : index
    %187 = vector.load %arg21[%c2_172, %c0_173, %c0_174] : memref<3x4x8xbf16, #tpu.memory_space<vmem>>, vector<1x4x8xbf16>
    %188 = vector.shape_cast %187 : vector<1x4x8xbf16> to vector<4x8xbf16>
    %cst_175 = arith.constant dense<0.000000e+00> : vector<4x256xf32>
    %189 = tpu.matmul %188, %171, %cst_175 {dimension_numbers = #tpu.dot_dimension_numbers<[1], [0], [0], [1], [0, 0, 1, 1], [], []>} : vector<4x8xbf16>, vector<8x256xbf16>, vector<4x256xf32> -> vector<4x256xf32>
    %190 = arith.truncf %189 : vector<4x256xf32> to vector<4x256xbf16>
    %c2_176 = arith.constant 2 : index
    %c0_177 = arith.constant 0 : index
    %c0_178 = arith.constant 0 : index
    %191 = vector.load %arg22[%c2_176, %c0_177, %c0_178] : memref<3x256x256xbf16, #tpu.memory_space<vmem>>, vector<1x256x256xbf16>
    %192 = vector.shape_cast %191 : vector<1x256x256xbf16> to vector<256x256xbf16>
    %cst_179 = arith.constant dense<0.000000e+00> : vector<4x256xf32>
    %193 = tpu.matmul %190, %192, %cst_179 {dimension_numbers = #tpu.dot_dimension_numbers<[1], [0], [0], [1], [0, 0, 1, 1], [], []>} : vector<4x256xbf16>, vector<256x256xbf16>, vector<4x256xf32> -> vector<4x256xf32>
    %194 = arith.addf %186, %193 : vector<4x256xf32>
    %c0_180 = arith.constant 0 : index
    %c0_181 = arith.constant 0 : index
    %195 = vector.load %arg23[%c0_180, %c0_181] : memref<1x256xf32, #tpu.memory_space<vmem>>, vector<1x256xf32>
    %196 = vector.broadcast %195 : vector<1x256xf32> to vector<4x256xf32>
    %197 = arith.addf %194, %196 : vector<4x256xf32>
    %cst_182 = arith.constant 0.000000e+00 : f32
    %198 = vector.broadcast %cst_182 : f32 to vector<4x256xf32>
    %199 = arith.maximumf %197, %198 : vector<4x256xf32>
    %200 = arith.truncf %199 : vector<4x256xf32> to vector<4x256xbf16>
    %c0_183 = arith.constant 0 : index
    %c0_184 = arith.constant 0 : index
    %c0_185 = arith.constant 0 : index
    %201 = vector.load %arg24[%c0_183, %c0_184, %c0_185] : memref<3x4x4xbf16, #tpu.memory_space<vmem>>, vector<1x4x4xbf16>
    %202 = vector.shape_cast %201 : vector<1x4x4xbf16> to vector<4x4xbf16>
    %cst_186 = arith.constant dense<0.000000e+00> : vector<4x256xf32>
    %203 = tpu.matmul %202, %200, %cst_186 {dimension_numbers = #tpu.dot_dimension_numbers<[1], [0], [0], [1], [0, 0, 1, 1], [], []>} : vector<4x4xbf16>, vector<4x256xbf16>, vector<4x256xf32> -> vector<4x256xf32>
    %204 = arith.truncf %203 : vector<4x256xf32> to vector<4x256xbf16>
    %c0_187 = arith.constant 0 : index
    %c0_188 = arith.constant 0 : index
    %c0_189 = arith.constant 0 : index
    %205 = vector.load %arg25[%c0_187, %c0_188, %c0_189] : memref<3x256x256xbf16, #tpu.memory_space<vmem>>, vector<1x256x256xbf16>
    %206 = vector.shape_cast %205 : vector<1x256x256xbf16> to vector<256x256xbf16>
    %cst_190 = arith.constant dense<0.000000e+00> : vector<4x256xf32>
    %207 = tpu.matmul %204, %206, %cst_190 {dimension_numbers = #tpu.dot_dimension_numbers<[1], [0], [0], [1], [0, 0, 1, 1], [], []>} : vector<4x256xbf16>, vector<256x256xbf16>, vector<4x256xf32> -> vector<4x256xf32>
    %c1_191 = arith.constant 1 : index
    %c0_192 = arith.constant 0 : index
    %c0_193 = arith.constant 0 : index
    %208 = vector.load %arg25[%c1_191, %c0_192, %c0_193] : memref<3x256x256xbf16, #tpu.memory_space<vmem>>, vector<1x256x256xbf16>
    %209 = vector.shape_cast %208 : vector<1x256x256xbf16> to vector<256x256xbf16>
    %cst_194 = arith.constant dense<0.000000e+00> : vector<4x256xf32>
    %210 = tpu.matmul %200, %209, %cst_194 {dimension_numbers = #tpu.dot_dimension_numbers<[1], [0], [0], [1], [0, 0, 1, 1], [], []>} : vector<4x256xbf16>, vector<256x256xbf16>, vector<4x256xf32> -> vector<4x256xf32>
    %211 = arith.addf %207, %210 : vector<4x256xf32>
    %c2_195 = arith.constant 2 : index
    %c0_196 = arith.constant 0 : index
    %c0_197 = arith.constant 0 : index
    %212 = vector.load %arg24[%c2_195, %c0_196, %c0_197] : memref<3x4x4xbf16, #tpu.memory_space<vmem>>, vector<1x4x4xbf16>
    %213 = vector.shape_cast %212 : vector<1x4x4xbf16> to vector<4x4xbf16>
    %cst_198 = arith.constant dense<0.000000e+00> : vector<4x256xf32>
    %214 = tpu.matmul %213, %200, %cst_198 {dimension_numbers = #tpu.dot_dimension_numbers<[1], [0], [0], [1], [0, 0, 1, 1], [], []>} : vector<4x4xbf16>, vector<4x256xbf16>, vector<4x256xf32> -> vector<4x256xf32>
    %215 = arith.truncf %214 : vector<4x256xf32> to vector<4x256xbf16>
    %c2_199 = arith.constant 2 : index
    %c0_200 = arith.constant 0 : index
    %c0_201 = arith.constant 0 : index
    %216 = vector.load %arg25[%c2_199, %c0_200, %c0_201] : memref<3x256x256xbf16, #tpu.memory_space<vmem>>, vector<1x256x256xbf16>
    %217 = vector.shape_cast %216 : vector<1x256x256xbf16> to vector<256x256xbf16>
    %cst_202 = arith.constant dense<0.000000e+00> : vector<4x256xf32>
    %218 = tpu.matmul %215, %217, %cst_202 {dimension_numbers = #tpu.dot_dimension_numbers<[1], [0], [0], [1], [0, 0, 1, 1], [], []>} : vector<4x256xbf16>, vector<256x256xbf16>, vector<4x256xf32> -> vector<4x256xf32>
    %219 = arith.addf %211, %218 : vector<4x256xf32>
    %c0_203 = arith.constant 0 : index
    %c0_204 = arith.constant 0 : index
    %220 = vector.load %arg26[%c0_203, %c0_204] : memref<1x256xf32, #tpu.memory_space<vmem>>, vector<1x256xf32>
    %221 = vector.broadcast %220 : vector<1x256xf32> to vector<4x256xf32>
    %222 = arith.addf %219, %221 : vector<4x256xf32>
    %cst_205 = arith.constant 0.000000e+00 : f32
    %223 = vector.broadcast %cst_205 : f32 to vector<4x256xf32>
    %224 = arith.maximumf %222, %223 : vector<4x256xf32>
    %225 = arith.truncf %224 : vector<4x256xf32> to vector<4x256xbf16>
    %c1_206 = arith.constant 1 : index
    %c0_207 = arith.constant 0 : index
    %c0_208 = arith.constant 0 : index
    %226 = vector.load %arg27[%c1_206, %c0_207, %c0_208] : memref<3x2x4xbf16, #tpu.memory_space<vmem>>, vector<1x2x4xbf16>
    %227 = vector.shape_cast %226 : vector<1x2x4xbf16> to vector<2x4xbf16>
    %cst_209 = arith.constant dense<0.000000e+00> : vector<2x256xf32>
    %228 = tpu.matmul %227, %225, %cst_209 {dimension_numbers = #tpu.dot_dimension_numbers<[1], [0], [0], [1], [0, 0, 1, 1], [], []>} : vector<2x4xbf16>, vector<4x256xbf16>, vector<2x256xf32> -> vector<2x256xf32>
    %229 = arith.truncf %228 : vector<2x256xf32> to vector<2x256xbf16>
    %c1_210 = arith.constant 1 : index
    %c0_211 = arith.constant 0 : index
    %c0_212 = arith.constant 0 : index
    %230 = vector.load %arg28[%c1_210, %c0_211, %c0_212] : memref<3x256x256xbf16, #tpu.memory_space<vmem>>, vector<1x256x256xbf16>
    %231 = vector.shape_cast %230 : vector<1x256x256xbf16> to vector<256x256xbf16>
    %cst_213 = arith.constant dense<0.000000e+00> : vector<2x256xf32>
    %232 = tpu.matmul %229, %231, %cst_213 {dimension_numbers = #tpu.dot_dimension_numbers<[1], [0], [0], [1], [0, 0, 1, 1], [], []>} : vector<2x256xbf16>, vector<256x256xbf16>, vector<2x256xf32> -> vector<2x256xf32>
    %c2_214 = arith.constant 2 : index
    %c0_215 = arith.constant 0 : index
    %c0_216 = arith.constant 0 : index
    %233 = vector.load %arg27[%c2_214, %c0_215, %c0_216] : memref<3x2x4xbf16, #tpu.memory_space<vmem>>, vector<1x2x4xbf16>
    %234 = vector.shape_cast %233 : vector<1x2x4xbf16> to vector<2x4xbf16>
    %cst_217 = arith.constant dense<0.000000e+00> : vector<2x256xf32>
    %235 = tpu.matmul %234, %225, %cst_217 {dimension_numbers = #tpu.dot_dimension_numbers<[1], [0], [0], [1], [0, 0, 1, 1], [], []>} : vector<2x4xbf16>, vector<4x256xbf16>, vector<2x256xf32> -> vector<2x256xf32>
    %236 = arith.truncf %235 : vector<2x256xf32> to vector<2x256xbf16>
    %c2_218 = arith.constant 2 : index
    %c0_219 = arith.constant 0 : index
    %c0_220 = arith.constant 0 : index
    %237 = vector.load %arg28[%c2_218, %c0_219, %c0_220] : memref<3x256x256xbf16, #tpu.memory_space<vmem>>, vector<1x256x256xbf16>
    %238 = vector.shape_cast %237 : vector<1x256x256xbf16> to vector<256x256xbf16>
    %cst_221 = arith.constant dense<0.000000e+00> : vector<2x256xf32>
    %239 = tpu.matmul %236, %238, %cst_221 {dimension_numbers = #tpu.dot_dimension_numbers<[1], [0], [0], [1], [0, 0, 1, 1], [], []>} : vector<2x256xbf16>, vector<256x256xbf16>, vector<2x256xf32> -> vector<2x256xf32>
    %240 = arith.addf %232, %239 : vector<2x256xf32>
    %c0_222 = arith.constant 0 : index
    %c0_223 = arith.constant 0 : index
    %241 = vector.load %arg29[%c0_222, %c0_223] : memref<1x256xf32, #tpu.memory_space<vmem>>, vector<1x256xf32>
    %242 = vector.broadcast %241 : vector<1x256xf32> to vector<2x256xf32>
    %243 = arith.addf %240, %242 : vector<2x256xf32>
    %cst_224 = arith.constant 0.000000e+00 : f32
    %244 = vector.broadcast %cst_224 : f32 to vector<2x256xf32>
    %245 = arith.maximumf %243, %244 : vector<2x256xf32>
    %246 = arith.truncf %245 : vector<2x256xf32> to vector<2x256xbf16>
    %c1_225 = arith.constant 1 : index
    %c0_226 = arith.constant 0 : index
    %c0_227 = arith.constant 0 : index
    %247 = vector.load %arg31[%c1_225, %c0_226, %c0_227] : memref<3x256x256xbf16, #tpu.memory_space<vmem>>, vector<1x256x256xbf16>
    %248 = vector.shape_cast %247 : vector<1x256x256xbf16> to vector<256x256xbf16>
    %cst_228 = arith.constant dense<0.000000e+00> : vector<2x256xf32>
    %249 = tpu.matmul %246, %248, %cst_228 {dimension_numbers = #tpu.dot_dimension_numbers<[1], [0], [0], [1], [0, 0, 1, 1], [], []>} : vector<2x256xbf16>, vector<256x256xbf16>, vector<2x256xf32> -> vector<2x256xf32>
    %c0_229 = arith.constant 0 : index
    %c0_230 = arith.constant 0 : index
    %250 = vector.load %arg32[%c0_229, %c0_230] : memref<1x256xf32, #tpu.memory_space<vmem>>, vector<1x256xf32>
    %251 = vector.broadcast %250 : vector<1x256xf32> to vector<2x256xf32>
    %252 = arith.addf %249, %251 : vector<2x256xf32>
    %cst_231 = arith.constant 0.000000e+00 : f32
    %253 = vector.broadcast %cst_231 : f32 to vector<2x256xf32>
    %254 = arith.maximumf %252, %253 : vector<2x256xf32>
    %c0_232 = arith.constant 0 : index
    %c0_233 = arith.constant 0 : index
    %c0_234 = arith.constant 0 : index
    %255 = vector.load %arg33[%c0_232, %c0_233, %c0_234] : memref<1x2x256xf32, #tpu.memory_space<vmem>>, vector<1x2x256xf32>
    %256 = vector.shape_cast %255 : vector<1x2x256xf32> to vector<2x256xf32>
    %257 = vector.shape_cast %254 : vector<2x256xf32> to vector<1x2x256xf32>
    tpu.vector_store %arg33[%c0_232, %c0_233, %c0_234], %257 {strides = array<i32>} : memref<1x2x256xf32, #tpu.memory_space<vmem>>, vector<1x2x256xf32>,
    return
  }
  func.func @transform_0(%arg0: i32) -> (i32, i32, i32) {
    %c0_i32 = arith.constant 0 : i32
    %c0_i32_0 = arith.constant 0 : i32
    %c0_i32_1 = arith.constant 0 : i32
    return %arg0, %c0_i32, %c0_i32_0 : i32, i32, i32
  }
  func.func @transform_1(%arg0: i32) -> (i32, i32, i32) {
    %c0_i32 = arith.constant 0 : i32
    %c0_i32_0 = arith.constant 0 : i32
    %c0_i32_1 = arith.constant 0 : i32
    return %arg0, %c0_i32, %c0_i32_0 : i32, i32, i32
  }
  func.func @transform_2(%arg0: i32) -> (i32, i32, i32) {
    %c0_i32 = arith.constant 0 : i32
    %c0_i32_0 = arith.constant 0 : i32
    %c0_i32_1 = arith.constant 0 : i32
    %c0_i32_2 = arith.constant 0 : i32
    return %c0_i32, %c0_i32_0, %c0_i32_1 : i32, i32, i32
  }
  func.func @transform_3(%arg0: i32) -> (i32, i32, i32) {
    %c0_i32 = arith.constant 0 : i32
    %c0_i32_0 = arith.constant 0 : i32
    %c0_i32_1 = arith.constant 0 : i32
    %c0_i32_2 = arith.constant 0 : i32
    return %c0_i32, %c0_i32_0, %c0_i32_1 : i32, i32, i32
  }
  func.func @transform_4(%arg0: i32) -> (i32, i32) {
    %c0_i32 = arith.constant 0 : i32
    %c0_i32_0 = arith.constant 0 : i32
    %c0_i32_1 = arith.constant 0 : i32
    return %c0_i32, %c0_i32_0 : i32, i32
  }
  func.func @transform_5(%arg0: i32) -> (i32, i32, i32) {
    %c0_i32 = arith.constant 0 : i32
    %c0_i32_0 = arith.constant 0 : i32
    %c0_i32_1 = arith.constant 0 : i32
    %c0_i32_2 = arith.constant 0 : i32
    return %c0_i32, %c0_i32_0, %c0_i32_1 : i32, i32, i32
  }
  func.func @transform_6(%arg0: i32) -> (i32, i32, i32) {
    %c0_i32 = arith.constant 0 : i32
    %c0_i32_0 = arith.constant 0 : i32
    %c0_i32_1 = arith.constant 0 : i32
    %c0_i32_2 = arith.constant 0 : i32
    return %c0_i32, %c0_i32_0, %c0_i32_1 : i32, i32, i32
  }
  func.func @transform_7(%arg0: i32) -> (i32, i32) {
    %c0_i32 = arith.constant 0 : i32
    %c0_i32_0 = arith.constant 0 : i32
    %c0_i32_1 = arith.constant 0 : i32
    return %c0_i32, %c0_i32_0 : i32, i32
  }
  func.func @transform_8(%arg0: i32) -> (i32, i32, i32) {
    %c0_i32 = arith.constant 0 : i32
    %c0_i32_0 = arith.constant 0 : i32
    %c0_i32_1 = arith.constant 0 : i32
    %c0_i32_2 = arith.constant 0 : i32
    return %c0_i32, %c0_i32_0, %c0_i32_1 : i32, i32, i32
  }
  func.func @transform_9(%arg0: i32) -> (i32, i32, i32) {
    %c0_i32 = arith.constant 0 : i32
    %c0_i32_0 = arith.constant 0 : i32
    %c0_i32_1 = arith.constant 0 : i32
    %c0_i32_2 = arith.constant 0 : i32
    return %c0_i32, %c0_i32_0, %c0_i32_1 : i32, i32, i32
  }
  func.func @transform_10(%arg0: i32) -> (i32, i32) {
    %c0_i32 = arith.constant 0 : i32
    %c0_i32_0 = arith.constant 0 : i32
    %c0_i32_1 = arith.constant 0 : i32
    return %c0_i32, %c0_i32_0 : i32, i32
  }
  func.func @transform_11(%arg0: i32) -> (i32, i32, i32) {
    %c0_i32 = arith.constant 0 : i32
    %c0_i32_0 = arith.constant 0 : i32
    %c0_i32_1 = arith.constant 0 : i32
    %c0_i32_2 = arith.constant 0 : i32
    return %c0_i32, %c0_i32_0, %c0_i32_1 : i32, i32, i32
  }
  func.func @transform_12(%arg0: i32) -> (i32, i32, i32) {
    %c0_i32 = arith.constant 0 : i32
    %c0_i32_0 = arith.constant 0 : i32
    %c0_i32_1 = arith.constant 0 : i32
    %c0_i32_2 = arith.constant 0 : i32
    return %c0_i32, %c0_i32_0, %c0_i32_1 : i32, i32, i32
  }
  func.func @transform_13(%arg0: i32) -> (i32, i32) {
    %c0_i32 = arith.constant 0 : i32
    %c0_i32_0 = arith.constant 0 : i32
    %c0_i32_1 = arith.constant 0 : i32
    return %c0_i32, %c0_i32_0 : i32, i32
  }
  func.func @transform_14(%arg0: i32) -> (i32, i32, i32) {
    %c0_i32 = arith.constant 0 : i32
    %c0_i32_0 = arith.constant 0 : i32
    %c0_i32_1 = arith.constant 0 : i32
    %c0_i32_2 = arith.constant 0 : i32
    return %c0_i32, %c0_i32_0, %c0_i32_1 : i32, i32, i32
  }
  func.func @transform_15(%arg0: i32) -> (i32, i32, i32) {
    %c0_i32 = arith.constant 0 : i32
    %c0_i32_0 = arith.constant 0 : i32
    %c0_i32_1 = arith.constant 0 : i32
    %c0_i32_2 = arith.constant 0 : i32
    return %c0_i32, %c0_i32_0, %c0_i32_1 : i32, i32, i32
  }
  func.func @transform_16(%arg0: i32) -> (i32, i32) {
    %c0_i32 = arith.constant 0 : i32
    %c0_i32_0 = arith.constant 0 : i32
    %c0_i32_1 = arith.constant 0 : i32
    return %c0_i32, %c0_i32_0 : i32, i32
  }
  func.func @transform_17(%arg0: i32) -> (i32, i32, i32) {
    %c0_i32 = arith.constant 0 : i32
    %c0_i32_0 = arith.constant 0 : i32
    %c0_i32_1 = arith.constant 0 : i32
    %c0_i32_2 = arith.constant 0 : i32
    return %c0_i32, %c0_i32_0, %c0_i32_1 : i32, i32, i32
  }
  func.func @transform_18(%arg0: i32) -> (i32, i32, i32) {
    %c0_i32 = arith.constant 0 : i32
    %c0_i32_0 = arith.constant 0 : i32
    %c0_i32_1 = arith.constant 0 : i32
    %c0_i32_2 = arith.constant 0 : i32
    return %c0_i32, %c0_i32_0, %c0_i32_1 : i32, i32, i32
  }
  func.func @transform_19(%arg0: i32) -> (i32, i32) {
    %c0_i32 = arith.constant 0 : i32
    %c0_i32_0 = arith.constant 0 : i32
    %c0_i32_1 = arith.constant 0 : i32
    return %c0_i32, %c0_i32_0 : i32, i32
  }
  func.func @transform_20(%arg0: i32) -> (i32, i32, i32) {
    %c0_i32 = arith.constant 0 : i32
    %c0_i32_0 = arith.constant 0 : i32
    %c0_i32_1 = arith.constant 0 : i32
    %c0_i32_2 = arith.constant 0 : i32
    return %c0_i32, %c0_i32_0, %c0_i32_1 : i32, i32, i32
  }
  func.func @transform_21(%arg0: i32) -> (i32, i32, i32) {
    %c0_i32 = arith.constant 0 : i32
    %c0_i32_0 = arith.constant 0 : i32
    %c0_i32_1 = arith.constant 0 : i32
    %c0_i32_2 = arith.constant 0 : i32
    return %c0_i32, %c0_i32_0, %c0_i32_1 : i32, i32, i32
  }
  func.func @transform_22(%arg0: i32) -> (i32, i32) {
    %c0_i32 = arith.constant 0 : i32
    %c0_i32_0 = arith.constant 0 : i32
    %c0_i32_1 = arith.constant 0 : i32
    return %c0_i32, %c0_i32_0 : i32, i32
  }
  func.func @transform_23(%arg0: i32) -> (i32, i32, i32) {
    %c0_i32 = arith.constant 0 : i32
    %c0_i32_0 = arith.constant 0 : i32
    %c0_i32_1 = arith.constant 0 : i32
    %c0_i32_2 = arith.constant 0 : i32
    return %c0_i32, %c0_i32_0, %c0_i32_1 : i32, i32, i32
  }
  func.func @transform_24(%arg0: i32) -> (i32, i32, i32) {
    %c0_i32 = arith.constant 0 : i32
    %c0_i32_0 = arith.constant 0 : i32
    %c0_i32_1 = arith.constant 0 : i32
    %c0_i32_2 = arith.constant 0 : i32
    return %c0_i32, %c0_i32_0, %c0_i32_1 : i32, i32, i32
  }
  func.func @transform_25(%arg0: i32) -> (i32, i32) {
    %c0_i32 = arith.constant 0 : i32
    %c0_i32_0 = arith.constant 0 : i32
    %c0_i32_1 = arith.constant 0 : i32
    return %c0_i32, %c0_i32_0 : i32, i32
  }
  func.func @transform_26(%arg0: i32) -> (i32, i32, i32) {
    %c0_i32 = arith.constant 0 : i32
    %c0_i32_0 = arith.constant 0 : i32
    %c0_i32_1 = arith.constant 0 : i32
    %c0_i32_2 = arith.constant 0 : i32
    return %c0_i32, %c0_i32_0, %c0_i32_1 : i32, i32, i32
  }
  func.func @transform_27(%arg0: i32) -> (i32, i32, i32) {
    %c0_i32 = arith.constant 0 : i32
    %c0_i32_0 = arith.constant 0 : i32
    %c0_i32_1 = arith.constant 0 : i32
    %c0_i32_2 = arith.constant 0 : i32
    return %c0_i32, %c0_i32_0, %c0_i32_1 : i32, i32, i32
  }
  func.func @transform_28(%arg0: i32) -> (i32, i32) {
    %c0_i32 = arith.constant 0 : i32
    %c0_i32_0 = arith.constant 0 : i32
    %c0_i32_1 = arith.constant 0 : i32
    return %c0_i32, %c0_i32_0 : i32, i32
  }
  func.func @transform_29(%arg0: i32) -> (i32, i32, i32) {
    %c0_i32 = arith.constant 0 : i32
    %c0_i32_0 = arith.constant 0 : i32
    %c0_i32_1 = arith.constant 0 : i32
    %c0_i32_2 = arith.constant 0 : i32
    return %c0_i32, %c0_i32_0, %c0_i32_1 : i32, i32, i32
  }
  func.func @transform_30(%arg0: i32) -> (i32, i32, i32) {
    %c0_i32 = arith.constant 0 : i32
    %c0_i32_0 = arith.constant 0 : i32
    %c0_i32_1 = arith.constant 0 : i32
    %c0_i32_2 = arith.constant 0 : i32
    return %c0_i32, %c0_i32_0, %c0_i32_1 : i32, i32, i32
  }
  func.func @transform_31(%arg0: i32) -> (i32, i32) {
    %c0_i32 = arith.constant 0 : i32
    %c0_i32_0 = arith.constant 0 : i32
    %c0_i32_1 = arith.constant 0 : i32
    return %c0_i32, %c0_i32_0 : i32, i32
  }
  func.func @transform_32(%arg0: i32) -> (i32, i32, i32) {
    %c0_i32 = arith.constant 0 : i32
    %c0_i32_0 = arith.constant 0 : i32
    %c0_i32_1 = arith.constant 0 : i32
    return %arg0, %c0_i32, %c0_i32_0 : i32, i32, i32
  }
  func.func @transform_33(%arg0: i32) -> (i32, i32, i32) {
    %c0_i32 = arith.constant 0 : i32
    %c0_i32_0 = arith.constant 0 : i32
    %c0_i32_1 = arith.constant 0 : i32
    return %arg0, %c0_i32, %c0_i32_0 : i32, i32, i32
  }
}

</mosaic_0001>

<llo_original>
// kernel: _lambda_.1
$region0: #{_lambda_.1}
  #allocation0 [shape = 'u32[]', space=smem, size = 0x4, offset = 0x4, fixed_abs, tag = 'smem constant byte address 0x4 - core index']
  #allocation1 [shape = 'u32[144,128]{1,0:T(1,128)}', space=vmem, size = 0x12000, scoped, tag = 'internal scratch']
  %s0 = inlined_call_operand.smem [shape: u32[34], index: -1, kind: input, shape index: {}]
  %s1 = sld [smem:[%s0]]
  %s2 = scalar_lea.smem %s0, 1
  %s3 = sld [smem:[%s2]]
  %s4 = scalar_lea.smem %s0, 2
  %s5 = sld [smem:[%s4]]
  %s6 = scalar_lea.smem %s0, 3
  %s7 = sld [smem:[%s6]]
  %s8 = scalar_lea.smem %s0, 4
  %s9 = sld [smem:[%s8]]
  %s10 = scalar_lea.smem %s0, 5
  %s11 = sld [smem:[%s10]]
  %s12 = scalar_lea.smem %s0, 6
  %s13 = sld [smem:[%s12]]
  %s14 = scalar_lea.smem %s0, 7
  %s15 = sld [smem:[%s14]]
  %s16 = scalar_lea.smem %s0, 8
  %s17 = sld [smem:[%s16]]
  %s18 = scalar_lea.smem %s0, 9
  %s19 = sld [smem:[%s18]]
  %s20 = scalar_lea.smem %s0, 10
  %s21 = sld [smem:[%s20]]
  %s22 = scalar_lea.smem %s0, 11
  %s23 = sld [smem:[%s22]]
  %s24 = scalar_lea.smem %s0, 12
  %s25 = sld [smem:[%s24]]
  %s26 = scalar_lea.smem %s0, 13
  %s27 = sld [smem:[%s26]]
  %s28 = scalar_lea.smem %s0, 14
  %s29 = sld [smem:[%s28]]
  %s30 = scalar_lea.smem %s0, 15
  %s31 = sld [smem:[%s30]]
  %s32 = scalar_lea.smem %s0, 16
  %s33 = sld [smem:[%s32]]
  %s34 = scalar_lea.smem %s0, 17
  %s35 = sld [smem:[%s34]]
  %s36 = scalar_lea.smem %s0, 18
  %s37 = sld [smem:[%s36]]
  %s38 = scalar_lea.smem %s0, 19
  %s39 = sld [smem:[%s38]]
  %s40 = scalar_lea.smem %s0, 20
  %s41 = sld [smem:[%s40]]
  %s42 = scalar_lea.smem %s0, 21
  %s43 = sld [smem:[%s42]]
  %s44 = scalar_lea.smem %s0, 22
  %s45 = sld [smem:[%s44]]
  %s46 = scalar_lea.smem %s0, 23
  %s47 = sld [smem:[%s46]]
  %s48 = scalar_lea.smem %s0, 24
  %s49 = sld [smem:[%s48]]
  %s50 = scalar_lea.smem %s0, 25
  %s51 = sld [smem:[%s50]]
  %s52 = scalar_lea.smem %s0, 26
  %s53 = sld [smem:[%s52]]
  %s54 = scalar_lea.smem %s0, 27
  %s55 = sld [smem:[%s54]]
  %s56 = scalar_lea.smem %s0, 28
  %s57 = sld [smem:[%s56]]
  %s58 = scalar_lea.smem %s0, 29
  %s59 = sld [smem:[%s58]]
  %s60 = scalar_lea.smem %s0, 30
  %s61 = sld [smem:[%s60]]
  %s62 = scalar_lea.smem %s0, 31
  %s63 = sld [smem:[%s62]]
  %s64 = scalar_lea.smem %s0, 32
  %s65 = sld [smem:[%s64]]
  %s66 = scalar_lea.smem %s0, 33
  %s67 = sld [smem:[%s66]]
  %68 = xla_tuple %s65, %s67
  %s69 = sld [smem:[#allocation0]]
  $region169: #{_lambda_.1} parent=0
    _
  %s71 = ssub.s32 1, %s69
  %s72 = scalar_select 0, %s71, %s69
  $region1: #{_lambda_.1} parent=0
    #allocation2 [shape = 'u8[4096]{0}', space=vmem, size = 0x1000, scoped, tag = 'output window, operand 0']
    #allocation3 [shape = 's32[2]{0}', space=sflag, size = 0x8, scoped, tag = 'scoped memory for _lambda_.1']
    %73 = vsyncpa [#allocation3], 0
    %s74 = scalar_lea.sflag [#allocation3], 1
    %75 = vsyncpa %s74, 0
    loop: start=0, step=1, limit=4
    $region2: #{_lambda_.1} parent=1 // loop_pre_header
      _
    $region3: #{_lambda_.1} parent=1 // loop_header
      %s77 = sphi 0, %s81
      %p78 = scmp.ge.s32.totalorder %s77, 4
      %s87 = sphi 0, %s89
      %s90 = sphi 0, %s87
      %s91 = sphi 0, %s90
      %s107 = sphi 0, %s91
      %s113 = sphi 0, %s115
      %s116 = sphi 0, %s113
      %s117 = sphi 0, %s116
      %s133 = sphi 0, %s117
      %s137 = sphi 0, %s137
      %s139 = sphi 0, %s137
      %s140 = sphi 0, %s139
      %s154 = sphi 0, %s140
      %s158 = sphi 0, %s158
      %s160 = sphi 0, %s158
      %s161 = sphi 0, %s160
      %s175 = sphi 0, %s161
      %s179 = sphi 0, %s179
      %s181 = sphi 0, %s179
      %s182 = sphi 0, %s181
      %s196 = sphi 0, %s182
      %s200 = sphi 0, %s200
      %s202 = sphi 0, %s200
      %s203 = sphi 0, %s202
      %s217 = sphi 0, %s203
      %s221 = sphi 0, %s221
      %s223 = sphi 0, %s221
      %s224 = sphi 0, %s223
      %s238 = sphi 0, %s224
      %s242 = sphi 0, %s242
      %s244 = sphi 0, %s242
      %s245 = sphi 0, %s244
      %s259 = sphi 0, %s245
      %s263 = sphi 0, %s263
      %s265 = sphi 0, %s263
      %s266 = sphi 0, %s265
      %s280 = sphi 0, %s266
      %s284 = sphi 0, %s284
      %s286 = sphi 0, %s284
      %s287 = sphi 0, %s286
      %s301 = sphi 0, %s287
      %s305 = sphi 0, %s305
      %s307 = sphi 0, %s305
      %s308 = sphi 0, %s307
      %s322 = sphi 0, %s308
      %s326 = sphi 0, %s326
      %s328 = sphi 0, %s326
      %s329 = sphi 0, %s328
      %s343 = sphi 0, %s329
      %s347 = sphi 0, %s347
      %s349 = sphi 0, %s347
      %s350 = sphi 0, %s349
      %s364 = sphi 0, %s350
      %s368 = sphi 0, %s368
      %s370 = sphi 0, %s368
      %s371 = sphi 0, %s370
      %s385 = sphi 0, %s371
      %s389 = sphi 0, %s389
      %s391 = sphi 0, %s389
      %s392 = sphi 0, %s391
      %s406 = sphi 0, %s392
      %s410 = sphi 0, %s410
      %s412 = sphi 0, %s410
      %s413 = sphi 0, %s412
      %s427 = sphi 0, %s413
      %s431 = sphi 0, %s431
      %s433 = sphi 0, %s431
      %s434 = sphi 0, %s433
      %s448 = sphi 0, %s434
      %s452 = sphi 0, %s452
      %s454 = sphi 0, %s452
      %s455 = sphi 0, %s454
      %s469 = sphi 0, %s455
      %s473 = sphi 0, %s473
      %s475 = sphi 0, %s473
      %s476 = sphi 0, %s475
      %s490 = sphi 0, %s476
      %s494 = sphi 0, %s494
      %s496 = sphi 0, %s494
      %s497 = sphi 0, %s496
      %s511 = sphi 0, %s497
      %s515 = sphi 0, %s515
      %s517 = sphi 0, %s515
      %s518 = sphi 0, %s517
      %s532 = sphi 0, %s518
      %s536 = sphi 0, %s536
      %s538 = sphi 0, %s536
      %s539 = sphi 0, %s538
      %s553 = sphi 0, %s539
      %s557 = sphi 0, %s557
      %s559 = sphi 0, %s557
      %s560 = sphi 0, %s559
      %s574 = sphi 0, %s560
      %s578 = sphi 0, %s578
      %s580 = sphi 0, %s578
      %s581 = sphi 0, %s580
      %s595 = sphi 0, %s581
      %s599 = sphi 0, %s599
      %s601 = sphi 0, %s599
      %s602 = sphi 0, %s601
      %s616 = sphi 0, %s602
      %s620 = sphi 0, %s620
      %s622 = sphi 0, %s620
      %s623 = sphi 0, %s622
      %s637 = sphi 0, %s623
      %s641 = sphi 0, %s641
      %s643 = sphi 0, %s641
      %s644 = sphi 0, %s643
      %s658 = sphi 0, %s644
      %s662 = sphi 0, %s662
      %s664 = sphi 0, %s662
      %s665 = sphi 0, %s664
      %s679 = sphi 0, %s665
      %s683 = sphi 0, %s683
      %s685 = sphi 0, %s683
      %s686 = sphi 0, %s685
      %s700 = sphi 0, %s686
      %s704 = sphi 0, %s704
      %s706 = sphi 0, %s704
      %s707 = sphi 0, %s706
      %s721 = sphi 0, %s707
      %s725 = sphi 0, %s725
      %s727 = sphi 0, %s725
      %s728 = sphi 0, %s727
      %s742 = sphi 0, %s728
      %s746 = sphi 0, %s746
      %s748 = sphi 0, %s746
      %s749 = sphi 0, %s748
      %s763 = sphi 0, %s749
      %s769 = sphi 0, %s771
      %s772 = sphi 0, %s769
      %s773 = sphi 0, %s772
      %s789 = sphi 0, %s773
      %s795 = sphi 0, %s797
      %s798 = sphi 0, %s795
      %s799 = sphi 0, %s798
      %s815 = sphi 0, %s799
    $region4: #{_lambda_.1} parent=1 // loop_header_branch
      %80 = sbr.rel (%p78) target = $region8
    $region5: #{_lambda_.1} parent=1 // loop_body
      %s82 = ssub.s32 %s77, 1
      %s83 = ssub.s32 %s77, 2
      %s84 = sadd.s32 %s77, 1
      %s85 = ssub.s32 %s77, %s84
      %p86 = scmp.eq.s32.totalorder %s85, 0
      %s88 = sadd.s32 %s87, 1
      %s89 = scalar_select %p86, %s87, %s88
      %p92 = pneg %p86
      %p93 = scmp.eq.s32.totalorder %s77, 1
      %p94 = por %p92, %p93
      %p95 = scmp.ne.s32.totalorder %s87, %s90
      %p96 = scmp.eq.s32.totalorder %s77, 0
      %p97 = por %p95, %p96
      %p98 = scmp.ne.s32.totalorder %s87, %s90
      %p99 = scmp.eq.s32.totalorder %s82, 1
      %p100 = por %p98, %p99
      %p101 = scmp.ne.s32.totalorder %s90, %s91
      %p102 = scmp.eq.s32.totalorder %s82, 0
      %p103 = por %p101, %p102
      %p104 = scmp.ne.s32.totalorder %s90, %s91
      %p105 = scmp.eq.s32.totalorder %s83, 1
      %p106 = por %p104, %p105
      %p108 = scmp.ne.s32.totalorder %s91, %s107
      %p109 = scmp.eq.s32.totalorder %s83, 0
      %p110 = por %p108, %p109
      %s111 = ssub.s32 %s77, %s84
      %p112 = scmp.eq.s32.totalorder %s111, 0
      %s114 = sadd.s32 %s113, 1
      %s115 = scalar_select %p112, %s113, %s114
      %p118 = pneg %p112
      %p119 = scmp.eq.s32.totalorder %s77, 1
      %p120 = por %p118, %p119
      %p121 = scmp.ne.s32.totalorder %s113, %s116
      %p122 = scmp.eq.s32.totalorder %s77, 0
      %p123 = por %p121, %p122
      %p124 = scmp.ne.s32.totalorder %s113, %s116
      %p125 = scmp.eq.s32.totalorder %s82, 1
      %p126 = por %p124, %p125
      %p127 = scmp.ne.s32.totalorder %s116, %s117
      %p128 = scmp.eq.s32.totalorder %s82, 0
      %p129 = por %p127, %p128
      %p130 = scmp.ne.s32.totalorder %s116, %s117
      %p131 = scmp.eq.s32.totalorder %s83, 1
      %p132 = por %p130, %p131
      %p134 = scmp.ne.s32.totalorder %s117, %s133
      %p135 = scmp.eq.s32.totalorder %s83, 0
      %p136 = por %p134, %p135
      %s138 = sadd.s32 %s137, 1
      %p141 = scmp.eq.s32.totalorder %s77, 1
      %p142 = scmp.ne.s32.totalorder %s137, %s139
      %p143 = scmp.eq.s32.totalorder %s77, 0
      %p144 = por %p142, %p143
      %p145 = scmp.ne.s32.totalorder %s137, %s139
      %p146 = scmp.eq.s32.totalorder %s82, 1
      %p147 = por %p145, %p146
      %p148 = scmp.ne.s32.totalorder %s139, %s140
      %p149 = scmp.eq.s32.totalorder %s82, 0
      %p150 = por %p148, %p149
      %p151 = scmp.ne.s32.totalorder %s139, %s140
      %p152 = scmp.eq.s32.totalorder %s83, 1
      %p153 = por %p151, %p152
      %p155 = scmp.ne.s32.totalorder %s140, %s154
      %p156 = scmp.eq.s32.totalorder %s83, 0
      %p157 = por %p155, %p156
      %s159 = sadd.s32 %s158, 1
      %p162 = scmp.eq.s32.totalorder %s77, 1
      %p163 = scmp.ne.s32.totalorder %s158, %s160
      %p164 = scmp.eq.s32.totalorder %s77, 0
      %p165 = por %p163, %p164
      %p166 = scmp.ne.s32.totalorder %s158, %s160
      %p167 = scmp.eq.s32.totalorder %s82, 1
      %p168 = por %p166, %p167
      %p169 = scmp.ne.s32.totalorder %s160, %s161
      %p170 = scmp.eq.s32.totalorder %s82, 0
      %p171 = por %p169, %p170
      %p172 = scmp.ne.s32.totalorder %s160, %s161
      %p173 = scmp.eq.s32.totalorder %s83, 1
      %p174 = por %p172, %p173
      %p176 = scmp.ne.s32.totalorder %s161, %s175
      %p177 = scmp.eq.s32.totalorder %s83, 0
      %p178 = por %p176, %p177
      %s180 = sadd.s32 %s179, 1
      %p183 = scmp.eq.s32.totalorder %s77, 1
      %p184 = scmp.ne.s32.totalorder %s179, %s181
      %p185 = scmp.eq.s32.totalorder %s77, 0
      %p186 = por %p184, %p185
      %p187 = scmp.ne.s32.totalorder %s179, %s181
      %p188 = scmp.eq.s32.totalorder %s82, 1
      %p189 = por %p187, %p188
      %p190 = scmp.ne.s32.totalorder %s181, %s182
      %p191 = scmp.eq.s32.totalorder %s82, 0
      %p192 = por %p190, %p191
      %p193 = scmp.ne.s32.totalorder %s181, %s182
      %p194 = scmp.eq.s32.totalorder %s83, 1
      %p195 = por %p193, %p194
      %p197 = scmp.ne.s32.totalorder %s182, %s196
      %p198 = scmp.eq.s32.totalorder %s83, 0
      %p199 = por %p197, %p198
      %s201 = sadd.s32 %s200, 1
      %p204 = scmp.eq.s32.totalorder %s77, 1
      %p205 = scmp.ne.s32.totalorder %s200, %s202
      %p206 = scmp.eq.s32.totalorder %s77, 0
      %p207 = por %p205, %p206
      %p208 = scmp.ne.s32.totalorder %s200, %s202
      %p209 = scmp.eq.s32.totalorder %s82, 1
      %p210 = por %p208, %p209
      %p211 = scmp.ne.s32.totalorder %s202, %s203
      %p212 = scmp.eq.s32.totalorder %s82, 0
      %p213 = por %p211, %p212
      %p214 = scmp.ne.s32.totalorder %s202, %s203
      %p215 = scmp.eq.s32.totalorder %s83, 1
      %p216 = por %p214, %p215
      %p218 = scmp.ne.s32.totalorder %s203, %s217
      %p219 = scmp.eq.s32.totalorder %s83, 0
      %p220 = por %p218, %p219
      %s222 = sadd.s32 %s221, 1
      %p225 = scmp.eq.s32.totalorder %s77, 1
      %p226 = scmp.ne.s32.totalorder %s221, %s223
      %p227 = scmp.eq.s32.totalorder %s77, 0
      %p228 = por %p226, %p227
      %p229 = scmp.ne.s32.totalorder %s221, %s223
      %p230 = scmp.eq.s32.totalorder %s82, 1
      %p231 = por %p229, %p230
      %p232 = scmp.ne.s32.totalorder %s223, %s224
      %p233 = scmp.eq.s32.totalorder %s82, 0
      %p234 = por %p232, %p233
      %p235 = scmp.ne.s32.totalorder %s223, %s224
      %p236 = scmp.eq.s32.totalorder %s83, 1
      %p237 = por %p235, %p236
      %p239 = scmp.ne.s32.totalorder %s224, %s238
      %p240 = scmp.eq.s32.totalorder %s83, 0
      %p241 = por %p239, %p240
      %s243 = sadd.s32 %s242, 1
      %p246 = scmp.eq.s32.totalorder %s77, 1
      %p247 = scmp.ne.s32.totalorder %s242, %s244
      %p248 = scmp.eq.s32.totalorder %s77, 0
      %p249 = por %p247, %p248
      %p250 = scmp.ne.s32.totalorder %s242, %s244
      %p251 = scmp.eq.s32.totalorder %s82, 1
      %p252 = por %p250, %p251
      %p253 = scmp.ne.s32.totalorder %s244, %s245
      %p254 = scmp.eq.s32.totalorder %s82, 0
      %p255 = por %p253, %p254
      %p256 = scmp.ne.s32.totalorder %s244, %s245
      %p257 = scmp.eq.s32.totalorder %s83, 1
      %p258 = por %p256, %p257
      %p260 = scmp.ne.s32.totalorder %s245, %s259
      %p261 = scmp.eq.s32.totalorder %s83, 0
      %p262 = por %p260, %p261
      %s264 = sadd.s32 %s263, 1
      %p267 = scmp.eq.s32.totalorder %s77, 1
      %p268 = scmp.ne.s32.totalorder %s263, %s265
      %p269 = scmp.eq.s32.totalorder %s77, 0
      %p270 = por %p268, %p269
      %p271 = scmp.ne.s32.totalorder %s263, %s265
      %p272 = scmp.eq.s32.totalorder %s82, 1
      %p273 = por %p271, %p272
      %p274 = scmp.ne.s32.totalorder %s265, %s266
      %p275 = scmp.eq.s32.totalorder %s82, 0
      %p276 = por %p274, %p275
      %p277 = scmp.ne.s32.totalorder %s265, %s266
      %p278 = scmp.eq.s32.totalorder %s83, 1
      %p279 = por %p277, %p278
      %p281 = scmp.ne.s32.totalorder %s266, %s280
      %p282 = scmp.eq.s32.totalorder %s83, 0
      %p283 = por %p281, %p282
      %s285 = sadd.s32 %s284, 1
      %p288 = scmp.eq.s32.totalorder %s77, 1
      %p289 = scmp.ne.s32.totalorder %s284, %s286
      %p290 = scmp.eq.s32.totalorder %s77, 0
      %p291 = por %p289, %p290
      %p292 = scmp.ne.s32.totalorder %s284, %s286
      %p293 = scmp.eq.s32.totalorder %s82, 1
      %p294 = por %p292, %p293
      %p295 = scmp.ne.s32.totalorder %s286, %s287
      %p296 = scmp.eq.s32.totalorder %s82, 0
      %p297 = por %p295, %p296
      %p298 = scmp.ne.s32.totalorder %s286, %s287
      %p299 = scmp.eq.s32.totalorder %s83, 1
      %p300 = por %p298, %p299
      %p302 = scmp.ne.s32.totalorder %s287, %s301
      %p303 = scmp.eq.s32.totalorder %s83, 0
      %p304 = por %p302, %p303
      %s306 = sadd.s32 %s305, 1
      %p309 = scmp.eq.s32.totalorder %s77, 1
      %p310 = scmp.ne.s32.totalorder %s305, %s307
      %p311 = scmp.eq.s32.totalorder %s77, 0
      %p312 = por %p310, %p311
      %p313 = scmp.ne.s32.totalorder %s305, %s307
      %p314 = scmp.eq.s32.totalorder %s82, 1
      %p315 = por %p313, %p314
      %p316 = scmp.ne.s32.totalorder %s307, %s308
      %p317 = scmp.eq.s32.totalorder %s82, 0
      %p318 = por %p316, %p317
      %p319 = scmp.ne.s32.totalorder %s307, %s308
      %p320 = scmp.eq.s32.totalorder %s83, 1
      %p321 = por %p319, %p320
      %p323 = scmp.ne.s32.totalorder %s308, %s322
      %p324 = scmp.eq.s32.totalorder %s83, 0
      %p325 = por %p323, %p324
      %s327 = sadd.s32 %s326, 1
      %p330 = scmp.eq.s32.totalorder %s77, 1
      %p331 = scmp.ne.s32.totalorder %s326, %s328
      %p332 = scmp.eq.s32.totalorder %s77, 0
      %p333 = por %p331, %p332
      %p334 = scmp.ne.s32.totalorder %s326, %s328
      %p335 = scmp.eq.s32.totalorder %s82, 1
      %p336 = por %p334, %p335
      %p337 = scmp.ne.s32.totalorder %s328, %s329
      %p338 = scmp.eq.s32.totalorder %s82, 0
      %p339 = por %p337, %p338
      %p340 = scmp.ne.s32.totalorder %s328, %s329
      %p341 = scmp.eq.s32.totalorder %s83, 1
      %p342 = por %p340, %p341
      %p344 = scmp.ne.s32.totalorder %s329, %s343
      %p345 = scmp.eq.s32.totalorder %s83, 0
      %p346 = por %p344, %p345
      %s348 = sadd.s32 %s347, 1
      %p351 = scmp.eq.s32.totalorder %s77, 1
      %p352 = scmp.ne.s32.totalorder %s347, %s349
      %p353 = scmp.eq.s32.totalorder %s77, 0
      %p354 = por %p352, %p353
      %p355 = scmp.ne.s32.totalorder %s347, %s349
      %p356 = scmp.eq.s32.totalorder %s82, 1
      %p357 = por %p355, %p356
      %p358 = scmp.ne.s32.totalorder %s349, %s350
      %p359 = scmp.eq.s32.totalorder %s82, 0
      %p360 = por %p358, %p359
      %p361 = scmp.ne.s32.totalorder %s349, %s350
      %p362 = scmp.eq.s32.totalorder %s83, 1
      %p363 = por %p361, %p362
      %p365 = scmp.ne.s32.totalorder %s350, %s364
      %p366 = scmp.eq.s32.totalorder %s83, 0
      %p367 = por %p365, %p366
      %s369 = sadd.s32 %s368, 1
      %p372 = scmp.eq.s32.totalorder %s77, 1
      %p373 = scmp.ne.s32.totalorder %s368, %s370
      %p374 = scmp.eq.s32.totalorder %s77, 0
      %p375 = por %p373, %p374
      %p376 = scmp.ne.s32.totalorder %s368, %s370
      %p377 = scmp.eq.s32.totalorder %s82, 1
      %p378 = por %p376, %p377
      %p379 = scmp.ne.s32.totalorder %s370, %s371
      %p380 = scmp.eq.s32.totalorder %s82, 0
      %p381 = por %p379, %p380
      %p382 = scmp.ne.s32.totalorder %s370, %s371
      %p383 = scmp.eq.s32.totalorder %s83, 1
      %p384 = por %p382, %p383
      %p386 = scmp.ne.s32.totalorder %s371, %s385
      %p387 = scmp.eq.s32.totalorder %s83, 0
      %p388 = por %p386, %p387
      %s390 = sadd.s32 %s389, 1
      %p393 = scmp.eq.s32.totalorder %s77, 1
      %p394 = scmp.ne.s32.totalorder %s389, %s391
      %p395 = scmp.eq.s32.totalorder %s77, 0
      %p396 = por %p394, %p395
      %p397 = scmp.ne.s32.totalorder %s389, %s391
      %p398 = scmp.eq.s32.totalorder %s82, 1
      %p399 = por %p397, %p398
      %p400 = scmp.ne.s32.totalorder %s391, %s392
      %p401 = scmp.eq.s32.totalorder %s82, 0
      %p402 = por %p400, %p401
      %p403 = scmp.ne.s32.totalorder %s391, %s392
      %p404 = scmp.eq.s32.totalorder %s83, 1
      %p405 = por %p403, %p404
      %p407 = scmp.ne.s32.totalorder %s392, %s406
      %p408 = scmp.eq.s32.totalorder %s83, 0
      %p409 = por %p407, %p408
      %s411 = sadd.s32 %s410, 1
      %p414 = scmp.eq.s32.totalorder %s77, 1
      %p415 = scmp.ne.s32.totalorder %s410, %s412
      %p416 = scmp.eq.s32.totalorder %s77, 0
      %p417 = por %p415, %p416
      %p418 = scmp.ne.s32.totalorder %s410, %s412
      %p419 = scmp.eq.s32.totalorder %s82, 1
      %p420 = por %p418, %p419
      %p421 = scmp.ne.s32.totalorder %s412, %s413
      %p422 = scmp.eq.s32.totalorder %s82, 0
      %p423 = por %p421, %p422
      %p424 = scmp.ne.s32.totalorder %s412, %s413
      %p425 = scmp.eq.s32.totalorder %s83, 1
      %p426 = por %p424, %p425
      %p428 = scmp.ne.s32.totalorder %s413, %s427
      %p429 = scmp.eq.s32.totalorder %s83, 0
      %p430 = por %p428, %p429
      %s432 = sadd.s32 %s431, 1
      %p435 = scmp.eq.s32.totalorder %s77, 1
      %p436 = scmp.ne.s32.totalorder %s431, %s433
      %p437 = scmp.eq.s32.totalorder %s77, 0
      %p438 = por %p436, %p437
      %p439 = scmp.ne.s32.totalorder %s431, %s433
      %p440 = scmp.eq.s32.totalorder %s82, 1
      %p441 = por %p439, %p440
      %p442 = scmp.ne.s32.totalorder %s433, %s434
      %p443 = scmp.eq.s32.totalorder %s82, 0
      %p444 = por %p442, %p443
      %p445 = scmp.ne.s32.totalorder %s433, %s434
      %p446 = scmp.eq.s32.totalorder %s83, 1
      %p447 = por %p445, %p446
      %p449 = scmp.ne.s32.totalorder %s434, %s448
      %p450 = scmp.eq.s32.totalorder %s83, 0
      %p451 = por %p449, %p450
      %s453 = sadd.s32 %s452, 1
      %p456 = scmp.eq.s32.totalorder %s77, 1
      %p457 = scmp.ne.s32.totalorder %s452, %s454
      %p458 = scmp.eq.s32.totalorder %s77, 0
      %p459 = por %p457, %p458
      %p460 = scmp.ne.s32.totalorder %s452, %s454
      %p461 = scmp.eq.s32.totalorder %s82, 1
      %p462 = por %p460, %p461
      %p463 = scmp.ne.s32.totalorder %s454, %s455
      %p464 = scmp.eq.s32.totalorder %s82, 0
      %p465 = por %p463, %p464
      %p466 = scmp.ne.s32.totalorder %s454, %s455
      %p467 = scmp.eq.s32.totalorder %s83, 1
      %p468 = por %p466, %p467
      %p470 = scmp.ne.s32.totalorder %s455, %s469
      %p471 = scmp.eq.s32.totalorder %s83, 0
      %p472 = por %p470, %p471
      %s474 = sadd.s32 %s473, 1
      %p477 = scmp.eq.s32.totalorder %s77, 1
      %p478 = scmp.ne.s32.totalorder %s473, %s475
      %p479 = scmp.eq.s32.totalorder %s77, 0
      %p480 = por %p478, %p479
      %p481 = scmp.ne.s32.totalorder %s473, %s475
      %p482 = scmp.eq.s32.totalorder %s82, 1
      %p483 = por %p481, %p482
      %p484 = scmp.ne.s32.totalorder %s475, %s476
      %p485 = scmp.eq.s32.totalorder %s82, 0
      %p486 = por %p484, %p485
      %p487 = scmp.ne.s32.totalorder %s475, %s476
      %p488 = scmp.eq.s32.totalorder %s83, 1
      %p489 = por %p487, %p488
      %p491 = scmp.ne.s32.totalorder %s476, %s490
      %p492 = scmp.eq.s32.totalorder %s83, 0
      %p493 = por %p491, %p492
      %s495 = sadd.s32 %s494, 1
      %p498 = scmp.eq.s32.totalorder %s77, 1
      %p499 = scmp.ne.s32.totalorder %s494, %s496
      %p500 = scmp.eq.s32.totalorder %s77, 0
      %p501 = por %p499, %p500
      %p502 = scmp.ne.s32.totalorder %s494, %s496
      %p503 = scmp.eq.s32.totalorder %s82, 1
      %p504 = por %p502, %p503
      %p505 = scmp.ne.s32.totalorder %s496, %s497
      %p506 = scmp.eq.s32.totalorder %s82, 0
      %p507 = por %p505, %p506
      %p508 = scmp.ne.s32.totalorder %s496, %s497
      %p509 = scmp.eq.s32.totalorder %s83, 1
      %p510 = por %p508, %p509
      %p512 = scmp.ne.s32.totalorder %s497, %s511
      %p513 = scmp.eq.s32.totalorder %s83, 0
      %p514 = por %p512, %p513
      %s516 = sadd.s32 %s515, 1
      %p519 = scmp.eq.s32.totalorder %s77, 1
      %p520 = scmp.ne.s32.totalorder %s515, %s517
      %p521 = scmp.eq.s32.totalorder %s77, 0
      %p522 = por %p520, %p521
      %p523 = scmp.ne.s32.totalorder %s515, %s517
      %p524 = scmp.eq.s32.totalorder %s82, 1
      %p525 = por %p523, %p524
      %p526 = scmp.ne.s32.totalorder %s517, %s518
      %p527 = scmp.eq.s32.totalorder %s82, 0
      %p528 = por %p526, %p527
      %p529 = scmp.ne.s32.totalorder %s517, %s518
      %p530 = scmp.eq.s32.totalorder %s83, 1
      %p531 = por %p529, %p530
      %p533 = scmp.ne.s32.totalorder %s518, %s532
      %p534 = scmp.eq.s32.totalorder %s83, 0
      %p535 = por %p533, %p534
      %s537 = sadd.s32 %s536, 1
      %p540 = scmp.eq.s32.totalorder %s77, 1
      %p541 = scmp.ne.s32.totalorder %s536, %s538
      %p542 = scmp.eq.s32.totalorder %s77, 0
      %p543 = por %p541, %p542
      %p544 = scmp.ne.s32.totalorder %s536, %s538
      %p545 = scmp.eq.s32.totalorder %s82, 1
      %p546 = por %p544, %p545
      %p547 = scmp.ne.s32.totalorder %s538, %s539
      %p548 = scmp.eq.s32.totalorder %s82, 0
      %p549 = por %p547, %p548
      %p550 = scmp.ne.s32.totalorder %s538, %s539
      %p551 = scmp.eq.s32.totalorder %s83, 1
      %p552 = por %p550, %p551
      %p554 = scmp.ne.s32.totalorder %s539, %s553
      %p555 = scmp.eq.s32.totalorder %s83, 0
      %p556 = por %p554, %p555
      %s558 = sadd.s32 %s557, 1
      %p561 = scmp.eq.s32.totalorder %s77, 1
      %p562 = scmp.ne.s32.totalorder %s557, %s559
      %p563 = scmp.eq.s32.totalorder %s77, 0
      %p564 = por %p562, %p563
      %p565 = scmp.ne.s32.totalorder %s557, %s559
      %p566 = scmp.eq.s32.totalorder %s82, 1
      %p567 = por %p565, %p566
      %p568 = scmp.ne.s32.totalorder %s559, %s560
      %p569 = scmp.eq.s32.totalorder %s82, 0
      %p570 = por %p568, %p569
      %p571 = scmp.ne.s32.totalorder %s559, %s560
      %p572 = scmp.eq.s32.totalorder %s83, 1
      %p573 = por %p571, %p572
      %p575 = scmp.ne.s32.totalorder %s560, %s574
      %p576 = scmp.eq.s32.totalorder %s83, 0
      %p577 = por %p575, %p576
      %s579 = sadd.s32 %s578, 1
      %p582 = scmp.eq.s32.totalorder %s77, 1
      %p583 = scmp.ne.s32.totalorder %s578, %s580
      %p584 = scmp.eq.s32.totalorder %s77, 0
      %p585 = por %p583, %p584
      %p586 = scmp.ne.s32.totalorder %s578, %s580
      %p587 = scmp.eq.s32.totalorder %s82, 1
      %p588 = por %p586, %p587
      %p589 = scmp.ne.s32.totalorder %s580, %s581
      %p590 = scmp.eq.s32.totalorder %s82, 0
      %p591 = por %p589, %p590
      %p592 = scmp.ne.s32.totalorder %s580, %s581
      %p593 = scmp.eq.s32.totalorder %s83, 1
      %p594 = por %p592, %p593
      %p596 = scmp.ne.s32.totalorder %s581, %s595
      %p597 = scmp.eq.s32.totalorder %s83, 0
      %p598 = por %p596, %p597
      %s600 = sadd.s32 %s599, 1
      %p603 = scmp.eq.s32.totalorder %s77, 1
      %p604 = scmp.ne.s32.totalorder %s599, %s601
      %p605 = scmp.eq.s32.totalorder %s77, 0
      %p606 = por %p604, %p605
      %p607 = scmp.ne.s32.totalorder %s599, %s601
      %p608 = scmp.eq.s32.totalorder %s82, 1
      %p609 = por %p607, %p608
      %p610 = scmp.ne.s32.totalorder %s601, %s602
      %p611 = scmp.eq.s32.totalorder %s82, 0
      %p612 = por %p610, %p611
      %p613 = scmp.ne.s32.totalorder %s601, %s602
      %p614 = scmp.eq.s32.totalorder %s83, 1
      %p615 = por %p613, %p614
      %p617 = scmp.ne.s32.totalorder %s602, %s616
      %p618 = scmp.eq.s32.totalorder %s83, 0
      %p619 = por %p617, %p618
      %s621 = sadd.s32 %s620, 1
      %p624 = scmp.eq.s32.totalorder %s77, 1
      %p625 = scmp.ne.s32.totalorder %s620, %s622
      %p626 = scmp.eq.s32.totalorder %s77, 0
      %p627 = por %p625, %p626
      %p628 = scmp.ne.s32.totalorder %s620, %s622
      %p629 = scmp.eq.s32.totalorder %s82, 1
      %p630 = por %p628, %p629
      %p631 = scmp.ne.s32.totalorder %s622, %s623
      %p632 = scmp.eq.s32.totalorder %s82, 0
      %p633 = por %p631, %p632
      %p634 = scmp.ne.s32.totalorder %s622, %s623
      %p635 = scmp.eq.s32.totalorder %s83, 1
      %p636 = por %p634, %p635
      %p638 = scmp.ne.s32.totalorder %s623, %s637
      %p639 = scmp.eq.s32.totalorder %s83, 0
      %p640 = por %p638, %p639
      %s642 = sadd.s32 %s641, 1
      %p645 = scmp.eq.s32.totalorder %s77, 1
      %p646 = scmp.ne.s32.totalorder %s641, %s643
      %p647 = scmp.eq.s32.totalorder %s77, 0
      %p648 = por %p646, %p647
      %p649 = scmp.ne.s32.totalorder %s641, %s643
      %p650 = scmp.eq.s32.totalorder %s82, 1
      %p651 = por %p649, %p650
      %p652 = scmp.ne.s32.totalorder %s643, %s644
      %p653 = scmp.eq.s32.totalorder %s82, 0
      %p654 = por %p652, %p653
      %p655 = scmp.ne.s32.totalorder %s643, %s644
      %p656 = scmp.eq.s32.totalorder %s83, 1
      %p657 = por %p655, %p656
      %p659 = scmp.ne.s32.totalorder %s644, %s658
      %p660 = scmp.eq.s32.totalorder %s83, 0
      %p661 = por %p659, %p660
      %s663 = sadd.s32 %s662, 1
      %p666 = scmp.eq.s32.totalorder %s77, 1
      %p667 = scmp.ne.s32.totalorder %s662, %s664
      %p668 = scmp.eq.s32.totalorder %s77, 0
      %p669 = por %p667, %p668
      %p670 = scmp.ne.s32.totalorder %s662, %s664
      %p671 = scmp.eq.s32.totalorder %s82, 1
      %p672 = por %p670, %p671
      %p673 = scmp.ne.s32.totalorder %s664, %s665
      %p674 = scmp.eq.s32.totalorder %s82, 0
      %p675 = por %p673, %p674
      %p676 = scmp.ne.s32.totalorder %s664, %s665
      %p677 = scmp.eq.s32.totalorder %s83, 1
      %p678 = por %p676, %p677
      %p680 = scmp.ne.s32.totalorder %s665, %s679
      %p681 = scmp.eq.s32.totalorder %s83, 0
      %p682 = por %p680, %p681
      %s684 = sadd.s32 %s683, 1
      %p687 = scmp.eq.s32.totalorder %s77, 1
      %p688 = scmp.ne.s32.totalorder %s683, %s685
      %p689 = scmp.eq.s32.totalorder %s77, 0
      %p690 = por %p688, %p689
      %p691 = scmp.ne.s32.totalorder %s683, %s685
      %p692 = scmp.eq.s32.totalorder %s82, 1
      %p693 = por %p691, %p692
      %p694 = scmp.ne.s32.totalorder %s685, %s686
      %p695 = scmp.eq.s32.totalorder %s82, 0
      %p696 = por %p694, %p695
      %p697 = scmp.ne.s32.totalorder %s685, %s686
      %p698 = scmp.eq.s32.totalorder %s83, 1
      %p699 = por %p697, %p698
      %p701 = scmp.ne.s32.totalorder %s686, %s700
      %p702 = scmp.eq.s32.totalorder %s83, 0
      %p703 = por %p701, %p702
      %s705 = sadd.s32 %s704, 1
      %p708 = scmp.eq.s32.totalorder %s77, 1
      %p709 = scmp.ne.s32.totalorder %s704, %s706
      %p710 = scmp.eq.s32.totalorder %s77, 0
      %p711 = por %p709, %p710
      %p712 = scmp.ne.s32.totalorder %s704, %s706
      %p713 = scmp.eq.s32.totalorder %s82, 1
      %p714 = por %p712, %p713
      %p715 = scmp.ne.s32.totalorder %s706, %s707
      %p716 = scmp.eq.s32.totalorder %s82, 0
      %p717 = por %p715, %p716
      %p718 = scmp.ne.s32.totalorder %s706, %s707
      %p719 = scmp.eq.s32.totalorder %s83, 1
      %p720 = por %p718, %p719
      %p722 = scmp.ne.s32.totalorder %s707, %s721
      %p723 = scmp.eq.s32.totalorder %s83, 0
      %p724 = por %p722, %p723
      %s726 = sadd.s32 %s725, 1
      %p729 = scmp.eq.s32.totalorder %s77, 1
      %p730 = scmp.ne.s32.totalorder %s725, %s727
      %p731 = scmp.eq.s32.totalorder %s77, 0
      %p732 = por %p730, %p731
      %p733 = scmp.ne.s32.totalorder %s725, %s727
      %p734 = scmp.eq.s32.totalorder %s82, 1
      %p735 = por %p733, %p734
      %p736 = scmp.ne.s32.totalorder %s727, %s728
      %p737 = scmp.eq.s32.totalorder %s82, 0
      %p738 = por %p736, %p737
      %p739 = scmp.ne.s32.totalorder %s727, %s728
      %p740 = scmp.eq.s32.totalorder %s83, 1
      %p741 = por %p739, %p740
      %p743 = scmp.ne.s32.totalorder %s728, %s742
      %p744 = scmp.eq.s32.totalorder %s83, 0
      %p745 = por %p743, %p744
      %s747 = sadd.s32 %s746, 1
      %p750 = scmp.eq.s32.totalorder %s77, 1
      %p751 = scmp.ne.s32.totalorder %s746, %s748
      %p752 = scmp.eq.s32.totalorder %s77, 0
      %p753 = por %p751, %p752
      %p754 = scmp.ne.s32.totalorder %s746, %s748
      %p755 = scmp.eq.s32.totalorder %s82, 1
      %p756 = por %p754, %p755
      %p757 = scmp.ne.s32.totalorder %s748, %s749
      %p758 = scmp.eq.s32.totalorder %s82, 0
      %p759 = por %p757, %p758
      %p760 = scmp.ne.s32.totalorder %s748, %s749
      %p761 = scmp.eq.s32.totalorder %s83, 1
      %p762 = por %p760, %p761
      %p764 = scmp.ne.s32.totalorder %s749, %s763
      %p765 = scmp.eq.s32.totalorder %s83, 0
      %p766 = por %p764, %p765
      %s767 = ssub.s32 %s77, %s84
      %p768 = scmp.eq.s32.totalorder %s767, 0
      %s770 = sadd.s32 %s769, 1
      %s771 = scalar_select %p768, %s769, %s770
      %p774 = pneg %p768
      %p775 = scmp.eq.s32.totalorder %s77, 1
      %p776 = por %p774, %p775
      %p777 = scmp.ne.s32.totalorder %s769, %s772
      %p778 = scmp.eq.s32.totalorder %s77, 0
      %p779 = por %p777, %p778
      %p780 = scmp.ne.s32.totalorder %s769, %s772
      %p781 = scmp.eq.s32.totalorder %s82, 1
      %p782 = por %p780, %p781
      %p783 = scmp.ne.s32.totalorder %s772, %s773
      %p784 = scmp.eq.s32.totalorder %s82, 0
      %p785 = por %p783, %p784
      %p786 = scmp.ne.s32.totalorder %s772, %s773
      %p787 = scmp.eq.s32.totalorder %s83, 1
      %p788 = por %p786, %p787
      %p790 = scmp.ne.s32.totalorder %s773, %s789
      %p791 = scmp.eq.s32.totalorder %s83, 0
      %p792 = por %p790, %p791
      %s793 = ssub.s32 %s77, %s84
      %p794 = scmp.eq.s32.totalorder %s793, 0
      %s796 = sadd.s32 %s795, 1
      %s797 = scalar_select %p794, %s795, %s796
      %p800 = pneg %p794
      %p801 = scmp.eq.s32.totalorder %s77, 1
      %p802 = por %p800, %p801
      %p803 = scmp.ne.s32.totalorder %s795, %s798
      %p804 = scmp.eq.s32.totalorder %s77, 0
      %p805 = por %p803, %p804
      %p806 = scmp.ne.s32.totalorder %s795, %s798
      %p807 = scmp.eq.s32.totalorder %s82, 1
      %p808 = por %p806, %p807
      %p809 = scmp.ne.s32.totalorder %s798, %s799
      %p810 = scmp.eq.s32.totalorder %s82, 0
      %p811 = por %p809, %p810
      %p812 = scmp.ne.s32.totalorder %s798, %s799
      %p813 = scmp.eq.s32.totalorder %s83, 1
      %p814 = por %p812, %p813
      %p816 = scmp.ne.s32.totalorder %s799, %s815
      %p817 = scmp.eq.s32.totalorder %s83, 0
      %p818 = por %p816, %p817
      %p819 = scmp.le.s32.totalorder 1, %s77
      %p820 = scmp.lt.s32.totalorder %s77, 3
      %p821 = pnand %p819, %p820
      %p822 = pneg %p821
      // Predicated region
      $region9: #{_lambda_.1} parent=5 // pred_check
        _
      $region10: #{_lambda_.1} parent=5 // pred_check_branch
        %824 = sbr.rel (%p821) target = $region12
      $region11: #{_lambda_.1} parent=5 // pred_region
        %s825 = ssub.s32 %s77, 1
        // Predicated region
        $region13: #{_lambda_.1} parent=11 // pred_check
          %p826 = pneg %p150
        $region14: #{_lambda_.1} parent=11 // pred_check_branch
          %828 = sbr.rel (%p826) target = $region16
        $region15: #{_lambda_.1} parent=11 // pred_region
          _
        $region16: #{_lambda_.1} parent=11 // pred_fallthru
          _
        // Predicated region
        $region17: #{_lambda_.1} parent=11 // pred_check
          %p829 = pneg %p171
        $region18: #{_lambda_.1} parent=11 // pred_check_branch
          %831 = sbr.rel (%p829) target = $region20
        $region19: #{_lambda_.1} parent=11 // pred_region
          _
        $region20: #{_lambda_.1} parent=11 // pred_fallthru
          _
        // Predicated region
        $region21: #{_lambda_.1} parent=11 // pred_check
          %p832 = pneg %p192
        $region22: #{_lambda_.1} parent=11 // pred_check_branch
          %834 = sbr.rel (%p832) target = $region24
        $region23: #{_lambda_.1} parent=11 // pred_region
          _
        $region24: #{_lambda_.1} parent=11 // pred_fallthru
          _
        // Predicated region
        $region25: #{_lambda_.1} parent=11 // pred_check
          %p835 = pneg %p213
        $region26: #{_lambda_.1} parent=11 // pred_check_branch
          %837 = sbr.rel (%p835) target = $region28
        $region27: #{_lambda_.1} parent=11 // pred_region
          _
        $region28: #{_lambda_.1} parent=11 // pred_fallthru
          _
        // Predicated region
        $region29: #{_lambda_.1} parent=11 // pred_check
          %p838 = pneg %p234
        $region30: #{_lambda_.1} parent=11 // pred_check_branch
          %840 = sbr.rel (%p838) target = $region32
        $region31: #{_lambda_.1} parent=11 // pred_region
          _
        $region32: #{_lambda_.1} parent=11 // pred_fallthru
          _
        // Predicated region
        $region33: #{_lambda_.1} parent=11 // pred_check
          %p841 = pneg %p255
        $region34: #{_lambda_.1} parent=11 // pred_check_branch
          %843 = sbr.rel (%p841) target = $region36
        $region35: #{_lambda_.1} parent=11 // pred_region
          _
        $region36: #{_lambda_.1} parent=11 // pred_fallthru
          _
        // Predicated region
        $region37: #{_lambda_.1} parent=11 // pred_check
          %p844 = pneg %p276
        $region38: #{_lambda_.1} parent=11 // pred_check_branch
          %846 = sbr.rel (%p844) target = $region40
        $region39: #{_lambda_.1} parent=11 // pred_region
          _
        $region40: #{_lambda_.1} parent=11 // pred_fallthru
          _
        // Predicated region
        $region41: #{_lambda_.1} parent=11 // pred_check
          %p847 = pneg %p297
        $region42: #{_lambda_.1} parent=11 // pred_check_branch
          %849 = sbr.rel (%p847) target = $region44
        $region43: #{_lambda_.1} parent=11 // pred_region
          _
        $region44: #{_lambda_.1} parent=11 // pred_fallthru
          _
        // Predicated region
        $region45: #{_lambda_.1} parent=11 // pred_check
          %p850 = pneg %p318
        $region46: #{_lambda_.1} parent=11 // pred_check_branch
          %852 = sbr.rel (%p850) target = $region48
        $region47: #{_lambda_.1} parent=11 // pred_region
          _
        $region48: #{_lambda_.1} parent=11 // pred_fallthru
          _
        // Predicated region
        $region49: #{_lambda_.1} parent=11 // pred_check
          %p853 = pneg %p339
        $region50: #{_lambda_.1} parent=11 // pred_check_branch
          %855 = sbr.rel (%p853) target = $region52
        $region51: #{_lambda_.1} parent=11 // pred_region
          _
        $region52: #{_lambda_.1} parent=11 // pred_fallthru
          _
        // Predicated region
        $region53: #{_lambda_.1} parent=11 // pred_check
          %p856 = pneg %p360
        $region54: #{_lambda_.1} parent=11 // pred_check_branch
          %858 = sbr.rel (%p856) target = $region56
        $region55: #{_lambda_.1} parent=11 // pred_region
          _
        $region56: #{_lambda_.1} parent=11 // pred_fallthru
          _
        // Predicated region
        $region57: #{_lambda_.1} parent=11 // pred_check
          %p859 = pneg %p381
        $region58: #{_lambda_.1} parent=11 // pred_check_branch
          %861 = sbr.rel (%p859) target = $region60
        $region59: #{_lambda_.1} parent=11 // pred_region
          _
        $region60: #{_lambda_.1} parent=11 // pred_fallthru
          _
        // Predicated region
        $region61: #{_lambda_.1} parent=11 // pred_check
          %p862 = pneg %p402
        $region62: #{_lambda_.1} parent=11 // pred_check_branch
          %864 = sbr.rel (%p862) target = $region64
        $region63: #{_lambda_.1} parent=11 // pred_region
          _
        $region64: #{_lambda_.1} parent=11 // pred_fallthru
          _
        // Predicated region
        $region65: #{_lambda_.1} parent=11 // pred_check
          %p865 = pneg %p423
        $region66: #{_lambda_.1} parent=11 // pred_check_branch
          %867 = sbr.rel (%p865) target = $region68
        $region67: #{_lambda_.1} parent=11 // pred_region
          _
        $region68: #{_lambda_.1} parent=11 // pred_fallthru
          _
        // Predicated region
        $region69: #{_lambda_.1} parent=11 // pred_check
          %p868 = pneg %p444
        $region70: #{_lambda_.1} parent=11 // pred_check_branch
          %870 = sbr.rel (%p868) target = $region72
        $region71: #{_lambda_.1} parent=11 // pred_region
          _
        $region72: #{_lambda_.1} parent=11 // pred_fallthru
          _
        // Predicated region
        $region73: #{_lambda_.1} parent=11 // pred_check
          %p871 = pneg %p465
        $region74: #{_lambda_.1} parent=11 // pred_check_branch
          %873 = sbr.rel (%p871) target = $region76
        $region75: #{_lambda_.1} parent=11 // pred_region
          _
        $region76: #{_lambda_.1} parent=11 // pred_fallthru
          _
        // Predicated region
        $region77: #{_lambda_.1} parent=11 // pred_check
          %p874 = pneg %p486
        $region78: #{_lambda_.1} parent=11 // pred_check_branch
          %876 = sbr.rel (%p874) target = $region80
        $region79: #{_lambda_.1} parent=11 // pred_region
          _
        $region80: #{_lambda_.1} parent=11 // pred_fallthru
          _
        // Predicated region
        $region81: #{_lambda_.1} parent=11 // pred_check
          %p877 = pneg %p507
        $region82: #{_lambda_.1} parent=11 // pred_check_branch
          %879 = sbr.rel (%p877) target = $region84
        $region83: #{_lambda_.1} parent=11 // pred_region
          _
        $region84: #{_lambda_.1} parent=11 // pred_fallthru
          _
        // Predicated region
        $region85: #{_lambda_.1} parent=11 // pred_check
          %p880 = pneg %p528
        $region86: #{_lambda_.1} parent=11 // pred_check_branch
          %882 = sbr.rel (%p880) target = $region88
        $region87: #{_lambda_.1} parent=11 // pred_region
          _
        $region88: #{_lambda_.1} parent=11 // pred_fallthru
          _
        // Predicated region
        $region89: #{_lambda_.1} parent=11 // pred_check
          %p883 = pneg %p549
        $region90: #{_lambda_.1} parent=11 // pred_check_branch
          %885 = sbr.rel (%p883) target = $region92
        $region91: #{_lambda_.1} parent=11 // pred_region
          _
        $region92: #{_lambda_.1} parent=11 // pred_fallthru
          _
        // Predicated region
        $region93: #{_lambda_.1} parent=11 // pred_check
          %p886 = pneg %p570
        $region94: #{_lambda_.1} parent=11 // pred_check_branch
          %888 = sbr.rel (%p886) target = $region96
        $region95: #{_lambda_.1} parent=11 // pred_region
          _
        $region96: #{_lambda_.1} parent=11 // pred_fallthru
          _
        // Predicated region
        $region97: #{_lambda_.1} parent=11 // pred_check
          %p889 = pneg %p591
        $region98: #{_lambda_.1} parent=11 // pred_check_branch
          %891 = sbr.rel (%p889) target = $region100
        $region99: #{_lambda_.1} parent=11 // pred_region
          _
        $region100: #{_lambda_.1} parent=11 // pred_fallthru
          _
        // Predicated region
        $region101: #{_lambda_.1} parent=11 // pred_check
          %p892 = pneg %p612
        $region102: #{_lambda_.1} parent=11 // pred_check_branch
          %894 = sbr.rel (%p892) target = $region104
        $region103: #{_lambda_.1} parent=11 // pred_region
          _
        $region104: #{_lambda_.1} parent=11 // pred_fallthru
          _
        // Predicated region
        $region105: #{_lambda_.1} parent=11 // pred_check
          %p895 = pneg %p633
        $region106: #{_lambda_.1} parent=11 // pred_check_branch
          %897 = sbr.rel (%p895) target = $region108
        $region107: #{_lambda_.1} parent=11 // pred_region
          _
        $region108: #{_lambda_.1} parent=11 // pred_fallthru
          _
        // Predicated region
        $region109: #{_lambda_.1} parent=11 // pred_check
          %p898 = pneg %p654
        $region110: #{_lambda_.1} parent=11 // pred_check_branch
          %900 = sbr.rel (%p898) target = $region112
        $region111: #{_lambda_.1} parent=11 // pred_region
          _
        $region112: #{_lambda_.1} parent=11 // pred_fallthru
          _
        // Predicated region
        $region113: #{_lambda_.1} parent=11 // pred_check
          %p901 = pneg %p675
        $region114: #{_lambda_.1} parent=11 // pred_check_branch
          %903 = sbr.rel (%p901) target = $region116
        $region115: #{_lambda_.1} parent=11 // pred_region
          _
        $region116: #{_lambda_.1} parent=11 // pred_fallthru
          _
        // Predicated region
        $region117: #{_lambda_.1} parent=11 // pred_check
          %p904 = pneg %p696
        $region118: #{_lambda_.1} parent=11 // pred_check_branch
          %906 = sbr.rel (%p904) target = $region120
        $region119: #{_lambda_.1} parent=11 // pred_region
          _
        $region120: #{_lambda_.1} parent=11 // pred_fallthru
          _
        // Predicated region
        $region121: #{_lambda_.1} parent=11 // pred_check
          %p907 = pneg %p717
        $region122: #{_lambda_.1} parent=11 // pred_check_branch
          %909 = sbr.rel (%p907) target = $region124
        $region123: #{_lambda_.1} parent=11 // pred_region
          _
        $region124: #{_lambda_.1} parent=11 // pred_fallthru
          _
        // Predicated region
        $region125: #{_lambda_.1} parent=11 // pred_check
          %p910 = pneg %p738
        $region126: #{_lambda_.1} parent=11 // pred_check_branch
          %912 = sbr.rel (%p910) target = $region128
        $region127: #{_lambda_.1} parent=11 // pred_region
          _
        $region128: #{_lambda_.1} parent=11 // pred_fallthru
          _
        // Predicated region
        $region129: #{_lambda_.1} parent=11 // pred_check
          %p913 = pneg %p759
        $region130: #{_lambda_.1} parent=11 // pred_check_branch
          %915 = sbr.rel (%p913) target = $region132
        $region131: #{_lambda_.1} parent=11 // pred_region
          _
        $region132: #{_lambda_.1} parent=11 // pred_fallthru
          _
      $region12: #{_lambda_.1} parent=5 // pred_fallthru
        _
      %p916 = scmp.lt.s32.totalorder %s77, 2
      // Predicated region
      $region133: #{_lambda_.1} parent=5 // pred_check
        %p917 = pneg %p916
      $region134: #{_lambda_.1} parent=5 // pred_check_branch
        %919 = sbr.rel (%p917) target = $region136
      $region135: #{_lambda_.1} parent=5 // pred_region
        // Predicated region
        $region137: #{_lambda_.1} parent=135 // pred_check
          %p920 = pneg %p97
        $region138: #{_lambda_.1} parent=135 // pred_check_branch
          %922 = sbr.rel (%p920) target = $region140
        $region139: #{_lambda_.1} parent=135 // pred_region
          %p923 = scmp.lt.s32.totalorder %s77, 1
          %s924 = scalar_select %p923, %s77, 1
          %s925 = smul.addr %s924, 8
          %s926 = smul.addr %s925, 8
          %s927 = scalar_lea.vmem %s1, %s926
        $region140: #{_lambda_.1} parent=135 // pred_fallthru
          _
        // Predicated region
        $region141: #{_lambda_.1} parent=135 // pred_check
          %p928 = pneg %p123
        $region142: #{_lambda_.1} parent=135 // pred_check_branch
          %930 = sbr.rel (%p928) target = $region144
        $region143: #{_lambda_.1} parent=135 // pred_region
          %p931 = scmp.lt.s32.totalorder %s77, 1
          %s932 = scalar_select %p931, %s77, 1
          %s933 = smul.addr %s932, 8
          %s934 = smul.addr %s933, 2
          %s935 = scalar_lea.vmem %s3, %s934
        $region144: #{_lambda_.1} parent=135 // pred_fallthru
          _
      $region136: #{_lambda_.1} parent=5 // pred_fallthru
        _
      %p936 = scmp.le.s32.totalorder 1, %s77
      %p937 = scmp.lt.s32.totalorder %s77, 3
      %p938 = pnand %p936, %p937
      %p939 = pneg %p938
      // Predicated region
      $region145: #{_lambda_.1} parent=5 // pred_check
        _
      $region146: #{_lambda_.1} parent=5 // pred_check_branch
        %941 = sbr.rel (%p938) target = $region148
      $region147: #{_lambda_.1} parent=5 // pred_region
        %s942 = ssub.s32 %s77, 1
        %p943 = scmp.lt.s32.totalorder %s82, 1
        %s944 = scalar_select %p943, %s82, 1
        %s945 = smul.addr %s944, 8
        %s946 = smul.addr %s945, 8
        %s947 = scalar_lea.vmem %s1, %s946
        %p948 = pneg %p103
        %p949 = pneg %p100
        %p950 = scmp.lt.s32.totalorder %s82, 1
        %s951 = scalar_select %p950, %s82, 1
        %s952 = smul.addr %s951, 8
        %s953 = smul.addr %s952, 2
        %s954 = scalar_lea.vmem %s3, %s953
        %p955 = pneg %p129
        %p956 = pneg %p126
        %p957 = pneg %p150
        %p958 = pneg %p147
        %p959 = pneg %p171
        %p960 = pneg %p168
        %p961 = pneg %p192
        %p962 = pneg %p189
        %p963 = pneg %p213
        %p964 = pneg %p210
        %p965 = pneg %p234
        %p966 = pneg %p231
        %p967 = pneg %p255
        %p968 = pneg %p252
        %p969 = pneg %p276
        %p970 = pneg %p273
        %p971 = pneg %p297
        %p972 = pneg %p294
        %p973 = pneg %p318
        %p974 = pneg %p315
        %p975 = pneg %p339
        %p976 = pneg %p336
        %p977 = pneg %p360
        %p978 = pneg %p357
        %p979 = pneg %p381
        %p980 = pneg %p378
        %p981 = pneg %p402
        %p982 = pneg %p399
        %p983 = pneg %p423
        %p984 = pneg %p420
        %p985 = pneg %p444
        %p986 = pneg %p441
        %p987 = pneg %p465
        %p988 = pneg %p462
        %p989 = pneg %p486
        %p990 = pneg %p483
        %p991 = pneg %p507
        %p992 = pneg %p504
        %p993 = pneg %p528
        %p994 = pneg %p525
        %p995 = pneg %p549
        %p996 = pneg %p546
        %p997 = pneg %p570
        %p998 = pneg %p567
        %p999 = pneg %p591
        %p1000 = pneg %p588
        %p1001 = pneg %p612
        %p1002 = pneg %p609
        %p1003 = pneg %p633
        %p1004 = pneg %p630
        %p1005 = pneg %p654
        %p1006 = pneg %p651
        %p1007 = pneg %p675
        %p1008 = pneg %p672
        %p1009 = pneg %p696
        %p1010 = pneg %p693
        %p1011 = pneg %p717
        %p1012 = pneg %p714
        %p1013 = pneg %p738
        %p1014 = pneg %p735
        %p1015 = pneg %p759
        %p1016 = pneg %p756
        %p1017 = pneg %p785
        %p1018 = pneg %p782
        %s1019 = sand.u32 %s772, 1
        %s1020 = scalar_lea.sflag [#allocation3], %s1019
        %s1021 = sand.u32 %s772, 1
        %s1022 = smul.addr %s1021, 4
        %s1023 = scalar_lea.vmem [#allocation2], %s1022
        %p1024 = pneg %p811
        %p1025 = pneg %p808
        %p1026 = scmp.lt.s32.totalorder %s82, 1
        %s1027 = scalar_select %p1026, %s82, 1
        %s1028 = smul.addr %s1027, 2
        %s1029 = scalar_lea.vmem %s67, %s1028
        %p1030 = scmp.lt.s32.totalorder %s82, 1
        %s1031 = scalar_select %p1030, %s82, 1
        %s1032 = smul.addr %s1031, 8
        %s1033 = smul.addr %s1032, 8
        %s1034 = scalar_lea.vmem %s1, %s1033
        %p1035 = scmp.lt.s32.totalorder %s82, 1
        %s1036 = scalar_select %p1035, %s82, 1
        %s1037 = smul.addr %s1036, 8
        %s1038 = smul.addr %s1037, 2
        %s1039 = scalar_lea.vmem %s3, %s1038
        %p1040 = scmp.lt.s32.totalorder %s82, 1
        %s1041 = scalar_select %p1040, %s82, 1
        %s1042 = smul.addr %s1041, 2
        %s1043 = scalar_lea.vmem %s67, %s1042
        %v1045 = vld [vmem:[%s1039] sm:$0xff]
        %v1046 = vld [vmem:[%s1039 + $0x8] sm:$0xff]
        %v1049 = vcombine.high %v1045, %v1045
        %v1051 = vunpack.c.l.s4 1983009808
        %v1052 = vunpack.c.0.s8 %v1051
        %v1053 = vlaneseq
        %v1054 = vshrl.u32 %v1053, 7
        %v1055 = vsub.s32 %v1052, %v1054
        %v1056 = vrot.slane %v1045, %v1055
        %v1058 = vunpack.c.l.s4 1983009808
        %v1059 = vunpack.c.0.s8 %v1058
        %v1060 = vlaneseq
        %v1061 = vshrl.u32 %v1060, 7
        %v1062 = vsub.s32 %v1059, %v1061
        %v1063 = vrot.slane %v1049, %v1062
        %v1064 = vcombine.high %v1056, %v1056
        %v1065 = vcombine.high %v1063, %v1063
        %v1066 = vcombine.high %v1046, %v1046
        %v1068 = vunpack.c.l.s4 1983009808
        %v1069 = vunpack.c.0.s8 %v1068
        %v1070 = vlaneseq
        %v1071 = vshrl.u32 %v1070, 7
        %v1072 = vsub.s32 %v1069, %v1071
        %v1073 = vrot.slane %v1046, %v1072
        %v1075 = vunpack.c.l.s4 1983009808
        %v1076 = vunpack.c.0.s8 %v1075
        %v1077 = vlaneseq
        %v1078 = vshrl.u32 %v1077, 7
        %v1079 = vsub.s32 %v1076, %v1078
        %v1080 = vrot.slane %v1066, %v1079
        %v1081 = vcombine.high %v1073, %v1073
        %v1082 = vcombine.high %v1080, %v1080
        %vm1091 = vcmask 1041408
        %v1092 = vsel %vm1091, %v1056, -inf
        %v1093 = vsel %vm1091, %v1064, -inf
        %v1094 = vsel %vm1091, %v1063, -inf
        %v1095 = vsel %vm1091, %v1065, -inf
        %v1096 = vsel %vm1091, %v1073, -inf
        %v1097 = vmax.f32 %v1092, %v1096
        %v1098 = vsel %vm1091, %v1081, -inf
        %v1099 = vmax.f32 %v1093, %v1098
        %v1100 = vsel %vm1091, %v1080, -inf
        %v1101 = vmax.f32 %v1094, %v1100
        %v1102 = vsel %vm1091, %v1082, -inf
        %v1103 = vmax.f32 %v1095, %v1102
        %v1104 = vmax.f32 %v1097, %v1099
        %v1105 = vmax.f32 %v1101, %v1103
        %v1106 = vmax.f32 %v1104, %v1105
        %1107 = vmax.xlane.f32.xlu0 %v1106
        %v1108 = vpop.xlane.xlu0 %1107
        %vm1109 = vcmask 1024
        %1110 = vst.msk [vmem:[%s1043] sm:$0x3] %vm1109, %v1108
        %v1111 = vld [vmem:[%s1034] sm:$0xff]
        %v1112 = vld [vmem:[%s1034 + $0x8] sm:$0xff]
        %v1113 = vld [vmem:[%s1034 + $0x10] sm:$0xff]
        %v1114 = vld [vmem:[%s1034 + $0x18] sm:$0xff]
        %v1115 = vld [vmem:[%s1034 + $0x20] sm:$0xff]
        %v1116 = vld [vmem:[%s1034 + $0x28] sm:$0xff]
        %v1117 = vld [vmem:[%s1034 + $0x30] sm:$0xff]
        %v1118 = vld [vmem:[%s1034 + $0x38] sm:$0xff]
        %v1119 = vpack.c.bf16 %v1112, %v1111
        %v1120 = vpack.c.bf16 %v1114, %v1113
        %v1121 = vpack.c.bf16 %v1116, %v1115
        %v1122 = vpack.c.bf16 %v1118, %v1117
        %v1123 = vld [vmem:[%s5] sm:$0xf]
        %v1124 = vld [vmem:[%s5 + $0x4] sm:$0xf]
        %v1125 = vld [vmem:[%s5 + $0x8] sm:$0xf]
        %v1126 = vld [vmem:[%s5 + $0xc] sm:$0xf]
        %v1131 = vunpack.c.l.b16 %v1123
        %v1132 = vunpack.c.l.b16 %v1124
        %v1133 = vunpack.c.l.b16 %v1125
        %v1134 = vunpack.c.l.b16 %v1126
        %v1135 = vpack.c.b16 %v1132, %v1131
        %v1136 = vpack.c.b16 %v1134, %v1133
        %vm1137 = vcmask 523264
        %v1139 = vsel %vm1137, %v1135, 0
        %v1142 = vsel %vm1137, %v1136, 0
        %1144 = vmatprep.subr.bf16.mxu0 0
        %1145 = vmatpush1.bf16.msra.mxu0 %v1119
        %1146 = vmatprep.subr.bf16.mxu0 0
        %1147 = vmatpush1.bf16.msra.mxu0 %v1120
        %1148 = vmatprep.subr.bf16.mxu0 0
        %1149 = vmatpush1.bf16.msra.mxu0 %v1121
        %1150 = vmatprep.subr.bf16.mxu0 0
        %1151 = vmatpush1.bf16.msra.mxu0 %v1122
        %1152 = vmatprep.subr.bf16.mxu0 0
        %1153 = vmatpush1.bf16.msra.mxu0 0
        %1154 = vmatprep.subr.bf16.mxu0 0
        %1155 = vmatpush1.bf16.msra.mxu0 0
        %1156 = vmatprep.subr.bf16.mxu0 0
        %1157 = vmatpush1.bf16.msra.mxu0 0
        %1158 = vmatprep.subr.bf16.mxu0 0
        %1159 = vmatpush1.bf16.msra.mxu0 0
        %1160 = vmatprep.subr.bf16.mxu0 0
        %1161 = vmatpush1.bf16.msra.mxu0 0
        %1162 = vmatprep.subr.bf16.mxu0 0
        %1163 = vmatpush1.bf16.msra.mxu0 0
        %1164 = vmatprep.subr.bf16.mxu0 0
        %1165 = vmatpush1.bf16.msra.mxu0 0
        %1166 = vmatprep.subr.bf16.mxu0 0
        %1167 = vmatpush1.bf16.msra.mxu0 0
        %1168 = vmatprep.subr.bf16.mxu0 0
        %1169 = vmatpush1.bf16.msra.mxu0 0
        %1170 = vmatprep.subr.bf16.mxu0 0
        %1171 = vmatpush1.bf16.msra.mxu0 0
        %1172 = vmatprep.subr.bf16.mxu0 0
        %1173 = vmatpush1.bf16.msra.mxu0 0
        %1174 = vmatprep.subr.bf16.mxu0 0
        %1175 = vmatpush1.bf16.msra.mxu0 0
        %1176 = vmatprep.mubr.bf16.mxu0 0
        %1177 = vmatmul.mubr.bf16.gmra.mrb[0].mxu0 %v1139
        %v1178 = vpop.f32.mrb[0].mxu0
        %v1179 = vadd.f32 0.0, %v1178
        %v1180 = vpop.f32.mrb[0].mxu0
        %v1181 = vpop.f32.mrb[0].mxu0
        %v1182 = vadd.f32 0.0, %v1181
        %v1183 = vpop.f32.mrb[0].mxu0
        %1184 = vmatprep.mubr.bf16.mxu0 0
        %1185 = vmatmul.mubr.bf16.gmra.mrb[0].mxu0 %v1142
        %v1186 = vpop.f32.mrb[0].mxu0
        %v1187 = vadd.f32 0.0, %v1186
        %v1188 = vpop.f32.mrb[0].mxu0
        %v1189 = vpop.f32.mrb[0].mxu0
        %v1190 = vadd.f32 0.0, %v1189
        %v1191 = vpop.f32.mrb[0].mxu0
        %1192 = vdwg.mxu0
        %v1193 = vpack.c.bf16 %v1182, %v1179
        %v1194 = vpack.c.bf16 %v1190, %v1187
        %v1195 = vld [vmem:[%s7] sm:$0xff]
        %v1196 = vld [vmem:[%s7 + $0x8] sm:$0xff]
        %v1197 = vld [vmem:[%s7 + $0x10] sm:$0xff]
        %v1198 = vld [vmem:[%s7 + $0x18] sm:$0xff]
        %s1199 = scalar_lea.vmem %s5, 16
        %v1200 = vld [vmem:[%s1199] sm:$0xf]
        %v1201 = vld [vmem:[%s1199 + $0x4] sm:$0xf]
        %v1202 = vld [vmem:[%s1199 + $0x8] sm:$0xf]
        %v1203 = vld [vmem:[%s1199 + $0xc] sm:$0xf]
        %v1208 = vunpack.c.l.b16 %v1200
        %v1209 = vunpack.c.l.b16 %v1201
        %v1210 = vunpack.c.l.b16 %v1202
        %v1211 = vunpack.c.l.b16 %v1203
        %v1212 = vpack.c.b16 %v1209, %v1208
        %v1213 = vpack.c.b16 %v1211, %v1210
        %v1215 = vsel %vm1137, %v1212, 0
        %v1218 = vsel %vm1137, %v1213, 0
        %1220 = vmatprep.subr.bf16.mxu0 0
        %1221 = vmatpush1.bf16.msra.mxu0 %v1119
        %1222 = vmatprep.subr.bf16.mxu0 0
        %1223 = vmatpush1.bf16.msra.mxu0 %v1120
        %1224 = vmatprep.subr.bf16.mxu0 0
        %1225 = vmatpush1.bf16.msra.mxu0 %v1121
        %1226 = vmatprep.subr.bf16.mxu0 0
        %1227 = vmatpush1.bf16.msra.mxu0 %v1122
        %1228 = vmatprep.subr.bf16.mxu0 0
        %1229 = vmatpush1.bf16.msra.mxu0 0
        %1230 = vmatprep.subr.bf16.mxu0 0
        %1231 = vmatpush1.bf16.msra.mxu0 0
        %1232 = vmatprep.subr.bf16.mxu0 0
        %1233 = vmatpush1.bf16.msra.mxu0 0
        %1234 = vmatprep.subr.bf16.mxu0 0
        %1235 = vmatpush1.bf16.msra.mxu0 0
        %1236 = vmatprep.subr.bf16.mxu0 0
        %1237 = vmatpush1.bf16.msra.mxu0 0
        %1238 = vmatprep.subr.bf16.mxu0 0
        %1239 = vmatpush1.bf16.msra.mxu0 0
        %1240 = vmatprep.subr.bf16.mxu0 0
        %1241 = vmatpush1.bf16.msra.mxu0 0
        %1242 = vmatprep.subr.bf16.mxu0 0
        %1243 = vmatpush1.bf16.msra.mxu0 0
        %1244 = vmatprep.subr.bf16.mxu0 0
        %1245 = vmatpush1.bf16.msra.mxu0 0
        %1246 = vmatprep.subr.bf16.mxu0 0
        %1247 = vmatpush1.bf16.msra.mxu0 0
        %1248 = vmatprep.subr.bf16.mxu0 0
        %1249 = vmatpush1.bf16.msra.mxu0 0
        %1250 = vmatprep.subr.bf16.mxu0 0
        %1251 = vmatpush1.bf16.msra.mxu0 0
        %1252 = vmatprep.mubr.bf16.mxu0 0
        %1253 = vmatmul.mubr.bf16.gmra.mrb[0].mxu0 %v1215
        %v1254 = vpop.f32.mrb[0].mxu0
        %v1255 = vadd.f32 0.0, %v1254
        %v1256 = vpop.f32.mrb[0].mxu0
        %v1257 = vpop.f32.mrb[0].mxu0
        %v1258 = vadd.f32 0.0, %v1257
        %v1259 = vpop.f32.mrb[0].mxu0
        %1260 = vmatprep.mubr.bf16.mxu0 0
        %1261 = vmatmul.mubr.bf16.gmra.mrb[0].mxu0 %v1218
        %v1262 = vpop.f32.mrb[0].mxu0
        %v1263 = vadd.f32 0.0, %v1262
        %v1264 = vpop.f32.mrb[0].mxu0
        %v1265 = vpop.f32.mrb[0].mxu0
        %v1266 = vadd.f32 0.0, %v1265
        %v1267 = vpop.f32.mrb[0].mxu0
        %1268 = vdwg.mxu0
        %v1269 = vpack.c.bf16 %v1258, %v1255
        %v1270 = vpack.c.bf16 %v1266, %v1263
        %s1271 = scalar_lea.vmem %s7, 32
        %v1272 = vld [vmem:[%s1271] sm:$0xff]
        %v1273 = vld [vmem:[%s1271 + $0x8] sm:$0xff]
        %v1274 = vld [vmem:[%s1271 + $0x10] sm:$0xff]
        %v1275 = vld [vmem:[%s1271 + $0x18] sm:$0xff]
        %v1280 = vunpack.c.l.b16 %v1272
        %v1281 = vunpack.c.h.b16 %v1272
        %v1282 = vunpack.c.l.b16 %v1273
        %v1283 = vunpack.c.h.b16 %v1273
        %v1284 = vunpack.c.l.b16 %v1274
        %v1285 = vunpack.c.h.b16 %v1274
        %v1286 = vunpack.c.l.b16 %v1275
        %v1287 = vunpack.c.h.b16 %v1275
        %v1288 = vpack.c.b16 %v1282, %v1280
        %v1289 = vpack.c.b16 %v1283, %v1281
        %v1290 = vpack.c.b16 %v1286, %v1284
        %v1291 = vpack.c.b16 %v1287, %v1285
        %vm1296 = vcmask 261120
        %v1298 = vsel %vm1296, %v1269, 0
        %v1301 = vsel %vm1296, %v1270, 0
        %1303 = vmatprep.subr.bf16.mxu0 %v1289
        %1304 = vmatpush1.bf16.msra.mxu0 %v1288
        %1305 = vmatprep.subr.bf16.mxu0 %v1291
        %1306 = vmatpush1.bf16.msra.mxu0 %v1290
        %1307 = vmatprep.subr.bf16.mxu0 0
        %1308 = vmatpush1.bf16.msra.mxu0 0
        %1309 = vmatprep.subr.bf16.mxu0 0
        %1310 = vmatpush1.bf16.msra.mxu0 0
        %1311 = vmatprep.subr.bf16.mxu0 0
        %1312 = vmatpush1.bf16.msra.mxu0 0
        %1313 = vmatprep.subr.bf16.mxu0 0
        %1314 = vmatpush1.bf16.msra.mxu0 0
        %1315 = vmatprep.subr.bf16.mxu0 0
        %1316 = vmatpush1.bf16.msra.mxu0 0
        %1317 = vmatprep.subr.bf16.mxu0 0
        %1318 = vmatpush1.bf16.msra.mxu0 0
        %1319 = vmatprep.subr.bf16.mxu0 0
        %1320 = vmatpush1.bf16.msra.mxu0 0
        %1321 = vmatprep.subr.bf16.mxu0 0
        %1322 = vmatpush1.bf16.msra.mxu0 0
        %1323 = vmatprep.subr.bf16.mxu0 0
        %1324 = vmatpush1.bf16.msra.mxu0 0
        %1325 = vmatprep.subr.bf16.mxu0 0
        %1326 = vmatpush1.bf16.msra.mxu0 0
        %1327 = vmatprep.subr.bf16.mxu0 0
        %1328 = vmatpush1.bf16.msra.mxu0 0
        %1329 = vmatprep.subr.bf16.mxu0 0
        %1330 = vmatpush1.bf16.msra.mxu0 0
        %1331 = vmatprep.subr.bf16.mxu0 0
        %1332 = vmatpush1.bf16.msra.mxu0 0
        %1333 = vmatprep.subr.bf16.mxu0 0
        %1334 = vmatpush1.bf16.msra.mxu0 0
        %1335 = vmatprep.mubr.bf16.mxu0 0
        %1336 = vmatmul.mubr.bf16.gmra.mrb[0].mxu0 %v1298
        %v1337 = vpop.f32.mrb[0].mxu0
        %v1338 = vadd.f32 0.0, %v1337
        %v1339 = vpop.f32.mrb[0].mxu0
        %v1340 = vadd.f32 0.0, %v1339
        %v1341 = vpop.f32.mrb[0].mxu0
        %v1342 = vadd.f32 0.0, %v1341
        %v1343 = vpop.f32.mrb[0].mxu0
        %v1344 = vadd.f32 0.0, %v1343
        %1345 = vmatprep.mubr.bf16.mxu0 0
        %1346 = vmatmul.mubr.bf16.gmra.mrb[0].mxu0 %v1301
        %v1347 = vpop.f32.mrb[0].mxu0
        %v1348 = vadd.f32 0.0, %v1347
        %v1349 = vpop.f32.mrb[0].mxu0
        %v1350 = vadd.f32 0.0, %v1349
        %v1351 = vpop.f32.mrb[0].mxu0
        %v1352 = vadd.f32 0.0, %v1351
        %v1353 = vpop.f32.mrb[0].mxu0
        %v1354 = vadd.f32 0.0, %v1353
        %1355 = vdwg.mxu0
        %v1360 = vunpack.c.l.b16 %v1195
        %v1361 = vunpack.c.h.b16 %v1195
        %v1362 = vunpack.c.l.b16 %v1196
        %v1363 = vunpack.c.h.b16 %v1196
        %v1364 = vunpack.c.l.b16 %v1197
        %v1365 = vunpack.c.h.b16 %v1197
        %v1366 = vunpack.c.l.b16 %v1198
        %v1367 = vunpack.c.h.b16 %v1198
        %v1368 = vpack.c.b16 %v1362, %v1360
        %v1369 = vpack.c.b16 %v1363, %v1361
        %v1370 = vpack.c.b16 %v1366, %v1364
        %v1371 = vpack.c.b16 %v1367, %v1365
        %v1377 = vsel %vm1296, %v1193, 0
        %v1380 = vsel %vm1296, %v1194, 0
        %1382 = vmatprep.subr.bf16.mxu0 %v1369
        %1383 = vmatpush1.bf16.msra.mxu0 %v1368
        %1384 = vmatprep.subr.bf16.mxu0 %v1371
        %1385 = vmatpush1.bf16.msra.mxu0 %v1370
        %1386 = vmatprep.subr.bf16.mxu0 0
        %1387 = vmatpush1.bf16.msra.mxu0 0
        %1388 = vmatprep.subr.bf16.mxu0 0
        %1389 = vmatpush1.bf16.msra.mxu0 0
        %1390 = vmatprep.subr.bf16.mxu0 0
        %1391 = vmatpush1.bf16.msra.mxu0 0
        %1392 = vmatprep.subr.bf16.mxu0 0
        %1393 = vmatpush1.bf16.msra.mxu0 0
        %1394 = vmatprep.subr.bf16.mxu0 0
        %1395 = vmatpush1.bf16.msra.mxu0 0
        %1396 = vmatprep.subr.bf16.mxu0 0
        %1397 = vmatpush1.bf16.msra.mxu0 0
        %1398 = vmatprep.subr.bf16.mxu0 0
        %1399 = vmatpush1.bf16.msra.mxu0 0
        %1400 = vmatprep.subr.bf16.mxu0 0
        %1401 = vmatpush1.bf16.msra.mxu0 0
        %1402 = vmatprep.subr.bf16.mxu0 0
        %1403 = vmatpush1.bf16.msra.mxu0 0
        %1404 = vmatprep.subr.bf16.mxu0 0
        %1405 = vmatpush1.bf16.msra.mxu0 0
        %1406 = vmatprep.subr.bf16.mxu0 0
        %1407 = vmatpush1.bf16.msra.mxu0 0
        %1408 = vmatprep.subr.bf16.mxu0 0
        %1409 = vmatpush1.bf16.msra.mxu0 0
        %1410 = vmatprep.subr.bf16.mxu0 0
        %1411 = vmatpush1.bf16.msra.mxu0 0
        %1412 = vmatprep.subr.bf16.mxu0 0
        %1413 = vmatpush1.bf16.msra.mxu0 0
        %1414 = vmatprep.mubr.bf16.mxu0 0
        %1415 = vmatmul.mubr.bf16.gmra.mrb[0].mxu0 %v1377
        %v1416 = vpop.f32.mrb[0].mxu0
        %v1417 = vadd.f32 %v1338, %v1416
        %v1418 = vpop.f32.mrb[0].mxu0
        %v1419 = vadd.f32 %v1340, %v1418
        %v1420 = vpop.f32.mrb[0].mxu0
        %v1421 = vadd.f32 %v1342, %v1420
        %v1422 = vpop.f32.mrb[0].mxu0
        %v1423 = vadd.f32 %v1344, %v1422
        %1424 = vmatprep.mubr.bf16.mxu0 0
        %1425 = vmatmul.mubr.bf16.gmra.mrb[0].mxu0 %v1380
        %v1426 = vpop.f32.mrb[0].mxu0
        %v1427 = vadd.f32 %v1348, %v1426
        %v1428 = vpop.f32.mrb[0].mxu0
        %v1429 = vadd.f32 %v1350, %v1428
        %v1430 = vpop.f32.mrb[0].mxu0
        %v1431 = vadd.f32 %v1352, %v1430
        %v1432 = vpop.f32.mrb[0].mxu0
        %v1433 = vadd.f32 %v1354, %v1432
        %1434 = vdwg.mxu0
        %s1435 = scalar_lea.vmem %s5, 32
        %v1436 = vld [vmem:[%s1435] sm:$0xf]
        %v1437 = vld [vmem:[%s1435 + $0x4] sm:$0xf]
        %v1438 = vld [vmem:[%s1435 + $0x8] sm:$0xf]
        %v1439 = vld [vmem:[%s1435 + $0xc] sm:$0xf]
        %v1444 = vunpack.c.l.b16 %v1436
        %v1445 = vunpack.c.l.b16 %v1437
        %v1446 = vunpack.c.l.b16 %v1438
        %v1447 = vunpack.c.l.b16 %v1439
        %v1448 = vpack.c.b16 %v1445, %v1444
        %v1449 = vpack.c.b16 %v1447, %v1446
        %v1451 = vsel %vm1137, %v1448, 0
        %v1454 = vsel %vm1137, %v1449, 0
        %1456 = vmatprep.subr.bf16.mxu0 0
        %1457 = vmatpush1.bf16.msra.mxu0 %v1119
        %1458 = vmatprep.subr.bf16.mxu0 0
        %1459 = vmatpush1.bf16.msra.mxu0 %v1120
        %1460 = vmatprep.subr.bf16.mxu0 0
        %1461 = vmatpush1.bf16.msra.mxu0 %v1121
        %1462 = vmatprep.subr.bf16.mxu0 0
        %1463 = vmatpush1.bf16.msra.mxu0 %v1122
        %1464 = vmatprep.subr.bf16.mxu0 0
        %1465 = vmatpush1.bf16.msra.mxu0 0
        %1466 = vmatprep.subr.bf16.mxu0 0
        %1467 = vmatpush1.bf16.msra.mxu0 0
        %1468 = vmatprep.subr.bf16.mxu0 0
        %1469 = vmatpush1.bf16.msra.mxu0 0
        %1470 = vmatprep.subr.bf16.mxu0 0
        %1471 = vmatpush1.bf16.msra.mxu0 0
        %1472 = vmatprep.subr.bf16.mxu0 0
        %1473 = vmatpush1.bf16.msra.mxu0 0
        %1474 = vmatprep.subr.bf16.mxu0 0
        %1475 = vmatpush1.bf16.msra.mxu0 0
        %1476 = vmatprep.subr.bf16.mxu0 0
        %1477 = vmatpush1.bf16.msra.mxu0 0
        %1478 = vmatprep.subr.bf16.mxu0 0
        %1479 = vmatpush1.bf16.msra.mxu0 0
        %1480 = vmatprep.subr.bf16.mxu0 0
        %1481 = vmatpush1.bf16.msra.mxu0 0
        %1482 = vmatprep.subr.bf16.mxu0 0
        %1483 = vmatpush1.bf16.msra.mxu0 0
        %1484 = vmatprep.subr.bf16.mxu0 0
        %1485 = vmatpush1.bf16.msra.mxu0 0
        %1486 = vmatprep.subr.bf16.mxu0 0
        %1487 = vmatpush1.bf16.msra.mxu0 0
        %1488 = vmatprep.mubr.bf16.mxu0 0
        %1489 = vmatmul.mubr.bf16.gmra.mrb[0].mxu0 %v1451
        %v1490 = vpop.f32.mrb[0].mxu0
        %v1491 = vadd.f32 0.0, %v1490
        %v1492 = vpop.f32.mrb[0].mxu0
        %v1493 = vpop.f32.mrb[0].mxu0
        %v1494 = vadd.f32 0.0, %v1493
        %v1495 = vpop.f32.mrb[0].mxu0
        %1496 = vmatprep.mubr.bf16.mxu0 0
        %1497 = vmatmul.mubr.bf16.gmra.mrb[0].mxu0 %v1454
        %v1498 = vpop.f32.mrb[0].mxu0
        %v1499 = vadd.f32 0.0, %v1498
        %v1500 = vpop.f32.mrb[0].mxu0
        %v1501 = vpop.f32.mrb[0].mxu0
        %v1502 = vadd.f32 0.0, %v1501
        %v1503 = vpop.f32.mrb[0].mxu0
        %1504 = vdwg.mxu0
        %v1505 = vpack.c.bf16 %v1494, %v1491
        %v1506 = vpack.c.bf16 %v1502, %v1499
        %s1507 = scalar_lea.vmem %s7, 64
        %v1508 = vld [vmem:[%s1507] sm:$0xff]
        %v1509 = vld [vmem:[%s1507 + $0x8] sm:$0xff]
        %v1510 = vld [vmem:[%s1507 + $0x10] sm:$0xff]
        %v1511 = vld [vmem:[%s1507 + $0x18] sm:$0xff]
        %v1516 = vunpack.c.l.b16 %v1508
        %v1517 = vunpack.c.h.b16 %v1508
        %v1518 = vunpack.c.l.b16 %v1509
        %v1519 = vunpack.c.h.b16 %v1509
        %v1520 = vunpack.c.l.b16 %v1510
        %v1521 = vunpack.c.h.b16 %v1510
        %v1522 = vunpack.c.l.b16 %v1511
        %v1523 = vunpack.c.h.b16 %v1511
        %v1524 = vpack.c.b16 %v1518, %v1516
        %v1525 = vpack.c.b16 %v1519, %v1517
        %v1526 = vpack.c.b16 %v1522, %v1520
        %v1527 = vpack.c.b16 %v1523, %v1521
        %v1533 = vsel %vm1296, %v1505, 0
        %v1536 = vsel %vm1296, %v1506, 0
        %1538 = vmatprep.subr.bf16.mxu0 %v1525
        %1539 = vmatpush1.bf16.msra.mxu0 %v1524
        %1540 = vmatprep.subr.bf16.mxu0 %v1527
        %1541 = vmatpush1.bf16.msra.mxu0 %v1526
        %1542 = vmatprep.subr.bf16.mxu0 0
        %1543 = vmatpush1.bf16.msra.mxu0 0
        %1544 = vmatprep.subr.bf16.mxu0 0
        %1545 = vmatpush1.bf16.msra.mxu0 0
        %1546 = vmatprep.subr.bf16.mxu0 0
        %1547 = vmatpush1.bf16.msra.mxu0 0
        %1548 = vmatprep.subr.bf16.mxu0 0
        %1549 = vmatpush1.bf16.msra.mxu0 0
        %1550 = vmatprep.subr.bf16.mxu0 0
        %1551 = vmatpush1.bf16.msra.mxu0 0
        %1552 = vmatprep.subr.bf16.mxu0 0
        %1553 = vmatpush1.bf16.msra.mxu0 0
        %1554 = vmatprep.subr.bf16.mxu0 0
        %1555 = vmatpush1.bf16.msra.mxu0 0
        %1556 = vmatprep.subr.bf16.mxu0 0
        %1557 = vmatpush1.bf16.msra.mxu0 0
        %1558 = vmatprep.subr.bf16.mxu0 0
        %1559 = vmatpush1.bf16.msra.mxu0 0
        %1560 = vmatprep.subr.bf16.mxu0 0
        %1561 = vmatpush1.bf16.msra.mxu0 0
        %1562 = vmatprep.subr.bf16.mxu0 0
        %1563 = vmatpush1.bf16.msra.mxu0 0
        %1564 = vmatprep.subr.bf16.mxu0 0
        %1565 = vmatpush1.bf16.msra.mxu0 0
        %1566 = vmatprep.subr.bf16.mxu0 0
        %1567 = vmatpush1.bf16.msra.mxu0 0
        %1568 = vmatprep.subr.bf16.mxu0 0
        %1569 = vmatpush1.bf16.msra.mxu0 0
        %1570 = vmatprep.mubr.bf16.mxu0 0
        %1571 = vmatmul.mubr.bf16.gmra.mrb[0].mxu0 %v1533
        %v1572 = vpop.f32.mrb[0].mxu0
        %v1573 = vadd.f32 0.0, %v1572
        %v1574 = vpop.f32.mrb[0].mxu0
        %v1575 = vadd.f32 0.0, %v1574
        %v1576 = vpop.f32.mrb[0].mxu0
        %v1577 = vadd.f32 0.0, %v1576
        %v1578 = vpop.f32.mrb[0].mxu0
        %v1579 = vadd.f32 0.0, %v1578
        %1580 = vmatprep.mubr.bf16.mxu0 0
        %1581 = vmatmul.mubr.bf16.gmra.mrb[0].mxu0 %v1536
        %v1582 = vpop.f32.mrb[0].mxu0
        %v1583 = vadd.f32 0.0, %v1582
        %v1584 = vpop.f32.mrb[0].mxu0
        %v1585 = vadd.f32 0.0, %v1584
        %v1586 = vpop.f32.mrb[0].mxu0
        %v1587 = vadd.f32 0.0, %v1586
        %v1588 = vpop.f32.mrb[0].mxu0
        %v1589 = vadd.f32 0.0, %v1588
        %1590 = vdwg.mxu0
        %v1591 = vadd.f32 %v1417, %v1573
        %v1592 = vadd.f32 %v1419, %v1575
        %v1593 = vadd.f32 %v1421, %v1577
        %v1594 = vadd.f32 %v1423, %v1579
        %v1595 = vadd.f32 %v1427, %v1583
        %v1596 = vadd.f32 %v1429, %v1585
        %v1597 = vadd.f32 %v1431, %v1587
        %v1598 = vadd.f32 %v1433, %v1589
        %v1599 = vld [vmem:[%s9] sm:$0x3]
        %v1601 = vlaneseq
        %v1602 = vshrl.u32 %v1601, 7
        %v1603 = vsub.s32 0, %v1602
        %v1604 = vrot.slane %v1599, %v1603
        %v1605 = vlaneseq
        %v1606 = vshrl.u32 %v1605, 7
        %v1607 = vsub.s32 1, %v1606
        %v1608 = vrot.slane %v1599, %v1607
        %v1611 = vadd.f32 %v1591, %v1604
        %v1612 = vadd.f32 %v1592, %v1608
        %v1613 = vadd.f32 %v1593, %v1604
        %v1614 = vadd.f32 %v1594, %v1608
        %v1615 = vadd.f32 %v1595, %v1604
        %v1616 = vadd.f32 %v1596, %v1608
        %v1617 = vadd.f32 %v1597, %v1604
        %v1618 = vadd.f32 %v1598, %v1608
        %v1619 = vmax.f32 %v1611, 0.0
        %v1620 = vmax.f32 %v1612, 0.0
        %v1621 = vmax.f32 %v1613, 0.0
        %v1622 = vmax.f32 %v1614, 0.0
        %v1623 = vmax.f32 %v1615, 0.0
        %v1624 = vmax.f32 %v1616, 0.0
        %v1625 = vmax.f32 %v1617, 0.0
        %v1626 = vmax.f32 %v1618, 0.0
        %v1627 = vpack.c.bf16 %v1621, %v1619
        %v1628 = vpack.c.bf16 %v1622, %v1620
        %v1629 = vpack.c.bf16 %v1625, %v1623
        %v1630 = vpack.c.bf16 %v1626, %v1624
        %v1631 = vld [vmem:[%s11] sm:$0xf]
        %v1632 = vld [vmem:[%s11 + $0x4] sm:$0xf]
        %v1633 = vld [vmem:[%s11 + $0x8] sm:$0xf]
        %v1634 = vld [vmem:[%s11 + $0xc] sm:$0xf]
        %v1639 = vunpack.c.l.b16 %v1631
        %v1640 = vunpack.c.l.b16 %v1632
        %v1641 = vunpack.c.l.b16 %v1633
        %v1642 = vunpack.c.l.b16 %v1634
        %v1643 = vpack.c.b16 %v1640, %v1639
        %v1644 = vpack.c.b16 %v1642, %v1641
        %v1646 = vsel %vm1296, %v1643, 0
        %v1649 = vsel %vm1296, %v1644, 0
        %1651 = vmatprep.subr.bf16.mxu0 %v1628
        %1652 = vmatpush1.bf16.msra.mxu0 %v1627
        %1653 = vmatprep.subr.bf16.mxu0 %v1630
        %1654 = vmatpush1.bf16.msra.mxu0 %v1629
        %1655 = vmatprep.subr.bf16.mxu0 0
        %1656 = vmatpush1.bf16.msra.mxu0 0
        %1657 = vmatprep.subr.bf16.mxu0 0
        %1658 = vmatpush1.bf16.msra.mxu0 0
        %1659 = vmatprep.subr.bf16.mxu0 0
        %1660 = vmatpush1.bf16.msra.mxu0 0
        %1661 = vmatprep.subr.bf16.mxu0 0
        %1662 = vmatpush1.bf16.msra.mxu0 0
        %1663 = vmatprep.subr.bf16.mxu0 0
        %1664 = vmatpush1.bf16.msra.mxu0 0
        %1665 = vmatprep.subr.bf16.mxu0 0
        %1666 = vmatpush1.bf16.msra.mxu0 0
        %1667 = vmatprep.subr.bf16.mxu0 0
        %1668 = vmatpush1.bf16.msra.mxu0 0
        %1669 = vmatprep.subr.bf16.mxu0 0
        %1670 = vmatpush1.bf16.msra.mxu0 0
        %1671 = vmatprep.subr.bf16.mxu0 0
        %1672 = vmatpush1.bf16.msra.mxu0 0
        %1673 = vmatprep.subr.bf16.mxu0 0
        %1674 = vmatpush1.bf16.msra.mxu0 0
        %1675 = vmatprep.subr.bf16.mxu0 0
        %1676 = vmatpush1.bf16.msra.mxu0 0
        %1677 = vmatprep.subr.bf16.mxu0 0
        %1678 = vmatpush1.bf16.msra.mxu0 0
        %1679 = vmatprep.subr.bf16.mxu0 0
        %1680 = vmatpush1.bf16.msra.mxu0 0
        %1681 = vmatprep.subr.bf16.mxu0 0
        %1682 = vmatpush1.bf16.msra.mxu0 0
        %1683 = vmatprep.mubr.bf16.mxu0 0
        %1684 = vmatmul.mubr.bf16.gmra.mrb[0].mxu0 %v1646
        %v1685 = vpop.f32.mrb[0].mxu0
        %v1686 = vadd.f32 0.0, %v1685
        %v1687 = vpop.f32.mrb[0].mxu0
        %v1688 = vadd.f32 0.0, %v1687
        %v1689 = vpop.f32.mrb[0].mxu0
        %v1690 = vadd.f32 0.0, %v1689
        %v1691 = vpop.f32.mrb[0].mxu0
        %v1692 = vadd.f32 0.0, %v1691
        %1693 = vmatprep.mubr.bf16.mxu0 0
        %1694 = vmatmul.mubr.bf16.gmra.mrb[0].mxu0 %v1649
        %v1695 = vpop.f32.mrb[0].mxu0
        %v1696 = vadd.f32 0.0, %v1695
        %v1697 = vpop.f32.mrb[0].mxu0
        %v1698 = vadd.f32 0.0, %v1697
        %v1699 = vpop.f32.mrb[0].mxu0
        %v1700 = vadd.f32 0.0, %v1699
        %v1701 = vpop.f32.mrb[0].mxu0
        %v1702 = vadd.f32 0.0, %v1701
        %1703 = vdwg.mxu0
        %v1704 = vpack.c.bf16 %v1690, %v1686
        %v1705 = vpack.c.bf16 %v1692, %v1688
        %v1706 = vpack.c.bf16 %v1700, %v1696
        %v1707 = vpack.c.bf16 %v1702, %v1698
        %v1708 = vld [vmem:[%s13] sm:$0xff]
        %v1709 = vld [vmem:[%s13 + $0x8] sm:$0xff]
        %v1710 = vld [vmem:[%s13 + $0x10] sm:$0xff]
        %v1711 = vld [vmem:[%s13 + $0x18] sm:$0xff]
        %v1712 = vld [vmem:[%s13 + $0x20] sm:$0xff]
        %v1713 = vld [vmem:[%s13 + $0x28] sm:$0xff]
        %v1714 = vld [vmem:[%s13 + $0x30] sm:$0xff]
        %v1715 = vld [vmem:[%s13 + $0x38] sm:$0xff]
        %v1716 = vld [vmem:[%s13 + $0x40] sm:$0xff]
        %v1717 = vld [vmem:[%s13 + $0x48] sm:$0xff]
        %v1718 = vld [vmem:[%s13 + $0x50] sm:$0xff]
        %v1719 = vld [vmem:[%s13 + $0x58] sm:$0xff]
        %v1720 = vld [vmem:[%s13 + $0x60] sm:$0xff]
        %v1721 = vld [vmem:[%s13 + $0x68] sm:$0xff]
        %v1722 = vld [vmem:[%s13 + $0x70] sm:$0xff]
        %v1723 = vld [vmem:[%s13 + $0x78] sm:$0xff]
        %v1724 = vld [vmem:[%s13 + $0x80] sm:$0xff]
        %v1725 = vld [vmem:[%s13 + $0x88] sm:$0xff]
        %v1726 = vld [vmem:[%s13 + $0x90] sm:$0xff]
        %v1727 = vld [vmem:[%s13 + $0x98] sm:$0xff]
        %v1728 = vld [vmem:[%s13 + $0xa0] sm:$0xff]
        %v1729 = vld [vmem:[%s13 + $0xa8] sm:$0xff]
        %v1730 = vld [vmem:[%s13 + $0xb0] sm:$0xff]
        %v1731 = vld [vmem:[%s13 + $0xb8] sm:$0xff]
        %v1732 = vld [vmem:[%s13 + $0xc0] sm:$0xff]
        %v1733 = vld [vmem:[%s13 + $0xc8] sm:$0xff]
        %v1734 = vld [vmem:[%s13 + $0xd0] sm:$0xff]
        %v1735 = vld [vmem:[%s13 + $0xd8] sm:$0xff]
        %v1736 = vld [vmem:[%s13 + $0xe0] sm:$0xff]
        %v1737 = vld [vmem:[%s13 + $0xe8] sm:$0xff]
        %v1738 = vld [vmem:[%s13 + $0xf0] sm:$0xff]
        %v1739 = vld [vmem:[%s13 + $0xf8] sm:$0xff]
        %s1740 = scalar_lea.vmem %s13, 256
        %v1741 = vld [vmem:[%s1740] sm:$0xff]
        %v1742 = vld [vmem:[%s1740 + $0x8] sm:$0xff]
        %v1743 = vld [vmem:[%s1740 + $0x10] sm:$0xff]
        %v1744 = vld [vmem:[%s1740 + $0x18] sm:$0xff]
        %v1745 = vld [vmem:[%s1740 + $0x20] sm:$0xff]
        %v1746 = vld [vmem:[%s1740 + $0x28] sm:$0xff]
        %v1747 = vld [vmem:[%s1740 + $0x30] sm:$0xff]
        %v1748 = vld [vmem:[%s1740 + $0x38] sm:$0xff]
        %v1749 = vld [vmem:[%s1740 + $0x40] sm:$0xff]
        %v1750 = vld [vmem:[%s1740 + $0x48] sm:$0xff]
        %v1751 = vld [vmem:[%s1740 + $0x50] sm:$0xff]
        %v1752 = vld [vmem:[%s1740 + $0x58] sm:$0xff]
        %v1753 = vld [vmem:[%s1740 + $0x60] sm:$0xff]
        %v1754 = vld [vmem:[%s1740 + $0x68] sm:$0xff]
        %v1755 = vld [vmem:[%s1740 + $0x70] sm:$0xff]
        %v1756 = vld [vmem:[%s1740 + $0x78] sm:$0xff]
        %v1757 = vld [vmem:[%s1740 + $0x80] sm:$0xff]
        %v1758 = vld [vmem:[%s1740 + $0x88] sm:$0xff]
        %v1759 = vld [vmem:[%s1740 + $0x90] sm:$0xff]
        %v1760 = vld [vmem:[%s1740 + $0x98] sm:$0xff]
        %v1761 = vld [vmem:[%s1740 + $0xa0] sm:$0xff]
        %v1762 = vld [vmem:[%s1740 + $0xa8] sm:$0xff]
        %v1763 = vld [vmem:[%s1740 + $0xb0] sm:$0xff]
        %v1764 = vld [vmem:[%s1740 + $0xb8] sm:$0xff]
        %v1765 = vld [vmem:[%s1740 + $0xc0] sm:$0xff]
        %v1766 = vld [vmem:[%s1740 + $0xc8] sm:$0xff]
        %v1767 = vld [vmem:[%s1740 + $0xd0] sm:$0xff]
        %v1768 = vld [vmem:[%s1740 + $0xd8] sm:$0xff]
        %v1769 = vld [vmem:[%s1740 + $0xe0] sm:$0xff]
        %v1770 = vld [vmem:[%s1740 + $0xe8] sm:$0xff]
        %v1771 = vld [vmem:[%s1740 + $0xf0] sm:$0xff]
        %v1772 = vld [vmem:[%s1740 + $0xf8] sm:$0xff]
        %v1805 = vunpack.c.l.b16 %v1741
        %v1806 = vunpack.c.h.b16 %v1741
        %v1807 = vunpack.c.l.b16 %v1742
        %v1808 = vunpack.c.h.b16 %v1742
        %v1809 = vunpack.c.l.b16 %v1743
        %v1810 = vunpack.c.h.b16 %v1743
        %v1811 = vunpack.c.l.b16 %v1744
        %v1812 = vunpack.c.h.b16 %v1744
        %v1813 = vunpack.c.l.b16 %v1745
        %v1814 = vunpack.c.h.b16 %v1745
        %v1815 = vunpack.c.l.b16 %v1746
        %v1816 = vunpack.c.h.b16 %v1746
        %v1817 = vunpack.c.l.b16 %v1747
        %v1818 = vunpack.c.h.b16 %v1747
        %v1819 = vunpack.c.l.b16 %v1748
        %v1820 = vunpack.c.h.b16 %v1748
        %v1821 = vunpack.c.l.b16 %v1749
        %v1822 = vunpack.c.h.b16 %v1749
        %v1823 = vunpack.c.l.b16 %v1750
        %v1824 = vunpack.c.h.b16 %v1750
        %v1825 = vunpack.c.l.b16 %v1751
        %v1826 = vunpack.c.h.b16 %v1751
        %v1827 = vunpack.c.l.b16 %v1752
        %v1828 = vunpack.c.h.b16 %v1752
        %v1829 = vunpack.c.l.b16 %v1753
        %v1830 = vunpack.c.h.b16 %v1753
        %v1831 = vunpack.c.l.b16 %v1754
        %v1832 = vunpack.c.h.b16 %v1754
        %v1833 = vunpack.c.l.b16 %v1755
        %v1834 = vunpack.c.h.b16 %v1755
        %v1835 = vunpack.c.l.b16 %v1756
        %v1836 = vunpack.c.h.b16 %v1756
        %v1837 = vunpack.c.l.b16 %v1757
        %v1838 = vunpack.c.h.b16 %v1757
        %v1839 = vunpack.c.l.b16 %v1758
        %v1840 = vunpack.c.h.b16 %v1758
        %v1841 = vunpack.c.l.b16 %v1759
        %v1842 = vunpack.c.h.b16 %v1759
        %v1843 = vunpack.c.l.b16 %v1760
        %v1844 = vunpack.c.h.b16 %v1760
        %v1845 = vunpack.c.l.b16 %v1761
        %v1846 = vunpack.c.h.b16 %v1761
        %v1847 = vunpack.c.l.b16 %v1762
        %v1848 = vunpack.c.h.b16 %v1762
        %v1849 = vunpack.c.l.b16 %v1763
        %v1850 = vunpack.c.h.b16 %v1763
        %v1851 = vunpack.c.l.b16 %v1764
        %v1852 = vunpack.c.h.b16 %v1764
        %v1853 = vunpack.c.l.b16 %v1765
        %v1854 = vunpack.c.h.b16 %v1765
        %v1855 = vunpack.c.l.b16 %v1766
        %v1856 = vunpack.c.h.b16 %v1766
        %v1857 = vunpack.c.l.b16 %v1767
        %v1858 = vunpack.c.h.b16 %v1767
        %v1859 = vunpack.c.l.b16 %v1768
        %v1860 = vunpack.c.h.b16 %v1768
        %v1861 = vunpack.c.l.b16 %v1769
        %v1862 = vunpack.c.h.b16 %v1769
        %v1863 = vunpack.c.l.b16 %v1770
        %v1864 = vunpack.c.h.b16 %v1770
        %v1865 = vunpack.c.l.b16 %v1771
        %v1866 = vunpack.c.h.b16 %v1771
        %v1867 = vunpack.c.l.b16 %v1772
        %v1868 = vunpack.c.h.b16 %v1772
        %v1869 = vpack.c.b16 %v1807, %v1805
        %v1870 = vpack.c.b16 %v1808, %v1806
        %v1871 = vpack.c.b16 %v1811, %v1809
        %v1872 = vpack.c.b16 %v1812, %v1810
        %v1873 = vpack.c.b16 %v1815, %v1813
        %v1874 = vpack.c.b16 %v1816, %v1814
        %v1875 = vpack.c.b16 %v1819, %v1817
        %v1876 = vpack.c.b16 %v1820, %v1818
        %v1877 = vpack.c.b16 %v1823, %v1821
        %v1878 = vpack.c.b16 %v1824, %v1822
        %v1879 = vpack.c.b16 %v1827, %v1825
        %v1880 = vpack.c.b16 %v1828, %v1826
        %v1881 = vpack.c.b16 %v1831, %v1829
        %v1882 = vpack.c.b16 %v1832, %v1830
        %v1883 = vpack.c.b16 %v1835, %v1833
        %v1884 = vpack.c.b16 %v1836, %v1834
        %v1885 = vpack.c.b16 %v1839, %v1837
        %v1886 = vpack.c.b16 %v1840, %v1838
        %v1887 = vpack.c.b16 %v1843, %v1841
        %v1888 = vpack.c.b16 %v1844, %v1842
        %v1889 = vpack.c.b16 %v1847, %v1845
        %v1890 = vpack.c.b16 %v1848, %v1846
        %v1891 = vpack.c.b16 %v1851, %v1849
        %v1892 = vpack.c.b16 %v1852, %v1850
        %v1893 = vpack.c.b16 %v1855, %v1853
        %v1894 = vpack.c.b16 %v1856, %v1854
        %v1895 = vpack.c.b16 %v1859, %v1857
        %v1896 = vpack.c.b16 %v1860, %v1858
        %v1897 = vpack.c.b16 %v1863, %v1861
        %v1898 = vpack.c.b16 %v1864, %v1862
        %v1899 = vpack.c.b16 %v1867, %v1865
        %v1900 = vpack.c.b16 %v1868, %v1866
        %1933 = vmatprep.subr.bf16.mxu0 %v1870
        %1934 = vmatpush1.bf16.msra.mxu0 %v1869
        %1935 = vmatprep.subr.bf16.mxu0 %v1872
        %1936 = vmatpush1.bf16.msra.mxu0 %v1871
        %1937 = vmatprep.subr.bf16.mxu0 %v1874
        %1938 = vmatpush1.bf16.msra.mxu0 %v1873
        %1939 = vmatprep.subr.bf16.mxu0 %v1876
        %1940 = vmatpush1.bf16.msra.mxu0 %v1875
        %1941 = vmatprep.subr.bf16.mxu0 %v1878
        %1942 = vmatpush1.bf16.msra.mxu0 %v1877
        %1943 = vmatprep.subr.bf16.mxu0 %v1880
        %1944 = vmatpush1.bf16.msra.mxu0 %v1879
        %1945 = vmatprep.subr.bf16.mxu0 %v1882
        %1946 = vmatpush1.bf16.msra.mxu0 %v1881
        %1947 = vmatprep.subr.bf16.mxu0 %v1884
        %1948 = vmatpush1.bf16.msra.mxu0 %v1883
        %1949 = vmatprep.subr.bf16.mxu0 %v1886
        %1950 = vmatpush1.bf16.msra.mxu0 %v1885
        %1951 = vmatprep.subr.bf16.mxu0 %v1888
        %1952 = vmatpush1.bf16.msra.mxu0 %v1887
        %1953 = vmatprep.subr.bf16.mxu0 %v1890
        %1954 = vmatpush1.bf16.msra.mxu0 %v1889
        %1955 = vmatprep.subr.bf16.mxu0 %v1892
        %1956 = vmatpush1.bf16.msra.mxu0 %v1891
        %1957 = vmatprep.subr.bf16.mxu0 %v1894
        %1958 = vmatpush1.bf16.msra.mxu0 %v1893
        %1959 = vmatprep.subr.bf16.mxu0 %v1896
        %1960 = vmatpush1.bf16.msra.mxu0 %v1895
        %1961 = vmatprep.subr.bf16.mxu0 %v1898
        %1962 = vmatpush1.bf16.msra.mxu0 %v1897
        %1963 = vmatprep.subr.bf16.mxu0 %v1900
        %1964 = vmatpush1.bf16.msra.mxu0 %v1899
        %1965 = vmatprep.mubr.bf16.mxu0 %v1628
        %1966 = vmatmul.mubr.bf16.gmra.mrb[0].mxu0 %v1627
        %v1967 = vpop.f32.mrb[0].mxu0
        %v1968 = vadd.f32 0.0, %v1967
        %v1969 = vpop.f32.mrb[0].mxu0
        %v1970 = vadd.f32 0.0, %v1969
        %v1971 = vpop.f32.mrb[0].mxu0
        %v1972 = vadd.f32 0.0, %v1971
        %v1973 = vpop.f32.mrb[0].mxu0
        %v1974 = vadd.f32 0.0, %v1973
        %1975 = vmatprep.mubr.bf16.mxu0 %v1630
        %1976 = vmatmul.mubr.bf16.gmra.mrb[0].mxu0 %v1629
        %v1977 = vpop.f32.mrb[0].mxu0
        %v1978 = vadd.f32 0.0, %v1977
        %v1979 = vpop.f32.mrb[0].mxu0
        %v1980 = vadd.f32 0.0, %v1979
        %v1981 = vpop.f32.mrb[0].mxu0
        %v1982 = vadd.f32 0.0, %v1981
        %v1983 = vpop.f32.mrb[0].mxu0
        %v1984 = vadd.f32 0.0, %v1983
        %1985 = vdwg.mxu0
        %v2018 = vunpack.c.l.b16 %v1708
        %v2019 = vunpack.c.h.b16 %v1708
        %v2020 = vunpack.c.l.b16 %v1709
        %v2021 = vunpack.c.h.b16 %v1709
        %v2022 = vunpack.c.l.b16 %v1710
        %v2023 = vunpack.c.h.b16 %v1710
        %v2024 = vunpack.c.l.b16 %v1711
        %v2025 = vunpack.c.h.b16 %v1711
        %v2026 = vunpack.c.l.b16 %v1712
        %v2027 = vunpack.c.h.b16 %v1712
        %v2028 = vunpack.c.l.b16 %v1713
        %v2029 = vunpack.c.h.b16 %v1713
        %v2030 = vunpack.c.l.b16 %v1714
        %v2031 = vunpack.c.h.b16 %v1714
        %v2032 = vunpack.c.l.b16 %v1715
        %v2033 = vunpack.c.h.b16 %v1715
        %v2034 = vunpack.c.l.b16 %v1716
        %v2035 = vunpack.c.h.b16 %v1716
        %v2036 = vunpack.c.l.b16 %v1717
        %v2037 = vunpack.c.h.b16 %v1717
        %v2038 = vunpack.c.l.b16 %v1718
        %v2039 = vunpack.c.h.b16 %v1718
        %v2040 = vunpack.c.l.b16 %v1719
        %v2041 = vunpack.c.h.b16 %v1719
        %v2042 = vunpack.c.l.b16 %v1720
        %v2043 = vunpack.c.h.b16 %v1720
        %v2044 = vunpack.c.l.b16 %v1721
        %v2045 = vunpack.c.h.b16 %v1721
        %v2046 = vunpack.c.l.b16 %v1722
        %v2047 = vunpack.c.h.b16 %v1722
        %v2048 = vunpack.c.l.b16 %v1723
        %v2049 = vunpack.c.h.b16 %v1723
        %v2050 = vunpack.c.l.b16 %v1724
        %v2051 = vunpack.c.h.b16 %v1724
        %v2052 = vunpack.c.l.b16 %v1725
        %v2053 = vunpack.c.h.b16 %v1725
        %v2054 = vunpack.c.l.b16 %v1726
        %v2055 = vunpack.c.h.b16 %v1726
        %v2056 = vunpack.c.l.b16 %v1727
        %v2057 = vunpack.c.h.b16 %v1727
        %v2058 = vunpack.c.l.b16 %v1728
        %v2059 = vunpack.c.h.b16 %v1728
        %v2060 = vunpack.c.l.b16 %v1729
        %v2061 = vunpack.c.h.b16 %v1729
        %v2062 = vunpack.c.l.b16 %v1730
        %v2063 = vunpack.c.h.b16 %v1730
        %v2064 = vunpack.c.l.b16 %v1731
        %v2065 = vunpack.c.h.b16 %v1731
        %v2066 = vunpack.c.l.b16 %v1732
        %v2067 = vunpack.c.h.b16 %v1732
        %v2068 = vunpack.c.l.b16 %v1733
        %v2069 = vunpack.c.h.b16 %v1733
        %v2070 = vunpack.c.l.b16 %v1734
        %v2071 = vunpack.c.h.b16 %v1734
        %v2072 = vunpack.c.l.b16 %v1735
        %v2073 = vunpack.c.h.b16 %v1735
        %v2074 = vunpack.c.l.b16 %v1736
        %v2075 = vunpack.c.h.b16 %v1736
        %v2076 = vunpack.c.l.b16 %v1737
        %v2077 = vunpack.c.h.b16 %v1737
        %v2078 = vunpack.c.l.b16 %v1738
        %v2079 = vunpack.c.h.b16 %v1738
        %v2080 = vunpack.c.l.b16 %v1739
        %v2081 = vunpack.c.h.b16 %v1739
        %v2082 = vpack.c.b16 %v2020, %v2018
        %v2083 = vpack.c.b16 %v2021, %v2019
        %v2084 = vpack.c.b16 %v2024, %v2022
        %v2085 = vpack.c.b16 %v2025, %v2023
        %v2086 = vpack.c.b16 %v2028, %v2026
        %v2087 = vpack.c.b16 %v2029, %v2027
        %v2088 = vpack.c.b16 %v2032, %v2030
        %v2089 = vpack.c.b16 %v2033, %v2031
        %v2090 = vpack.c.b16 %v2036, %v2034
        %v2091 = vpack.c.b16 %v2037, %v2035
        %v2092 = vpack.c.b16 %v2040, %v2038
        %v2093 = vpack.c.b16 %v2041, %v2039
        %v2094 = vpack.c.b16 %v2044, %v2042
        %v2095 = vpack.c.b16 %v2045, %v2043
        %v2096 = vpack.c.b16 %v2048, %v2046
        %v2097 = vpack.c.b16 %v2049, %v2047
        %v2098 = vpack.c.b16 %v2052, %v2050
        %v2099 = vpack.c.b16 %v2053, %v2051
        %v2100 = vpack.c.b16 %v2056, %v2054
        %v2101 = vpack.c.b16 %v2057, %v2055
        %v2102 = vpack.c.b16 %v2060, %v2058
        %v2103 = vpack.c.b16 %v2061, %v2059
        %v2104 = vpack.c.b16 %v2064, %v2062
        %v2105 = vpack.c.b16 %v2065, %v2063
        %v2106 = vpack.c.b16 %v2068, %v2066
        %v2107 = vpack.c.b16 %v2069, %v2067
        %v2108 = vpack.c.b16 %v2072, %v2070
        %v2109 = vpack.c.b16 %v2073, %v2071
        %v2110 = vpack.c.b16 %v2076, %v2074
        %v2111 = vpack.c.b16 %v2077, %v2075
        %v2112 = vpack.c.b16 %v2080, %v2078
        %v2113 = vpack.c.b16 %v2081, %v2079
        %2146 = vmatprep.subr.bf16.mxu0 %v2083
        %2147 = vmatpush1.bf16.msra.mxu0 %v2082
        %2148 = vmatprep.subr.bf16.mxu0 %v2085
        %2149 = vmatpush1.bf16.msra.mxu0 %v2084
        %2150 = vmatprep.subr.bf16.mxu0 %v2087
        %2151 = vmatpush1.bf16.msra.mxu0 %v2086
        %2152 = vmatprep.subr.bf16.mxu0 %v2089
        %2153 = vmatpush1.bf16.msra.mxu0 %v2088
        %2154 = vmatprep.subr.bf16.mxu0 %v2091
        %2155 = vmatpush1.bf16.msra.mxu0 %v2090
        %2156 = vmatprep.subr.bf16.mxu0 %v2093
        %2157 = vmatpush1.bf16.msra.mxu0 %v2092
        %2158 = vmatprep.subr.bf16.mxu0 %v2095
        %2159 = vmatpush1.bf16.msra.mxu0 %v2094
        %2160 = vmatprep.subr.bf16.mxu0 %v2097
        %2161 = vmatpush1.bf16.msra.mxu0 %v2096
        %2162 = vmatprep.subr.bf16.mxu0 %v2099
        %2163 = vmatpush1.bf16.msra.mxu0 %v2098
        %2164 = vmatprep.subr.bf16.mxu0 %v2101
        %2165 = vmatpush1.bf16.msra.mxu0 %v2100
        %2166 = vmatprep.subr.bf16.mxu0 %v2103
        %2167 = vmatpush1.bf16.msra.mxu0 %v2102
        %2168 = vmatprep.subr.bf16.mxu0 %v2105
        %2169 = vmatpush1.bf16.msra.mxu0 %v2104
        %2170 = vmatprep.subr.bf16.mxu0 %v2107
        %2171 = vmatpush1.bf16.msra.mxu0 %v2106
        %2172 = vmatprep.subr.bf16.mxu0 %v2109
        %2173 = vmatpush1.bf16.msra.mxu0 %v2108
        %2174 = vmatprep.subr.bf16.mxu0 %v2111
        %2175 = vmatpush1.bf16.msra.mxu0 %v2110
        %2176 = vmatprep.subr.bf16.mxu0 %v2113
        %2177 = vmatpush1.bf16.msra.mxu0 %v2112
        %2178 = vmatprep.mubr.bf16.mxu0 %v1705
        %2179 = vmatmul.mubr.bf16.gmra.mrb[0].mxu0 %v1704
        %v2180 = vpop.f32.mrb[0].mxu0
        %v2181 = vadd.f32 %v1968, %v2180
        %v2182 = vpop.f32.mrb[0].mxu0
        %v2183 = vadd.f32 %v1970, %v2182
        %v2184 = vpop.f32.mrb[0].mxu0
        %v2185 = vadd.f32 %v1972, %v2184
        %v2186 = vpop.f32.mrb[0].mxu0
        %v2187 = vadd.f32 %v1974, %v2186
        %2188 = vmatprep.mubr.bf16.mxu0 %v1707
        %2189 = vmatmul.mubr.bf16.gmra.mrb[0].mxu0 %v1706
        %v2190 = vpop.f32.mrb[0].mxu0
        %v2191 = vadd.f32 %v1978, %v2190
        %v2192 = vpop.f32.mrb[0].mxu0
        %v2193 = vadd.f32 %v1980, %v2192
        %v2194 = vpop.f32.mrb[0].mxu0
        %v2195 = vadd.f32 %v1982, %v2194
        %v2196 = vpop.f32.mrb[0].mxu0
        %v2197 = vadd.f32 %v1984, %v2196
        %2198 = vdwg.mxu0
        %s2199 = scalar_lea.vmem %s11, 32
        %v2200 = vld [vmem:[%s2199] sm:$0xf]
        %v2201 = vld [vmem:[%s2199 + $0x4] sm:$0xf]
        %v2202 = vld [vmem:[%s2199 + $0x8] sm:$0xf]
        %v2203 = vld [vmem:[%s2199 + $0xc] sm:$0xf]
        %v2208 = vunpack.c.l.b16 %v2200
        %v2209 = vunpack.c.l.b16 %v2201
        %v2210 = vunpack.c.l.b16 %v2202
        %v2211 = vunpack.c.l.b16 %v2203
        %v2212 = vpack.c.b16 %v2209, %v2208
        %v2213 = vpack.c.b16 %v2211, %v2210
        %v2215 = vsel %vm1296, %v2212, 0
        %v2218 = vsel %vm1296, %v2213, 0
        %2220 = vmatprep.subr.bf16.mxu0 %v1628
        %2221 = vmatpush1.bf16.msra.mxu0 %v1627
        %2222 = vmatprep.subr.bf16.mxu0 %v1630
        %2223 = vmatpush1.bf16.msra.mxu0 %v1629
        %2224 = vmatprep.subr.bf16.mxu0 0
        %2225 = vmatpush1.bf16.msra.mxu0 0
        %2226 = vmatprep.subr.bf16.mxu0 0
        %2227 = vmatpush1.bf16.msra.mxu0 0
        %2228 = vmatprep.subr.bf16.mxu0 0
        %2229 = vmatpush1.bf16.msra.mxu0 0
        %2230 = vmatprep.subr.bf16.mxu0 0
        %2231 = vmatpush1.bf16.msra.mxu0 0
        %2232 = vmatprep.subr.bf16.mxu0 0
        %2233 = vmatpush1.bf16.msra.mxu0 0
        %2234 = vmatprep.subr.bf16.mxu0 0
        %2235 = vmatpush1.bf16.msra.mxu0 0
        %2236 = vmatprep.subr.bf16.mxu0 0
        %2237 = vmatpush1.bf16.msra.mxu0 0
        %2238 = vmatprep.subr.bf16.mxu0 0
        %2239 = vmatpush1.bf16.msra.mxu0 0
        %2240 = vmatprep.subr.bf16.mxu0 0
        %2241 = vmatpush1.bf16.msra.mxu0 0
        %2242 = vmatprep.subr.bf16.mxu0 0
        %2243 = vmatpush1.bf16.msra.mxu0 0
        %2244 = vmatprep.subr.bf16.mxu0 0
        %2245 = vmatpush1.bf16.msra.mxu0 0
        %2246 = vmatprep.subr.bf16.mxu0 0
        %2247 = vmatpush1.bf16.msra.mxu0 0
        %2248 = vmatprep.subr.bf16.mxu0 0
        %2249 = vmatpush1.bf16.msra.mxu0 0
        %2250 = vmatprep.subr.bf16.mxu0 0
        %2251 = vmatpush1.bf16.msra.mxu0 0
        %2252 = vmatprep.mubr.bf16.mxu0 0
        %2253 = vmatmul.mubr.bf16.gmra.mrb[0].mxu0 %v2215
        %v2254 = vpop.f32.mrb[0].mxu0
        %v2255 = vadd.f32 0.0, %v2254
        %v2256 = vpop.f32.mrb[0].mxu0
        %v2257 = vadd.f32 0.0, %v2256
        %v2258 = vpop.f32.mrb[0].mxu0
        %v2259 = vadd.f32 0.0, %v2258
        %v2260 = vpop.f32.mrb[0].mxu0
        %v2261 = vadd.f32 0.0, %v2260
        %2262 = vmatprep.mubr.bf16.mxu0 0
        %2263 = vmatmul.mubr.bf16.gmra.mrb[0].mxu0 %v2218
        %v2264 = vpop.f32.mrb[0].mxu0
        %v2265 = vadd.f32 0.0, %v2264
        %v2266 = vpop.f32.mrb[0].mxu0
        %v2267 = vadd.f32 0.0, %v2266
        %v2268 = vpop.f32.mrb[0].mxu0
        %v2269 = vadd.f32 0.0, %v2268
        %v2270 = vpop.f32.mrb[0].mxu0
        %v2271 = vadd.f32 0.0, %v2270
        %2272 = vdwg.mxu0
        %v2273 = vpack.c.bf16 %v2259, %v2255
        %v2274 = vpack.c.bf16 %v2261, %v2257
        %v2275 = vpack.c.bf16 %v2269, %v2265
        %v2276 = vpack.c.bf16 %v2271, %v2267
        %s2277 = scalar_lea.vmem %s13, 512
        %v2278 = vld [vmem:[%s2277] sm:$0xff]
        %v2279 = vld [vmem:[%s2277 + $0x8] sm:$0xff]
        %v2280 = vld [vmem:[%s2277 + $0x10] sm:$0xff]
        %v2281 = vld [vmem:[%s2277 + $0x18] sm:$0xff]
        %v2282 = vld [vmem:[%s2277 + $0x20] sm:$0xff]
        %v2283 = vld [vmem:[%s2277 + $0x28] sm:$0xff]
        %v2284 = vld [vmem:[%s2277 + $0x30] sm:$0xff]
        %v2285 = vld [vmem:[%s2277 + $0x38] sm:$0xff]
        %v2286 = vld [vmem:[%s2277 + $0x40] sm:$0xff]
        %v2287 = vld [vmem:[%s2277 + $0x48] sm:$0xff]
        %v2288 = vld [vmem:[%s2277 + $0x50] sm:$0xff]
        %v2289 = vld [vmem:[%s2277 + $0x58] sm:$0xff]
        %v2290 = vld [vmem:[%s2277 + $0x60] sm:$0xff]
        %v2291 = vld [vmem:[%s2277 + $0x68] sm:$0xff]
        %v2292 = vld [vmem:[%s2277 + $0x70] sm:$0xff]
        %v2293 = vld [vmem:[%s2277 + $0x78] sm:$0xff]
        %v2294 = vld [vmem:[%s2277 + $0x80] sm:$0xff]
        %v2295 = vld [vmem:[%s2277 + $0x88] sm:$0xff]
        %v2296 = vld [vmem:[%s2277 + $0x90] sm:$0xff]
        %v2297 = vld [vmem:[%s2277 + $0x98] sm:$0xff]
        %v2298 = vld [vmem:[%s2277 + $0xa0] sm:$0xff]
        %v2299 = vld [vmem:[%s2277 + $0xa8] sm:$0xff]
        %v2300 = vld [vmem:[%s2277 + $0xb0] sm:$0xff]
        %v2301 = vld [vmem:[%s2277 + $0xb8] sm:$0xff]
        %v2302 = vld [vmem:[%s2277 + $0xc0] sm:$0xff]
        %v2303 = vld [vmem:[%s2277 + $0xc8] sm:$0xff]
        %v2304 = vld [vmem:[%s2277 + $0xd0] sm:$0xff]
        %v2305 = vld [vmem:[%s2277 + $0xd8] sm:$0xff]
        %v2306 = vld [vmem:[%s2277 + $0xe0] sm:$0xff]
        %v2307 = vld [vmem:[%s2277 + $0xe8] sm:$0xff]
        %v2308 = vld [vmem:[%s2277 + $0xf0] sm:$0xff]
        %v2309 = vld [vmem:[%s2277 + $0xf8] sm:$0xff]
        %v2342 = vunpack.c.l.b16 %v2278
        %v2343 = vunpack.c.h.b16 %v2278
        %v2344 = vunpack.c.l.b16 %v2279
        %v2345 = vunpack.c.h.b16 %v2279
        %v2346 = vunpack.c.l.b16 %v2280
        %v2347 = vunpack.c.h.b16 %v2280
        %v2348 = vunpack.c.l.b16 %v2281
        %v2349 = vunpack.c.h.b16 %v2281
        %v2350 = vunpack.c.l.b16 %v2282
        %v2351 = vunpack.c.h.b16 %v2282
        %v2352 = vunpack.c.l.b16 %v2283
        %v2353 = vunpack.c.h.b16 %v2283
        %v2354 = vunpack.c.l.b16 %v2284
        %v2355 = vunpack.c.h.b16 %v2284
        %v2356 = vunpack.c.l.b16 %v2285
        %v2357 = vunpack.c.h.b16 %v2285
        %v2358 = vunpack.c.l.b16 %v2286
        %v2359 = vunpack.c.h.b16 %v2286
        %v2360 = vunpack.c.l.b16 %v2287
        %v2361 = vunpack.c.h.b16 %v2287
        %v2362 = vunpack.c.l.b16 %v2288
        %v2363 = vunpack.c.h.b16 %v2288
        %v2364 = vunpack.c.l.b16 %v2289
        %v2365 = vunpack.c.h.b16 %v2289
        %v2366 = vunpack.c.l.b16 %v2290
        %v2367 = vunpack.c.h.b16 %v2290
        %v2368 = vunpack.c.l.b16 %v2291
        %v2369 = vunpack.c.h.b16 %v2291
        %v2370 = vunpack.c.l.b16 %v2292
        %v2371 = vunpack.c.h.b16 %v2292
        %v2372 = vunpack.c.l.b16 %v2293
        %v2373 = vunpack.c.h.b16 %v2293
        %v2374 = vunpack.c.l.b16 %v2294
        %v2375 = vunpack.c.h.b16 %v2294
        %v2376 = vunpack.c.l.b16 %v2295
        %v2377 = vunpack.c.h.b16 %v2295
        %v2378 = vunpack.c.l.b16 %v2296
        %v2379 = vunpack.c.h.b16 %v2296
        %v2380 = vunpack.c.l.b16 %v2297
        %v2381 = vunpack.c.h.b16 %v2297
        %v2382 = vunpack.c.l.b16 %v2298
        %v2383 = vunpack.c.h.b16 %v2298
        %v2384 = vunpack.c.l.b16 %v2299
        %v2385 = vunpack.c.h.b16 %v2299
        %v2386 = vunpack.c.l.b16 %v2300
        %v2387 = vunpack.c.h.b16 %v2300
        %v2388 = vunpack.c.l.b16 %v2301
        %v2389 = vunpack.c.h.b16 %v2301
        %v2390 = vunpack.c.l.b16 %v2302
        %v2391 = vunpack.c.h.b16 %v2302
        %v2392 = vunpack.c.l.b16 %v2303
        %v2393 = vunpack.c.h.b16 %v2303
        %v2394 = vunpack.c.l.b16 %v2304
        %v2395 = vunpack.c.h.b16 %v2304
        %v2396 = vunpack.c.l.b16 %v2305
        %v2397 = vunpack.c.h.b16 %v2305
        %v2398 = vunpack.c.l.b16 %v2306
        %v2399 = vunpack.c.h.b16 %v2306
        %v2400 = vunpack.c.l.b16 %v2307
        %v2401 = vunpack.c.h.b16 %v2307
        %v2402 = vunpack.c.l.b16 %v2308
        %v2403 = vunpack.c.h.b16 %v2308
        %v2404 = vunpack.c.l.b16 %v2309
        %v2405 = vunpack.c.h.b16 %v2309
        %v2406 = vpack.c.b16 %v2344, %v2342
        %v2407 = vpack.c.b16 %v2345, %v2343
        %v2408 = vpack.c.b16 %v2348, %v2346
        %v2409 = vpack.c.b16 %v2349, %v2347
        %v2410 = vpack.c.b16 %v2352, %v2350
        %v2411 = vpack.c.b16 %v2353, %v2351
        %v2412 = vpack.c.b16 %v2356, %v2354
        %v2413 = vpack.c.b16 %v2357, %v2355
        %v2414 = vpack.c.b16 %v2360, %v2358
        %v2415 = vpack.c.b16 %v2361, %v2359
        %v2416 = vpack.c.b16 %v2364, %v2362
        %v2417 = vpack.c.b16 %v2365, %v2363
        %v2418 = vpack.c.b16 %v2368, %v2366
        %v2419 = vpack.c.b16 %v2369, %v2367
        %v2420 = vpack.c.b16 %v2372, %v2370
        %v2421 = vpack.c.b16 %v2373, %v2371
        %v2422 = vpack.c.b16 %v2376, %v2374
        %v2423 = vpack.c.b16 %v2377, %v2375
        %v2424 = vpack.c.b16 %v2380, %v2378
        %v2425 = vpack.c.b16 %v2381, %v2379
        %v2426 = vpack.c.b16 %v2384, %v2382
        %v2427 = vpack.c.b16 %v2385, %v2383
        %v2428 = vpack.c.b16 %v2388, %v2386
        %v2429 = vpack.c.b16 %v2389, %v2387
        %v2430 = vpack.c.b16 %v2392, %v2390
        %v2431 = vpack.c.b16 %v2393, %v2391
        %v2432 = vpack.c.b16 %v2396, %v2394
        %v2433 = vpack.c.b16 %v2397, %v2395
        %v2434 = vpack.c.b16 %v2400, %v2398
        %v2435 = vpack.c.b16 %v2401, %v2399
        %v2436 = vpack.c.b16 %v2404, %v2402
        %v2437 = vpack.c.b16 %v2405, %v2403
        %2470 = vmatprep.subr.bf16.mxu0 %v2407
        %2471 = vmatpush1.bf16.msra.mxu0 %v2406
        %2472 = vmatprep.subr.bf16.mxu0 %v2409
        %2473 = vmatpush1.bf16.msra.mxu0 %v2408
        %2474 = vmatprep.subr.bf16.mxu0 %v2411
        %2475 = vmatpush1.bf16.msra.mxu0 %v2410
        %2476 = vmatprep.subr.bf16.mxu0 %v2413
        %2477 = vmatpush1.bf16.msra.mxu0 %v2412
        %2478 = vmatprep.subr.bf16.mxu0 %v2415
        %2479 = vmatpush1.bf16.msra.mxu0 %v2414
        %2480 = vmatprep.subr.bf16.mxu0 %v2417
        %2481 = vmatpush1.bf16.msra.mxu0 %v2416
        %2482 = vmatprep.subr.bf16.mxu0 %v2419
        %2483 = vmatpush1.bf16.msra.mxu0 %v2418
        %2484 = vmatprep.subr.bf16.mxu0 %v2421
        %2485 = vmatpush1.bf16.msra.mxu0 %v2420
        %2486 = vmatprep.subr.bf16.mxu0 %v2423
        %2487 = vmatpush1.bf16.msra.mxu0 %v2422
        %2488 = vmatprep.subr.bf16.mxu0 %v2425
        %2489 = vmatpush1.bf16.msra.mxu0 %v2424
        %2490 = vmatprep.subr.bf16.mxu0 %v2427
        %2491 = vmatpush1.bf16.msra.mxu0 %v2426
        %2492 = vmatprep.subr.bf16.mxu0 %v2429
        %2493 = vmatpush1.bf16.msra.mxu0 %v2428
        %2494 = vmatprep.subr.bf16.mxu0 %v2431
        %2495 = vmatpush1.bf16.msra.mxu0 %v2430
        %2496 = vmatprep.subr.bf16.mxu0 %v2433
        %2497 = vmatpush1.bf16.msra.mxu0 %v2432
        %2498 = vmatprep.subr.bf16.mxu0 %v2435
        %2499 = vmatpush1.bf16.msra.mxu0 %v2434
        %2500 = vmatprep.subr.bf16.mxu0 %v2437
        %2501 = vmatpush1.bf16.msra.mxu0 %v2436
        %2502 = vmatprep.mubr.bf16.mxu0 %v2274
        %2503 = vmatmul.mubr.bf16.gmra.mrb[0].mxu0 %v2273
        %v2504 = vpop.f32.mrb[0].mxu0
        %v2505 = vadd.f32 0.0, %v2504
        %v2506 = vpop.f32.mrb[0].mxu0
        %v2507 = vadd.f32 0.0, %v2506
        %v2508 = vpop.f32.mrb[0].mxu0
        %v2509 = vadd.f32 0.0, %v2508
        %v2510 = vpop.f32.mrb[0].mxu0
        %v2511 = vadd.f32 0.0, %v2510
        %2512 = vmatprep.mubr.bf16.mxu0 %v2276
        %2513 = vmatmul.mubr.bf16.gmra.mrb[0].mxu0 %v2275
        %v2514 = vpop.f32.mrb[0].mxu0
        %v2515 = vadd.f32 0.0, %v2514
        %v2516 = vpop.f32.mrb[0].mxu0
        %v2517 = vadd.f32 0.0, %v2516
        %v2518 = vpop.f32.mrb[0].mxu0
        %v2519 = vadd.f32 0.0, %v2518
        %v2520 = vpop.f32.mrb[0].mxu0
        %v2521 = vadd.f32 0.0, %v2520
        %2522 = vdwg.mxu0
        %v2523 = vadd.f32 %v2181, %v2505
        %v2524 = vadd.f32 %v2183, %v2507
        %v2525 = vadd.f32 %v2185, %v2509
        %v2526 = vadd.f32 %v2187, %v2511
        %v2527 = vadd.f32 %v2191, %v2515
        %v2528 = vadd.f32 %v2193, %v2517
        %v2529 = vadd.f32 %v2195, %v2519
        %v2530 = vadd.f32 %v2197, %v2521
        %v2531 = vld [vmem:[%s15] sm:$0x3]
        %v2533 = vlaneseq
        %v2534 = vshrl.u32 %v2533, 7
        %v2535 = vsub.s32 0, %v2534
        %v2536 = vrot.slane %v2531, %v2535
        %v2537 = vlaneseq
        %v2538 = vshrl.u32 %v2537, 7
        %v2539 = vsub.s32 1, %v2538
        %v2540 = vrot.slane %v2531, %v2539
        %v2543 = vadd.f32 %v2523, %v2536
        %v2544 = vadd.f32 %v2524, %v2540
        %v2545 = vadd.f32 %v2525, %v2536
        %v2546 = vadd.f32 %v2526, %v2540
        %v2547 = vadd.f32 %v2527, %v2536
        %v2548 = vadd.f32 %v2528, %v2540
        %v2549 = vadd.f32 %v2529, %v2536
        %v2550 = vadd.f32 %v2530, %v2540
        %v2551 = vmax.f32 %v2543, 0.0
        %v2552 = vmax.f32 %v2544, 0.0
        %v2553 = vmax.f32 %v2545, 0.0
        %v2554 = vmax.f32 %v2546, 0.0
        %v2555 = vmax.f32 %v2547, 0.0
        %v2556 = vmax.f32 %v2548, 0.0
        %v2557 = vmax.f32 %v2549, 0.0
        %v2558 = vmax.f32 %v2550, 0.0
        %v2559 = vpack.c.bf16 %v2553, %v2551
        %v2560 = vpack.c.bf16 %v2554, %v2552
        %v2561 = vpack.c.bf16 %v2557, %v2555
        %v2562 = vpack.c.bf16 %v2558, %v2556
        %v2563 = vld [vmem:[%s17] sm:$0xf]
        %v2564 = vld [vmem:[%s17 + $0x4] sm:$0xf]
        %v2567 = vunpack.c.l.b16 %v2563
        %v2568 = vunpack.c.l.b16 %v2564
        %v2569 = vpack.c.b16 %v2568, %v2567
        %v2571 = vsel %vm1296, %v2569, 0
        %2573 = vmatprep.subr.bf16.mxu0 %v2560
        %2574 = vmatpush1.bf16.msra.mxu0 %v2559
        %2575 = vmatprep.subr.bf16.mxu0 %v2562
        %2576 = vmatpush1.bf16.msra.mxu0 %v2561
        %2577 = vmatprep.subr.bf16.mxu0 0
        %2578 = vmatpush1.bf16.msra.mxu0 0
        %2579 = vmatprep.subr.bf16.mxu0 0
        %2580 = vmatpush1.bf16.msra.mxu0 0
        %2581 = vmatprep.subr.bf16.mxu0 0
        %2582 = vmatpush1.bf16.msra.mxu0 0
        %2583 = vmatprep.subr.bf16.mxu0 0
        %2584 = vmatpush1.bf16.msra.mxu0 0
        %2585 = vmatprep.subr.bf16.mxu0 0
        %2586 = vmatpush1.bf16.msra.mxu0 0
        %2587 = vmatprep.subr.bf16.mxu0 0
        %2588 = vmatpush1.bf16.msra.mxu0 0
        %2589 = vmatprep.subr.bf16.mxu0 0
        %2590 = vmatpush1.bf16.msra.mxu0 0
        %2591 = vmatprep.subr.bf16.mxu0 0
        %2592 = vmatpush1.bf16.msra.mxu0 0
        %2593 = vmatprep.subr.bf16.mxu0 0
        %2594 = vmatpush1.bf16.msra.mxu0 0
        %2595 = vmatprep.subr.bf16.mxu0 0
        %2596 = vmatpush1.bf16.msra.mxu0 0
        %2597 = vmatprep.subr.bf16.mxu0 0
        %2598 = vmatpush1.bf16.msra.mxu0 0
        %2599 = vmatprep.subr.bf16.mxu0 0
        %2600 = vmatpush1.bf16.msra.mxu0 0
        %2601 = vmatprep.subr.bf16.mxu0 0
        %2602 = vmatpush1.bf16.msra.mxu0 0
        %2603 = vmatprep.subr.bf16.mxu0 0
        %2604 = vmatpush1.bf16.msra.mxu0 0
        %2605 = vmatprep.mubr.bf16.mxu0 0
        %2606 = vmatmul.mubr.bf16.gmra.mrb[0].mxu0 %v2571
        %v2607 = vpop.f32.mrb[0].mxu0
        %v2608 = vadd.f32 0.0, %v2607
        %v2609 = vpop.f32.mrb[0].mxu0
        %v2610 = vadd.f32 0.0, %v2609
        %v2611 = vpop.f32.mrb[0].mxu0
        %v2612 = vadd.f32 0.0, %v2611
        %v2613 = vpop.f32.mrb[0].mxu0
        %v2614 = vadd.f32 0.0, %v2613
        %2615 = vdwg.mxu0
        %v2616 = vpack.c.bf16 %v2612, %v2608
        %v2617 = vpack.c.bf16 %v2614, %v2610
        %v2618 = vld [vmem:[%s19] sm:$0xff]
        %v2619 = vld [vmem:[%s19 + $0x8] sm:$0xff]
        %v2620 = vld [vmem:[%s19 + $0x10] sm:$0xff]
        %v2621 = vld [vmem:[%s19 + $0x18] sm:$0xff]
        %v2622 = vld [vmem:[%s19 + $0x20] sm:$0xff]
        %v2623 = vld [vmem:[%s19 + $0x28] sm:$0xff]
        %v2624 = vld [vmem:[%s19 + $0x30] sm:$0xff]
        %v2625 = vld [vmem:[%s19 + $0x38] sm:$0xff]
        %v2626 = vld [vmem:[%s19 + $0x40] sm:$0xff]
        %v2627 = vld [vmem:[%s19 + $0x48] sm:$0xff]
        %v2628 = vld [vmem:[%s19 + $0x50] sm:$0xff]
        %v2629 = vld [vmem:[%s19 + $0x58] sm:$0xff]
        %v2630 = vld [vmem:[%s19 + $0x60] sm:$0xff]
        %v2631 = vld [vmem:[%s19 + $0x68] sm:$0xff]
        %v2632 = vld [vmem:[%s19 + $0x70] sm:$0xff]
        %v2633 = vld [vmem:[%s19 + $0x78] sm:$0xff]
        %v2634 = vld [vmem:[%s19 + $0x80] sm:$0xff]
        %v2635 = vld [vmem:[%s19 + $0x88] sm:$0xff]
        %v2636 = vld [vmem:[%s19 + $0x90] sm:$0xff]
        %v2637 = vld [vmem:[%s19 + $0x98] sm:$0xff]
        %v2638 = vld [vmem:[%s19 + $0xa0] sm:$0xff]
        %v2639 = vld [vmem:[%s19 + $0xa8] sm:$0xff]
        %v2640 = vld [vmem:[%s19 + $0xb0] sm:$0xff]
        %v2641 = vld [vmem:[%s19 + $0xb8] sm:$0xff]
        %v2642 = vld [vmem:[%s19 + $0xc0] sm:$0xff]
        %v2643 = vld [vmem:[%s19 + $0xc8] sm:$0xff]
        %v2644 = vld [vmem:[%s19 + $0xd0] sm:$0xff]
        %v2645 = vld [vmem:[%s19 + $0xd8] sm:$0xff]
        %v2646 = vld [vmem:[%s19 + $0xe0] sm:$0xff]
        %v2647 = vld [vmem:[%s19 + $0xe8] sm:$0xff]
        %v2648 = vld [vmem:[%s19 + $0xf0] sm:$0xff]
        %v2649 = vld [vmem:[%s19 + $0xf8] sm:$0xff]
        %s2650 = scalar_lea.vmem %s17, 8
        %v2651 = vld [vmem:[%s2650] sm:$0xf]
        %v2652 = vld [vmem:[%s2650 + $0x4] sm:$0xf]
        %v2655 = vunpack.c.l.b16 %v2651
        %v2656 = vunpack.c.l.b16 %v2652
        %v2657 = vpack.c.b16 %v2656, %v2655
        %v2659 = vsel %vm1296, %v2657, 0
        %2661 = vmatprep.subr.bf16.mxu0 %v2560
        %2662 = vmatpush1.bf16.msra.mxu0 %v2559
        %2663 = vmatprep.subr.bf16.mxu0 %v2562
        %2664 = vmatpush1.bf16.msra.mxu0 %v2561
        %2665 = vmatprep.subr.bf16.mxu0 0
        %2666 = vmatpush1.bf16.msra.mxu0 0
        %2667 = vmatprep.subr.bf16.mxu0 0
        %2668 = vmatpush1.bf16.msra.mxu0 0
        %2669 = vmatprep.subr.bf16.mxu0 0
        %2670 = vmatpush1.bf16.msra.mxu0 0
        %2671 = vmatprep.subr.bf16.mxu0 0
        %2672 = vmatpush1.bf16.msra.mxu0 0
        %2673 = vmatprep.subr.bf16.mxu0 0
        %2674 = vmatpush1.bf16.msra.mxu0 0
        %2675 = vmatprep.subr.bf16.mxu0 0
        %2676 = vmatpush1.bf16.msra.mxu0 0
        %2677 = vmatprep.subr.bf16.mxu0 0
        %2678 = vmatpush1.bf16.msra.mxu0 0
        %2679 = vmatprep.subr.bf16.mxu0 0
        %2680 = vmatpush1.bf16.msra.mxu0 0
        %2681 = vmatprep.subr.bf16.mxu0 0
        %2682 = vmatpush1.bf16.msra.mxu0 0
        %2683 = vmatprep.subr.bf16.mxu0 0
        %2684 = vmatpush1.bf16.msra.mxu0 0
        %2685 = vmatprep.subr.bf16.mxu0 0
        %2686 = vmatpush1.bf16.msra.mxu0 0
        %2687 = vmatprep.subr.bf16.mxu0 0
        %2688 = vmatpush1.bf16.msra.mxu0 0
        %2689 = vmatprep.subr.bf16.mxu0 0
        %2690 = vmatpush1.bf16.msra.mxu0 0
        %2691 = vmatprep.subr.bf16.mxu0 0
        %2692 = vmatpush1.bf16.msra.mxu0 0
        %2693 = vmatprep.mubr.bf16.mxu0 0
        %2694 = vmatmul.mubr.bf16.gmra.mrb[0].mxu0 %v2659
        %v2695 = vpop.f32.mrb[0].mxu0
        %v2696 = vadd.f32 0.0, %v2695
        %v2697 = vpop.f32.mrb[0].mxu0
        %v2698 = vadd.f32 0.0, %v2697
        %v2699 = vpop.f32.mrb[0].mxu0
        %v2700 = vadd.f32 0.0, %v2699
        %v2701 = vpop.f32.mrb[0].mxu0
        %v2702 = vadd.f32 0.0, %v2701
        %2703 = vdwg.mxu0
        %v2704 = vpack.c.bf16 %v2700, %v2696
        %v2705 = vpack.c.bf16 %v2702, %v2698
        %s2706 = scalar_lea.vmem %s19, 256
        %v2707 = vld [vmem:[%s2706] sm:$0xff]
        %v2708 = vld [vmem:[%s2706 + $0x8] sm:$0xff]
        %v2709 = vld [vmem:[%s2706 + $0x10] sm:$0xff]
        %v2710 = vld [vmem:[%s2706 + $0x18] sm:$0xff]
        %v2711 = vld [vmem:[%s2706 + $0x20] sm:$0xff]
        %v2712 = vld [vmem:[%s2706 + $0x28] sm:$0xff]
        %v2713 = vld [vmem:[%s2706 + $0x30] sm:$0xff]
        %v2714 = vld [vmem:[%s2706 + $0x38] sm:$0xff]
        %v2715 = vld [vmem:[%s2706 + $0x40] sm:$0xff]
        %v2716 = vld [vmem:[%s2706 + $0x48] sm:$0xff]
        %v2717 = vld [vmem:[%s2706 + $0x50] sm:$0xff]
        %v2718 = vld [vmem:[%s2706 + $0x58] sm:$0xff]
        %v2719 = vld [vmem:[%s2706 + $0x60] sm:$0xff]
        %v2720 = vld [vmem:[%s2706 + $0x68] sm:$0xff]
        %v2721 = vld [vmem:[%s2706 + $0x70] sm:$0xff]
        %v2722 = vld [vmem:[%s2706 + $0x78] sm:$0xff]
        %v2723 = vld [vmem:[%s2706 + $0x80] sm:$0xff]
        %v2724 = vld [vmem:[%s2706 + $0x88] sm:$0xff]
        %v2725 = vld [vmem:[%s2706 + $0x90] sm:$0xff]
        %v2726 = vld [vmem:[%s2706 + $0x98] sm:$0xff]
        %v2727 = vld [vmem:[%s2706 + $0xa0] sm:$0xff]
        %v2728 = vld [vmem:[%s2706 + $0xa8] sm:$0xff]
        %v2729 = vld [vmem:[%s2706 + $0xb0] sm:$0xff]
        %v2730 = vld [vmem:[%s2706 + $0xb8] sm:$0xff]
        %v2731 = vld [vmem:[%s2706 + $0xc0] sm:$0xff]
        %v2732 = vld [vmem:[%s2706 + $0xc8] sm:$0xff]
        %v2733 = vld [vmem:[%s2706 + $0xd0] sm:$0xff]
        %v2734 = vld [vmem:[%s2706 + $0xd8] sm:$0xff]
        %v2735 = vld [vmem:[%s2706 + $0xe0] sm:$0xff]
        %v2736 = vld [vmem:[%s2706 + $0xe8] sm:$0xff]
        %v2737 = vld [vmem:[%s2706 + $0xf0] sm:$0xff]
        %v2738 = vld [vmem:[%s2706 + $0xf8] sm:$0xff]
        %v2771 = vunpack.c.l.b16 %v2707
        %v2772 = vunpack.c.h.b16 %v2707
        %v2773 = vunpack.c.l.b16 %v2708
        %v2774 = vunpack.c.h.b16 %v2708
        %v2775 = vunpack.c.l.b16 %v2709
        %v2776 = vunpack.c.h.b16 %v2709
        %v2777 = vunpack.c.l.b16 %v2710
        %v2778 = vunpack.c.h.b16 %v2710
        %v2779 = vunpack.c.l.b16 %v2711
        %v2780 = vunpack.c.h.b16 %v2711
        %v2781 = vunpack.c.l.b16 %v2712
        %v2782 = vunpack.c.h.b16 %v2712
        %v2783 = vunpack.c.l.b16 %v2713
        %v2784 = vunpack.c.h.b16 %v2713
        %v2785 = vunpack.c.l.b16 %v2714
        %v2786 = vunpack.c.h.b16 %v2714
        %v2787 = vunpack.c.l.b16 %v2715
        %v2788 = vunpack.c.h.b16 %v2715
        %v2789 = vunpack.c.l.b16 %v2716
        %v2790 = vunpack.c.h.b16 %v2716
        %v2791 = vunpack.c.l.b16 %v2717
        %v2792 = vunpack.c.h.b16 %v2717
        %v2793 = vunpack.c.l.b16 %v2718
        %v2794 = vunpack.c.h.b16 %v2718
        %v2795 = vunpack.c.l.b16 %v2719
        %v2796 = vunpack.c.h.b16 %v2719
        %v2797 = vunpack.c.l.b16 %v2720
        %v2798 = vunpack.c.h.b16 %v2720
        %v2799 = vunpack.c.l.b16 %v2721
        %v2800 = vunpack.c.h.b16 %v2721
        %v2801 = vunpack.c.l.b16 %v2722
        %v2802 = vunpack.c.h.b16 %v2722
        %v2803 = vunpack.c.l.b16 %v2723
        %v2804 = vunpack.c.h.b16 %v2723
        %v2805 = vunpack.c.l.b16 %v2724
        %v2806 = vunpack.c.h.b16 %v2724
        %v2807 = vunpack.c.l.b16 %v2725
        %v2808 = vunpack.c.h.b16 %v2725
        %v2809 = vunpack.c.l.b16 %v2726
        %v2810 = vunpack.c.h.b16 %v2726
        %v2811 = vunpack.c.l.b16 %v2727
        %v2812 = vunpack.c.h.b16 %v2727
        %v2813 = vunpack.c.l.b16 %v2728
        %v2814 = vunpack.c.h.b16 %v2728
        %v2815 = vunpack.c.l.b16 %v2729
        %v2816 = vunpack.c.h.b16 %v2729
        %v2817 = vunpack.c.l.b16 %v2730
        %v2818 = vunpack.c.h.b16 %v2730
        %v2819 = vunpack.c.l.b16 %v2731
        %v2820 = vunpack.c.h.b16 %v2731
        %v2821 = vunpack.c.l.b16 %v2732
        %v2822 = vunpack.c.h.b16 %v2732
        %v2823 = vunpack.c.l.b16 %v2733
        %v2824 = vunpack.c.h.b16 %v2733
        %v2825 = vunpack.c.l.b16 %v2734
        %v2826 = vunpack.c.h.b16 %v2734
        %v2827 = vunpack.c.l.b16 %v2735
        %v2828 = vunpack.c.h.b16 %v2735
        %v2829 = vunpack.c.l.b16 %v2736
        %v2830 = vunpack.c.h.b16 %v2736
        %v2831 = vunpack.c.l.b16 %v2737
        %v2832 = vunpack.c.h.b16 %v2737
        %v2833 = vunpack.c.l.b16 %v2738
        %v2834 = vunpack.c.h.b16 %v2738
        %v2835 = vpack.c.b16 %v2773, %v2771
        %v2836 = vpack.c.b16 %v2774, %v2772
        %v2837 = vpack.c.b16 %v2777, %v2775
        %v2838 = vpack.c.b16 %v2778, %v2776
        %v2839 = vpack.c.b16 %v2781, %v2779
        %v2840 = vpack.c.b16 %v2782, %v2780
        %v2841 = vpack.c.b16 %v2785, %v2783
        %v2842 = vpack.c.b16 %v2786, %v2784
        %v2843 = vpack.c.b16 %v2789, %v2787
        %v2844 = vpack.c.b16 %v2790, %v2788
        %v2845 = vpack.c.b16 %v2793, %v2791
        %v2846 = vpack.c.b16 %v2794, %v2792
        %v2847 = vpack.c.b16 %v2797, %v2795
        %v2848 = vpack.c.b16 %v2798, %v2796
        %v2849 = vpack.c.b16 %v2801, %v2799
        %v2850 = vpack.c.b16 %v2802, %v2800
        %v2851 = vpack.c.b16 %v2805, %v2803
        %v2852 = vpack.c.b16 %v2806, %v2804
        %v2853 = vpack.c.b16 %v2809, %v2807
        %v2854 = vpack.c.b16 %v2810, %v2808
        %v2855 = vpack.c.b16 %v2813, %v2811
        %v2856 = vpack.c.b16 %v2814, %v2812
        %v2857 = vpack.c.b16 %v2817, %v2815
        %v2858 = vpack.c.b16 %v2818, %v2816
        %v2859 = vpack.c.b16 %v2821, %v2819
        %v2860 = vpack.c.b16 %v2822, %v2820
        %v2861 = vpack.c.b16 %v2825, %v2823
        %v2862 = vpack.c.b16 %v2826, %v2824
        %v2863 = vpack.c.b16 %v2829, %v2827
        %v2864 = vpack.c.b16 %v2830, %v2828
        %v2865 = vpack.c.b16 %v2833, %v2831
        %v2866 = vpack.c.b16 %v2834, %v2832
        %2899 = vmatprep.subr.bf16.mxu0 %v2836
        %2900 = vmatpush1.bf16.msra.mxu0 %v2835
        %2901 = vmatprep.subr.bf16.mxu0 %v2838
        %2902 = vmatpush1.bf16.msra.mxu0 %v2837
        %2903 = vmatprep.subr.bf16.mxu0 %v2840
        %2904 = vmatpush1.bf16.msra.mxu0 %v2839
        %2905 = vmatprep.subr.bf16.mxu0 %v2842
        %2906 = vmatpush1.bf16.msra.mxu0 %v2841
        %2907 = vmatprep.subr.bf16.mxu0 %v2844
        %2908 = vmatpush1.bf16.msra.mxu0 %v2843
        %2909 = vmatprep.subr.bf16.mxu0 %v2846
        %2910 = vmatpush1.bf16.msra.mxu0 %v2845
        %2911 = vmatprep.subr.bf16.mxu0 %v2848
        %2912 = vmatpush1.bf16.msra.mxu0 %v2847
        %2913 = vmatprep.subr.bf16.mxu0 %v2850
        %2914 = vmatpush1.bf16.msra.mxu0 %v2849
        %2915 = vmatprep.subr.bf16.mxu0 %v2852
        %2916 = vmatpush1.bf16.msra.mxu0 %v2851
        %2917 = vmatprep.subr.bf16.mxu0 %v2854
        %2918 = vmatpush1.bf16.msra.mxu0 %v2853
        %2919 = vmatprep.subr.bf16.mxu0 %v2856
        %2920 = vmatpush1.bf16.msra.mxu0 %v2855
        %2921 = vmatprep.subr.bf16.mxu0 %v2858
        %2922 = vmatpush1.bf16.msra.mxu0 %v2857
        %2923 = vmatprep.subr.bf16.mxu0 %v2860
        %2924 = vmatpush1.bf16.msra.mxu0 %v2859
        %2925 = vmatprep.subr.bf16.mxu0 %v2862
        %2926 = vmatpush1.bf16.msra.mxu0 %v2861
        %2927 = vmatprep.subr.bf16.mxu0 %v2864
        %2928 = vmatpush1.bf16.msra.mxu0 %v2863
        %2929 = vmatprep.subr.bf16.mxu0 %v2866
        %2930 = vmatpush1.bf16.msra.mxu0 %v2865
        %2931 = vmatprep.mubr.bf16.mxu0 %v2705
        %2932 = vmatmul.mubr.bf16.gmra.mrb[0].mxu0 %v2704
        %v2933 = vpop.f32.mrb[0].mxu0
        %v2934 = vadd.f32 0.0, %v2933
        %v2935 = vpop.f32.mrb[0].mxu0
        %v2936 = vadd.f32 0.0, %v2935
        %v2937 = vpop.f32.mrb[0].mxu0
        %v2938 = vadd.f32 0.0, %v2937
        %v2939 = vpop.f32.mrb[0].mxu0
        %v2940 = vadd.f32 0.0, %v2939
        %2941 = vdwg.mxu0
        %v2974 = vunpack.c.l.b16 %v2618
        %v2975 = vunpack.c.h.b16 %v2618
        %v2976 = vunpack.c.l.b16 %v2619
        %v2977 = vunpack.c.h.b16 %v2619
        %v2978 = vunpack.c.l.b16 %v2620
        %v2979 = vunpack.c.h.b16 %v2620
        %v2980 = vunpack.c.l.b16 %v2621
        %v2981 = vunpack.c.h.b16 %v2621
        %v2982 = vunpack.c.l.b16 %v2622
        %v2983 = vunpack.c.h.b16 %v2622
        %v2984 = vunpack.c.l.b16 %v2623
        %v2985 = vunpack.c.h.b16 %v2623
        %v2986 = vunpack.c.l.b16 %v2624
        %v2987 = vunpack.c.h.b16 %v2624
        %v2988 = vunpack.c.l.b16 %v2625
        %v2989 = vunpack.c.h.b16 %v2625
        %v2990 = vunpack.c.l.b16 %v2626
        %v2991 = vunpack.c.h.b16 %v2626
        %v2992 = vunpack.c.l.b16 %v2627
        %v2993 = vunpack.c.h.b16 %v2627
        %v2994 = vunpack.c.l.b16 %v2628
        %v2995 = vunpack.c.h.b16 %v2628
        %v2996 = vunpack.c.l.b16 %v2629
        %v2997 = vunpack.c.h.b16 %v2629
        %v2998 = vunpack.c.l.b16 %v2630
        %v2999 = vunpack.c.h.b16 %v2630
        %v3000 = vunpack.c.l.b16 %v2631
        %v3001 = vunpack.c.h.b16 %v2631
        %v3002 = vunpack.c.l.b16 %v2632
        %v3003 = vunpack.c.h.b16 %v2632
        %v3004 = vunpack.c.l.b16 %v2633
        %v3005 = vunpack.c.h.b16 %v2633
        %v3006 = vunpack.c.l.b16 %v2634
        %v3007 = vunpack.c.h.b16 %v2634
        %v3008 = vunpack.c.l.b16 %v2635
        %v3009 = vunpack.c.h.b16 %v2635
        %v3010 = vunpack.c.l.b16 %v2636
        %v3011 = vunpack.c.h.b16 %v2636
        %v3012 = vunpack.c.l.b16 %v2637
        %v3013 = vunpack.c.h.b16 %v2637
        %v3014 = vunpack.c.l.b16 %v2638
        %v3015 = vunpack.c.h.b16 %v2638
        %v3016 = vunpack.c.l.b16 %v2639
        %v3017 = vunpack.c.h.b16 %v2639
        %v3018 = vunpack.c.l.b16 %v2640
        %v3019 = vunpack.c.h.b16 %v2640
        %v3020 = vunpack.c.l.b16 %v2641
        %v3021 = vunpack.c.h.b16 %v2641
        %v3022 = vunpack.c.l.b16 %v2642
        %v3023 = vunpack.c.h.b16 %v2642
        %v3024 = vunpack.c.l.b16 %v2643
        %v3025 = vunpack.c.h.b16 %v2643
        %v3026 = vunpack.c.l.b16 %v2644
        %v3027 = vunpack.c.h.b16 %v2644
        %v3028 = vunpack.c.l.b16 %v2645
        %v3029 = vunpack.c.h.b16 %v2645
        %v3030 = vunpack.c.l.b16 %v2646
        %v3031 = vunpack.c.h.b16 %v2646
        %v3032 = vunpack.c.l.b16 %v2647
        %v3033 = vunpack.c.h.b16 %v2647
        %v3034 = vunpack.c.l.b16 %v2648
        %v3035 = vunpack.c.h.b16 %v2648
        %v3036 = vunpack.c.l.b16 %v2649
        %v3037 = vunpack.c.h.b16 %v2649
        %v3038 = vpack.c.b16 %v2976, %v2974
        %v3039 = vpack.c.b16 %v2977, %v2975
        %v3040 = vpack.c.b16 %v2980, %v2978
        %v3041 = vpack.c.b16 %v2981, %v2979
        %v3042 = vpack.c.b16 %v2984, %v2982
        %v3043 = vpack.c.b16 %v2985, %v2983
        %v3044 = vpack.c.b16 %v2988, %v2986
        %v3045 = vpack.c.b16 %v2989, %v2987
        %v3046 = vpack.c.b16 %v2992, %v2990
        %v3047 = vpack.c.b16 %v2993, %v2991
        %v3048 = vpack.c.b16 %v2996, %v2994
        %v3049 = vpack.c.b16 %v2997, %v2995
        %v3050 = vpack.c.b16 %v3000, %v2998
        %v3051 = vpack.c.b16 %v3001, %v2999
        %v3052 = vpack.c.b16 %v3004, %v3002
        %v3053 = vpack.c.b16 %v3005, %v3003
        %v3054 = vpack.c.b16 %v3008, %v3006
        %v3055 = vpack.c.b16 %v3009, %v3007
        %v3056 = vpack.c.b16 %v3012, %v3010
        %v3057 = vpack.c.b16 %v3013, %v3011
        %v3058 = vpack.c.b16 %v3016, %v3014
        %v3059 = vpack.c.b16 %v3017, %v3015
        %v3060 = vpack.c.b16 %v3020, %v3018
        %v3061 = vpack.c.b16 %v3021, %v3019
        %v3062 = vpack.c.b16 %v3024, %v3022
        %v3063 = vpack.c.b16 %v3025, %v3023
        %v3064 = vpack.c.b16 %v3028, %v3026
        %v3065 = vpack.c.b16 %v3029, %v3027
        %v3066 = vpack.c.b16 %v3032, %v3030
        %v3067 = vpack.c.b16 %v3033, %v3031
        %v3068 = vpack.c.b16 %v3036, %v3034
        %v3069 = vpack.c.b16 %v3037, %v3035
        %3102 = vmatprep.subr.bf16.mxu0 %v3039
        %3103 = vmatpush1.bf16.msra.mxu0 %v3038
        %3104 = vmatprep.subr.bf16.mxu0 %v3041
        %3105 = vmatpush1.bf16.msra.mxu0 %v3040
        %3106 = vmatprep.subr.bf16.mxu0 %v3043
        %3107 = vmatpush1.bf16.msra.mxu0 %v3042
        %3108 = vmatprep.subr.bf16.mxu0 %v3045
        %3109 = vmatpush1.bf16.msra.mxu0 %v3044
        %3110 = vmatprep.subr.bf16.mxu0 %v3047
        %3111 = vmatpush1.bf16.msra.mxu0 %v3046
        %3112 = vmatprep.subr.bf16.mxu0 %v3049
        %3113 = vmatpush1.bf16.msra.mxu0 %v3048
        %3114 = vmatprep.subr.bf16.mxu0 %v3051
        %3115 = vmatpush1.bf16.msra.mxu0 %v3050
        %3116 = vmatprep.subr.bf16.mxu0 %v3053
        %3117 = vmatpush1.bf16.msra.mxu0 %v3052
        %3118 = vmatprep.subr.bf16.mxu0 %v3055
        %3119 = vmatpush1.bf16.msra.mxu0 %v3054
        %3120 = vmatprep.subr.bf16.mxu0 %v3057
        %3121 = vmatpush1.bf16.msra.mxu0 %v3056
        %3122 = vmatprep.subr.bf16.mxu0 %v3059
        %3123 = vmatpush1.bf16.msra.mxu0 %v3058
        %3124 = vmatprep.subr.bf16.mxu0 %v3061
        %3125 = vmatpush1.bf16.msra.mxu0 %v3060
        %3126 = vmatprep.subr.bf16.mxu0 %v3063
        %3127 = vmatpush1.bf16.msra.mxu0 %v3062
        %3128 = vmatprep.subr.bf16.mxu0 %v3065
        %3129 = vmatpush1.bf16.msra.mxu0 %v3064
        %3130 = vmatprep.subr.bf16.mxu0 %v3067
        %3131 = vmatpush1.bf16.msra.mxu0 %v3066
        %3132 = vmatprep.subr.bf16.mxu0 %v3069
        %3133 = vmatpush1.bf16.msra.mxu0 %v3068
        %3134 = vmatprep.mubr.bf16.mxu0 %v2617
        %3135 = vmatmul.mubr.bf16.gmra.mrb[0].mxu0 %v2616
        %v3136 = vpop.f32.mrb[0].mxu0
        %v3137 = vadd.f32 %v2934, %v3136
        %v3138 = vpop.f32.mrb[0].mxu0
        %v3139 = vadd.f32 %v2936, %v3138
        %v3140 = vpop.f32.mrb[0].mxu0
        %v3141 = vadd.f32 %v2938, %v3140
        %v3142 = vpop.f32.mrb[0].mxu0
        %v3143 = vadd.f32 %v2940, %v3142
        %3144 = vdwg.mxu0
        %s3145 = scalar_lea.vmem %s17, 16
        %v3146 = vld [vmem:[%s3145] sm:$0xf]
        %v3147 = vld [vmem:[%s3145 + $0x4] sm:$0xf]
        %v3150 = vunpack.c.l.b16 %v3146
        %v3151 = vunpack.c.l.b16 %v3147
        %v3152 = vpack.c.b16 %v3151, %v3150
        %v3154 = vsel %vm1296, %v3152, 0
        %3156 = vmatprep.subr.bf16.mxu0 %v2560
        %3157 = vmatpush1.bf16.msra.mxu0 %v2559
        %3158 = vmatprep.subr.bf16.mxu0 %v2562
        %3159 = vmatpush1.bf16.msra.mxu0 %v2561
        %3160 = vmatprep.subr.bf16.mxu0 0
        %3161 = vmatpush1.bf16.msra.mxu0 0
        %3162 = vmatprep.subr.bf16.mxu0 0
        %3163 = vmatpush1.bf16.msra.mxu0 0
        %3164 = vmatprep.subr.bf16.mxu0 0
        %3165 = vmatpush1.bf16.msra.mxu0 0
        %3166 = vmatprep.subr.bf16.mxu0 0
        %3167 = vmatpush1.bf16.msra.mxu0 0
        %3168 = vmatprep.subr.bf16.mxu0 0
        %3169 = vmatpush1.bf16.msra.mxu0 0
        %3170 = vmatprep.subr.bf16.mxu0 0
        %3171 = vmatpush1.bf16.msra.mxu0 0
        %3172 = vmatprep.subr.bf16.mxu0 0
        %3173 = vmatpush1.bf16.msra.mxu0 0
        %3174 = vmatprep.subr.bf16.mxu0 0
        %3175 = vmatpush1.bf16.msra.mxu0 0
        %3176 = vmatprep.subr.bf16.mxu0 0
        %3177 = vmatpush1.bf16.msra.mxu0 0
        %3178 = vmatprep.subr.bf16.mxu0 0
        %3179 = vmatpush1.bf16.msra.mxu0 0
        %3180 = vmatprep.subr.bf16.mxu0 0
        %3181 = vmatpush1.bf16.msra.mxu0 0
        %3182 = vmatprep.subr.bf16.mxu0 0
        %3183 = vmatpush1.bf16.msra.mxu0 0
        %3184 = vmatprep.subr.bf16.mxu0 0
        %3185 = vmatpush1.bf16.msra.mxu0 0
        %3186 = vmatprep.subr.bf16.mxu0 0
        %3187 = vmatpush1.bf16.msra.mxu0 0
        %3188 = vmatprep.mubr.bf16.mxu0 0
        %3189 = vmatmul.mubr.bf16.gmra.mrb[0].mxu0 %v3154
        %v3190 = vpop.f32.mrb[0].mxu0
        %v3191 = vadd.f32 0.0, %v3190
        %v3192 = vpop.f32.mrb[0].mxu0
        %v3193 = vadd.f32 0.0, %v3192
        %v3194 = vpop.f32.mrb[0].mxu0
        %v3195 = vadd.f32 0.0, %v3194
        %v3196 = vpop.f32.mrb[0].mxu0
        %v3197 = vadd.f32 0.0, %v3196
        %3198 = vdwg.mxu0
        %v3199 = vpack.c.bf16 %v3195, %v3191
        %v3200 = vpack.c.bf16 %v3197, %v3193
        %s3201 = scalar_lea.vmem %s19, 512
        %v3202 = vld [vmem:[%s3201] sm:$0xff]
        %v3203 = vld [vmem:[%s3201 + $0x8] sm:$0xff]
        %v3204 = vld [vmem:[%s3201 + $0x10] sm:$0xff]
        %v3205 = vld [vmem:[%s3201 + $0x18] sm:$0xff]
        %v3206 = vld [vmem:[%s3201 + $0x20] sm:$0xff]
        %v3207 = vld [vmem:[%s3201 + $0x28] sm:$0xff]
        %v3208 = vld [vmem:[%s3201 + $0x30] sm:$0xff]
        %v3209 = vld [vmem:[%s3201 + $0x38] sm:$0xff]
        %v3210 = vld [vmem:[%s3201 + $0x40] sm:$0xff]
        %v3211 = vld [vmem:[%s3201 + $0x48] sm:$0xff]
        %v3212 = vld [vmem:[%s3201 + $0x50] sm:$0xff]
        %v3213 = vld [vmem:[%s3201 + $0x58] sm:$0xff]
        %v3214 = vld [vmem:[%s3201 + $0x60] sm:$0xff]
        %v3215 = vld [vmem:[%s3201 + $0x68] sm:$0xff]
        %v3216 = vld [vmem:[%s3201 + $0x70] sm:$0xff]
        %v3217 = vld [vmem:[%s3201 + $0x78] sm:$0xff]
        %v3218 = vld [vmem:[%s3201 + $0x80] sm:$0xff]
        %v3219 = vld [vmem:[%s3201 + $0x88] sm:$0xff]
        %v3220 = vld [vmem:[%s3201 + $0x90] sm:$0xff]
        %v3221 = vld [vmem:[%s3201 + $0x98] sm:$0xff]
        %v3222 = vld [vmem:[%s3201 + $0xa0] sm:$0xff]
        %v3223 = vld [vmem:[%s3201 + $0xa8] sm:$0xff]
        %v3224 = vld [vmem:[%s3201 + $0xb0] sm:$0xff]
        %v3225 = vld [vmem:[%s3201 + $0xb8] sm:$0xff]
        %v3226 = vld [vmem:[%s3201 + $0xc0] sm:$0xff]
        %v3227 = vld [vmem:[%s3201 + $0xc8] sm:$0xff]
        %v3228 = vld [vmem:[%s3201 + $0xd0] sm:$0xff]
        %v3229 = vld [vmem:[%s3201 + $0xd8] sm:$0xff]
        %v3230 = vld [vmem:[%s3201 + $0xe0] sm:$0xff]
        %v3231 = vld [vmem:[%s3201 + $0xe8] sm:$0xff]
        %v3232 = vld [vmem:[%s3201 + $0xf0] sm:$0xff]
        %v3233 = vld [vmem:[%s3201 + $0xf8] sm:$0xff]
        %v3266 = vunpack.c.l.b16 %v3202
        %v3267 = vunpack.c.h.b16 %v3202
        %v3268 = vunpack.c.l.b16 %v3203
        %v3269 = vunpack.c.h.b16 %v3203
        %v3270 = vunpack.c.l.b16 %v3204
        %v3271 = vunpack.c.h.b16 %v3204
        %v3272 = vunpack.c.l.b16 %v3205
        %v3273 = vunpack.c.h.b16 %v3205
        %v3274 = vunpack.c.l.b16 %v3206
        %v3275 = vunpack.c.h.b16 %v3206
        %v3276 = vunpack.c.l.b16 %v3207
        %v3277 = vunpack.c.h.b16 %v3207
        %v3278 = vunpack.c.l.b16 %v3208
        %v3279 = vunpack.c.h.b16 %v3208
        %v3280 = vunpack.c.l.b16 %v3209
        %v3281 = vunpack.c.h.b16 %v3209
        %v3282 = vunpack.c.l.b16 %v3210
        %v3283 = vunpack.c.h.b16 %v3210
        %v3284 = vunpack.c.l.b16 %v3211
        %v3285 = vunpack.c.h.b16 %v3211
        %v3286 = vunpack.c.l.b16 %v3212
        %v3287 = vunpack.c.h.b16 %v3212
        %v3288 = vunpack.c.l.b16 %v3213
        %v3289 = vunpack.c.h.b16 %v3213
        %v3290 = vunpack.c.l.b16 %v3214
        %v3291 = vunpack.c.h.b16 %v3214
        %v3292 = vunpack.c.l.b16 %v3215
        %v3293 = vunpack.c.h.b16 %v3215
        %v3294 = vunpack.c.l.b16 %v3216
        %v3295 = vunpack.c.h.b16 %v3216
        %v3296 = vunpack.c.l.b16 %v3217
        %v3297 = vunpack.c.h.b16 %v3217
        %v3298 = vunpack.c.l.b16 %v3218
        %v3299 = vunpack.c.h.b16 %v3218
        %v3300 = vunpack.c.l.b16 %v3219
        %v3301 = vunpack.c.h.b16 %v3219
        %v3302 = vunpack.c.l.b16 %v3220
        %v3303 = vunpack.c.h.b16 %v3220
        %v3304 = vunpack.c.l.b16 %v3221
        %v3305 = vunpack.c.h.b16 %v3221
        %v3306 = vunpack.c.l.b16 %v3222
        %v3307 = vunpack.c.h.b16 %v3222
        %v3308 = vunpack.c.l.b16 %v3223
        %v3309 = vunpack.c.h.b16 %v3223
        %v3310 = vunpack.c.l.b16 %v3224
        %v3311 = vunpack.c.h.b16 %v3224
        %v3312 = vunpack.c.l.b16 %v3225
        %v3313 = vunpack.c.h.b16 %v3225
        %v3314 = vunpack.c.l.b16 %v3226
        %v3315 = vunpack.c.h.b16 %v3226
        %v3316 = vunpack.c.l.b16 %v3227
        %v3317 = vunpack.c.h.b16 %v3227
        %v3318 = vunpack.c.l.b16 %v3228
        %v3319 = vunpack.c.h.b16 %v3228
        %v3320 = vunpack.c.l.b16 %v3229
        %v3321 = vunpack.c.h.b16 %v3229
        %v3322 = vunpack.c.l.b16 %v3230
        %v3323 = vunpack.c.h.b16 %v3230
        %v3324 = vunpack.c.l.b16 %v3231
        %v3325 = vunpack.c.h.b16 %v3231
        %v3326 = vunpack.c.l.b16 %v3232
        %v3327 = vunpack.c.h.b16 %v3232
        %v3328 = vunpack.c.l.b16 %v3233
        %v3329 = vunpack.c.h.b16 %v3233
        %v3330 = vpack.c.b16 %v3268, %v3266
        %v3331 = vpack.c.b16 %v3269, %v3267
        %v3332 = vpack.c.b16 %v3272, %v3270
        %v3333 = vpack.c.b16 %v3273, %v3271
        %v3334 = vpack.c.b16 %v3276, %v3274
        %v3335 = vpack.c.b16 %v3277, %v3275
        %v3336 = vpack.c.b16 %v3280, %v3278
        %v3337 = vpack.c.b16 %v3281, %v3279
        %v3338 = vpack.c.b16 %v3284, %v3282
        %v3339 = vpack.c.b16 %v3285, %v3283
        %v3340 = vpack.c.b16 %v3288, %v3286
        %v3341 = vpack.c.b16 %v3289, %v3287
        %v3342 = vpack.c.b16 %v3292, %v3290
        %v3343 = vpack.c.b16 %v3293, %v3291
        %v3344 = vpack.c.b16 %v3296, %v3294
        %v3345 = vpack.c.b16 %v3297, %v3295
        %v3346 = vpack.c.b16 %v3300, %v3298
        %v3347 = vpack.c.b16 %v3301, %v3299
        %v3348 = vpack.c.b16 %v3304, %v3302
        %v3349 = vpack.c.b16 %v3305, %v3303
        %v3350 = vpack.c.b16 %v3308, %v3306
        %v3351 = vpack.c.b16 %v3309, %v3307
        %v3352 = vpack.c.b16 %v3312, %v3310
        %v3353 = vpack.c.b16 %v3313, %v3311
        %v3354 = vpack.c.b16 %v3316, %v3314
        %v3355 = vpack.c.b16 %v3317, %v3315
        %v3356 = vpack.c.b16 %v3320, %v3318
        %v3357 = vpack.c.b16 %v3321, %v3319
        %v3358 = vpack.c.b16 %v3324, %v3322
        %v3359 = vpack.c.b16 %v3325, %v3323
        %v3360 = vpack.c.b16 %v3328, %v3326
        %v3361 = vpack.c.b16 %v3329, %v3327
        %3394 = vmatprep.subr.bf16.mxu0 %v3331
        %3395 = vmatpush1.bf16.msra.mxu0 %v3330
        %3396 = vmatprep.subr.bf16.mxu0 %v3333
        %3397 = vmatpush1.bf16.msra.mxu0 %v3332
        %3398 = vmatprep.subr.bf16.mxu0 %v3335
        %3399 = vmatpush1.bf16.msra.mxu0 %v3334
        %3400 = vmatprep.subr.bf16.mxu0 %v3337
        %3401 = vmatpush1.bf16.msra.mxu0 %v3336
        %3402 = vmatprep.subr.bf16.mxu0 %v3339
        %3403 = vmatpush1.bf16.msra.mxu0 %v3338
        %3404 = vmatprep.subr.bf16.mxu0 %v3341
        %3405 = vmatpush1.bf16.msra.mxu0 %v3340
        %3406 = vmatprep.subr.bf16.mxu0 %v3343
        %3407 = vmatpush1.bf16.msra.mxu0 %v3342
        %3408 = vmatprep.subr.bf16.mxu0 %v3345
        %3409 = vmatpush1.bf16.msra.mxu0 %v3344
        %3410 = vmatprep.subr.bf16.mxu0 %v3347
        %3411 = vmatpush1.bf16.msra.mxu0 %v3346
        %3412 = vmatprep.subr.bf16.mxu0 %v3349
        %3413 = vmatpush1.bf16.msra.mxu0 %v3348
        %3414 = vmatprep.subr.bf16.mxu0 %v3351
        %3415 = vmatpush1.bf16.msra.mxu0 %v3350
        %3416 = vmatprep.subr.bf16.mxu0 %v3353
        %3417 = vmatpush1.bf16.msra.mxu0 %v3352
        %3418 = vmatprep.subr.bf16.mxu0 %v3355
        %3419 = vmatpush1.bf16.msra.mxu0 %v3354
        %3420 = vmatprep.subr.bf16.mxu0 %v3357
        %3421 = vmatpush1.bf16.msra.mxu0 %v3356
        %3422 = vmatprep.subr.bf16.mxu0 %v3359
        %3423 = vmatpush1.bf16.msra.mxu0 %v3358
        %3424 = vmatprep.subr.bf16.mxu0 %v3361
        %3425 = vmatpush1.bf16.msra.mxu0 %v3360
        %3426 = vmatprep.mubr.bf16.mxu0 %v3200
        %3427 = vmatmul.mubr.bf16.gmra.mrb[0].mxu0 %v3199
        %v3428 = vpop.f32.mrb[0].mxu0
        %v3429 = vadd.f32 0.0, %v3428
        %v3430 = vpop.f32.mrb[0].mxu0
        %v3431 = vadd.f32 0.0, %v3430
        %v3432 = vpop.f32.mrb[0].mxu0
        %v3433 = vadd.f32 0.0, %v3432
        %v3434 = vpop.f32.mrb[0].mxu0
        %v3435 = vadd.f32 0.0, %v3434
        %3436 = vdwg.mxu0
        %v3437 = vadd.f32 %v3137, %v3429
        %v3438 = vadd.f32 %v3139, %v3431
        %v3439 = vadd.f32 %v3141, %v3433
        %v3440 = vadd.f32 %v3143, %v3435
        %v3441 = vld [vmem:[%s21] sm:$0x3]
        %v3443 = vlaneseq
        %v3444 = vshrl.u32 %v3443, 7
        %v3445 = vsub.s32 0, %v3444
        %v3446 = vrot.slane %v3441, %v3445
        %v3447 = vlaneseq
        %v3448 = vshrl.u32 %v3447, 7
        %v3449 = vsub.s32 1, %v3448
        %v3450 = vrot.slane %v3441, %v3449
        %v3453 = vadd.f32 %v3437, %v3446
        %v3454 = vadd.f32 %v3438, %v3450
        %v3455 = vadd.f32 %v3439, %v3446
        %v3456 = vadd.f32 %v3440, %v3450
        %v3457 = vmax.f32 %v3453, 0.0
        %v3458 = vmax.f32 %v3454, 0.0
        %v3459 = vmax.f32 %v3455, 0.0
        %v3460 = vmax.f32 %v3456, 0.0
        %v3461 = vpack.c.bf16 %v3459, %v3457
        %v3462 = vpack.c.bf16 %v3460, %v3458
        %v3463 = vld [vmem:[%s23] sm:$0xf]
        %v3464 = vld [vmem:[%s23 + $0x4] sm:$0xf]
        %v3467 = vunpack.c.l.b16 %v3463
        %v3468 = vunpack.c.l.b16 %v3464
        %v3469 = vpack.c.b16 %v3468, %v3467
        %vm3470 = vcmask 130048
        %v3472 = vsel %vm3470, %v3469, 0
        %3474 = vmatprep.subr.bf16.mxu0 %v3462
        %3475 = vmatpush1.bf16.msra.mxu0 %v3461
        %3476 = vmatprep.subr.bf16.mxu0 0
        %3477 = vmatpush1.bf16.msra.mxu0 0
        %3478 = vmatprep.subr.bf16.mxu0 0
        %3479 = vmatpush1.bf16.msra.mxu0 0
        %3480 = vmatprep.subr.bf16.mxu0 0
        %3481 = vmatpush1.bf16.msra.mxu0 0
        %3482 = vmatprep.subr.bf16.mxu0 0
        %3483 = vmatpush1.bf16.msra.mxu0 0
        %3484 = vmatprep.subr.bf16.mxu0 0
        %3485 = vmatpush1.bf16.msra.mxu0 0
        %3486 = vmatprep.subr.bf16.mxu0 0
        %3487 = vmatpush1.bf16.msra.mxu0 0
        %3488 = vmatprep.subr.bf16.mxu0 0
        %3489 = vmatpush1.bf16.msra.mxu0 0
        %3490 = vmatprep.subr.bf16.mxu0 0
        %3491 = vmatpush1.bf16.msra.mxu0 0
        %3492 = vmatprep.subr.bf16.mxu0 0
        %3493 = vmatpush1.bf16.msra.mxu0 0
        %3494 = vmatprep.subr.bf16.mxu0 0
        %3495 = vmatpush1.bf16.msra.mxu0 0
        %3496 = vmatprep.subr.bf16.mxu0 0
        %3497 = vmatpush1.bf16.msra.mxu0 0
        %3498 = vmatprep.subr.bf16.mxu0 0
        %3499 = vmatpush1.bf16.msra.mxu0 0
        %3500 = vmatprep.subr.bf16.mxu0 0
        %3501 = vmatpush1.bf16.msra.mxu0 0
        %3502 = vmatprep.subr.bf16.mxu0 0
        %3503 = vmatpush1.bf16.msra.mxu0 0
        %3504 = vmatprep.subr.bf16.mxu0 0
        %3505 = vmatpush1.bf16.msra.mxu0 0
        %3506 = vmatprep.mubr.bf16.mxu0 0
        %3507 = vmatmul.mubr.bf16.gmra.mrb[0].mxu0 %v3472
        %v3508 = vpop.f32.mrb[0].mxu0
        %v3509 = vadd.f32 0.0, %v3508
        %v3510 = vpop.f32.mrb[0].mxu0
        %v3511 = vadd.f32 0.0, %v3510
        %v3512 = vpop.f32.mrb[0].mxu0
        %v3513 = vadd.f32 0.0, %v3512
        %v3514 = vpop.f32.mrb[0].mxu0
        %v3515 = vadd.f32 0.0, %v3514
        %3516 = vdwg.mxu0
        %v3517 = vpack.c.bf16 %v3513, %v3509
        %v3518 = vpack.c.bf16 %v3515, %v3511
        %v3519 = vld [vmem:[%s25] sm:$0xff]
        %v3520 = vld [vmem:[%s25 + $0x8] sm:$0xff]
        %v3521 = vld [vmem:[%s25 + $0x10] sm:$0xff]
        %v3522 = vld [vmem:[%s25 + $0x18] sm:$0xff]
        %v3523 = vld [vmem:[%s25 + $0x20] sm:$0xff]
        %v3524 = vld [vmem:[%s25 + $0x28] sm:$0xff]
        %v3525 = vld [vmem:[%s25 + $0x30] sm:$0xff]
        %v3526 = vld [vmem:[%s25 + $0x38] sm:$0xff]
        %v3527 = vld [vmem:[%s25 + $0x40] sm:$0xff]
        %v3528 = vld [vmem:[%s25 + $0x48] sm:$0xff]
        %v3529 = vld [vmem:[%s25 + $0x50] sm:$0xff]
        %v3530 = vld [vmem:[%s25 + $0x58] sm:$0xff]
        %v3531 = vld [vmem:[%s25 + $0x60] sm:$0xff]
        %v3532 = vld [vmem:[%s25 + $0x68] sm:$0xff]
        %v3533 = vld [vmem:[%s25 + $0x70] sm:$0xff]
        %v3534 = vld [vmem:[%s25 + $0x78] sm:$0xff]
        %v3535 = vld [vmem:[%s25 + $0x80] sm:$0xff]
        %v3536 = vld [vmem:[%s25 + $0x88] sm:$0xff]
        %v3537 = vld [vmem:[%s25 + $0x90] sm:$0xff]
        %v3538 = vld [vmem:[%s25 + $0x98] sm:$0xff]
        %v3539 = vld [vmem:[%s25 + $0xa0] sm:$0xff]
        %v3540 = vld [vmem:[%s25 + $0xa8] sm:$0xff]
        %v3541 = vld [vmem:[%s25 + $0xb0] sm:$0xff]
        %v3542 = vld [vmem:[%s25 + $0xb8] sm:$0xff]
        %v3543 = vld [vmem:[%s25 + $0xc0] sm:$0xff]
        %v3544 = vld [vmem:[%s25 + $0xc8] sm:$0xff]
        %v3545 = vld [vmem:[%s25 + $0xd0] sm:$0xff]
        %v3546 = vld [vmem:[%s25 + $0xd8] sm:$0xff]
        %v3547 = vld [vmem:[%s25 + $0xe0] sm:$0xff]
        %v3548 = vld [vmem:[%s25 + $0xe8] sm:$0xff]
        %v3549 = vld [vmem:[%s25 + $0xf0] sm:$0xff]
        %v3550 = vld [vmem:[%s25 + $0xf8] sm:$0xff]
        %s3551 = scalar_lea.vmem %s25, 256
        %v3552 = vld [vmem:[%s3551] sm:$0xff]
        %v3553 = vld [vmem:[%s3551 + $0x8] sm:$0xff]
        %v3554 = vld [vmem:[%s3551 + $0x10] sm:$0xff]
        %v3555 = vld [vmem:[%s3551 + $0x18] sm:$0xff]
        %v3556 = vld [vmem:[%s3551 + $0x20] sm:$0xff]
        %v3557 = vld [vmem:[%s3551 + $0x28] sm:$0xff]
        %v3558 = vld [vmem:[%s3551 + $0x30] sm:$0xff]
        %v3559 = vld [vmem:[%s3551 + $0x38] sm:$0xff]
        %v3560 = vld [vmem:[%s3551 + $0x40] sm:$0xff]
        %v3561 = vld [vmem:[%s3551 + $0x48] sm:$0xff]
        %v3562 = vld [vmem:[%s3551 + $0x50] sm:$0xff]
        %v3563 = vld [vmem:[%s3551 + $0x58] sm:$0xff]
        %v3564 = vld [vmem:[%s3551 + $0x60] sm:$0xff]
        %v3565 = vld [vmem:[%s3551 + $0x68] sm:$0xff]
        %v3566 = vld [vmem:[%s3551 + $0x70] sm:$0xff]
        %v3567 = vld [vmem:[%s3551 + $0x78] sm:$0xff]
        %v3568 = vld [vmem:[%s3551 + $0x80] sm:$0xff]
        %v3569 = vld [vmem:[%s3551 + $0x88] sm:$0xff]
        %v3570 = vld [vmem:[%s3551 + $0x90] sm:$0xff]
        %v3571 = vld [vmem:[%s3551 + $0x98] sm:$0xff]
        %v3572 = vld [vmem:[%s3551 + $0xa0] sm:$0xff]
        %v3573 = vld [vmem:[%s3551 + $0xa8] sm:$0xff]
        %v3574 = vld [vmem:[%s3551 + $0xb0] sm:$0xff]
        %v3575 = vld [vmem:[%s3551 + $0xb8] sm:$0xff]
        %v3576 = vld [vmem:[%s3551 + $0xc0] sm:$0xff]
        %v3577 = vld [vmem:[%s3551 + $0xc8] sm:$0xff]
        %v3578 = vld [vmem:[%s3551 + $0xd0] sm:$0xff]
        %v3579 = vld [vmem:[%s3551 + $0xd8] sm:$0xff]
        %v3580 = vld [vmem:[%s3551 + $0xe0] sm:$0xff]
        %v3581 = vld [vmem:[%s3551 + $0xe8] sm:$0xff]
        %v3582 = vld [vmem:[%s3551 + $0xf0] sm:$0xff]
        %v3583 = vld [vmem:[%s3551 + $0xf8] sm:$0xff]
        %v3616 = vunpack.c.l.b16 %v3552
        %v3617 = vunpack.c.h.b16 %v3552
        %v3618 = vunpack.c.l.b16 %v3553
        %v3619 = vunpack.c.h.b16 %v3553
        %v3620 = vunpack.c.l.b16 %v3554
        %v3621 = vunpack.c.h.b16 %v3554
        %v3622 = vunpack.c.l.b16 %v3555
        %v3623 = vunpack.c.h.b16 %v3555
        %v3624 = vunpack.c.l.b16 %v3556
        %v3625 = vunpack.c.h.b16 %v3556
        %v3626 = vunpack.c.l.b16 %v3557
        %v3627 = vunpack.c.h.b16 %v3557
        %v3628 = vunpack.c.l.b16 %v3558
        %v3629 = vunpack.c.h.b16 %v3558
        %v3630 = vunpack.c.l.b16 %v3559
        %v3631 = vunpack.c.h.b16 %v3559
        %v3632 = vunpack.c.l.b16 %v3560
        %v3633 = vunpack.c.h.b16 %v3560
        %v3634 = vunpack.c.l.b16 %v3561
        %v3635 = vunpack.c.h.b16 %v3561
        %v3636 = vunpack.c.l.b16 %v3562
        %v3637 = vunpack.c.h.b16 %v3562
        %v3638 = vunpack.c.l.b16 %v3563
        %v3639 = vunpack.c.h.b16 %v3563
        %v3640 = vunpack.c.l.b16 %v3564
        %v3641 = vunpack.c.h.b16 %v3564
        %v3642 = vunpack.c.l.b16 %v3565
        %v3643 = vunpack.c.h.b16 %v3565
        %v3644 = vunpack.c.l.b16 %v3566
        %v3645 = vunpack.c.h.b16 %v3566
        %v3646 = vunpack.c.l.b16 %v3567
        %v3647 = vunpack.c.h.b16 %v3567
        %v3648 = vunpack.c.l.b16 %v3568
        %v3649 = vunpack.c.h.b16 %v3568
        %v3650 = vunpack.c.l.b16 %v3569
        %v3651 = vunpack.c.h.b16 %v3569
        %v3652 = vunpack.c.l.b16 %v3570
        %v3653 = vunpack.c.h.b16 %v3570
        %v3654 = vunpack.c.l.b16 %v3571
        %v3655 = vunpack.c.h.b16 %v3571
        %v3656 = vunpack.c.l.b16 %v3572
        %v3657 = vunpack.c.h.b16 %v3572
        %v3658 = vunpack.c.l.b16 %v3573
        %v3659 = vunpack.c.h.b16 %v3573
        %v3660 = vunpack.c.l.b16 %v3574
        %v3661 = vunpack.c.h.b16 %v3574
        %v3662 = vunpack.c.l.b16 %v3575
        %v3663 = vunpack.c.h.b16 %v3575
        %v3664 = vunpack.c.l.b16 %v3576
        %v3665 = vunpack.c.h.b16 %v3576
        %v3666 = vunpack.c.l.b16 %v3577
        %v3667 = vunpack.c.h.b16 %v3577
        %v3668 = vunpack.c.l.b16 %v3578
        %v3669 = vunpack.c.h.b16 %v3578
        %v3670 = vunpack.c.l.b16 %v3579
        %v3671 = vunpack.c.h.b16 %v3579
        %v3672 = vunpack.c.l.b16 %v3580
        %v3673 = vunpack.c.h.b16 %v3580
        %v3674 = vunpack.c.l.b16 %v3581
        %v3675 = vunpack.c.h.b16 %v3581
        %v3676 = vunpack.c.l.b16 %v3582
        %v3677 = vunpack.c.h.b16 %v3582
        %v3678 = vunpack.c.l.b16 %v3583
        %v3679 = vunpack.c.h.b16 %v3583
        %v3680 = vpack.c.b16 %v3618, %v3616
        %v3681 = vpack.c.b16 %v3619, %v3617
        %v3682 = vpack.c.b16 %v3622, %v3620
        %v3683 = vpack.c.b16 %v3623, %v3621
        %v3684 = vpack.c.b16 %v3626, %v3624
        %v3685 = vpack.c.b16 %v3627, %v3625
        %v3686 = vpack.c.b16 %v3630, %v3628
        %v3687 = vpack.c.b16 %v3631, %v3629
        %v3688 = vpack.c.b16 %v3634, %v3632
        %v3689 = vpack.c.b16 %v3635, %v3633
        %v3690 = vpack.c.b16 %v3638, %v3636
        %v3691 = vpack.c.b16 %v3639, %v3637
        %v3692 = vpack.c.b16 %v3642, %v3640
        %v3693 = vpack.c.b16 %v3643, %v3641
        %v3694 = vpack.c.b16 %v3646, %v3644
        %v3695 = vpack.c.b16 %v3647, %v3645
        %v3696 = vpack.c.b16 %v3650, %v3648
        %v3697 = vpack.c.b16 %v3651, %v3649
        %v3698 = vpack.c.b16 %v3654, %v3652
        %v3699 = vpack.c.b16 %v3655, %v3653
        %v3700 = vpack.c.b16 %v3658, %v3656
        %v3701 = vpack.c.b16 %v3659, %v3657
        %v3702 = vpack.c.b16 %v3662, %v3660
        %v3703 = vpack.c.b16 %v3663, %v3661
        %v3704 = vpack.c.b16 %v3666, %v3664
        %v3705 = vpack.c.b16 %v3667, %v3665
        %v3706 = vpack.c.b16 %v3670, %v3668
        %v3707 = vpack.c.b16 %v3671, %v3669
        %v3708 = vpack.c.b16 %v3674, %v3672
        %v3709 = vpack.c.b16 %v3675, %v3673
        %v3710 = vpack.c.b16 %v3678, %v3676
        %v3711 = vpack.c.b16 %v3679, %v3677
        %3744 = vmatprep.subr.bf16.mxu0 %v3681
        %3745 = vmatpush1.bf16.msra.mxu0 %v3680
        %3746 = vmatprep.subr.bf16.mxu0 %v3683
        %3747 = vmatpush1.bf16.msra.mxu0 %v3682
        %3748 = vmatprep.subr.bf16.mxu0 %v3685
        %3749 = vmatpush1.bf16.msra.mxu0 %v3684
        %3750 = vmatprep.subr.bf16.mxu0 %v3687
        %3751 = vmatpush1.bf16.msra.mxu0 %v3686
        %3752 = vmatprep.subr.bf16.mxu0 %v3689
        %3753 = vmatpush1.bf16.msra.mxu0 %v3688
        %3754 = vmatprep.subr.bf16.mxu0 %v3691
        %3755 = vmatpush1.bf16.msra.mxu0 %v3690
        %3756 = vmatprep.subr.bf16.mxu0 %v3693
        %3757 = vmatpush1.bf16.msra.mxu0 %v3692
        %3758 = vmatprep.subr.bf16.mxu0 %v3695
        %3759 = vmatpush1.bf16.msra.mxu0 %v3694
        %3760 = vmatprep.subr.bf16.mxu0 %v3697
        %3761 = vmatpush1.bf16.msra.mxu0 %v3696
        %3762 = vmatprep.subr.bf16.mxu0 %v3699
        %3763 = vmatpush1.bf16.msra.mxu0 %v3698
        %3764 = vmatprep.subr.bf16.mxu0 %v3701
        %3765 = vmatpush1.bf16.msra.mxu0 %v3700
        %3766 = vmatprep.subr.bf16.mxu0 %v3703
        %3767 = vmatpush1.bf16.msra.mxu0 %v3702
        %3768 = vmatprep.subr.bf16.mxu0 %v3705
        %3769 = vmatpush1.bf16.msra.mxu0 %v3704
        %3770 = vmatprep.subr.bf16.mxu0 %v3707
        %3771 = vmatpush1.bf16.msra.mxu0 %v3706
        %3772 = vmatprep.subr.bf16.mxu0 %v3709
        %3773 = vmatpush1.bf16.msra.mxu0 %v3708
        %3774 = vmatprep.subr.bf16.mxu0 %v3711
        %3775 = vmatpush1.bf16.msra.mxu0 %v3710
        %3776 = vmatprep.mubr.bf16.mxu0 %v3462
        %3777 = vmatmul.mubr.bf16.gmra.mrb[0].mxu0 %v3461
        %v3778 = vpop.f32.mrb[0].mxu0
        %v3779 = vadd.f32 0.0, %v3778
        %v3780 = vpop.f32.mrb[0].mxu0
        %v3781 = vadd.f32 0.0, %v3780
        %v3782 = vpop.f32.mrb[0].mxu0
        %v3783 = vadd.f32 0.0, %v3782
        %v3784 = vpop.f32.mrb[0].mxu0
        %v3785 = vadd.f32 0.0, %v3784
        %3786 = vdwg.mxu0
        %v3819 = vunpack.c.l.b16 %v3519
        %v3820 = vunpack.c.h.b16 %v3519
        %v3821 = vunpack.c.l.b16 %v3520
        %v3822 = vunpack.c.h.b16 %v3520
        %v3823 = vunpack.c.l.b16 %v3521
        %v3824 = vunpack.c.h.b16 %v3521
        %v3825 = vunpack.c.l.b16 %v3522
        %v3826 = vunpack.c.h.b16 %v3522
        %v3827 = vunpack.c.l.b16 %v3523
        %v3828 = vunpack.c.h.b16 %v3523
        %v3829 = vunpack.c.l.b16 %v3524
        %v3830 = vunpack.c.h.b16 %v3524
        %v3831 = vunpack.c.l.b16 %v3525
        %v3832 = vunpack.c.h.b16 %v3525
        %v3833 = vunpack.c.l.b16 %v3526
        %v3834 = vunpack.c.h.b16 %v3526
        %v3835 = vunpack.c.l.b16 %v3527
        %v3836 = vunpack.c.h.b16 %v3527
        %v3837 = vunpack.c.l.b16 %v3528
        %v3838 = vunpack.c.h.b16 %v3528
        %v3839 = vunpack.c.l.b16 %v3529
        %v3840 = vunpack.c.h.b16 %v3529
        %v3841 = vunpack.c.l.b16 %v3530
        %v3842 = vunpack.c.h.b16 %v3530
        %v3843 = vunpack.c.l.b16 %v3531
        %v3844 = vunpack.c.h.b16 %v3531
        %v3845 = vunpack.c.l.b16 %v3532
        %v3846 = vunpack.c.h.b16 %v3532
        %v3847 = vunpack.c.l.b16 %v3533
        %v3848 = vunpack.c.h.b16 %v3533
        %v3849 = vunpack.c.l.b16 %v3534
        %v3850 = vunpack.c.h.b16 %v3534
        %v3851 = vunpack.c.l.b16 %v3535
        %v3852 = vunpack.c.h.b16 %v3535
        %v3853 = vunpack.c.l.b16 %v3536
        %v3854 = vunpack.c.h.b16 %v3536
        %v3855 = vunpack.c.l.b16 %v3537
        %v3856 = vunpack.c.h.b16 %v3537
        %v3857 = vunpack.c.l.b16 %v3538
        %v3858 = vunpack.c.h.b16 %v3538
        %v3859 = vunpack.c.l.b16 %v3539
        %v3860 = vunpack.c.h.b16 %v3539
        %v3861 = vunpack.c.l.b16 %v3540
        %v3862 = vunpack.c.h.b16 %v3540
        %v3863 = vunpack.c.l.b16 %v3541
        %v3864 = vunpack.c.h.b16 %v3541
        %v3865 = vunpack.c.l.b16 %v3542
        %v3866 = vunpack.c.h.b16 %v3542
        %v3867 = vunpack.c.l.b16 %v3543
        %v3868 = vunpack.c.h.b16 %v3543
        %v3869 = vunpack.c.l.b16 %v3544
        %v3870 = vunpack.c.h.b16 %v3544
        %v3871 = vunpack.c.l.b16 %v3545
        %v3872 = vunpack.c.h.b16 %v3545
        %v3873 = vunpack.c.l.b16 %v3546
        %v3874 = vunpack.c.h.b16 %v3546
        %v3875 = vunpack.c.l.b16 %v3547
        %v3876 = vunpack.c.h.b16 %v3547
        %v3877 = vunpack.c.l.b16 %v3548
        %v3878 = vunpack.c.h.b16 %v3548
        %v3879 = vunpack.c.l.b16 %v3549
        %v3880 = vunpack.c.h.b16 %v3549
        %v3881 = vunpack.c.l.b16 %v3550
        %v3882 = vunpack.c.h.b16 %v3550
        %v3883 = vpack.c.b16 %v3821, %v3819
        %v3884 = vpack.c.b16 %v3822, %v3820
        %v3885 = vpack.c.b16 %v3825, %v3823
        %v3886 = vpack.c.b16 %v3826, %v3824
        %v3887 = vpack.c.b16 %v3829, %v3827
        %v3888 = vpack.c.b16 %v3830, %v3828
        %v3889 = vpack.c.b16 %v3833, %v3831
        %v3890 = vpack.c.b16 %v3834, %v3832
        %v3891 = vpack.c.b16 %v3837, %v3835
        %v3892 = vpack.c.b16 %v3838, %v3836
        %v3893 = vpack.c.b16 %v3841, %v3839
        %v3894 = vpack.c.b16 %v3842, %v3840
        %v3895 = vpack.c.b16 %v3845, %v3843
        %v3896 = vpack.c.b16 %v3846, %v3844
        %v3897 = vpack.c.b16 %v3849, %v3847
        %v3898 = vpack.c.b16 %v3850, %v3848
        %v3899 = vpack.c.b16 %v3853, %v3851
        %v3900 = vpack.c.b16 %v3854, %v3852
        %v3901 = vpack.c.b16 %v3857, %v3855
        %v3902 = vpack.c.b16 %v3858, %v3856
        %v3903 = vpack.c.b16 %v3861, %v3859
        %v3904 = vpack.c.b16 %v3862, %v3860
        %v3905 = vpack.c.b16 %v3865, %v3863
        %v3906 = vpack.c.b16 %v3866, %v3864
        %v3907 = vpack.c.b16 %v3869, %v3867
        %v3908 = vpack.c.b16 %v3870, %v3868
        %v3909 = vpack.c.b16 %v3873, %v3871
        %v3910 = vpack.c.b16 %v3874, %v3872
        %v3911 = vpack.c.b16 %v3877, %v3875
        %v3912 = vpack.c.b16 %v3878, %v3876
        %v3913 = vpack.c.b16 %v3881, %v3879
        %v3914 = vpack.c.b16 %v3882, %v3880
        %3947 = vmatprep.subr.bf16.mxu0 %v3884
        %3948 = vmatpush1.bf16.msra.mxu0 %v3883
        %3949 = vmatprep.subr.bf16.mxu0 %v3886
        %3950 = vmatpush1.bf16.msra.mxu0 %v3885
        %3951 = vmatprep.subr.bf16.mxu0 %v3888
        %3952 = vmatpush1.bf16.msra.mxu0 %v3887
        %3953 = vmatprep.subr.bf16.mxu0 %v3890
        %3954 = vmatpush1.bf16.msra.mxu0 %v3889
        %3955 = vmatprep.subr.bf16.mxu0 %v3892
        %3956 = vmatpush1.bf16.msra.mxu0 %v3891
        %3957 = vmatprep.subr.bf16.mxu0 %v3894
        %3958 = vmatpush1.bf16.msra.mxu0 %v3893
        %3959 = vmatprep.subr.bf16.mxu0 %v3896
        %3960 = vmatpush1.bf16.msra.mxu0 %v3895
        %3961 = vmatprep.subr.bf16.mxu0 %v3898
        %3962 = vmatpush1.bf16.msra.mxu0 %v3897
        %3963 = vmatprep.subr.bf16.mxu0 %v3900
        %3964 = vmatpush1.bf16.msra.mxu0 %v3899
        %3965 = vmatprep.subr.bf16.mxu0 %v3902
        %3966 = vmatpush1.bf16.msra.mxu0 %v3901
        %3967 = vmatprep.subr.bf16.mxu0 %v3904
        %3968 = vmatpush1.bf16.msra.mxu0 %v3903
        %3969 = vmatprep.subr.bf16.mxu0 %v3906
        %3970 = vmatpush1.bf16.msra.mxu0 %v3905
        %3971 = vmatprep.subr.bf16.mxu0 %v3908
        %3972 = vmatpush1.bf16.msra.mxu0 %v3907
        %3973 = vmatprep.subr.bf16.mxu0 %v3910
        %3974 = vmatpush1.bf16.msra.mxu0 %v3909
        %3975 = vmatprep.subr.bf16.mxu0 %v3912
        %3976 = vmatpush1.bf16.msra.mxu0 %v3911
        %3977 = vmatprep.subr.bf16.mxu0 %v3914
        %3978 = vmatpush1.bf16.msra.mxu0 %v3913
        %3979 = vmatprep.mubr.bf16.mxu0 %v3518
        %3980 = vmatmul.mubr.bf16.gmra.mrb[0].mxu0 %v3517
        %v3981 = vpop.f32.mrb[0].mxu0
        %v3982 = vadd.f32 %v3779, %v3981
        %v3983 = vpop.f32.mrb[0].mxu0
        %v3984 = vadd.f32 %v3781, %v3983
        %v3985 = vpop.f32.mrb[0].mxu0
        %v3986 = vadd.f32 %v3783, %v3985
        %v3987 = vpop.f32.mrb[0].mxu0
        %v3988 = vadd.f32 %v3785, %v3987
        %3989 = vdwg.mxu0
        %s3990 = scalar_lea.vmem %s23, 16
        %v3991 = vld [vmem:[%s3990] sm:$0xf]
        %v3992 = vld [vmem:[%s3990 + $0x4] sm:$0xf]
        %v3995 = vunpack.c.l.b16 %v3991
        %v3996 = vunpack.c.l.b16 %v3992
        %v3997 = vpack.c.b16 %v3996, %v3995
        %v3999 = vsel %vm3470, %v3997, 0
        %4001 = vmatprep.subr.bf16.mxu0 %v3462
        %4002 = vmatpush1.bf16.msra.mxu0 %v3461
        %4003 = vmatprep.subr.bf16.mxu0 0
        %4004 = vmatpush1.bf16.msra.mxu0 0
        %4005 = vmatprep.subr.bf16.mxu0 0
        %4006 = vmatpush1.bf16.msra.mxu0 0
        %4007 = vmatprep.subr.bf16.mxu0 0
        %4008 = vmatpush1.bf16.msra.mxu0 0
        %4009 = vmatprep.subr.bf16.mxu0 0
        %4010 = vmatpush1.bf16.msra.mxu0 0
        %4011 = vmatprep.subr.bf16.mxu0 0
        %4012 = vmatpush1.bf16.msra.mxu0 0
        %4013 = vmatprep.subr.bf16.mxu0 0
        %4014 = vmatpush1.bf16.msra.mxu0 0
        %4015 = vmatprep.subr.bf16.mxu0 0
        %4016 = vmatpush1.bf16.msra.mxu0 0
        %4017 = vmatprep.subr.bf16.mxu0 0
        %4018 = vmatpush1.bf16.msra.mxu0 0
        %4019 = vmatprep.subr.bf16.mxu0 0
        %4020 = vmatpush1.bf16.msra.mxu0 0
        %4021 = vmatprep.subr.bf16.mxu0 0
        %4022 = vmatpush1.bf16.msra.mxu0 0
        %4023 = vmatprep.subr.bf16.mxu0 0
        %4024 = vmatpush1.bf16.msra.mxu0 0
        %4025 = vmatprep.subr.bf16.mxu0 0
        %4026 = vmatpush1.bf16.msra.mxu0 0
        %4027 = vmatprep.subr.bf16.mxu0 0
        %4028 = vmatpush1.bf16.msra.mxu0 0
        %4029 = vmatprep.subr.bf16.mxu0 0
        %4030 = vmatpush1.bf16.msra.mxu0 0
        %4031 = vmatprep.subr.bf16.mxu0 0
        %4032 = vmatpush1.bf16.msra.mxu0 0
        %4033 = vmatprep.mubr.bf16.mxu0 0
        %4034 = vmatmul.mubr.bf16.gmra.mrb[0].mxu0 %v3999
        %v4035 = vpop.f32.mrb[0].mxu0
        %v4036 = vadd.f32 0.0, %v4035
        %v4037 = vpop.f32.mrb[0].mxu0
        %v4038 = vadd.f32 0.0, %v4037
        %v4039 = vpop.f32.mrb[0].mxu0
        %v4040 = vadd.f32 0.0, %v4039
        %v4041 = vpop.f32.mrb[0].mxu0
        %v4042 = vadd.f32 0.0, %v4041
        %4043 = vdwg.mxu0
        %v4044 = vpack.c.bf16 %v4040, %v4036
        %v4045 = vpack.c.bf16 %v4042, %v4038
        %s4046 = scalar_lea.vmem %s25, 512
        %v4047 = vld [vmem:[%s4046] sm:$0xff]
        %v4048 = vld [vmem:[%s4046 + $0x8] sm:$0xff]
        %v4049 = vld [vmem:[%s4046 + $0x10] sm:$0xff]
        %v4050 = vld [vmem:[%s4046 + $0x18] sm:$0xff]
        %v4051 = vld [vmem:[%s4046 + $0x20] sm:$0xff]
        %v4052 = vld [vmem:[%s4046 + $0x28] sm:$0xff]
        %v4053 = vld [vmem:[%s4046 + $0x30] sm:$0xff]
        %v4054 = vld [vmem:[%s4046 + $0x38] sm:$0xff]
        %v4055 = vld [vmem:[%s4046 + $0x40] sm:$0xff]
        %v4056 = vld [vmem:[%s4046 + $0x48] sm:$0xff]
        %v4057 = vld [vmem:[%s4046 + $0x50] sm:$0xff]
        %v4058 = vld [vmem:[%s4046 + $0x58] sm:$0xff]
        %v4059 = vld [vmem:[%s4046 + $0x60] sm:$0xff]
        %v4060 = vld [vmem:[%s4046 + $0x68] sm:$0xff]
        %v4061 = vld [vmem:[%s4046 + $0x70] sm:$0xff]
        %v4062 = vld [vmem:[%s4046 + $0x78] sm:$0xff]
        %v4063 = vld [vmem:[%s4046 + $0x80] sm:$0xff]
        %v4064 = vld [vmem:[%s4046 + $0x88] sm:$0xff]
        %v4065 = vld [vmem:[%s4046 + $0x90] sm:$0xff]
        %v4066 = vld [vmem:[%s4046 + $0x98] sm:$0xff]
        %v4067 = vld [vmem:[%s4046 + $0xa0] sm:$0xff]
        %v4068 = vld [vmem:[%s4046 + $0xa8] sm:$0xff]
        %v4069 = vld [vmem:[%s4046 + $0xb0] sm:$0xff]
        %v4070 = vld [vmem:[%s4046 + $0xb8] sm:$0xff]
        %v4071 = vld [vmem:[%s4046 + $0xc0] sm:$0xff]
        %v4072 = vld [vmem:[%s4046 + $0xc8] sm:$0xff]
        %v4073 = vld [vmem:[%s4046 + $0xd0] sm:$0xff]
        %v4074 = vld [vmem:[%s4046 + $0xd8] sm:$0xff]
        %v4075 = vld [vmem:[%s4046 + $0xe0] sm:$0xff]
        %v4076 = vld [vmem:[%s4046 + $0xe8] sm:$0xff]
        %v4077 = vld [vmem:[%s4046 + $0xf0] sm:$0xff]
        %v4078 = vld [vmem:[%s4046 + $0xf8] sm:$0xff]
        %v4111 = vunpack.c.l.b16 %v4047
        %v4112 = vunpack.c.h.b16 %v4047
        %v4113 = vunpack.c.l.b16 %v4048
        %v4114 = vunpack.c.h.b16 %v4048
        %v4115 = vunpack.c.l.b16 %v4049
        %v4116 = vunpack.c.h.b16 %v4049
        %v4117 = vunpack.c.l.b16 %v4050
        %v4118 = vunpack.c.h.b16 %v4050
        %v4119 = vunpack.c.l.b16 %v4051
        %v4120 = vunpack.c.h.b16 %v4051
        %v4121 = vunpack.c.l.b16 %v4052
        %v4122 = vunpack.c.h.b16 %v4052
        %v4123 = vunpack.c.l.b16 %v4053
        %v4124 = vunpack.c.h.b16 %v4053
        %v4125 = vunpack.c.l.b16 %v4054
        %v4126 = vunpack.c.h.b16 %v4054
        %v4127 = vunpack.c.l.b16 %v4055
        %v4128 = vunpack.c.h.b16 %v4055
        %v4129 = vunpack.c.l.b16 %v4056
        %v4130 = vunpack.c.h.b16 %v4056
        %v4131 = vunpack.c.l.b16 %v4057
        %v4132 = vunpack.c.h.b16 %v4057
        %v4133 = vunpack.c.l.b16 %v4058
        %v4134 = vunpack.c.h.b16 %v4058
        %v4135 = vunpack.c.l.b16 %v4059
        %v4136 = vunpack.c.h.b16 %v4059
        %v4137 = vunpack.c.l.b16 %v4060
        %v4138 = vunpack.c.h.b16 %v4060
        %v4139 = vunpack.c.l.b16 %v4061
        %v4140 = vunpack.c.h.b16 %v4061
        %v4141 = vunpack.c.l.b16 %v4062
        %v4142 = vunpack.c.h.b16 %v4062
        %v4143 = vunpack.c.l.b16 %v4063
        %v4144 = vunpack.c.h.b16 %v4063
        %v4145 = vunpack.c.l.b16 %v4064
        %v4146 = vunpack.c.h.b16 %v4064
        %v4147 = vunpack.c.l.b16 %v4065
        %v4148 = vunpack.c.h.b16 %v4065
        %v4149 = vunpack.c.l.b16 %v4066
        %v4150 = vunpack.c.h.b16 %v4066
        %v4151 = vunpack.c.l.b16 %v4067
        %v4152 = vunpack.c.h.b16 %v4067
        %v4153 = vunpack.c.l.b16 %v4068
        %v4154 = vunpack.c.h.b16 %v4068
        %v4155 = vunpack.c.l.b16 %v4069
        %v4156 = vunpack.c.h.b16 %v4069
        %v4157 = vunpack.c.l.b16 %v4070
        %v4158 = vunpack.c.h.b16 %v4070
        %v4159 = vunpack.c.l.b16 %v4071
        %v4160 = vunpack.c.h.b16 %v4071
        %v4161 = vunpack.c.l.b16 %v4072
        %v4162 = vunpack.c.h.b16 %v4072
        %v4163 = vunpack.c.l.b16 %v4073
        %v4164 = vunpack.c.h.b16 %v4073
        %v4165 = vunpack.c.l.b16 %v4074
        %v4166 = vunpack.c.h.b16 %v4074
        %v4167 = vunpack.c.l.b16 %v4075
        %v4168 = vunpack.c.h.b16 %v4075
        %v4169 = vunpack.c.l.b16 %v4076
        %v4170 = vunpack.c.h.b16 %v4076
        %v4171 = vunpack.c.l.b16 %v4077
        %v4172 = vunpack.c.h.b16 %v4077
        %v4173 = vunpack.c.l.b16 %v4078
        %v4174 = vunpack.c.h.b16 %v4078
        %v4175 = vpack.c.b16 %v4113, %v4111
        %v4176 = vpack.c.b16 %v4114, %v4112
        %v4177 = vpack.c.b16 %v4117, %v4115
        %v4178 = vpack.c.b16 %v4118, %v4116
        %v4179 = vpack.c.b16 %v4121, %v4119
        %v4180 = vpack.c.b16 %v4122, %v4120
        %v4181 = vpack.c.b16 %v4125, %v4123
        %v4182 = vpack.c.b16 %v4126, %v4124
        %v4183 = vpack.c.b16 %v4129, %v4127
        %v4184 = vpack.c.b16 %v4130, %v4128
        %v4185 = vpack.c.b16 %v4133, %v4131
        %v4186 = vpack.c.b16 %v4134, %v4132
        %v4187 = vpack.c.b16 %v4137, %v4135
        %v4188 = vpack.c.b16 %v4138, %v4136
        %v4189 = vpack.c.b16 %v4141, %v4139
        %v4190 = vpack.c.b16 %v4142, %v4140
        %v4191 = vpack.c.b16 %v4145, %v4143
        %v4192 = vpack.c.b16 %v4146, %v4144
        %v4193 = vpack.c.b16 %v4149, %v4147
        %v4194 = vpack.c.b16 %v4150, %v4148
        %v4195 = vpack.c.b16 %v4153, %v4151
        %v4196 = vpack.c.b16 %v4154, %v4152
        %v4197 = vpack.c.b16 %v4157, %v4155
        %v4198 = vpack.c.b16 %v4158, %v4156
        %v4199 = vpack.c.b16 %v4161, %v4159
        %v4200 = vpack.c.b16 %v4162, %v4160
        %v4201 = vpack.c.b16 %v4165, %v4163
        %v4202 = vpack.c.b16 %v4166, %v4164
        %v4203 = vpack.c.b16 %v4169, %v4167
        %v4204 = vpack.c.b16 %v4170, %v4168
        %v4205 = vpack.c.b16 %v4173, %v4171
        %v4206 = vpack.c.b16 %v4174, %v4172
        %4239 = vmatprep.subr.bf16.mxu0 %v4176
        %4240 = vmatpush1.bf16.msra.mxu0 %v4175
        %4241 = vmatprep.subr.bf16.mxu0 %v4178
        %4242 = vmatpush1.bf16.msra.mxu0 %v4177
        %4243 = vmatprep.subr.bf16.mxu0 %v4180
        %4244 = vmatpush1.bf16.msra.mxu0 %v4179
        %4245 = vmatprep.subr.bf16.mxu0 %v4182
        %4246 = vmatpush1.bf16.msra.mxu0 %v4181
        %4247 = vmatprep.subr.bf16.mxu0 %v4184
        %4248 = vmatpush1.bf16.msra.mxu0 %v4183
        %4249 = vmatprep.subr.bf16.mxu0 %v4186
        %4250 = vmatpush1.bf16.msra.mxu0 %v4185
        %4251 = vmatprep.subr.bf16.mxu0 %v4188
        %4252 = vmatpush1.bf16.msra.mxu0 %v4187
        %4253 = vmatprep.subr.bf16.mxu0 %v4190
        %4254 = vmatpush1.bf16.msra.mxu0 %v4189
        %4255 = vmatprep.subr.bf16.mxu0 %v4192
        %4256 = vmatpush1.bf16.msra.mxu0 %v4191
        %4257 = vmatprep.subr.bf16.mxu0 %v4194
        %4258 = vmatpush1.bf16.msra.mxu0 %v4193
        %4259 = vmatprep.subr.bf16.mxu0 %v4196
        %4260 = vmatpush1.bf16.msra.mxu0 %v4195
        %4261 = vmatprep.subr.bf16.mxu0 %v4198
        %4262 = vmatpush1.bf16.msra.mxu0 %v4197
        %4263 = vmatprep.subr.bf16.mxu0 %v4200
        %4264 = vmatpush1.bf16.msra.mxu0 %v4199
        %4265 = vmatprep.subr.bf16.mxu0 %v4202
        %4266 = vmatpush1.bf16.msra.mxu0 %v4201
        %4267 = vmatprep.subr.bf16.mxu0 %v4204
        %4268 = vmatpush1.bf16.msra.mxu0 %v4203
        %4269 = vmatprep.subr.bf16.mxu0 %v4206
        %4270 = vmatpush1.bf16.msra.mxu0 %v4205
        %4271 = vmatprep.mubr.bf16.mxu0 %v4045
        %4272 = vmatmul.mubr.bf16.gmra.mrb[0].mxu0 %v4044
        %v4273 = vpop.f32.mrb[0].mxu0
        %v4274 = vadd.f32 0.0, %v4273
        %v4275 = vpop.f32.mrb[0].mxu0
        %v4276 = vadd.f32 0.0, %v4275
        %v4277 = vpop.f32.mrb[0].mxu0
        %v4278 = vadd.f32 0.0, %v4277
        %v4279 = vpop.f32.mrb[0].mxu0
        %v4280 = vadd.f32 0.0, %v4279
        %4281 = vdwg.mxu0
        %v4282 = vadd.f32 %v3982, %v4274
        %v4283 = vadd.f32 %v3984, %v4276
        %v4284 = vadd.f32 %v3986, %v4278
        %v4285 = vadd.f32 %v3988, %v4280
        %v4286 = vld [vmem:[%s27] sm:$0x3]
        %v4288 = vlaneseq
        %v4289 = vshrl.u32 %v4288, 7
        %v4290 = vsub.s32 0, %v4289
        %v4291 = vrot.slane %v4286, %v4290
        %v4292 = vlaneseq
        %v4293 = vshrl.u32 %v4292, 7
        %v4294 = vsub.s32 1, %v4293
        %v4295 = vrot.slane %v4286, %v4294
        %v4298 = vadd.f32 %v4282, %v4291
        %v4299 = vadd.f32 %v4283, %v4295
        %v4300 = vadd.f32 %v4284, %v4291
        %v4301 = vadd.f32 %v4285, %v4295
        %v4302 = vmax.f32 %v4298, 0.0
        %v4303 = vmax.f32 %v4299, 0.0
        %v4304 = vmax.f32 %v4300, 0.0
        %v4305 = vmax.f32 %v4301, 0.0
        %v4306 = vpack.c.bf16 %v4304, %v4302
        %v4307 = vpack.c.bf16 %v4305, %v4303
        %v4308 = vld [vmem:[%s29] sm:$0xf]
        %v4310 = vsel %vm3470, %v4308, 0
        %4312 = vmatprep.subr.bf16.mxu0 %v4307
        %4313 = vmatpush1.bf16.msra.mxu0 %v4306
        %4314 = vmatprep.subr.bf16.mxu0 0
        %4315 = vmatpush1.bf16.msra.mxu0 0
        %4316 = vmatprep.subr.bf16.mxu0 0
        %4317 = vmatpush1.bf16.msra.mxu0 0
        %4318 = vmatprep.subr.bf16.mxu0 0
        %4319 = vmatpush1.bf16.msra.mxu0 0
        %4320 = vmatprep.subr.bf16.mxu0 0
        %4321 = vmatpush1.bf16.msra.mxu0 0
        %4322 = vmatprep.subr.bf16.mxu0 0
        %4323 = vmatpush1.bf16.msra.mxu0 0
        %4324 = vmatprep.subr.bf16.mxu0 0
        %4325 = vmatpush1.bf16.msra.mxu0 0
        %4326 = vmatprep.subr.bf16.mxu0 0
        %4327 = vmatpush1.bf16.msra.mxu0 0
        %4328 = vmatprep.subr.bf16.mxu0 0
        %4329 = vmatpush1.bf16.msra.mxu0 0
        %4330 = vmatprep.subr.bf16.mxu0 0
        %4331 = vmatpush1.bf16.msra.mxu0 0
        %4332 = vmatprep.subr.bf16.mxu0 0
        %4333 = vmatpush1.bf16.msra.mxu0 0
        %4334 = vmatprep.subr.bf16.mxu0 0
        %4335 = vmatpush1.bf16.msra.mxu0 0
        %4336 = vmatprep.subr.bf16.mxu0 0
        %4337 = vmatpush1.bf16.msra.mxu0 0
        %4338 = vmatprep.subr.bf16.mxu0 0
        %4339 = vmatpush1.bf16.msra.mxu0 0
        %4340 = vmatprep.subr.bf16.mxu0 0
        %4341 = vmatpush1.bf16.msra.mxu0 0
        %4342 = vmatprep.subr.bf16.mxu0 0
        %4343 = vmatpush1.bf16.msra.mxu0 0
        %4344 = vmatprep.mubr.bf16.mxu0 0
        %4345 = vmatmul.mubr.bf16.gmra.mrb[0].mxu0 %v4310
        %v4346 = vpop.f32.mrb[0].mxu0
        %v4347 = vadd.f32 0.0, %v4346
        %v4348 = vpop.f32.mrb[0].mxu0
        %v4349 = vadd.f32 0.0, %v4348
        %v4350 = vpop.f32.mrb[0].mxu0
        %v4351 = vpop.f32.mrb[0].mxu0
        %4352 = vdwg.mxu0
        %v4353 = vpack.c.bf16 %v4347, %v4347
        %v4354 = vpack.c.bf16 %v4349, %v4349
        %v4355 = vld [vmem:[%s31] sm:$0xff]
        %v4356 = vld [vmem:[%s31 + $0x8] sm:$0xff]
        %v4357 = vld [vmem:[%s31 + $0x10] sm:$0xff]
        %v4358 = vld [vmem:[%s31 + $0x18] sm:$0xff]
        %v4359 = vld [vmem:[%s31 + $0x20] sm:$0xff]
        %v4360 = vld [vmem:[%s31 + $0x28] sm:$0xff]
        %v4361 = vld [vmem:[%s31 + $0x30] sm:$0xff]
        %v4362 = vld [vmem:[%s31 + $0x38] sm:$0xff]
        %v4363 = vld [vmem:[%s31 + $0x40] sm:$0xff]
        %v4364 = vld [vmem:[%s31 + $0x48] sm:$0xff]
        %v4365 = vld [vmem:[%s31 + $0x50] sm:$0xff]
        %v4366 = vld [vmem:[%s31 + $0x58] sm:$0xff]
        %v4367 = vld [vmem:[%s31 + $0x60] sm:$0xff]
        %v4368 = vld [vmem:[%s31 + $0x68] sm:$0xff]
        %v4369 = vld [vmem:[%s31 + $0x70] sm:$0xff]
        %v4370 = vld [vmem:[%s31 + $0x78] sm:$0xff]
        %v4371 = vld [vmem:[%s31 + $0x80] sm:$0xff]
        %v4372 = vld [vmem:[%s31 + $0x88] sm:$0xff]
        %v4373 = vld [vmem:[%s31 + $0x90] sm:$0xff]
        %v4374 = vld [vmem:[%s31 + $0x98] sm:$0xff]
        %v4375 = vld [vmem:[%s31 + $0xa0] sm:$0xff]
        %v4376 = vld [vmem:[%s31 + $0xa8] sm:$0xff]
        %v4377 = vld [vmem:[%s31 + $0xb0] sm:$0xff]
        %v4378 = vld [vmem:[%s31 + $0xb8] sm:$0xff]
        %v4379 = vld [vmem:[%s31 + $0xc0] sm:$0xff]
        %v4380 = vld [vmem:[%s31 + $0xc8] sm:$0xff]
        %v4381 = vld [vmem:[%s31 + $0xd0] sm:$0xff]
        %v4382 = vld [vmem:[%s31 + $0xd8] sm:$0xff]
        %v4383 = vld [vmem:[%s31 + $0xe0] sm:$0xff]
        %v4384 = vld [vmem:[%s31 + $0xe8] sm:$0xff]
        %v4385 = vld [vmem:[%s31 + $0xf0] sm:$0xff]
        %v4386 = vld [vmem:[%s31 + $0xf8] sm:$0xff]
        %s4387 = scalar_lea.vmem %s29, 4
        %v4388 = vld [vmem:[%s4387] sm:$0xf]
        %v4390 = vsel %vm3470, %v4388, 0
        %4392 = vmatprep.subr.bf16.mxu0 %v4307
        %4393 = vmatpush1.bf16.msra.mxu0 %v4306
        %4394 = vmatprep.subr.bf16.mxu0 0
        %4395 = vmatpush1.bf16.msra.mxu0 0
        %4396 = vmatprep.subr.bf16.mxu0 0
        %4397 = vmatpush1.bf16.msra.mxu0 0
        %4398 = vmatprep.subr.bf16.mxu0 0
        %4399 = vmatpush1.bf16.msra.mxu0 0
        %4400 = vmatprep.subr.bf16.mxu0 0
        %4401 = vmatpush1.bf16.msra.mxu0 0
        %4402 = vmatprep.subr.bf16.mxu0 0
        %4403 = vmatpush1.bf16.msra.mxu0 0
        %4404 = vmatprep.subr.bf16.mxu0 0
        %4405 = vmatpush1.bf16.msra.mxu0 0
        %4406 = vmatprep.subr.bf16.mxu0 0
        %4407 = vmatpush1.bf16.msra.mxu0 0
        %4408 = vmatprep.subr.bf16.mxu0 0
        %4409 = vmatpush1.bf16.msra.mxu0 0
        %4410 = vmatprep.subr.bf16.mxu0 0
        %4411 = vmatpush1.bf16.msra.mxu0 0
        %4412 = vmatprep.subr.bf16.mxu0 0
        %4413 = vmatpush1.bf16.msra.mxu0 0
        %4414 = vmatprep.subr.bf16.mxu0 0
        %4415 = vmatpush1.bf16.msra.mxu0 0
        %4416 = vmatprep.subr.bf16.mxu0 0
        %4417 = vmatpush1.bf16.msra.mxu0 0
        %4418 = vmatprep.subr.bf16.mxu0 0
        %4419 = vmatpush1.bf16.msra.mxu0 0
        %4420 = vmatprep.subr.bf16.mxu0 0
        %4421 = vmatpush1.bf16.msra.mxu0 0
        %4422 = vmatprep.subr.bf16.mxu0 0
        %4423 = vmatpush1.bf16.msra.mxu0 0
        %4424 = vmatprep.mubr.bf16.mxu0 0
        %4425 = vmatmul.mubr.bf16.gmra.mrb[0].mxu0 %v4390
        %v4426 = vpop.f32.mrb[0].mxu0
        %v4427 = vadd.f32 0.0, %v4426
        %v4428 = vpop.f32.mrb[0].mxu0
        %v4429 = vadd.f32 0.0, %v4428
        %v4430 = vpop.f32.mrb[0].mxu0
        %v4431 = vpop.f32.mrb[0].mxu0
        %4432 = vdwg.mxu0
        %v4433 = vpack.c.bf16 %v4427, %v4427
        %v4434 = vpack.c.bf16 %v4429, %v4429
        %s4435 = scalar_lea.vmem %s31, 256
        %v4436 = vld [vmem:[%s4435] sm:$0xff]
        %v4437 = vld [vmem:[%s4435 + $0x8] sm:$0xff]
        %v4438 = vld [vmem:[%s4435 + $0x10] sm:$0xff]
        %v4439 = vld [vmem:[%s4435 + $0x18] sm:$0xff]
        %v4440 = vld [vmem:[%s4435 + $0x20] sm:$0xff]
        %v4441 = vld [vmem:[%s4435 + $0x28] sm:$0xff]
        %v4442 = vld [vmem:[%s4435 + $0x30] sm:$0xff]
        %v4443 = vld [vmem:[%s4435 + $0x38] sm:$0xff]
        %v4444 = vld [vmem:[%s4435 + $0x40] sm:$0xff]
        %v4445 = vld [vmem:[%s4435 + $0x48] sm:$0xff]
        %v4446 = vld [vmem:[%s4435 + $0x50] sm:$0xff]
        %v4447 = vld [vmem:[%s4435 + $0x58] sm:$0xff]
        %v4448 = vld [vmem:[%s4435 + $0x60] sm:$0xff]
        %v4449 = vld [vmem:[%s4435 + $0x68] sm:$0xff]
        %v4450 = vld [vmem:[%s4435 + $0x70] sm:$0xff]
        %v4451 = vld [vmem:[%s4435 + $0x78] sm:$0xff]
        %v4452 = vld [vmem:[%s4435 + $0x80] sm:$0xff]
        %v4453 = vld [vmem:[%s4435 + $0x88] sm:$0xff]
        %v4454 = vld [vmem:[%s4435 + $0x90] sm:$0xff]
        %v4455 = vld [vmem:[%s4435 + $0x98] sm:$0xff]
        %v4456 = vld [vmem:[%s4435 + $0xa0] sm:$0xff]
        %v4457 = vld [vmem:[%s4435 + $0xa8] sm:$0xff]
        %v4458 = vld [vmem:[%s4435 + $0xb0] sm:$0xff]
        %v4459 = vld [vmem:[%s4435 + $0xb8] sm:$0xff]
        %v4460 = vld [vmem:[%s4435 + $0xc0] sm:$0xff]
        %v4461 = vld [vmem:[%s4435 + $0xc8] sm:$0xff]
        %v4462 = vld [vmem:[%s4435 + $0xd0] sm:$0xff]
        %v4463 = vld [vmem:[%s4435 + $0xd8] sm:$0xff]
        %v4464 = vld [vmem:[%s4435 + $0xe0] sm:$0xff]
        %v4465 = vld [vmem:[%s4435 + $0xe8] sm:$0xff]
        %v4466 = vld [vmem:[%s4435 + $0xf0] sm:$0xff]
        %v4467 = vld [vmem:[%s4435 + $0xf8] sm:$0xff]
        %v4500 = vunpack.c.l.b16 %v4436
        %v4501 = vunpack.c.h.b16 %v4436
        %v4502 = vunpack.c.l.b16 %v4437
        %v4503 = vunpack.c.h.b16 %v4437
        %v4504 = vunpack.c.l.b16 %v4438
        %v4505 = vunpack.c.h.b16 %v4438
        %v4506 = vunpack.c.l.b16 %v4439
        %v4507 = vunpack.c.h.b16 %v4439
        %v4508 = vunpack.c.l.b16 %v4440
        %v4509 = vunpack.c.h.b16 %v4440
        %v4510 = vunpack.c.l.b16 %v4441
        %v4511 = vunpack.c.h.b16 %v4441
        %v4512 = vunpack.c.l.b16 %v4442
        %v4513 = vunpack.c.h.b16 %v4442
        %v4514 = vunpack.c.l.b16 %v4443
        %v4515 = vunpack.c.h.b16 %v4443
        %v4516 = vunpack.c.l.b16 %v4444
        %v4517 = vunpack.c.h.b16 %v4444
        %v4518 = vunpack.c.l.b16 %v4445
        %v4519 = vunpack.c.h.b16 %v4445
        %v4520 = vunpack.c.l.b16 %v4446
        %v4521 = vunpack.c.h.b16 %v4446
        %v4522 = vunpack.c.l.b16 %v4447
        %v4523 = vunpack.c.h.b16 %v4447
        %v4524 = vunpack.c.l.b16 %v4448
        %v4525 = vunpack.c.h.b16 %v4448
        %v4526 = vunpack.c.l.b16 %v4449
        %v4527 = vunpack.c.h.b16 %v4449
        %v4528 = vunpack.c.l.b16 %v4450
        %v4529 = vunpack.c.h.b16 %v4450
        %v4530 = vunpack.c.l.b16 %v4451
        %v4531 = vunpack.c.h.b16 %v4451
        %v4532 = vunpack.c.l.b16 %v4452
        %v4533 = vunpack.c.h.b16 %v4452
        %v4534 = vunpack.c.l.b16 %v4453
        %v4535 = vunpack.c.h.b16 %v4453
        %v4536 = vunpack.c.l.b16 %v4454
        %v4537 = vunpack.c.h.b16 %v4454
        %v4538 = vunpack.c.l.b16 %v4455
        %v4539 = vunpack.c.h.b16 %v4455
        %v4540 = vunpack.c.l.b16 %v4456
        %v4541 = vunpack.c.h.b16 %v4456
        %v4542 = vunpack.c.l.b16 %v4457
        %v4543 = vunpack.c.h.b16 %v4457
        %v4544 = vunpack.c.l.b16 %v4458
        %v4545 = vunpack.c.h.b16 %v4458
        %v4546 = vunpack.c.l.b16 %v4459
        %v4547 = vunpack.c.h.b16 %v4459
        %v4548 = vunpack.c.l.b16 %v4460
        %v4549 = vunpack.c.h.b16 %v4460
        %v4550 = vunpack.c.l.b16 %v4461
        %v4551 = vunpack.c.h.b16 %v4461
        %v4552 = vunpack.c.l.b16 %v4462
        %v4553 = vunpack.c.h.b16 %v4462
        %v4554 = vunpack.c.l.b16 %v4463
        %v4555 = vunpack.c.h.b16 %v4463
        %v4556 = vunpack.c.l.b16 %v4464
        %v4557 = vunpack.c.h.b16 %v4464
        %v4558 = vunpack.c.l.b16 %v4465
        %v4559 = vunpack.c.h.b16 %v4465
        %v4560 = vunpack.c.l.b16 %v4466
        %v4561 = vunpack.c.h.b16 %v4466
        %v4562 = vunpack.c.l.b16 %v4467
        %v4563 = vunpack.c.h.b16 %v4467
        %v4564 = vpack.c.b16 %v4502, %v4500
        %v4565 = vpack.c.b16 %v4503, %v4501
        %v4566 = vpack.c.b16 %v4506, %v4504
        %v4567 = vpack.c.b16 %v4507, %v4505
        %v4568 = vpack.c.b16 %v4510, %v4508
        %v4569 = vpack.c.b16 %v4511, %v4509
        %v4570 = vpack.c.b16 %v4514, %v4512
        %v4571 = vpack.c.b16 %v4515, %v4513
        %v4572 = vpack.c.b16 %v4518, %v4516
        %v4573 = vpack.c.b16 %v4519, %v4517
        %v4574 = vpack.c.b16 %v4522, %v4520
        %v4575 = vpack.c.b16 %v4523, %v4521
        %v4576 = vpack.c.b16 %v4526, %v4524
        %v4577 = vpack.c.b16 %v4527, %v4525
        %v4578 = vpack.c.b16 %v4530, %v4528
        %v4579 = vpack.c.b16 %v4531, %v4529
        %v4580 = vpack.c.b16 %v4534, %v4532
        %v4581 = vpack.c.b16 %v4535, %v4533
        %v4582 = vpack.c.b16 %v4538, %v4536
        %v4583 = vpack.c.b16 %v4539, %v4537
        %v4584 = vpack.c.b16 %v4542, %v4540
        %v4585 = vpack.c.b16 %v4543, %v4541
        %v4586 = vpack.c.b16 %v4546, %v4544
        %v4587 = vpack.c.b16 %v4547, %v4545
        %v4588 = vpack.c.b16 %v4550, %v4548
        %v4589 = vpack.c.b16 %v4551, %v4549
        %v4590 = vpack.c.b16 %v4554, %v4552
        %v4591 = vpack.c.b16 %v4555, %v4553
        %v4592 = vpack.c.b16 %v4558, %v4556
        %v4593 = vpack.c.b16 %v4559, %v4557
        %v4594 = vpack.c.b16 %v4562, %v4560
        %v4595 = vpack.c.b16 %v4563, %v4561
        %4628 = vmatprep.subr.bf16.mxu0 %v4565
        %4629 = vmatpush1.bf16.msra.mxu0 %v4564
        %4630 = vmatprep.subr.bf16.mxu0 %v4567
        %4631 = vmatpush1.bf16.msra.mxu0 %v4566
        %4632 = vmatprep.subr.bf16.mxu0 %v4569
        %4633 = vmatpush1.bf16.msra.mxu0 %v4568
        %4634 = vmatprep.subr.bf16.mxu0 %v4571
        %4635 = vmatpush1.bf16.msra.mxu0 %v4570
        %4636 = vmatprep.subr.bf16.mxu0 %v4573
        %4637 = vmatpush1.bf16.msra.mxu0 %v4572
        %4638 = vmatprep.subr.bf16.mxu0 %v4575
        %4639 = vmatpush1.bf16.msra.mxu0 %v4574
        %4640 = vmatprep.subr.bf16.mxu0 %v4577
        %4641 = vmatpush1.bf16.msra.mxu0 %v4576
        %4642 = vmatprep.subr.bf16.mxu0 %v4579
        %4643 = vmatpush1.bf16.msra.mxu0 %v4578
        %4644 = vmatprep.subr.bf16.mxu0 %v4581
        %4645 = vmatpush1.bf16.msra.mxu0 %v4580
        %4646 = vmatprep.subr.bf16.mxu0 %v4583
        %4647 = vmatpush1.bf16.msra.mxu0 %v4582
        %4648 = vmatprep.subr.bf16.mxu0 %v4585
        %4649 = vmatpush1.bf16.msra.mxu0 %v4584
        %4650 = vmatprep.subr.bf16.mxu0 %v4587
        %4651 = vmatpush1.bf16.msra.mxu0 %v4586
        %4652 = vmatprep.subr.bf16.mxu0 %v4589
        %4653 = vmatpush1.bf16.msra.mxu0 %v4588
        %4654 = vmatprep.subr.bf16.mxu0 %v4591
        %4655 = vmatpush1.bf16.msra.mxu0 %v4590
        %4656 = vmatprep.subr.bf16.mxu0 %v4593
        %4657 = vmatpush1.bf16.msra.mxu0 %v4592
        %4658 = vmatprep.subr.bf16.mxu0 %v4595
        %4659 = vmatpush1.bf16.msra.mxu0 %v4594
        %4660 = vmatprep.mubr.bf16.mxu0 %v4434
        %4661 = vmatmul.mubr.bf16.gmra.mrb[0].mxu0 %v4433
        %v4662 = vpop.f32.mrb[0].mxu0
        %v4663 = vadd.f32 0.0, %v4662
        %v4664 = vpop.f32.mrb[0].mxu0
        %v4665 = vadd.f32 0.0, %v4664
        %v4666 = vpop.f32.mrb[0].mxu0
        %v4667 = vpop.f32.mrb[0].mxu0
        %4668 = vdwg.mxu0
        %v4701 = vunpack.c.l.b16 %v4355
        %v4702 = vunpack.c.h.b16 %v4355
        %v4703 = vunpack.c.l.b16 %v4356
        %v4704 = vunpack.c.h.b16 %v4356
        %v4705 = vunpack.c.l.b16 %v4357
        %v4706 = vunpack.c.h.b16 %v4357
        %v4707 = vunpack.c.l.b16 %v4358
        %v4708 = vunpack.c.h.b16 %v4358
        %v4709 = vunpack.c.l.b16 %v4359
        %v4710 = vunpack.c.h.b16 %v4359
        %v4711 = vunpack.c.l.b16 %v4360
        %v4712 = vunpack.c.h.b16 %v4360
        %v4713 = vunpack.c.l.b16 %v4361
        %v4714 = vunpack.c.h.b16 %v4361
        %v4715 = vunpack.c.l.b16 %v4362
        %v4716 = vunpack.c.h.b16 %v4362
        %v4717 = vunpack.c.l.b16 %v4363
        %v4718 = vunpack.c.h.b16 %v4363
        %v4719 = vunpack.c.l.b16 %v4364
        %v4720 = vunpack.c.h.b16 %v4364
        %v4721 = vunpack.c.l.b16 %v4365
        %v4722 = vunpack.c.h.b16 %v4365
        %v4723 = vunpack.c.l.b16 %v4366
        %v4724 = vunpack.c.h.b16 %v4366
        %v4725 = vunpack.c.l.b16 %v4367
        %v4726 = vunpack.c.h.b16 %v4367
        %v4727 = vunpack.c.l.b16 %v4368
        %v4728 = vunpack.c.h.b16 %v4368
        %v4729 = vunpack.c.l.b16 %v4369
        %v4730 = vunpack.c.h.b16 %v4369
        %v4731 = vunpack.c.l.b16 %v4370
        %v4732 = vunpack.c.h.b16 %v4370
        %v4733 = vunpack.c.l.b16 %v4371
        %v4734 = vunpack.c.h.b16 %v4371
        %v4735 = vunpack.c.l.b16 %v4372
        %v4736 = vunpack.c.h.b16 %v4372
        %v4737 = vunpack.c.l.b16 %v4373
        %v4738 = vunpack.c.h.b16 %v4373
        %v4739 = vunpack.c.l.b16 %v4374
        %v4740 = vunpack.c.h.b16 %v4374
        %v4741 = vunpack.c.l.b16 %v4375
        %v4742 = vunpack.c.h.b16 %v4375
        %v4743 = vunpack.c.l.b16 %v4376
        %v4744 = vunpack.c.h.b16 %v4376
        %v4745 = vunpack.c.l.b16 %v4377
        %v4746 = vunpack.c.h.b16 %v4377
        %v4747 = vunpack.c.l.b16 %v4378
        %v4748 = vunpack.c.h.b16 %v4378
        %v4749 = vunpack.c.l.b16 %v4379
        %v4750 = vunpack.c.h.b16 %v4379
        %v4751 = vunpack.c.l.b16 %v4380
        %v4752 = vunpack.c.h.b16 %v4380
        %v4753 = vunpack.c.l.b16 %v4381
        %v4754 = vunpack.c.h.b16 %v4381
        %v4755 = vunpack.c.l.b16 %v4382
        %v4756 = vunpack.c.h.b16 %v4382
        %v4757 = vunpack.c.l.b16 %v4383
        %v4758 = vunpack.c.h.b16 %v4383
        %v4759 = vunpack.c.l.b16 %v4384
        %v4760 = vunpack.c.h.b16 %v4384
        %v4761 = vunpack.c.l.b16 %v4385
        %v4762 = vunpack.c.h.b16 %v4385
        %v4763 = vunpack.c.l.b16 %v4386
        %v4764 = vunpack.c.h.b16 %v4386
        %v4765 = vpack.c.b16 %v4703, %v4701
        %v4766 = vpack.c.b16 %v4704, %v4702
        %v4767 = vpack.c.b16 %v4707, %v4705
        %v4768 = vpack.c.b16 %v4708, %v4706
        %v4769 = vpack.c.b16 %v4711, %v4709
        %v4770 = vpack.c.b16 %v4712, %v4710
        %v4771 = vpack.c.b16 %v4715, %v4713
        %v4772 = vpack.c.b16 %v4716, %v4714
        %v4773 = vpack.c.b16 %v4719, %v4717
        %v4774 = vpack.c.b16 %v4720, %v4718
        %v4775 = vpack.c.b16 %v4723, %v4721
        %v4776 = vpack.c.b16 %v4724, %v4722
        %v4777 = vpack.c.b16 %v4727, %v4725
        %v4778 = vpack.c.b16 %v4728, %v4726
        %v4779 = vpack.c.b16 %v4731, %v4729
        %v4780 = vpack.c.b16 %v4732, %v4730
        %v4781 = vpack.c.b16 %v4735, %v4733
        %v4782 = vpack.c.b16 %v4736, %v4734
        %v4783 = vpack.c.b16 %v4739, %v4737
        %v4784 = vpack.c.b16 %v4740, %v4738
        %v4785 = vpack.c.b16 %v4743, %v4741
        %v4786 = vpack.c.b16 %v4744, %v4742
        %v4787 = vpack.c.b16 %v4747, %v4745
        %v4788 = vpack.c.b16 %v4748, %v4746
        %v4789 = vpack.c.b16 %v4751, %v4749
        %v4790 = vpack.c.b16 %v4752, %v4750
        %v4791 = vpack.c.b16 %v4755, %v4753
        %v4792 = vpack.c.b16 %v4756, %v4754
        %v4793 = vpack.c.b16 %v4759, %v4757
        %v4794 = vpack.c.b16 %v4760, %v4758
        %v4795 = vpack.c.b16 %v4763, %v4761
        %v4796 = vpack.c.b16 %v4764, %v4762
        %4829 = vmatprep.subr.bf16.mxu0 %v4766
        %4830 = vmatpush1.bf16.msra.mxu0 %v4765
        %4831 = vmatprep.subr.bf16.mxu0 %v4768
        %4832 = vmatpush1.bf16.msra.mxu0 %v4767
        %4833 = vmatprep.subr.bf16.mxu0 %v4770
        %4834 = vmatpush1.bf16.msra.mxu0 %v4769
        %4835 = vmatprep.subr.bf16.mxu0 %v4772
        %4836 = vmatpush1.bf16.msra.mxu0 %v4771
        %4837 = vmatprep.subr.bf16.mxu0 %v4774
        %4838 = vmatpush1.bf16.msra.mxu0 %v4773
        %4839 = vmatprep.subr.bf16.mxu0 %v4776
        %4840 = vmatpush1.bf16.msra.mxu0 %v4775
        %4841 = vmatprep.subr.bf16.mxu0 %v4778
        %4842 = vmatpush1.bf16.msra.mxu0 %v4777
        %4843 = vmatprep.subr.bf16.mxu0 %v4780
        %4844 = vmatpush1.bf16.msra.mxu0 %v4779
        %4845 = vmatprep.subr.bf16.mxu0 %v4782
        %4846 = vmatpush1.bf16.msra.mxu0 %v4781
        %4847 = vmatprep.subr.bf16.mxu0 %v4784
        %4848 = vmatpush1.bf16.msra.mxu0 %v4783
        %4849 = vmatprep.subr.bf16.mxu0 %v4786
        %4850 = vmatpush1.bf16.msra.mxu0 %v4785
        %4851 = vmatprep.subr.bf16.mxu0 %v4788
        %4852 = vmatpush1.bf16.msra.mxu0 %v4787
        %4853 = vmatprep.subr.bf16.mxu0 %v4790
        %4854 = vmatpush1.bf16.msra.mxu0 %v4789
        %4855 = vmatprep.subr.bf16.mxu0 %v4792
        %4856 = vmatpush1.bf16.msra.mxu0 %v4791
        %4857 = vmatprep.subr.bf16.mxu0 %v4794
        %4858 = vmatpush1.bf16.msra.mxu0 %v4793
        %4859 = vmatprep.subr.bf16.mxu0 %v4796
        %4860 = vmatpush1.bf16.msra.mxu0 %v4795
        %4861 = vmatprep.mubr.bf16.mxu0 %v4354
        %4862 = vmatmul.mubr.bf16.gmra.mrb[0].mxu0 %v4353
        %v4863 = vpop.f32.mrb[0].mxu0
        %v4864 = vadd.f32 %v4663, %v4863
        %v4865 = vpop.f32.mrb[0].mxu0
        %v4866 = vadd.f32 %v4665, %v4865
        %v4867 = vpop.f32.mrb[0].mxu0
        %v4868 = vpop.f32.mrb[0].mxu0
        %4869 = vdwg.mxu0
        %s4870 = scalar_lea.vmem %s29, 8
        %v4871 = vld [vmem:[%s4870] sm:$0xf]
        %v4873 = vsel %vm3470, %v4871, 0
        %4875 = vmatprep.subr.bf16.mxu0 %v4307
        %4876 = vmatpush1.bf16.msra.mxu0 %v4306
        %4877 = vmatprep.subr.bf16.mxu0 0
        %4878 = vmatpush1.bf16.msra.mxu0 0
        %4879 = vmatprep.subr.bf16.mxu0 0
        %4880 = vmatpush1.bf16.msra.mxu0 0
        %4881 = vmatprep.subr.bf16.mxu0 0
        %4882 = vmatpush1.bf16.msra.mxu0 0
        %4883 = vmatprep.subr.bf16.mxu0 0
        %4884 = vmatpush1.bf16.msra.mxu0 0
        %4885 = vmatprep.subr.bf16.mxu0 0
        %4886 = vmatpush1.bf16.msra.mxu0 0
        %4887 = vmatprep.subr.bf16.mxu0 0
        %4888 = vmatpush1.bf16.msra.mxu0 0
        %4889 = vmatprep.subr.bf16.mxu0 0
        %4890 = vmatpush1.bf16.msra.mxu0 0
        %4891 = vmatprep.subr.bf16.mxu0 0
        %4892 = vmatpush1.bf16.msra.mxu0 0
        %4893 = vmatprep.subr.bf16.mxu0 0
        %4894 = vmatpush1.bf16.msra.mxu0 0
        %4895 = vmatprep.subr.bf16.mxu0 0
        %4896 = vmatpush1.bf16.msra.mxu0 0
        %4897 = vmatprep.subr.bf16.mxu0 0
        %4898 = vmatpush1.bf16.msra.mxu0 0
        %4899 = vmatprep.subr.bf16.mxu0 0
        %4900 = vmatpush1.bf16.msra.mxu0 0
        %4901 = vmatprep.subr.bf16.mxu0 0
        %4902 = vmatpush1.bf16.msra.mxu0 0
        %4903 = vmatprep.subr.bf16.mxu0 0
        %4904 = vmatpush1.bf16.msra.mxu0 0
        %4905 = vmatprep.subr.bf16.mxu0 0
        %4906 = vmatpush1.bf16.msra.mxu0 0
        %4907 = vmatprep.mubr.bf16.mxu0 0
        %4908 = vmatmul.mubr.bf16.gmra.mrb[0].mxu0 %v4873
        %v4909 = vpop.f32.mrb[0].mxu0
        %v4910 = vadd.f32 0.0, %v4909
        %v4911 = vpop.f32.mrb[0].mxu0
        %v4912 = vadd.f32 0.0, %v4911
        %v4913 = vpop.f32.mrb[0].mxu0
        %v4914 = vpop.f32.mrb[0].mxu0
        %4915 = vdwg.mxu0
        %v4916 = vpack.c.bf16 %v4910, %v4910
        %v4917 = vpack.c.bf16 %v4912, %v4912
        %s4918 = scalar_lea.vmem %s31, 512
        %v4919 = vld [vmem:[%s4918] sm:$0xff]
        %v4920 = vld [vmem:[%s4918 + $0x8] sm:$0xff]
        %v4921 = vld [vmem:[%s4918 + $0x10] sm:$0xff]
        %v4922 = vld [vmem:[%s4918 + $0x18] sm:$0xff]
        %v4923 = vld [vmem:[%s4918 + $0x20] sm:$0xff]
        %v4924 = vld [vmem:[%s4918 + $0x28] sm:$0xff]
        %v4925 = vld [vmem:[%s4918 + $0x30] sm:$0xff]
        %v4926 = vld [vmem:[%s4918 + $0x38] sm:$0xff]
        %v4927 = vld [vmem:[%s4918 + $0x40] sm:$0xff]
        %v4928 = vld [vmem:[%s4918 + $0x48] sm:$0xff]
        %v4929 = vld [vmem:[%s4918 + $0x50] sm:$0xff]
        %v4930 = vld [vmem:[%s4918 + $0x58] sm:$0xff]
        %v4931 = vld [vmem:[%s4918 + $0x60] sm:$0xff]
        %v4932 = vld [vmem:[%s4918 + $0x68] sm:$0xff]
        %v4933 = vld [vmem:[%s4918 + $0x70] sm:$0xff]
        %v4934 = vld [vmem:[%s4918 + $0x78] sm:$0xff]
        %v4935 = vld [vmem:[%s4918 + $0x80] sm:$0xff]
        %v4936 = vld [vmem:[%s4918 + $0x88] sm:$0xff]
        %v4937 = vld [vmem:[%s4918 + $0x90] sm:$0xff]
        %v4938 = vld [vmem:[%s4918 + $0x98] sm:$0xff]
        %v4939 = vld [vmem:[%s4918 + $0xa0] sm:$0xff]
        %v4940 = vld [vmem:[%s4918 + $0xa8] sm:$0xff]
        %v4941 = vld [vmem:[%s4918 + $0xb0] sm:$0xff]
        %v4942 = vld [vmem:[%s4918 + $0xb8] sm:$0xff]
        %v4943 = vld [vmem:[%s4918 + $0xc0] sm:$0xff]
        %v4944 = vld [vmem:[%s4918 + $0xc8] sm:$0xff]
        %v4945 = vld [vmem:[%s4918 + $0xd0] sm:$0xff]
        %v4946 = vld [vmem:[%s4918 + $0xd8] sm:$0xff]
        %v4947 = vld [vmem:[%s4918 + $0xe0] sm:$0xff]
        %v4948 = vld [vmem:[%s4918 + $0xe8] sm:$0xff]
        %v4949 = vld [vmem:[%s4918 + $0xf0] sm:$0xff]
        %v4950 = vld [vmem:[%s4918 + $0xf8] sm:$0xff]
        %v4983 = vunpack.c.l.b16 %v4919
        %v4984 = vunpack.c.h.b16 %v4919
        %v4985 = vunpack.c.l.b16 %v4920
        %v4986 = vunpack.c.h.b16 %v4920
        %v4987 = vunpack.c.l.b16 %v4921
        %v4988 = vunpack.c.h.b16 %v4921
        %v4989 = vunpack.c.l.b16 %v4922
        %v4990 = vunpack.c.h.b16 %v4922
        %v4991 = vunpack.c.l.b16 %v4923
        %v4992 = vunpack.c.h.b16 %v4923
        %v4993 = vunpack.c.l.b16 %v4924
        %v4994 = vunpack.c.h.b16 %v4924
        %v4995 = vunpack.c.l.b16 %v4925
        %v4996 = vunpack.c.h.b16 %v4925
        %v4997 = vunpack.c.l.b16 %v4926
        %v4998 = vunpack.c.h.b16 %v4926
        %v4999 = vunpack.c.l.b16 %v4927
        %v5000 = vunpack.c.h.b16 %v4927
        %v5001 = vunpack.c.l.b16 %v4928
        %v5002 = vunpack.c.h.b16 %v4928
        %v5003 = vunpack.c.l.b16 %v4929
        %v5004 = vunpack.c.h.b16 %v4929
        %v5005 = vunpack.c.l.b16 %v4930
        %v5006 = vunpack.c.h.b16 %v4930
        %v5007 = vunpack.c.l.b16 %v4931
        %v5008 = vunpack.c.h.b16 %v4931
        %v5009 = vunpack.c.l.b16 %v4932
        %v5010 = vunpack.c.h.b16 %v4932
        %v5011 = vunpack.c.l.b16 %v4933
        %v5012 = vunpack.c.h.b16 %v4933
        %v5013 = vunpack.c.l.b16 %v4934
        %v5014 = vunpack.c.h.b16 %v4934
        %v5015 = vunpack.c.l.b16 %v4935
        %v5016 = vunpack.c.h.b16 %v4935
        %v5017 = vunpack.c.l.b16 %v4936
        %v5018 = vunpack.c.h.b16 %v4936
        %v5019 = vunpack.c.l.b16 %v4937
        %v5020 = vunpack.c.h.b16 %v4937
        %v5021 = vunpack.c.l.b16 %v4938
        %v5022 = vunpack.c.h.b16 %v4938
        %v5023 = vunpack.c.l.b16 %v4939
        %v5024 = vunpack.c.h.b16 %v4939
        %v5025 = vunpack.c.l.b16 %v4940
        %v5026 = vunpack.c.h.b16 %v4940
        %v5027 = vunpack.c.l.b16 %v4941
        %v5028 = vunpack.c.h.b16 %v4941
        %v5029 = vunpack.c.l.b16 %v4942
        %v5030 = vunpack.c.h.b16 %v4942
        %v5031 = vunpack.c.l.b16 %v4943
        %v5032 = vunpack.c.h.b16 %v4943
        %v5033 = vunpack.c.l.b16 %v4944
        %v5034 = vunpack.c.h.b16 %v4944
        %v5035 = vunpack.c.l.b16 %v4945
        %v5036 = vunpack.c.h.b16 %v4945
        %v5037 = vunpack.c.l.b16 %v4946
        %v5038 = vunpack.c.h.b16 %v4946
        %v5039 = vunpack.c.l.b16 %v4947
        %v5040 = vunpack.c.h.b16 %v4947
        %v5041 = vunpack.c.l.b16 %v4948
        %v5042 = vunpack.c.h.b16 %v4948
        %v5043 = vunpack.c.l.b16 %v4949
        %v5044 = vunpack.c.h.b16 %v4949
        %v5045 = vunpack.c.l.b16 %v4950
        %v5046 = vunpack.c.h.b16 %v4950
        %v5047 = vpack.c.b16 %v4985, %v4983
        %v5048 = vpack.c.b16 %v4986, %v4984
        %v5049 = vpack.c.b16 %v4989, %v4987
        %v5050 = vpack.c.b16 %v4990, %v4988
        %v5051 = vpack.c.b16 %v4993, %v4991
        %v5052 = vpack.c.b16 %v4994, %v4992
        %v5053 = vpack.c.b16 %v4997, %v4995
        %v5054 = vpack.c.b16 %v4998, %v4996
        %v5055 = vpack.c.b16 %v5001, %v4999
        %v5056 = vpack.c.b16 %v5002, %v5000
        %v5057 = vpack.c.b16 %v5005, %v5003
        %v5058 = vpack.c.b16 %v5006, %v5004
        %v5059 = vpack.c.b16 %v5009, %v5007
        %v5060 = vpack.c.b16 %v5010, %v5008
        %v5061 = vpack.c.b16 %v5013, %v5011
        %v5062 = vpack.c.b16 %v5014, %v5012
        %v5063 = vpack.c.b16 %v5017, %v5015
        %v5064 = vpack.c.b16 %v5018, %v5016
        %v5065 = vpack.c.b16 %v5021, %v5019
        %v5066 = vpack.c.b16 %v5022, %v5020
        %v5067 = vpack.c.b16 %v5025, %v5023
        %v5068 = vpack.c.b16 %v5026, %v5024
        %v5069 = vpack.c.b16 %v5029, %v5027
        %v5070 = vpack.c.b16 %v5030, %v5028
        %v5071 = vpack.c.b16 %v5033, %v5031
        %v5072 = vpack.c.b16 %v5034, %v5032
        %v5073 = vpack.c.b16 %v5037, %v5035
        %v5074 = vpack.c.b16 %v5038, %v5036
        %v5075 = vpack.c.b16 %v5041, %v5039
        %v5076 = vpack.c.b16 %v5042, %v5040
        %v5077 = vpack.c.b16 %v5045, %v5043
        %v5078 = vpack.c.b16 %v5046, %v5044
        %5111 = vmatprep.subr.bf16.mxu0 %v5048
        %5112 = vmatpush1.bf16.msra.mxu0 %v5047
        %5113 = vmatprep.subr.bf16.mxu0 %v5050
        %5114 = vmatpush1.bf16.msra.mxu0 %v5049
        %5115 = vmatprep.subr.bf16.mxu0 %v5052
        %5116 = vmatpush1.bf16.msra.mxu0 %v5051
        %5117 = vmatprep.subr.bf16.mxu0 %v5054
        %5118 = vmatpush1.bf16.msra.mxu0 %v5053
        %5119 = vmatprep.subr.bf16.mxu0 %v5056
        %5120 = vmatpush1.bf16.msra.mxu0 %v5055
        %5121 = vmatprep.subr.bf16.mxu0 %v5058
        %5122 = vmatpush1.bf16.msra.mxu0 %v5057
        %5123 = vmatprep.subr.bf16.mxu0 %v5060
        %5124 = vmatpush1.bf16.msra.mxu0 %v5059
        %5125 = vmatprep.subr.bf16.mxu0 %v5062
        %5126 = vmatpush1.bf16.msra.mxu0 %v5061
        %5127 = vmatprep.subr.bf16.mxu0 %v5064
        %5128 = vmatpush1.bf16.msra.mxu0 %v5063
        %5129 = vmatprep.subr.bf16.mxu0 %v5066
        %5130 = vmatpush1.bf16.msra.mxu0 %v5065
        %5131 = vmatprep.subr.bf16.mxu0 %v5068
        %5132 = vmatpush1.bf16.msra.mxu0 %v5067
        %5133 = vmatprep.subr.bf16.mxu0 %v5070
        %5134 = vmatpush1.bf16.msra.mxu0 %v5069
        %5135 = vmatprep.subr.bf16.mxu0 %v5072
        %5136 = vmatpush1.bf16.msra.mxu0 %v5071
        %5137 = vmatprep.subr.bf16.mxu0 %v5074
        %5138 = vmatpush1.bf16.msra.mxu0 %v5073
        %5139 = vmatprep.subr.bf16.mxu0 %v5076
        %5140 = vmatpush1.bf16.msra.mxu0 %v5075
        %5141 = vmatprep.subr.bf16.mxu0 %v5078
        %5142 = vmatpush1.bf16.msra.mxu0 %v5077
        %5143 = vmatprep.mubr.bf16.mxu0 %v4917
        %5144 = vmatmul.mubr.bf16.gmra.mrb[0].mxu0 %v4916
        %v5145 = vpop.f32.mrb[0].mxu0
        %v5146 = vadd.f32 0.0, %v5145
        %v5147 = vpop.f32.mrb[0].mxu0
        %v5148 = vadd.f32 0.0, %v5147
        %v5149 = vpop.f32.mrb[0].mxu0
        %v5150 = vpop.f32.mrb[0].mxu0
        %5151 = vdwg.mxu0
        %v5152 = vadd.f32 %v4864, %v5146
        %v5153 = vadd.f32 %v4866, %v5148
        %v5154 = vld [vmem:[%s33] sm:$0x3]
        %v5156 = vlaneseq
        %v5157 = vshrl.u32 %v5156, 7
        %v5158 = vsub.s32 0, %v5157
        %v5159 = vrot.slane %v5154, %v5158
        %v5160 = vlaneseq
        %v5161 = vshrl.u32 %v5160, 7
        %v5162 = vsub.s32 1, %v5161
        %v5163 = vrot.slane %v5154, %v5162
        %v5166 = vadd.f32 %v5152, %v5159
        %v5167 = vadd.f32 %v5153, %v5163
        %v5168 = vmax.f32 %v5166, 0.0
        %v5169 = vmax.f32 %v5167, 0.0
        %v5170 = vpack.c.bf16 %v5168, %v5168
        %v5171 = vpack.c.bf16 %v5169, %v5169
        %v5172 = vld [vmem:[%s35] sm:$0xf]
        %vm5173 = vcmask 64512
        %v5175 = vsel %vm5173, %v5172, 0
        %vm5177 = vcmask 1043456
        %v5179 = vsel %vm5177, %v5170, 0
        %v5182 = vsel %vm5177, %v5171, 0
        %5184 = vmatprep.subr.bf16.mxu0 %v5182
        %5185 = vmatpush1.bf16.msra.mxu0 %v5179
        %5186 = vmatprep.subr.bf16.mxu0 0
        %5187 = vmatpush1.bf16.msra.mxu0 0
        %5188 = vmatprep.subr.bf16.mxu0 0
        %5189 = vmatpush1.bf16.msra.mxu0 0
        %5190 = vmatprep.subr.bf16.mxu0 0
        %5191 = vmatpush1.bf16.msra.mxu0 0
        %5192 = vmatprep.subr.bf16.mxu0 0
        %5193 = vmatpush1.bf16.msra.mxu0 0
        %5194 = vmatprep.subr.bf16.mxu0 0
        %5195 = vmatpush1.bf16.msra.mxu0 0
        %5196 = vmatprep.subr.bf16.mxu0 0
        %5197 = vmatpush1.bf16.msra.mxu0 0
        %5198 = vmatprep.subr.bf16.mxu0 0
        %5199 = vmatpush1.bf16.msra.mxu0 0
        %5200 = vmatprep.subr.bf16.mxu0 0
        %5201 = vmatpush1.bf16.msra.mxu0 0
        %5202 = vmatprep.subr.bf16.mxu0 0
        %5203 = vmatpush1.bf16.msra.mxu0 0
        %5204 = vmatprep.subr.bf16.mxu0 0
        %5205 = vmatpush1.bf16.msra.mxu0 0
        %5206 = vmatprep.subr.bf16.mxu0 0
        %5207 = vmatpush1.bf16.msra.mxu0 0
        %5208 = vmatprep.subr.bf16.mxu0 0
        %5209 = vmatpush1.bf16.msra.mxu0 0
        %5210 = vmatprep.subr.bf16.mxu0 0
        %5211 = vmatpush1.bf16.msra.mxu0 0
        %5212 = vmatprep.subr.bf16.mxu0 0
        %5213 = vmatpush1.bf16.msra.mxu0 0
        %5214 = vmatprep.subr.bf16.mxu0 0
        %5215 = vmatpush1.bf16.msra.mxu0 0
        %5216 = vmatprep.mubr.bf16.mxu0 0
        %5217 = vmatmul.mubr.bf16.gmra.mrb[0].mxu0 %v5175
        %v5218 = vpop.f32.mrb[0].mxu0
        %v5219 = vadd.f32 0.0, %v5218
        %v5220 = vpop.f32.mrb[0].mxu0
        %v5221 = vadd.f32 0.0, %v5220
        %v5222 = vpop.f32.mrb[0].mxu0
        %v5223 = vpop.f32.mrb[0].mxu0
        %5224 = vdwg.mxu0
        %v5225 = vpack.c.bf16 %v5219, %v5219
        %v5226 = vpack.c.bf16 %v5221, %v5221
        %v5227 = vld [vmem:[%s37] sm:$0xff]
        %v5228 = vld [vmem:[%s37 + $0x8] sm:$0xff]
        %v5229 = vld [vmem:[%s37 + $0x10] sm:$0xff]
        %v5230 = vld [vmem:[%s37 + $0x18] sm:$0xff]
        %v5231 = vld [vmem:[%s37 + $0x20] sm:$0xff]
        %v5232 = vld [vmem:[%s37 + $0x28] sm:$0xff]
        %v5233 = vld [vmem:[%s37 + $0x30] sm:$0xff]
        %v5234 = vld [vmem:[%s37 + $0x38] sm:$0xff]
        %v5235 = vld [vmem:[%s37 + $0x40] sm:$0xff]
        %v5236 = vld [vmem:[%s37 + $0x48] sm:$0xff]
        %v5237 = vld [vmem:[%s37 + $0x50] sm:$0xff]
        %v5238 = vld [vmem:[%s37 + $0x58] sm:$0xff]
        %v5239 = vld [vmem:[%s37 + $0x60] sm:$0xff]
        %v5240 = vld [vmem:[%s37 + $0x68] sm:$0xff]
        %v5241 = vld [vmem:[%s37 + $0x70] sm:$0xff]
        %v5242 = vld [vmem:[%s37 + $0x78] sm:$0xff]
        %v5243 = vld [vmem:[%s37 + $0x80] sm:$0xff]
        %v5244 = vld [vmem:[%s37 + $0x88] sm:$0xff]
        %v5245 = vld [vmem:[%s37 + $0x90] sm:$0xff]
        %v5246 = vld [vmem:[%s37 + $0x98] sm:$0xff]
        %v5247 = vld [vmem:[%s37 + $0xa0] sm:$0xff]
        %v5248 = vld [vmem:[%s37 + $0xa8] sm:$0xff]
        %v5249 = vld [vmem:[%s37 + $0xb0] sm:$0xff]
        %v5250 = vld [vmem:[%s37 + $0xb8] sm:$0xff]
        %v5251 = vld [vmem:[%s37 + $0xc0] sm:$0xff]
        %v5252 = vld [vmem:[%s37 + $0xc8] sm:$0xff]
        %v5253 = vld [vmem:[%s37 + $0xd0] sm:$0xff]
        %v5254 = vld [vmem:[%s37 + $0xd8] sm:$0xff]
        %v5255 = vld [vmem:[%s37 + $0xe0] sm:$0xff]
        %v5256 = vld [vmem:[%s37 + $0xe8] sm:$0xff]
        %v5257 = vld [vmem:[%s37 + $0xf0] sm:$0xff]
        %v5258 = vld [vmem:[%s37 + $0xf8] sm:$0xff]
        %s5259 = scalar_lea.vmem %s37, 256
        %v5260 = vld [vmem:[%s5259] sm:$0xff]
        %v5261 = vld [vmem:[%s5259 + $0x8] sm:$0xff]
        %v5262 = vld [vmem:[%s5259 + $0x10] sm:$0xff]
        %v5263 = vld [vmem:[%s5259 + $0x18] sm:$0xff]
        %v5264 = vld [vmem:[%s5259 + $0x20] sm:$0xff]
        %v5265 = vld [vmem:[%s5259 + $0x28] sm:$0xff]
        %v5266 = vld [vmem:[%s5259 + $0x30] sm:$0xff]
        %v5267 = vld [vmem:[%s5259 + $0x38] sm:$0xff]
        %v5268 = vld [vmem:[%s5259 + $0x40] sm:$0xff]
        %v5269 = vld [vmem:[%s5259 + $0x48] sm:$0xff]
        %v5270 = vld [vmem:[%s5259 + $0x50] sm:$0xff]
        %v5271 = vld [vmem:[%s5259 + $0x58] sm:$0xff]
        %v5272 = vld [vmem:[%s5259 + $0x60] sm:$0xff]
        %v5273 = vld [vmem:[%s5259 + $0x68] sm:$0xff]
        %v5274 = vld [vmem:[%s5259 + $0x70] sm:$0xff]
        %v5275 = vld [vmem:[%s5259 + $0x78] sm:$0xff]
        %v5276 = vld [vmem:[%s5259 + $0x80] sm:$0xff]
        %v5277 = vld [vmem:[%s5259 + $0x88] sm:$0xff]
        %v5278 = vld [vmem:[%s5259 + $0x90] sm:$0xff]
        %v5279 = vld [vmem:[%s5259 + $0x98] sm:$0xff]
        %v5280 = vld [vmem:[%s5259 + $0xa0] sm:$0xff]
        %v5281 = vld [vmem:[%s5259 + $0xa8] sm:$0xff]
        %v5282 = vld [vmem:[%s5259 + $0xb0] sm:$0xff]
        %v5283 = vld [vmem:[%s5259 + $0xb8] sm:$0xff]
        %v5284 = vld [vmem:[%s5259 + $0xc0] sm:$0xff]
        %v5285 = vld [vmem:[%s5259 + $0xc8] sm:$0xff]
        %v5286 = vld [vmem:[%s5259 + $0xd0] sm:$0xff]
        %v5287 = vld [vmem:[%s5259 + $0xd8] sm:$0xff]
        %v5288 = vld [vmem:[%s5259 + $0xe0] sm:$0xff]
        %v5289 = vld [vmem:[%s5259 + $0xe8] sm:$0xff]
        %v5290 = vld [vmem:[%s5259 + $0xf0] sm:$0xff]
        %v5291 = vld [vmem:[%s5259 + $0xf8] sm:$0xff]
        %v5324 = vunpack.c.l.b16 %v5260
        %v5325 = vunpack.c.h.b16 %v5260
        %v5326 = vunpack.c.l.b16 %v5261
        %v5327 = vunpack.c.h.b16 %v5261
        %v5328 = vunpack.c.l.b16 %v5262
        %v5329 = vunpack.c.h.b16 %v5262
        %v5330 = vunpack.c.l.b16 %v5263
        %v5331 = vunpack.c.h.b16 %v5263
        %v5332 = vunpack.c.l.b16 %v5264
        %v5333 = vunpack.c.h.b16 %v5264
        %v5334 = vunpack.c.l.b16 %v5265
        %v5335 = vunpack.c.h.b16 %v5265
        %v5336 = vunpack.c.l.b16 %v5266
        %v5337 = vunpack.c.h.b16 %v5266
        %v5338 = vunpack.c.l.b16 %v5267
        %v5339 = vunpack.c.h.b16 %v5267
        %v5340 = vunpack.c.l.b16 %v5268
        %v5341 = vunpack.c.h.b16 %v5268
        %v5342 = vunpack.c.l.b16 %v5269
        %v5343 = vunpack.c.h.b16 %v5269
        %v5344 = vunpack.c.l.b16 %v5270
        %v5345 = vunpack.c.h.b16 %v5270
        %v5346 = vunpack.c.l.b16 %v5271
        %v5347 = vunpack.c.h.b16 %v5271
        %v5348 = vunpack.c.l.b16 %v5272
        %v5349 = vunpack.c.h.b16 %v5272
        %v5350 = vunpack.c.l.b16 %v5273
        %v5351 = vunpack.c.h.b16 %v5273
        %v5352 = vunpack.c.l.b16 %v5274
        %v5353 = vunpack.c.h.b16 %v5274
        %v5354 = vunpack.c.l.b16 %v5275
        %v5355 = vunpack.c.h.b16 %v5275
        %v5356 = vunpack.c.l.b16 %v5276
        %v5357 = vunpack.c.h.b16 %v5276
        %v5358 = vunpack.c.l.b16 %v5277
        %v5359 = vunpack.c.h.b16 %v5277
        %v5360 = vunpack.c.l.b16 %v5278
        %v5361 = vunpack.c.h.b16 %v5278
        %v5362 = vunpack.c.l.b16 %v5279
        %v5363 = vunpack.c.h.b16 %v5279
        %v5364 = vunpack.c.l.b16 %v5280
        %v5365 = vunpack.c.h.b16 %v5280
        %v5366 = vunpack.c.l.b16 %v5281
        %v5367 = vunpack.c.h.b16 %v5281
        %v5368 = vunpack.c.l.b16 %v5282
        %v5369 = vunpack.c.h.b16 %v5282
        %v5370 = vunpack.c.l.b16 %v5283
        %v5371 = vunpack.c.h.b16 %v5283
        %v5372 = vunpack.c.l.b16 %v5284
        %v5373 = vunpack.c.h.b16 %v5284
        %v5374 = vunpack.c.l.b16 %v5285
        %v5375 = vunpack.c.h.b16 %v5285
        %v5376 = vunpack.c.l.b16 %v5286
        %v5377 = vunpack.c.h.b16 %v5286
        %v5378 = vunpack.c.l.b16 %v5287
        %v5379 = vunpack.c.h.b16 %v5287
        %v5380 = vunpack.c.l.b16 %v5288
        %v5381 = vunpack.c.h.b16 %v5288
        %v5382 = vunpack.c.l.b16 %v5289
        %v5383 = vunpack.c.h.b16 %v5289
        %v5384 = vunpack.c.l.b16 %v5290
        %v5385 = vunpack.c.h.b16 %v5290
        %v5386 = vunpack.c.l.b16 %v5291
        %v5387 = vunpack.c.h.b16 %v5291
        %v5388 = vpack.c.b16 %v5326, %v5324
        %v5389 = vpack.c.b16 %v5327, %v5325
        %v5390 = vpack.c.b16 %v5330, %v5328
        %v5391 = vpack.c.b16 %v5331, %v5329
        %v5392 = vpack.c.b16 %v5334, %v5332
        %v5393 = vpack.c.b16 %v5335, %v5333
        %v5394 = vpack.c.b16 %v5338, %v5336
        %v5395 = vpack.c.b16 %v5339, %v5337
        %v5396 = vpack.c.b16 %v5342, %v5340
        %v5397 = vpack.c.b16 %v5343, %v5341
        %v5398 = vpack.c.b16 %v5346, %v5344
        %v5399 = vpack.c.b16 %v5347, %v5345
        %v5400 = vpack.c.b16 %v5350, %v5348
        %v5401 = vpack.c.b16 %v5351, %v5349
        %v5402 = vpack.c.b16 %v5354, %v5352
        %v5403 = vpack.c.b16 %v5355, %v5353
        %v5404 = vpack.c.b16 %v5358, %v5356
        %v5405 = vpack.c.b16 %v5359, %v5357
        %v5406 = vpack.c.b16 %v5362, %v5360
        %v5407 = vpack.c.b16 %v5363, %v5361
        %v5408 = vpack.c.b16 %v5366, %v5364
        %v5409 = vpack.c.b16 %v5367, %v5365
        %v5410 = vpack.c.b16 %v5370, %v5368
        %v5411 = vpack.c.b16 %v5371, %v5369
        %v5412 = vpack.c.b16 %v5374, %v5372
        %v5413 = vpack.c.b16 %v5375, %v5373
        %v5414 = vpack.c.b16 %v5378, %v5376
        %v5415 = vpack.c.b16 %v5379, %v5377
        %v5416 = vpack.c.b16 %v5382, %v5380
        %v5417 = vpack.c.b16 %v5383, %v5381
        %v5418 = vpack.c.b16 %v5386, %v5384
        %v5419 = vpack.c.b16 %v5387, %v5385
        %5452 = vmatprep.subr.bf16.mxu0 %v5389
        %5453 = vmatpush1.bf16.msra.mxu0 %v5388
        %5454 = vmatprep.subr.bf16.mxu0 %v5391
        %5455 = vmatpush1.bf16.msra.mxu0 %v5390
        %5456 = vmatprep.subr.bf16.mxu0 %v5393
        %5457 = vmatpush1.bf16.msra.mxu0 %v5392
        %5458 = vmatprep.subr.bf16.mxu0 %v5395
        %5459 = vmatpush1.bf16.msra.mxu0 %v5394
        %5460 = vmatprep.subr.bf16.mxu0 %v5397
        %5461 = vmatpush1.bf16.msra.mxu0 %v5396
        %5462 = vmatprep.subr.bf16.mxu0 %v5399
        %5463 = vmatpush1.bf16.msra.mxu0 %v5398
        %5464 = vmatprep.subr.bf16.mxu0 %v5401
        %5465 = vmatpush1.bf16.msra.mxu0 %v5400
        %5466 = vmatprep.subr.bf16.mxu0 %v5403
        %5467 = vmatpush1.bf16.msra.mxu0 %v5402
        %5468 = vmatprep.subr.bf16.mxu0 %v5405
        %5469 = vmatpush1.bf16.msra.mxu0 %v5404
        %5470 = vmatprep.subr.bf16.mxu0 %v5407
        %5471 = vmatpush1.bf16.msra.mxu0 %v5406
        %5472 = vmatprep.subr.bf16.mxu0 %v5409
        %5473 = vmatpush1.bf16.msra.mxu0 %v5408
        %5474 = vmatprep.subr.bf16.mxu0 %v5411
        %5475 = vmatpush1.bf16.msra.mxu0 %v5410
        %5476 = vmatprep.subr.bf16.mxu0 %v5413
        %5477 = vmatpush1.bf16.msra.mxu0 %v5412
        %5478 = vmatprep.subr.bf16.mxu0 %v5415
        %5479 = vmatpush1.bf16.msra.mxu0 %v5414
        %5480 = vmatprep.subr.bf16.mxu0 %v5417
        %5481 = vmatpush1.bf16.msra.mxu0 %v5416
        %5482 = vmatprep.subr.bf16.mxu0 %v5419
        %5483 = vmatpush1.bf16.msra.mxu0 %v5418
        %5484 = vmatprep.mubr.bf16.mxu0 %v5171
        %5485 = vmatmul.mubr.bf16.gmra.mrb[0].mxu0 %v5170
        %v5486 = vpop.f32.mrb[0].mxu0
        %v5487 = vadd.f32 0.0, %v5486
        %v5488 = vpop.f32.mrb[0].mxu0
        %v5489 = vadd.f32 0.0, %v5488
        %v5490 = vpop.f32.mrb[0].mxu0
        %v5491 = vpop.f32.mrb[0].mxu0
        %5492 = vdwg.mxu0
        %v5525 = vunpack.c.l.b16 %v5227
        %v5526 = vunpack.c.h.b16 %v5227
        %v5527 = vunpack.c.l.b16 %v5228
        %v5528 = vunpack.c.h.b16 %v5228
        %v5529 = vunpack.c.l.b16 %v5229
        %v5530 = vunpack.c.h.b16 %v5229
        %v5531 = vunpack.c.l.b16 %v5230
        %v5532 = vunpack.c.h.b16 %v5230
        %v5533 = vunpack.c.l.b16 %v5231
        %v5534 = vunpack.c.h.b16 %v5231
        %v5535 = vunpack.c.l.b16 %v5232
        %v5536 = vunpack.c.h.b16 %v5232
        %v5537 = vunpack.c.l.b16 %v5233
        %v5538 = vunpack.c.h.b16 %v5233
        %v5539 = vunpack.c.l.b16 %v5234
        %v5540 = vunpack.c.h.b16 %v5234
        %v5541 = vunpack.c.l.b16 %v5235
        %v5542 = vunpack.c.h.b16 %v5235
        %v5543 = vunpack.c.l.b16 %v5236
        %v5544 = vunpack.c.h.b16 %v5236
        %v5545 = vunpack.c.l.b16 %v5237
        %v5546 = vunpack.c.h.b16 %v5237
        %v5547 = vunpack.c.l.b16 %v5238
        %v5548 = vunpack.c.h.b16 %v5238
        %v5549 = vunpack.c.l.b16 %v5239
        %v5550 = vunpack.c.h.b16 %v5239
        %v5551 = vunpack.c.l.b16 %v5240
        %v5552 = vunpack.c.h.b16 %v5240
        %v5553 = vunpack.c.l.b16 %v5241
        %v5554 = vunpack.c.h.b16 %v5241
        %v5555 = vunpack.c.l.b16 %v5242
        %v5556 = vunpack.c.h.b16 %v5242
        %v5557 = vunpack.c.l.b16 %v5243
        %v5558 = vunpack.c.h.b16 %v5243
        %v5559 = vunpack.c.l.b16 %v5244
        %v5560 = vunpack.c.h.b16 %v5244
        %v5561 = vunpack.c.l.b16 %v5245
        %v5562 = vunpack.c.h.b16 %v5245
        %v5563 = vunpack.c.l.b16 %v5246
        %v5564 = vunpack.c.h.b16 %v5246
        %v5565 = vunpack.c.l.b16 %v5247
        %v5566 = vunpack.c.h.b16 %v5247
        %v5567 = vunpack.c.l.b16 %v5248
        %v5568 = vunpack.c.h.b16 %v5248
        %v5569 = vunpack.c.l.b16 %v5249
        %v5570 = vunpack.c.h.b16 %v5249
        %v5571 = vunpack.c.l.b16 %v5250
        %v5572 = vunpack.c.h.b16 %v5250
        %v5573 = vunpack.c.l.b16 %v5251
        %v5574 = vunpack.c.h.b16 %v5251
        %v5575 = vunpack.c.l.b16 %v5252
        %v5576 = vunpack.c.h.b16 %v5252
        %v5577 = vunpack.c.l.b16 %v5253
        %v5578 = vunpack.c.h.b16 %v5253
        %v5579 = vunpack.c.l.b16 %v5254
        %v5580 = vunpack.c.h.b16 %v5254
        %v5581 = vunpack.c.l.b16 %v5255
        %v5582 = vunpack.c.h.b16 %v5255
        %v5583 = vunpack.c.l.b16 %v5256
        %v5584 = vunpack.c.h.b16 %v5256
        %v5585 = vunpack.c.l.b16 %v5257
        %v5586 = vunpack.c.h.b16 %v5257
        %v5587 = vunpack.c.l.b16 %v5258
        %v5588 = vunpack.c.h.b16 %v5258
        %v5589 = vpack.c.b16 %v5527, %v5525
        %v5590 = vpack.c.b16 %v5528, %v5526
        %v5591 = vpack.c.b16 %v5531, %v5529
        %v5592 = vpack.c.b16 %v5532, %v5530
        %v5593 = vpack.c.b16 %v5535, %v5533
        %v5594 = vpack.c.b16 %v5536, %v5534
        %v5595 = vpack.c.b16 %v5539, %v5537
        %v5596 = vpack.c.b16 %v5540, %v5538
        %v5597 = vpack.c.b16 %v5543, %v5541
        %v5598 = vpack.c.b16 %v5544, %v5542
        %v5599 = vpack.c.b16 %v5547, %v5545
        %v5600 = vpack.c.b16 %v5548, %v5546
        %v5601 = vpack.c.b16 %v5551, %v5549
        %v5602 = vpack.c.b16 %v5552, %v5550
        %v5603 = vpack.c.b16 %v5555, %v5553
        %v5604 = vpack.c.b16 %v5556, %v5554
        %v5605 = vpack.c.b16 %v5559, %v5557
        %v5606 = vpack.c.b16 %v5560, %v5558
        %v5607 = vpack.c.b16 %v5563, %v5561
        %v5608 = vpack.c.b16 %v5564, %v5562
        %v5609 = vpack.c.b16 %v5567, %v5565
        %v5610 = vpack.c.b16 %v5568, %v5566
        %v5611 = vpack.c.b16 %v5571, %v5569
        %v5612 = vpack.c.b16 %v5572, %v5570
        %v5613 = vpack.c.b16 %v5575, %v5573
        %v5614 = vpack.c.b16 %v5576, %v5574
        %v5615 = vpack.c.b16 %v5579, %v5577
        %v5616 = vpack.c.b16 %v5580, %v5578
        %v5617 = vpack.c.b16 %v5583, %v5581
        %v5618 = vpack.c.b16 %v5584, %v5582
        %v5619 = vpack.c.b16 %v5587, %v5585
        %v5620 = vpack.c.b16 %v5588, %v5586
        %5653 = vmatprep.subr.bf16.mxu0 %v5590
        %5654 = vmatpush1.bf16.msra.mxu0 %v5589
        %5655 = vmatprep.subr.bf16.mxu0 %v5592
        %5656 = vmatpush1.bf16.msra.mxu0 %v5591
        %5657 = vmatprep.subr.bf16.mxu0 %v5594
        %5658 = vmatpush1.bf16.msra.mxu0 %v5593
        %5659 = vmatprep.subr.bf16.mxu0 %v5596
        %5660 = vmatpush1.bf16.msra.mxu0 %v5595
        %5661 = vmatprep.subr.bf16.mxu0 %v5598
        %5662 = vmatpush1.bf16.msra.mxu0 %v5597
        %5663 = vmatprep.subr.bf16.mxu0 %v5600
        %5664 = vmatpush1.bf16.msra.mxu0 %v5599
        %5665 = vmatprep.subr.bf16.mxu0 %v5602
        %5666 = vmatpush1.bf16.msra.mxu0 %v5601
        %5667 = vmatprep.subr.bf16.mxu0 %v5604
        %5668 = vmatpush1.bf16.msra.mxu0 %v5603
        %5669 = vmatprep.subr.bf16.mxu0 %v5606
        %5670 = vmatpush1.bf16.msra.mxu0 %v5605
        %5671 = vmatprep.subr.bf16.mxu0 %v5608
        %5672 = vmatpush1.bf16.msra.mxu0 %v5607
        %5673 = vmatprep.subr.bf16.mxu0 %v5610
        %5674 = vmatpush1.bf16.msra.mxu0 %v5609
        %5675 = vmatprep.subr.bf16.mxu0 %v5612
        %5676 = vmatpush1.bf16.msra.mxu0 %v5611
        %5677 = vmatprep.subr.bf16.mxu0 %v5614
        %5678 = vmatpush1.bf16.msra.mxu0 %v5613
        %5679 = vmatprep.subr.bf16.mxu0 %v5616
        %5680 = vmatpush1.bf16.msra.mxu0 %v5615
        %5681 = vmatprep.subr.bf16.mxu0 %v5618
        %5682 = vmatpush1.bf16.msra.mxu0 %v5617
        %5683 = vmatprep.subr.bf16.mxu0 %v5620
        %5684 = vmatpush1.bf16.msra.mxu0 %v5619
        %5685 = vmatprep.mubr.bf16.mxu0 %v5226
        %5686 = vmatmul.mubr.bf16.gmra.mrb[0].mxu0 %v5225
        %v5687 = vpop.f32.mrb[0].mxu0
        %v5688 = vadd.f32 %v5487, %v5687
        %v5689 = vpop.f32.mrb[0].mxu0
        %v5690 = vadd.f32 %v5489, %v5689
        %v5691 = vpop.f32.mrb[0].mxu0
        %v5692 = vpop.f32.mrb[0].mxu0
        %5693 = vdwg.mxu0
        %s5694 = scalar_lea.vmem %s35, 8
        %v5695 = vld [vmem:[%s5694] sm:$0xf]
        %v5697 = vsel %vm5173, %v5695, 0
        %5699 = vmatprep.subr.bf16.mxu0 %v5182
        %5700 = vmatpush1.bf16.msra.mxu0 %v5179
        %5701 = vmatprep.subr.bf16.mxu0 0
        %5702 = vmatpush1.bf16.msra.mxu0 0
        %5703 = vmatprep.subr.bf16.mxu0 0
        %5704 = vmatpush1.bf16.msra.mxu0 0
        %5705 = vmatprep.subr.bf16.mxu0 0
        %5706 = vmatpush1.bf16.msra.mxu0 0
        %5707 = vmatprep.subr.bf16.mxu0 0
        %5708 = vmatpush1.bf16.msra.mxu0 0
        %5709 = vmatprep.subr.bf16.mxu0 0
        %5710 = vmatpush1.bf16.msra.mxu0 0
        %5711 = vmatprep.subr.bf16.mxu0 0
        %5712 = vmatpush1.bf16.msra.mxu0 0
        %5713 = vmatprep.subr.bf16.mxu0 0
        %5714 = vmatpush1.bf16.msra.mxu0 0
        %5715 = vmatprep.subr.bf16.mxu0 0
        %5716 = vmatpush1.bf16.msra.mxu0 0
        %5717 = vmatprep.subr.bf16.mxu0 0
        %5718 = vmatpush1.bf16.msra.mxu0 0
        %5719 = vmatprep.subr.bf16.mxu0 0
        %5720 = vmatpush1.bf16.msra.mxu0 0
        %5721 = vmatprep.subr.bf16.mxu0 0
        %5722 = vmatpush1.bf16.msra.mxu0 0
        %5723 = vmatprep.subr.bf16.mxu0 0
        %5724 = vmatpush1.bf16.msra.mxu0 0
        %5725 = vmatprep.subr.bf16.mxu0 0
        %5726 = vmatpush1.bf16.msra.mxu0 0
        %5727 = vmatprep.subr.bf16.mxu0 0
        %5728 = vmatpush1.bf16.msra.mxu0 0
        %5729 = vmatprep.subr.bf16.mxu0 0
        %5730 = vmatpush1.bf16.msra.mxu0 0
        %5731 = vmatprep.mubr.bf16.mxu0 0
        %5732 = vmatmul.mubr.bf16.gmra.mrb[0].mxu0 %v5697
        %v5733 = vpop.f32.mrb[0].mxu0
        %v5734 = vadd.f32 0.0, %v5733
        %v5735 = vpop.f32.mrb[0].mxu0
        %v5736 = vadd.f32 0.0, %v5735
        %v5737 = vpop.f32.mrb[0].mxu0
        %v5738 = vpop.f32.mrb[0].mxu0
        %5739 = vdwg.mxu0
        %v5740 = vpack.c.bf16 %v5734, %v5734
        %v5741 = vpack.c.bf16 %v5736, %v5736
        %s5742 = scalar_lea.vmem %s37, 512
        %v5743 = vld [vmem:[%s5742] sm:$0xff]
        %v5744 = vld [vmem:[%s5742 + $0x8] sm:$0xff]
        %v5745 = vld [vmem:[%s5742 + $0x10] sm:$0xff]
        %v5746 = vld [vmem:[%s5742 + $0x18] sm:$0xff]
        %v5747 = vld [vmem:[%s5742 + $0x20] sm:$0xff]
        %v5748 = vld [vmem:[%s5742 + $0x28] sm:$0xff]
        %v5749 = vld [vmem:[%s5742 + $0x30] sm:$0xff]
        %v5750 = vld [vmem:[%s5742 + $0x38] sm:$0xff]
        %v5751 = vld [vmem:[%s5742 + $0x40] sm:$0xff]
        %v5752 = vld [vmem:[%s5742 + $0x48] sm:$0xff]
        %v5753 = vld [vmem:[%s5742 + $0x50] sm:$0xff]
        %v5754 = vld [vmem:[%s5742 + $0x58] sm:$0xff]
        %v5755 = vld [vmem:[%s5742 + $0x60] sm:$0xff]
        %v5756 = vld [vmem:[%s5742 + $0x68] sm:$0xff]
        %v5757 = vld [vmem:[%s5742 + $0x70] sm:$0xff]
        %v5758 = vld [vmem:[%s5742 + $0x78] sm:$0xff]
        %v5759 = vld [vmem:[%s5742 + $0x80] sm:$0xff]
        %v5760 = vld [vmem:[%s5742 + $0x88] sm:$0xff]
        %v5761 = vld [vmem:[%s5742 + $0x90] sm:$0xff]
        %v5762 = vld [vmem:[%s5742 + $0x98] sm:$0xff]
        %v5763 = vld [vmem:[%s5742 + $0xa0] sm:$0xff]
        %v5764 = vld [vmem:[%s5742 + $0xa8] sm:$0xff]
        %v5765 = vld [vmem:[%s5742 + $0xb0] sm:$0xff]
        %v5766 = vld [vmem:[%s5742 + $0xb8] sm:$0xff]
        %v5767 = vld [vmem:[%s5742 + $0xc0] sm:$0xff]
        %v5768 = vld [vmem:[%s5742 + $0xc8] sm:$0xff]
        %v5769 = vld [vmem:[%s5742 + $0xd0] sm:$0xff]
        %v5770 = vld [vmem:[%s5742 + $0xd8] sm:$0xff]
        %v5771 = vld [vmem:[%s5742 + $0xe0] sm:$0xff]
        %v5772 = vld [vmem:[%s5742 + $0xe8] sm:$0xff]
        %v5773 = vld [vmem:[%s5742 + $0xf0] sm:$0xff]
        %v5774 = vld [vmem:[%s5742 + $0xf8] sm:$0xff]
        %v5807 = vunpack.c.l.b16 %v5743
        %v5808 = vunpack.c.h.b16 %v5743
        %v5809 = vunpack.c.l.b16 %v5744
        %v5810 = vunpack.c.h.b16 %v5744
        %v5811 = vunpack.c.l.b16 %v5745
        %v5812 = vunpack.c.h.b16 %v5745
        %v5813 = vunpack.c.l.b16 %v5746
        %v5814 = vunpack.c.h.b16 %v5746
        %v5815 = vunpack.c.l.b16 %v5747
        %v5816 = vunpack.c.h.b16 %v5747
        %v5817 = vunpack.c.l.b16 %v5748
        %v5818 = vunpack.c.h.b16 %v5748
        %v5819 = vunpack.c.l.b16 %v5749
        %v5820 = vunpack.c.h.b16 %v5749
        %v5821 = vunpack.c.l.b16 %v5750
        %v5822 = vunpack.c.h.b16 %v5750
        %v5823 = vunpack.c.l.b16 %v5751
        %v5824 = vunpack.c.h.b16 %v5751
        %v5825 = vunpack.c.l.b16 %v5752
        %v5826 = vunpack.c.h.b16 %v5752
        %v5827 = vunpack.c.l.b16 %v5753
        %v5828 = vunpack.c.h.b16 %v5753
        %v5829 = vunpack.c.l.b16 %v5754
        %v5830 = vunpack.c.h.b16 %v5754
        %v5831 = vunpack.c.l.b16 %v5755
        %v5832 = vunpack.c.h.b16 %v5755
        %v5833 = vunpack.c.l.b16 %v5756
        %v5834 = vunpack.c.h.b16 %v5756
        %v5835 = vunpack.c.l.b16 %v5757
        %v5836 = vunpack.c.h.b16 %v5757
        %v5837 = vunpack.c.l.b16 %v5758
        %v5838 = vunpack.c.h.b16 %v5758
        %v5839 = vunpack.c.l.b16 %v5759
        %v5840 = vunpack.c.h.b16 %v5759
        %v5841 = vunpack.c.l.b16 %v5760
        %v5842 = vunpack.c.h.b16 %v5760
        %v5843 = vunpack.c.l.b16 %v5761
        %v5844 = vunpack.c.h.b16 %v5761
        %v5845 = vunpack.c.l.b16 %v5762
        %v5846 = vunpack.c.h.b16 %v5762
        %v5847 = vunpack.c.l.b16 %v5763
        %v5848 = vunpack.c.h.b16 %v5763
        %v5849 = vunpack.c.l.b16 %v5764
        %v5850 = vunpack.c.h.b16 %v5764
        %v5851 = vunpack.c.l.b16 %v5765
        %v5852 = vunpack.c.h.b16 %v5765
        %v5853 = vunpack.c.l.b16 %v5766
        %v5854 = vunpack.c.h.b16 %v5766
        %v5855 = vunpack.c.l.b16 %v5767
        %v5856 = vunpack.c.h.b16 %v5767
        %v5857 = vunpack.c.l.b16 %v5768
        %v5858 = vunpack.c.h.b16 %v5768
        %v5859 = vunpack.c.l.b16 %v5769
        %v5860 = vunpack.c.h.b16 %v5769
        %v5861 = vunpack.c.l.b16 %v5770
        %v5862 = vunpack.c.h.b16 %v5770
        %v5863 = vunpack.c.l.b16 %v5771
        %v5864 = vunpack.c.h.b16 %v5771
        %v5865 = vunpack.c.l.b16 %v5772
        %v5866 = vunpack.c.h.b16 %v5772
        %v5867 = vunpack.c.l.b16 %v5773
        %v5868 = vunpack.c.h.b16 %v5773
        %v5869 = vunpack.c.l.b16 %v5774
        %v5870 = vunpack.c.h.b16 %v5774
        %v5871 = vpack.c.b16 %v5809, %v5807
        %v5872 = vpack.c.b16 %v5810, %v5808
        %v5873 = vpack.c.b16 %v5813, %v5811
        %v5874 = vpack.c.b16 %v5814, %v5812
        %v5875 = vpack.c.b16 %v5817, %v5815
        %v5876 = vpack.c.b16 %v5818, %v5816
        %v5877 = vpack.c.b16 %v5821, %v5819
        %v5878 = vpack.c.b16 %v5822, %v5820
        %v5879 = vpack.c.b16 %v5825, %v5823
        %v5880 = vpack.c.b16 %v5826, %v5824
        %v5881 = vpack.c.b16 %v5829, %v5827
        %v5882 = vpack.c.b16 %v5830, %v5828
        %v5883 = vpack.c.b16 %v5833, %v5831
        %v5884 = vpack.c.b16 %v5834, %v5832
        %v5885 = vpack.c.b16 %v5837, %v5835
        %v5886 = vpack.c.b16 %v5838, %v5836
        %v5887 = vpack.c.b16 %v5841, %v5839
        %v5888 = vpack.c.b16 %v5842, %v5840
        %v5889 = vpack.c.b16 %v5845, %v5843
        %v5890 = vpack.c.b16 %v5846, %v5844
        %v5891 = vpack.c.b16 %v5849, %v5847
        %v5892 = vpack.c.b16 %v5850, %v5848
        %v5893 = vpack.c.b16 %v5853, %v5851
        %v5894 = vpack.c.b16 %v5854, %v5852
        %v5895 = vpack.c.b16 %v5857, %v5855
        %v5896 = vpack.c.b16 %v5858, %v5856
        %v5897 = vpack.c.b16 %v5861, %v5859
        %v5898 = vpack.c.b16 %v5862, %v5860
        %v5899 = vpack.c.b16 %v5865, %v5863
        %v5900 = vpack.c.b16 %v5866, %v5864
        %v5901 = vpack.c.b16 %v5869, %v5867
        %v5902 = vpack.c.b16 %v5870, %v5868
        %5935 = vmatprep.subr.bf16.mxu0 %v5872
        %5936 = vmatpush1.bf16.msra.mxu0 %v5871
        %5937 = vmatprep.subr.bf16.mxu0 %v5874
        %5938 = vmatpush1.bf16.msra.mxu0 %v5873
        %5939 = vmatprep.subr.bf16.mxu0 %v5876
        %5940 = vmatpush1.bf16.msra.mxu0 %v5875
        %5941 = vmatprep.subr.bf16.mxu0 %v5878
        %5942 = vmatpush1.bf16.msra.mxu0 %v5877
        %5943 = vmatprep.subr.bf16.mxu0 %v5880
        %5944 = vmatpush1.bf16.msra.mxu0 %v5879
        %5945 = vmatprep.subr.bf16.mxu0 %v5882
        %5946 = vmatpush1.bf16.msra.mxu0 %v5881
        %5947 = vmatprep.subr.bf16.mxu0 %v5884
        %5948 = vmatpush1.bf16.msra.mxu0 %v5883
        %5949 = vmatprep.subr.bf16.mxu0 %v5886
        %5950 = vmatpush1.bf16.msra.mxu0 %v5885
        %5951 = vmatprep.subr.bf16.mxu0 %v5888
        %5952 = vmatpush1.bf16.msra.mxu0 %v5887
        %5953 = vmatprep.subr.bf16.mxu0 %v5890
        %5954 = vmatpush1.bf16.msra.mxu0 %v5889
        %5955 = vmatprep.subr.bf16.mxu0 %v5892
        %5956 = vmatpush1.bf16.msra.mxu0 %v5891
        %5957 = vmatprep.subr.bf16.mxu0 %v5894
        %5958 = vmatpush1.bf16.msra.mxu0 %v5893
        %5959 = vmatprep.subr.bf16.mxu0 %v5896
        %5960 = vmatpush1.bf16.msra.mxu0 %v5895
        %5961 = vmatprep.subr.bf16.mxu0 %v5898
        %5962 = vmatpush1.bf16.msra.mxu0 %v5897
        %5963 = vmatprep.subr.bf16.mxu0 %v5900
        %5964 = vmatpush1.bf16.msra.mxu0 %v5899
        %5965 = vmatprep.subr.bf16.mxu0 %v5902
        %5966 = vmatpush1.bf16.msra.mxu0 %v5901
        %5967 = vmatprep.mubr.bf16.mxu0 %v5741
        %5968 = vmatmul.mubr.bf16.gmra.mrb[0].mxu0 %v5740
        %v5969 = vpop.f32.mrb[0].mxu0
        %v5970 = vadd.f32 0.0, %v5969
        %v5971 = vpop.f32.mrb[0].mxu0
        %v5972 = vadd.f32 0.0, %v5971
        %v5973 = vpop.f32.mrb[0].mxu0
        %v5974 = vpop.f32.mrb[0].mxu0
        %5975 = vdwg.mxu0
        %v5976 = vadd.f32 %v5688, %v5970
        %v5977 = vadd.f32 %v5690, %v5972
        %v5978 = vld [vmem:[%s39] sm:$0x3]
        %v5980 = vlaneseq
        %v5981 = vshrl.u32 %v5980, 7
        %v5982 = vsub.s32 0, %v5981
        %v5983 = vrot.slane %v5978, %v5982
        %v5984 = vlaneseq
        %v5985 = vshrl.u32 %v5984, 7
        %v5986 = vsub.s32 1, %v5985
        %v5987 = vrot.slane %v5978, %v5986
        %v5990 = vadd.f32 %v5976, %v5983
        %v5991 = vadd.f32 %v5977, %v5987
        %v5992 = vmax.f32 %v5990, 0.0
        %v5993 = vmax.f32 %v5991, 0.0
        %v5994 = vpack.c.bf16 %v5992, %v5992
        %v5995 = vpack.c.bf16 %v5993, %v5993
        %v5996 = vld [vmem:[%s41] sm:$0x3]
        %v5998 = vsel %vm5173, %v5996, 0
        %v6001 = vsel %vm5177, %v5994, 0
        %v6004 = vsel %vm5177, %v5995, 0
        %6006 = vmatprep.subr.bf16.mxu0 %v6004
        %6007 = vmatpush1.bf16.msra.mxu0 %v6001
        %6008 = vmatprep.subr.bf16.mxu0 0
        %6009 = vmatpush1.bf16.msra.mxu0 0
        %6010 = vmatprep.subr.bf16.mxu0 0
        %6011 = vmatpush1.bf16.msra.mxu0 0
        %6012 = vmatprep.subr.bf16.mxu0 0
        %6013 = vmatpush1.bf16.msra.mxu0 0
        %6014 = vmatprep.subr.bf16.mxu0 0
        %6015 = vmatpush1.bf16.msra.mxu0 0
        %6016 = vmatprep.subr.bf16.mxu0 0
        %6017 = vmatpush1.bf16.msra.mxu0 0
        %6018 = vmatprep.subr.bf16.mxu0 0
        %6019 = vmatpush1.bf16.msra.mxu0 0
        %6020 = vmatprep.subr.bf16.mxu0 0
        %6021 = vmatpush1.bf16.msra.mxu0 0
        %6022 = vmatprep.subr.bf16.mxu0 0
        %6023 = vmatpush1.bf16.msra.mxu0 0
        %6024 = vmatprep.subr.bf16.mxu0 0
        %6025 = vmatpush1.bf16.msra.mxu0 0
        %6026 = vmatprep.subr.bf16.mxu0 0
        %6027 = vmatpush1.bf16.msra.mxu0 0
        %6028 = vmatprep.subr.bf16.mxu0 0
        %6029 = vmatpush1.bf16.msra.mxu0 0
        %6030 = vmatprep.subr.bf16.mxu0 0
        %6031 = vmatpush1.bf16.msra.mxu0 0
        %6032 = vmatprep.subr.bf16.mxu0 0
        %6033 = vmatpush1.bf16.msra.mxu0 0
        %6034 = vmatprep.subr.bf16.mxu0 0
        %6035 = vmatpush1.bf16.msra.mxu0 0
        %6036 = vmatprep.subr.bf16.mxu0 0
        %6037 = vmatpush1.bf16.msra.mxu0 0
        %6038 = vmatprep.mubr.bf16.mxu0 0
        %6039 = vmatmul.mubr.bf16.gmra.mrb[0].mxu0 %v5998
        %v6040 = vpop.f32.mrb[0].mxu0
        %v6041 = vadd.f32 0.0, %v6040
        %v6042 = vpop.f32.mrb[0].mxu0
        %v6043 = vadd.f32 0.0, %v6042
        %v6044 = vpop.f32.mrb[0].mxu0
        %v6045 = vpop.f32.mrb[0].mxu0
        %6046 = vdwg.mxu0
        %v6047 = vpack.c.bf16 %v6041, %v6041
        %v6048 = vpack.c.bf16 %v6043, %v6043
        %v6049 = vld [vmem:[%s43] sm:$0xff]
        %v6050 = vld [vmem:[%s43 + $0x8] sm:$0xff]
        %v6051 = vld [vmem:[%s43 + $0x10] sm:$0xff]
        %v6052 = vld [vmem:[%s43 + $0x18] sm:$0xff]
        %v6053 = vld [vmem:[%s43 + $0x20] sm:$0xff]
        %v6054 = vld [vmem:[%s43 + $0x28] sm:$0xff]
        %v6055 = vld [vmem:[%s43 + $0x30] sm:$0xff]
        %v6056 = vld [vmem:[%s43 + $0x38] sm:$0xff]
        %v6057 = vld [vmem:[%s43 + $0x40] sm:$0xff]
        %v6058 = vld [vmem:[%s43 + $0x48] sm:$0xff]
        %v6059 = vld [vmem:[%s43 + $0x50] sm:$0xff]
        %v6060 = vld [vmem:[%s43 + $0x58] sm:$0xff]
        %v6061 = vld [vmem:[%s43 + $0x60] sm:$0xff]
        %v6062 = vld [vmem:[%s43 + $0x68] sm:$0xff]
        %v6063 = vld [vmem:[%s43 + $0x70] sm:$0xff]
        %v6064 = vld [vmem:[%s43 + $0x78] sm:$0xff]
        %v6065 = vld [vmem:[%s43 + $0x80] sm:$0xff]
        %v6066 = vld [vmem:[%s43 + $0x88] sm:$0xff]
        %v6067 = vld [vmem:[%s43 + $0x90] sm:$0xff]
        %v6068 = vld [vmem:[%s43 + $0x98] sm:$0xff]
        %v6069 = vld [vmem:[%s43 + $0xa0] sm:$0xff]
        %v6070 = vld [vmem:[%s43 + $0xa8] sm:$0xff]
        %v6071 = vld [vmem:[%s43 + $0xb0] sm:$0xff]
        %v6072 = vld [vmem:[%s43 + $0xb8] sm:$0xff]
        %v6073 = vld [vmem:[%s43 + $0xc0] sm:$0xff]
        %v6074 = vld [vmem:[%s43 + $0xc8] sm:$0xff]
        %v6075 = vld [vmem:[%s43 + $0xd0] sm:$0xff]
        %v6076 = vld [vmem:[%s43 + $0xd8] sm:$0xff]
        %v6077 = vld [vmem:[%s43 + $0xe0] sm:$0xff]
        %v6078 = vld [vmem:[%s43 + $0xe8] sm:$0xff]
        %v6079 = vld [vmem:[%s43 + $0xf0] sm:$0xff]
        %v6080 = vld [vmem:[%s43 + $0xf8] sm:$0xff]
        %s6081 = scalar_lea.vmem %s41, 2
        %v6082 = vld [vmem:[%s6081] sm:$0x3]
        %v6084 = vsel %vm5173, %v6082, 0
        %6086 = vmatprep.subr.bf16.mxu0 %v6004
        %6087 = vmatpush1.bf16.msra.mxu0 %v6001
        %6088 = vmatprep.subr.bf16.mxu0 0
        %6089 = vmatpush1.bf16.msra.mxu0 0
        %6090 = vmatprep.subr.bf16.mxu0 0
        %6091 = vmatpush1.bf16.msra.mxu0 0
        %6092 = vmatprep.subr.bf16.mxu0 0
        %6093 = vmatpush1.bf16.msra.mxu0 0
        %6094 = vmatprep.subr.bf16.mxu0 0
        %6095 = vmatpush1.bf16.msra.mxu0 0
        %6096 = vmatprep.subr.bf16.mxu0 0
        %6097 = vmatpush1.bf16.msra.mxu0 0
        %6098 = vmatprep.subr.bf16.mxu0 0
        %6099 = vmatpush1.bf16.msra.mxu0 0
        %6100 = vmatprep.subr.bf16.mxu0 0
        %6101 = vmatpush1.bf16.msra.mxu0 0
        %6102 = vmatprep.subr.bf16.mxu0 0
        %6103 = vmatpush1.bf16.msra.mxu0 0
        %6104 = vmatprep.subr.bf16.mxu0 0
        %6105 = vmatpush1.bf16.msra.mxu0 0
        %6106 = vmatprep.subr.bf16.mxu0 0
        %6107 = vmatpush1.bf16.msra.mxu0 0
        %6108 = vmatprep.subr.bf16.mxu0 0
        %6109 = vmatpush1.bf16.msra.mxu0 0
        %6110 = vmatprep.subr.bf16.mxu0 0
        %6111 = vmatpush1.bf16.msra.mxu0 0
        %6112 = vmatprep.subr.bf16.mxu0 0
        %6113 = vmatpush1.bf16.msra.mxu0 0
        %6114 = vmatprep.subr.bf16.mxu0 0
        %6115 = vmatpush1.bf16.msra.mxu0 0
        %6116 = vmatprep.subr.bf16.mxu0 0
        %6117 = vmatpush1.bf16.msra.mxu0 0
        %6118 = vmatprep.mubr.bf16.mxu0 0
        %6119 = vmatmul.mubr.bf16.gmra.mrb[0].mxu0 %v6084
        %v6120 = vpop.f32.mrb[0].mxu0
        %v6121 = vadd.f32 0.0, %v6120
        %v6122 = vpop.f32.mrb[0].mxu0
        %v6123 = vadd.f32 0.0, %v6122
        %v6124 = vpop.f32.mrb[0].mxu0
        %v6125 = vpop.f32.mrb[0].mxu0
        %6126 = vdwg.mxu0
        %v6127 = vpack.c.bf16 %v6121, %v6121
        %v6128 = vpack.c.bf16 %v6123, %v6123
        %s6129 = scalar_lea.vmem %s43, 256
        %v6130 = vld [vmem:[%s6129] sm:$0xff]
        %v6131 = vld [vmem:[%s6129 + $0x8] sm:$0xff]
        %v6132 = vld [vmem:[%s6129 + $0x10] sm:$0xff]
        %v6133 = vld [vmem:[%s6129 + $0x18] sm:$0xff]
        %v6134 = vld [vmem:[%s6129 + $0x20] sm:$0xff]
        %v6135 = vld [vmem:[%s6129 + $0x28] sm:$0xff]
        %v6136 = vld [vmem:[%s6129 + $0x30] sm:$0xff]
        %v6137 = vld [vmem:[%s6129 + $0x38] sm:$0xff]
        %v6138 = vld [vmem:[%s6129 + $0x40] sm:$0xff]
        %v6139 = vld [vmem:[%s6129 + $0x48] sm:$0xff]
        %v6140 = vld [vmem:[%s6129 + $0x50] sm:$0xff]
        %v6141 = vld [vmem:[%s6129 + $0x58] sm:$0xff]
        %v6142 = vld [vmem:[%s6129 + $0x60] sm:$0xff]
        %v6143 = vld [vmem:[%s6129 + $0x68] sm:$0xff]
        %v6144 = vld [vmem:[%s6129 + $0x70] sm:$0xff]
        %v6145 = vld [vmem:[%s6129 + $0x78] sm:$0xff]
        %v6146 = vld [vmem:[%s6129 + $0x80] sm:$0xff]
        %v6147 = vld [vmem:[%s6129 + $0x88] sm:$0xff]
        %v6148 = vld [vmem:[%s6129 + $0x90] sm:$0xff]
        %v6149 = vld [vmem:[%s6129 + $0x98] sm:$0xff]
        %v6150 = vld [vmem:[%s6129 + $0xa0] sm:$0xff]
        %v6151 = vld [vmem:[%s6129 + $0xa8] sm:$0xff]
        %v6152 = vld [vmem:[%s6129 + $0xb0] sm:$0xff]
        %v6153 = vld [vmem:[%s6129 + $0xb8] sm:$0xff]
        %v6154 = vld [vmem:[%s6129 + $0xc0] sm:$0xff]
        %v6155 = vld [vmem:[%s6129 + $0xc8] sm:$0xff]
        %v6156 = vld [vmem:[%s6129 + $0xd0] sm:$0xff]
        %v6157 = vld [vmem:[%s6129 + $0xd8] sm:$0xff]
        %v6158 = vld [vmem:[%s6129 + $0xe0] sm:$0xff]
        %v6159 = vld [vmem:[%s6129 + $0xe8] sm:$0xff]
        %v6160 = vld [vmem:[%s6129 + $0xf0] sm:$0xff]
        %v6161 = vld [vmem:[%s6129 + $0xf8] sm:$0xff]
        %v6194 = vunpack.c.l.b16 %v6130
        %v6195 = vunpack.c.h.b16 %v6130
        %v6196 = vunpack.c.l.b16 %v6131
        %v6197 = vunpack.c.h.b16 %v6131
        %v6198 = vunpack.c.l.b16 %v6132
        %v6199 = vunpack.c.h.b16 %v6132
        %v6200 = vunpack.c.l.b16 %v6133
        %v6201 = vunpack.c.h.b16 %v6133
        %v6202 = vunpack.c.l.b16 %v6134
        %v6203 = vunpack.c.h.b16 %v6134
        %v6204 = vunpack.c.l.b16 %v6135
        %v6205 = vunpack.c.h.b16 %v6135
        %v6206 = vunpack.c.l.b16 %v6136
        %v6207 = vunpack.c.h.b16 %v6136
        %v6208 = vunpack.c.l.b16 %v6137
        %v6209 = vunpack.c.h.b16 %v6137
        %v6210 = vunpack.c.l.b16 %v6138
        %v6211 = vunpack.c.h.b16 %v6138
        %v6212 = vunpack.c.l.b16 %v6139
        %v6213 = vunpack.c.h.b16 %v6139
        %v6214 = vunpack.c.l.b16 %v6140
        %v6215 = vunpack.c.h.b16 %v6140
        %v6216 = vunpack.c.l.b16 %v6141
        %v6217 = vunpack.c.h.b16 %v6141
        %v6218 = vunpack.c.l.b16 %v6142
        %v6219 = vunpack.c.h.b16 %v6142
        %v6220 = vunpack.c.l.b16 %v6143
        %v6221 = vunpack.c.h.b16 %v6143
        %v6222 = vunpack.c.l.b16 %v6144
        %v6223 = vunpack.c.h.b16 %v6144
        %v6224 = vunpack.c.l.b16 %v6145
        %v6225 = vunpack.c.h.b16 %v6145
        %v6226 = vunpack.c.l.b16 %v6146
        %v6227 = vunpack.c.h.b16 %v6146
        %v6228 = vunpack.c.l.b16 %v6147
        %v6229 = vunpack.c.h.b16 %v6147
        %v6230 = vunpack.c.l.b16 %v6148
        %v6231 = vunpack.c.h.b16 %v6148
        %v6232 = vunpack.c.l.b16 %v6149
        %v6233 = vunpack.c.h.b16 %v6149
        %v6234 = vunpack.c.l.b16 %v6150
        %v6235 = vunpack.c.h.b16 %v6150
        %v6236 = vunpack.c.l.b16 %v6151
        %v6237 = vunpack.c.h.b16 %v6151
        %v6238 = vunpack.c.l.b16 %v6152
        %v6239 = vunpack.c.h.b16 %v6152
        %v6240 = vunpack.c.l.b16 %v6153
        %v6241 = vunpack.c.h.b16 %v6153
        %v6242 = vunpack.c.l.b16 %v6154
        %v6243 = vunpack.c.h.b16 %v6154
        %v6244 = vunpack.c.l.b16 %v6155
        %v6245 = vunpack.c.h.b16 %v6155
        %v6246 = vunpack.c.l.b16 %v6156
        %v6247 = vunpack.c.h.b16 %v6156
        %v6248 = vunpack.c.l.b16 %v6157
        %v6249 = vunpack.c.h.b16 %v6157
        %v6250 = vunpack.c.l.b16 %v6158
        %v6251 = vunpack.c.h.b16 %v6158
        %v6252 = vunpack.c.l.b16 %v6159
        %v6253 = vunpack.c.h.b16 %v6159
        %v6254 = vunpack.c.l.b16 %v6160
        %v6255 = vunpack.c.h.b16 %v6160
        %v6256 = vunpack.c.l.b16 %v6161
        %v6257 = vunpack.c.h.b16 %v6161
        %v6258 = vpack.c.b16 %v6196, %v6194
        %v6259 = vpack.c.b16 %v6197, %v6195
        %v6260 = vpack.c.b16 %v6200, %v6198
        %v6261 = vpack.c.b16 %v6201, %v6199
        %v6262 = vpack.c.b16 %v6204, %v6202
        %v6263 = vpack.c.b16 %v6205, %v6203
        %v6264 = vpack.c.b16 %v6208, %v6206
        %v6265 = vpack.c.b16 %v6209, %v6207
        %v6266 = vpack.c.b16 %v6212, %v6210
        %v6267 = vpack.c.b16 %v6213, %v6211
        %v6268 = vpack.c.b16 %v6216, %v6214
        %v6269 = vpack.c.b16 %v6217, %v6215
        %v6270 = vpack.c.b16 %v6220, %v6218
        %v6271 = vpack.c.b16 %v6221, %v6219
        %v6272 = vpack.c.b16 %v6224, %v6222
        %v6273 = vpack.c.b16 %v6225, %v6223
        %v6274 = vpack.c.b16 %v6228, %v6226
        %v6275 = vpack.c.b16 %v6229, %v6227
        %v6276 = vpack.c.b16 %v6232, %v6230
        %v6277 = vpack.c.b16 %v6233, %v6231
        %v6278 = vpack.c.b16 %v6236, %v6234
        %v6279 = vpack.c.b16 %v6237, %v6235
        %v6280 = vpack.c.b16 %v6240, %v6238
        %v6281 = vpack.c.b16 %v6241, %v6239
        %v6282 = vpack.c.b16 %v6244, %v6242
        %v6283 = vpack.c.b16 %v6245, %v6243
        %v6284 = vpack.c.b16 %v6248, %v6246
        %v6285 = vpack.c.b16 %v6249, %v6247
        %v6286 = vpack.c.b16 %v6252, %v6250
        %v6287 = vpack.c.b16 %v6253, %v6251
        %v6288 = vpack.c.b16 %v6256, %v6254
        %v6289 = vpack.c.b16 %v6257, %v6255
        %6322 = vmatprep.subr.bf16.mxu0 %v6259
        %6323 = vmatpush1.bf16.msra.mxu0 %v6258
        %6324 = vmatprep.subr.bf16.mxu0 %v6261
        %6325 = vmatpush1.bf16.msra.mxu0 %v6260
        %6326 = vmatprep.subr.bf16.mxu0 %v6263
        %6327 = vmatpush1.bf16.msra.mxu0 %v6262
        %6328 = vmatprep.subr.bf16.mxu0 %v6265
        %6329 = vmatpush1.bf16.msra.mxu0 %v6264
        %6330 = vmatprep.subr.bf16.mxu0 %v6267
        %6331 = vmatpush1.bf16.msra.mxu0 %v6266
        %6332 = vmatprep.subr.bf16.mxu0 %v6269
        %6333 = vmatpush1.bf16.msra.mxu0 %v6268
        %6334 = vmatprep.subr.bf16.mxu0 %v6271
        %6335 = vmatpush1.bf16.msra.mxu0 %v6270
        %6336 = vmatprep.subr.bf16.mxu0 %v6273
        %6337 = vmatpush1.bf16.msra.mxu0 %v6272
        %6338 = vmatprep.subr.bf16.mxu0 %v6275
        %6339 = vmatpush1.bf16.msra.mxu0 %v6274
        %6340 = vmatprep.subr.bf16.mxu0 %v6277
        %6341 = vmatpush1.bf16.msra.mxu0 %v6276
        %6342 = vmatprep.subr.bf16.mxu0 %v6279
        %6343 = vmatpush1.bf16.msra.mxu0 %v6278
        %6344 = vmatprep.subr.bf16.mxu0 %v6281
        %6345 = vmatpush1.bf16.msra.mxu0 %v6280
        %6346 = vmatprep.subr.bf16.mxu0 %v6283
        %6347 = vmatpush1.bf16.msra.mxu0 %v6282
        %6348 = vmatprep.subr.bf16.mxu0 %v6285
        %6349 = vmatpush1.bf16.msra.mxu0 %v6284
        %6350 = vmatprep.subr.bf16.mxu0 %v6287
        %6351 = vmatpush1.bf16.msra.mxu0 %v6286
        %6352 = vmatprep.subr.bf16.mxu0 %v6289
        %6353 = vmatpush1.bf16.msra.mxu0 %v6288
        %6354 = vmatprep.mubr.bf16.mxu0 %v6128
        %6355 = vmatmul.mubr.bf16.gmra.mrb[0].mxu0 %v6127
        %v6356 = vpop.f32.mrb[0].mxu0
        %v6357 = vadd.f32 0.0, %v6356
        %v6358 = vpop.f32.mrb[0].mxu0
        %v6359 = vadd.f32 0.0, %v6358
        %v6360 = vpop.f32.mrb[0].mxu0
        %v6361 = vpop.f32.mrb[0].mxu0
        %6362 = vdwg.mxu0
        %v6395 = vunpack.c.l.b16 %v6049
        %v6396 = vunpack.c.h.b16 %v6049
        %v6397 = vunpack.c.l.b16 %v6050
        %v6398 = vunpack.c.h.b16 %v6050
        %v6399 = vunpack.c.l.b16 %v6051
        %v6400 = vunpack.c.h.b16 %v6051
        %v6401 = vunpack.c.l.b16 %v6052
        %v6402 = vunpack.c.h.b16 %v6052
        %v6403 = vunpack.c.l.b16 %v6053
        %v6404 = vunpack.c.h.b16 %v6053
        %v6405 = vunpack.c.l.b16 %v6054
        %v6406 = vunpack.c.h.b16 %v6054
        %v6407 = vunpack.c.l.b16 %v6055
        %v6408 = vunpack.c.h.b16 %v6055
        %v6409 = vunpack.c.l.b16 %v6056
        %v6410 = vunpack.c.h.b16 %v6056
        %v6411 = vunpack.c.l.b16 %v6057
        %v6412 = vunpack.c.h.b16 %v6057
        %v6413 = vunpack.c.l.b16 %v6058
        %v6414 = vunpack.c.h.b16 %v6058
        %v6415 = vunpack.c.l.b16 %v6059
        %v6416 = vunpack.c.h.b16 %v6059
        %v6417 = vunpack.c.l.b16 %v6060
        %v6418 = vunpack.c.h.b16 %v6060
        %v6419 = vunpack.c.l.b16 %v6061
        %v6420 = vunpack.c.h.b16 %v6061
        %v6421 = vunpack.c.l.b16 %v6062
        %v6422 = vunpack.c.h.b16 %v6062
        %v6423 = vunpack.c.l.b16 %v6063
        %v6424 = vunpack.c.h.b16 %v6063
        %v6425 = vunpack.c.l.b16 %v6064
        %v6426 = vunpack.c.h.b16 %v6064
        %v6427 = vunpack.c.l.b16 %v6065
        %v6428 = vunpack.c.h.b16 %v6065
        %v6429 = vunpack.c.l.b16 %v6066
        %v6430 = vunpack.c.h.b16 %v6066
        %v6431 = vunpack.c.l.b16 %v6067
        %v6432 = vunpack.c.h.b16 %v6067
        %v6433 = vunpack.c.l.b16 %v6068
        %v6434 = vunpack.c.h.b16 %v6068
        %v6435 = vunpack.c.l.b16 %v6069
        %v6436 = vunpack.c.h.b16 %v6069
        %v6437 = vunpack.c.l.b16 %v6070
        %v6438 = vunpack.c.h.b16 %v6070
        %v6439 = vunpack.c.l.b16 %v6071
        %v6440 = vunpack.c.h.b16 %v6071
        %v6441 = vunpack.c.l.b16 %v6072
        %v6442 = vunpack.c.h.b16 %v6072
        %v6443 = vunpack.c.l.b16 %v6073
        %v6444 = vunpack.c.h.b16 %v6073
        %v6445 = vunpack.c.l.b16 %v6074
        %v6446 = vunpack.c.h.b16 %v6074
        %v6447 = vunpack.c.l.b16 %v6075
        %v6448 = vunpack.c.h.b16 %v6075
        %v6449 = vunpack.c.l.b16 %v6076
        %v6450 = vunpack.c.h.b16 %v6076
        %v6451 = vunpack.c.l.b16 %v6077
        %v6452 = vunpack.c.h.b16 %v6077
        %v6453 = vunpack.c.l.b16 %v6078
        %v6454 = vunpack.c.h.b16 %v6078
        %v6455 = vunpack.c.l.b16 %v6079
        %v6456 = vunpack.c.h.b16 %v6079
        %v6457 = vunpack.c.l.b16 %v6080
        %v6458 = vunpack.c.h.b16 %v6080
        %v6459 = vpack.c.b16 %v6397, %v6395
        %v6460 = vpack.c.b16 %v6398, %v6396
        %v6461 = vpack.c.b16 %v6401, %v6399
        %v6462 = vpack.c.b16 %v6402, %v6400
        %v6463 = vpack.c.b16 %v6405, %v6403
        %v6464 = vpack.c.b16 %v6406, %v6404
        %v6465 = vpack.c.b16 %v6409, %v6407
        %v6466 = vpack.c.b16 %v6410, %v6408
        %v6467 = vpack.c.b16 %v6413, %v6411
        %v6468 = vpack.c.b16 %v6414, %v6412
        %v6469 = vpack.c.b16 %v6417, %v6415
        %v6470 = vpack.c.b16 %v6418, %v6416
        %v6471 = vpack.c.b16 %v6421, %v6419
        %v6472 = vpack.c.b16 %v6422, %v6420
        %v6473 = vpack.c.b16 %v6425, %v6423
        %v6474 = vpack.c.b16 %v6426, %v6424
        %v6475 = vpack.c.b16 %v6429, %v6427
        %v6476 = vpack.c.b16 %v6430, %v6428
        %v6477 = vpack.c.b16 %v6433, %v6431
        %v6478 = vpack.c.b16 %v6434, %v6432
        %v6479 = vpack.c.b16 %v6437, %v6435
        %v6480 = vpack.c.b16 %v6438, %v6436
        %v6481 = vpack.c.b16 %v6441, %v6439
        %v6482 = vpack.c.b16 %v6442, %v6440
        %v6483 = vpack.c.b16 %v6445, %v6443
        %v6484 = vpack.c.b16 %v6446, %v6444
        %v6485 = vpack.c.b16 %v6449, %v6447
        %v6486 = vpack.c.b16 %v6450, %v6448
        %v6487 = vpack.c.b16 %v6453, %v6451
        %v6488 = vpack.c.b16 %v6454, %v6452
        %v6489 = vpack.c.b16 %v6457, %v6455
        %v6490 = vpack.c.b16 %v6458, %v6456
        %6523 = vmatprep.subr.bf16.mxu0 %v6460
        %6524 = vmatpush1.bf16.msra.mxu0 %v6459
        %6525 = vmatprep.subr.bf16.mxu0 %v6462
        %6526 = vmatpush1.bf16.msra.mxu0 %v6461
        %6527 = vmatprep.subr.bf16.mxu0 %v6464
        %6528 = vmatpush1.bf16.msra.mxu0 %v6463
        %6529 = vmatprep.subr.bf16.mxu0 %v6466
        %6530 = vmatpush1.bf16.msra.mxu0 %v6465
        %6531 = vmatprep.subr.bf16.mxu0 %v6468
        %6532 = vmatpush1.bf16.msra.mxu0 %v6467
        %6533 = vmatprep.subr.bf16.mxu0 %v6470
        %6534 = vmatpush1.bf16.msra.mxu0 %v6469
        %6535 = vmatprep.subr.bf16.mxu0 %v6472
        %6536 = vmatpush1.bf16.msra.mxu0 %v6471
        %6537 = vmatprep.subr.bf16.mxu0 %v6474
        %6538 = vmatpush1.bf16.msra.mxu0 %v6473
        %6539 = vmatprep.subr.bf16.mxu0 %v6476
        %6540 = vmatpush1.bf16.msra.mxu0 %v6475
        %6541 = vmatprep.subr.bf16.mxu0 %v6478
        %6542 = vmatpush1.bf16.msra.mxu0 %v6477
        %6543 = vmatprep.subr.bf16.mxu0 %v6480
        %6544 = vmatpush1.bf16.msra.mxu0 %v6479
        %6545 = vmatprep.subr.bf16.mxu0 %v6482
        %6546 = vmatpush1.bf16.msra.mxu0 %v6481
        %6547 = vmatprep.subr.bf16.mxu0 %v6484
        %6548 = vmatpush1.bf16.msra.mxu0 %v6483
        %6549 = vmatprep.subr.bf16.mxu0 %v6486
        %6550 = vmatpush1.bf16.msra.mxu0 %v6485
        %6551 = vmatprep.subr.bf16.mxu0 %v6488
        %6552 = vmatpush1.bf16.msra.mxu0 %v6487
        %6553 = vmatprep.subr.bf16.mxu0 %v6490
        %6554 = vmatpush1.bf16.msra.mxu0 %v6489
        %6555 = vmatprep.mubr.bf16.mxu0 %v6048
        %6556 = vmatmul.mubr.bf16.gmra.mrb[0].mxu0 %v6047
        %v6557 = vpop.f32.mrb[0].mxu0
        %v6558 = vadd.f32 %v6357, %v6557
        %v6559 = vpop.f32.mrb[0].mxu0
        %v6560 = vadd.f32 %v6359, %v6559
        %v6561 = vpop.f32.mrb[0].mxu0
        %v6562 = vpop.f32.mrb[0].mxu0
        %6563 = vdwg.mxu0
        %s6564 = scalar_lea.vmem %s41, 4
        %v6565 = vld [vmem:[%s6564] sm:$0x3]
        %v6567 = vsel %vm5173, %v6565, 0
        %6569 = vmatprep.subr.bf16.mxu0 %v6004
        %6570 = vmatpush1.bf16.msra.mxu0 %v6001
        %6571 = vmatprep.subr.bf16.mxu0 0
        %6572 = vmatpush1.bf16.msra.mxu0 0
        %6573 = vmatprep.subr.bf16.mxu0 0
        %6574 = vmatpush1.bf16.msra.mxu0 0
        %6575 = vmatprep.subr.bf16.mxu0 0
        %6576 = vmatpush1.bf16.msra.mxu0 0
        %6577 = vmatprep.subr.bf16.mxu0 0
        %6578 = vmatpush1.bf16.msra.mxu0 0
        %6579 = vmatprep.subr.bf16.mxu0 0
        %6580 = vmatpush1.bf16.msra.mxu0 0
        %6581 = vmatprep.subr.bf16.mxu0 0
        %6582 = vmatpush1.bf16.msra.mxu0 0
        %6583 = vmatprep.subr.bf16.mxu0 0
        %6584 = vmatpush1.bf16.msra.mxu0 0
        %6585 = vmatprep.subr.bf16.mxu0 0
        %6586 = vmatpush1.bf16.msra.mxu0 0
        %6587 = vmatprep.subr.bf16.mxu0 0
        %6588 = vmatpush1.bf16.msra.mxu0 0
        %6589 = vmatprep.subr.bf16.mxu0 0
        %6590 = vmatpush1.bf16.msra.mxu0 0
        %6591 = vmatprep.subr.bf16.mxu0 0
        %6592 = vmatpush1.bf16.msra.mxu0 0
        %6593 = vmatprep.subr.bf16.mxu0 0
        %6594 = vmatpush1.bf16.msra.mxu0 0
        %6595 = vmatprep.subr.bf16.mxu0 0
        %6596 = vmatpush1.bf16.msra.mxu0 0
        %6597 = vmatprep.subr.bf16.mxu0 0
        %6598 = vmatpush1.bf16.msra.mxu0 0
        %6599 = vmatprep.subr.bf16.mxu0 0
        %6600 = vmatpush1.bf16.msra.mxu0 0
        %6601 = vmatprep.mubr.bf16.mxu0 0
        %6602 = vmatmul.mubr.bf16.gmra.mrb[0].mxu0 %v6567
        %v6603 = vpop.f32.mrb[0].mxu0
        %v6604 = vadd.f32 0.0, %v6603
        %v6605 = vpop.f32.mrb[0].mxu0
        %v6606 = vadd.f32 0.0, %v6605
        %v6607 = vpop.f32.mrb[0].mxu0
        %v6608 = vpop.f32.mrb[0].mxu0
        %6609 = vdwg.mxu0
        %v6610 = vpack.c.bf16 %v6604, %v6604
        %v6611 = vpack.c.bf16 %v6606, %v6606
        %s6612 = scalar_lea.vmem %s43, 512
        %v6613 = vld [vmem:[%s6612] sm:$0xff]
        %v6614 = vld [vmem:[%s6612 + $0x8] sm:$0xff]
        %v6615 = vld [vmem:[%s6612 + $0x10] sm:$0xff]
        %v6616 = vld [vmem:[%s6612 + $0x18] sm:$0xff]
        %v6617 = vld [vmem:[%s6612 + $0x20] sm:$0xff]
        %v6618 = vld [vmem:[%s6612 + $0x28] sm:$0xff]
        %v6619 = vld [vmem:[%s6612 + $0x30] sm:$0xff]
        %v6620 = vld [vmem:[%s6612 + $0x38] sm:$0xff]
        %v6621 = vld [vmem:[%s6612 + $0x40] sm:$0xff]
        %v6622 = vld [vmem:[%s6612 + $0x48] sm:$0xff]
        %v6623 = vld [vmem:[%s6612 + $0x50] sm:$0xff]
        %v6624 = vld [vmem:[%s6612 + $0x58] sm:$0xff]
        %v6625 = vld [vmem:[%s6612 + $0x60] sm:$0xff]
        %v6626 = vld [vmem:[%s6612 + $0x68] sm:$0xff]
        %v6627 = vld [vmem:[%s6612 + $0x70] sm:$0xff]
        %v6628 = vld [vmem:[%s6612 + $0x78] sm:$0xff]
        %v6629 = vld [vmem:[%s6612 + $0x80] sm:$0xff]
        %v6630 = vld [vmem:[%s6612 + $0x88] sm:$0xff]
        %v6631 = vld [vmem:[%s6612 + $0x90] sm:$0xff]
        %v6632 = vld [vmem:[%s6612 + $0x98] sm:$0xff]
        %v6633 = vld [vmem:[%s6612 + $0xa0] sm:$0xff]
        %v6634 = vld [vmem:[%s6612 + $0xa8] sm:$0xff]
        %v6635 = vld [vmem:[%s6612 + $0xb0] sm:$0xff]
        %v6636 = vld [vmem:[%s6612 + $0xb8] sm:$0xff]
        %v6637 = vld [vmem:[%s6612 + $0xc0] sm:$0xff]
        %v6638 = vld [vmem:[%s6612 + $0xc8] sm:$0xff]
        %v6639 = vld [vmem:[%s6612 + $0xd0] sm:$0xff]
        %v6640 = vld [vmem:[%s6612 + $0xd8] sm:$0xff]
        %v6641 = vld [vmem:[%s6612 + $0xe0] sm:$0xff]
        %v6642 = vld [vmem:[%s6612 + $0xe8] sm:$0xff]
        %v6643 = vld [vmem:[%s6612 + $0xf0] sm:$0xff]
        %v6644 = vld [vmem:[%s6612 + $0xf8] sm:$0xff]
        %v6677 = vunpack.c.l.b16 %v6613
        %v6678 = vunpack.c.h.b16 %v6613
        %v6679 = vunpack.c.l.b16 %v6614
        %v6680 = vunpack.c.h.b16 %v6614
        %v6681 = vunpack.c.l.b16 %v6615
        %v6682 = vunpack.c.h.b16 %v6615
        %v6683 = vunpack.c.l.b16 %v6616
        %v6684 = vunpack.c.h.b16 %v6616
        %v6685 = vunpack.c.l.b16 %v6617
        %v6686 = vunpack.c.h.b16 %v6617
        %v6687 = vunpack.c.l.b16 %v6618
        %v6688 = vunpack.c.h.b16 %v6618
        %v6689 = vunpack.c.l.b16 %v6619
        %v6690 = vunpack.c.h.b16 %v6619
        %v6691 = vunpack.c.l.b16 %v6620
        %v6692 = vunpack.c.h.b16 %v6620
        %v6693 = vunpack.c.l.b16 %v6621
        %v6694 = vunpack.c.h.b16 %v6621
        %v6695 = vunpack.c.l.b16 %v6622
        %v6696 = vunpack.c.h.b16 %v6622
        %v6697 = vunpack.c.l.b16 %v6623
        %v6698 = vunpack.c.h.b16 %v6623
        %v6699 = vunpack.c.l.b16 %v6624
        %v6700 = vunpack.c.h.b16 %v6624
        %v6701 = vunpack.c.l.b16 %v6625
        %v6702 = vunpack.c.h.b16 %v6625
        %v6703 = vunpack.c.l.b16 %v6626
        %v6704 = vunpack.c.h.b16 %v6626
        %v6705 = vunpack.c.l.b16 %v6627
        %v6706 = vunpack.c.h.b16 %v6627
        %v6707 = vunpack.c.l.b16 %v6628
        %v6708 = vunpack.c.h.b16 %v6628
        %v6709 = vunpack.c.l.b16 %v6629
        %v6710 = vunpack.c.h.b16 %v6629
        %v6711 = vunpack.c.l.b16 %v6630
        %v6712 = vunpack.c.h.b16 %v6630
        %v6713 = vunpack.c.l.b16 %v6631
        %v6714 = vunpack.c.h.b16 %v6631
        %v6715 = vunpack.c.l.b16 %v6632
        %v6716 = vunpack.c.h.b16 %v6632
        %v6717 = vunpack.c.l.b16 %v6633
        %v6718 = vunpack.c.h.b16 %v6633
        %v6719 = vunpack.c.l.b16 %v6634
        %v6720 = vunpack.c.h.b16 %v6634
        %v6721 = vunpack.c.l.b16 %v6635
        %v6722 = vunpack.c.h.b16 %v6635
        %v6723 = vunpack.c.l.b16 %v6636
        %v6724 = vunpack.c.h.b16 %v6636
        %v6725 = vunpack.c.l.b16 %v6637
        %v6726 = vunpack.c.h.b16 %v6637
        %v6727 = vunpack.c.l.b16 %v6638
        %v6728 = vunpack.c.h.b16 %v6638
        %v6729 = vunpack.c.l.b16 %v6639
        %v6730 = vunpack.c.h.b16 %v6639
        %v6731 = vunpack.c.l.b16 %v6640
        %v6732 = vunpack.c.h.b16 %v6640
        %v6733 = vunpack.c.l.b16 %v6641
        %v6734 = vunpack.c.h.b16 %v6641
        %v6735 = vunpack.c.l.b16 %v6642
        %v6736 = vunpack.c.h.b16 %v6642
        %v6737 = vunpack.c.l.b16 %v6643
        %v6738 = vunpack.c.h.b16 %v6643
        %v6739 = vunpack.c.l.b16 %v6644
        %v6740 = vunpack.c.h.b16 %v6644
        %v6741 = vpack.c.b16 %v6679, %v6677
        %v6742 = vpack.c.b16 %v6680, %v6678
        %v6743 = vpack.c.b16 %v6683, %v6681
        %v6744 = vpack.c.b16 %v6684, %v6682
        %v6745 = vpack.c.b16 %v6687, %v6685
        %v6746 = vpack.c.b16 %v6688, %v6686
        %v6747 = vpack.c.b16 %v6691, %v6689
        %v6748 = vpack.c.b16 %v6692, %v6690
        %v6749 = vpack.c.b16 %v6695, %v6693
        %v6750 = vpack.c.b16 %v6696, %v6694
        %v6751 = vpack.c.b16 %v6699, %v6697
        %v6752 = vpack.c.b16 %v6700, %v6698
        %v6753 = vpack.c.b16 %v6703, %v6701
        %v6754 = vpack.c.b16 %v6704, %v6702
        %v6755 = vpack.c.b16 %v6707, %v6705
        %v6756 = vpack.c.b16 %v6708, %v6706
        %v6757 = vpack.c.b16 %v6711, %v6709
        %v6758 = vpack.c.b16 %v6712, %v6710
        %v6759 = vpack.c.b16 %v6715, %v6713
        %v6760 = vpack.c.b16 %v6716, %v6714
        %v6761 = vpack.c.b16 %v6719, %v6717
        %v6762 = vpack.c.b16 %v6720, %v6718
        %v6763 = vpack.c.b16 %v6723, %v6721
        %v6764 = vpack.c.b16 %v6724, %v6722
        %v6765 = vpack.c.b16 %v6727, %v6725
        %v6766 = vpack.c.b16 %v6728, %v6726
        %v6767 = vpack.c.b16 %v6731, %v6729
        %v6768 = vpack.c.b16 %v6732, %v6730
        %v6769 = vpack.c.b16 %v6735, %v6733
        %v6770 = vpack.c.b16 %v6736, %v6734
        %v6771 = vpack.c.b16 %v6739, %v6737
        %v6772 = vpack.c.b16 %v6740, %v6738
        %6805 = vmatprep.subr.bf16.mxu0 %v6742
        %6806 = vmatpush1.bf16.msra.mxu0 %v6741
        %6807 = vmatprep.subr.bf16.mxu0 %v6744
        %6808 = vmatpush1.bf16.msra.mxu0 %v6743
        %6809 = vmatprep.subr.bf16.mxu0 %v6746
        %6810 = vmatpush1.bf16.msra.mxu0 %v6745
        %6811 = vmatprep.subr.bf16.mxu0 %v6748
        %6812 = vmatpush1.bf16.msra.mxu0 %v6747
        %6813 = vmatprep.subr.bf16.mxu0 %v6750
        %6814 = vmatpush1.bf16.msra.mxu0 %v6749
        %6815 = vmatprep.subr.bf16.mxu0 %v6752
        %6816 = vmatpush1.bf16.msra.mxu0 %v6751
        %6817 = vmatprep.subr.bf16.mxu0 %v6754
        %6818 = vmatpush1.bf16.msra.mxu0 %v6753
        %6819 = vmatprep.subr.bf16.mxu0 %v6756
        %6820 = vmatpush1.bf16.msra.mxu0 %v6755
        %6821 = vmatprep.subr.bf16.mxu0 %v6758
        %6822 = vmatpush1.bf16.msra.mxu0 %v6757
        %6823 = vmatprep.subr.bf16.mxu0 %v6760
        %6824 = vmatpush1.bf16.msra.mxu0 %v6759
        %6825 = vmatprep.subr.bf16.mxu0 %v6762
        %6826 = vmatpush1.bf16.msra.mxu0 %v6761
        %6827 = vmatprep.subr.bf16.mxu0 %v6764
        %6828 = vmatpush1.bf16.msra.mxu0 %v6763
        %6829 = vmatprep.subr.bf16.mxu0 %v6766
        %6830 = vmatpush1.bf16.msra.mxu0 %v6765
        %6831 = vmatprep.subr.bf16.mxu0 %v6768
        %6832 = vmatpush1.bf16.msra.mxu0 %v6767
        %6833 = vmatprep.subr.bf16.mxu0 %v6770
        %6834 = vmatpush1.bf16.msra.mxu0 %v6769
        %6835 = vmatprep.subr.bf16.mxu0 %v6772
        %6836 = vmatpush1.bf16.msra.mxu0 %v6771
        %6837 = vmatprep.mubr.bf16.mxu0 %v6611
        %6838 = vmatmul.mubr.bf16.gmra.mrb[0].mxu0 %v6610
        %v6839 = vpop.f32.mrb[0].mxu0
        %v6840 = vadd.f32 0.0, %v6839
        %v6841 = vpop.f32.mrb[0].mxu0
        %v6842 = vadd.f32 0.0, %v6841
        %v6843 = vpop.f32.mrb[0].mxu0
        %v6844 = vpop.f32.mrb[0].mxu0
        %6845 = vdwg.mxu0
        %v6846 = vadd.f32 %v6558, %v6840
        %v6847 = vadd.f32 %v6560, %v6842
        %v6848 = vld [vmem:[%s45] sm:$0x3]
        %v6850 = vlaneseq
        %v6851 = vshrl.u32 %v6850, 7
        %v6852 = vsub.s32 0, %v6851
        %v6853 = vrot.slane %v6848, %v6852
        %v6854 = vlaneseq
        %v6855 = vshrl.u32 %v6854, 7
        %v6856 = vsub.s32 1, %v6855
        %v6857 = vrot.slane %v6848, %v6856
        %v6860 = vadd.f32 %v6846, %v6853
        %v6861 = vadd.f32 %v6847, %v6857
        %v6862 = vmax.f32 %v6860, 0.0
        %v6863 = vmax.f32 %v6861, 0.0
        %v6864 = vpack.c.bf16 %v6862, %v6862
        %v6865 = vpack.c.bf16 %v6863, %v6863
        %v6866 = vld [vmem:[%s47] sm:$0x3]
        %vm6867 = vcmask 31744
        %v6869 = vsel %vm6867, %v6866, 0
        %v6872 = vsel %vm1091, %v6864, 0
        %v6875 = vsel %vm1091, %v6865, 0
        %6877 = vmatprep.subr.bf16.mxu0 %v6875
        %6878 = vmatpush1.bf16.msra.mxu0 %v6872
        %6879 = vmatprep.subr.bf16.mxu0 0
        %6880 = vmatpush1.bf16.msra.mxu0 0
        %6881 = vmatprep.subr.bf16.mxu0 0
        %6882 = vmatpush1.bf16.msra.mxu0 0
        %6883 = vmatprep.subr.bf16.mxu0 0
        %6884 = vmatpush1.bf16.msra.mxu0 0
        %6885 = vmatprep.subr.bf16.mxu0 0
        %6886 = vmatpush1.bf16.msra.mxu0 0
        %6887 = vmatprep.subr.bf16.mxu0 0
        %6888 = vmatpush1.bf16.msra.mxu0 0
        %6889 = vmatprep.subr.bf16.mxu0 0
        %6890 = vmatpush1.bf16.msra.mxu0 0
        %6891 = vmatprep.subr.bf16.mxu0 0
        %6892 = vmatpush1.bf16.msra.mxu0 0
        %6893 = vmatprep.subr.bf16.mxu0 0
        %6894 = vmatpush1.bf16.msra.mxu0 0
        %6895 = vmatprep.subr.bf16.mxu0 0
        %6896 = vmatpush1.bf16.msra.mxu0 0
        %6897 = vmatprep.subr.bf16.mxu0 0
        %6898 = vmatpush1.bf16.msra.mxu0 0
        %6899 = vmatprep.subr.bf16.mxu0 0
        %6900 = vmatpush1.bf16.msra.mxu0 0
        %6901 = vmatprep.subr.bf16.mxu0 0
        %6902 = vmatpush1.bf16.msra.mxu0 0
        %6903 = vmatprep.subr.bf16.mxu0 0
        %6904 = vmatpush1.bf16.msra.mxu0 0
        %6905 = vmatprep.subr.bf16.mxu0 0
        %6906 = vmatpush1.bf16.msra.mxu0 0
        %6907 = vmatprep.subr.bf16.mxu0 0
        %6908 = vmatpush1.bf16.msra.mxu0 0
        %6909 = vmatprep.mubr.bf16.mxu0 0
        %6910 = vmatmul.mubr.bf16.gmra.mrb[0].mxu0 %v6869
        %v6911 = vpop.f32.mrb[0].mxu0
        %v6912 = vadd.f32 0.0, %v6911
        %v6913 = vpop.f32.mrb[0].mxu0
        %v6914 = vadd.f32 0.0, %v6913
        %v6915 = vpop.f32.mrb[0].mxu0
        %v6916 = vpop.f32.mrb[0].mxu0
        %6917 = vdwg.mxu0
        %v6918 = vpack.c.bf16 %v6912, %v6912
        %v6919 = vpack.c.bf16 %v6914, %v6914
        %v6920 = vld [vmem:[%s49] sm:$0xff]
        %v6921 = vld [vmem:[%s49 + $0x8] sm:$0xff]
        %v6922 = vld [vmem:[%s49 + $0x10] sm:$0xff]
        %v6923 = vld [vmem:[%s49 + $0x18] sm:$0xff]
        %v6924 = vld [vmem:[%s49 + $0x20] sm:$0xff]
        %v6925 = vld [vmem:[%s49 + $0x28] sm:$0xff]
        %v6926 = vld [vmem:[%s49 + $0x30] sm:$0xff]
        %v6927 = vld [vmem:[%s49 + $0x38] sm:$0xff]
        %v6928 = vld [vmem:[%s49 + $0x40] sm:$0xff]
        %v6929 = vld [vmem:[%s49 + $0x48] sm:$0xff]
        %v6930 = vld [vmem:[%s49 + $0x50] sm:$0xff]
        %v6931 = vld [vmem:[%s49 + $0x58] sm:$0xff]
        %v6932 = vld [vmem:[%s49 + $0x60] sm:$0xff]
        %v6933 = vld [vmem:[%s49 + $0x68] sm:$0xff]
        %v6934 = vld [vmem:[%s49 + $0x70] sm:$0xff]
        %v6935 = vld [vmem:[%s49 + $0x78] sm:$0xff]
        %v6936 = vld [vmem:[%s49 + $0x80] sm:$0xff]
        %v6937 = vld [vmem:[%s49 + $0x88] sm:$0xff]
        %v6938 = vld [vmem:[%s49 + $0x90] sm:$0xff]
        %v6939 = vld [vmem:[%s49 + $0x98] sm:$0xff]
        %v6940 = vld [vmem:[%s49 + $0xa0] sm:$0xff]
        %v6941 = vld [vmem:[%s49 + $0xa8] sm:$0xff]
        %v6942 = vld [vmem:[%s49 + $0xb0] sm:$0xff]
        %v6943 = vld [vmem:[%s49 + $0xb8] sm:$0xff]
        %v6944 = vld [vmem:[%s49 + $0xc0] sm:$0xff]
        %v6945 = vld [vmem:[%s49 + $0xc8] sm:$0xff]
        %v6946 = vld [vmem:[%s49 + $0xd0] sm:$0xff]
        %v6947 = vld [vmem:[%s49 + $0xd8] sm:$0xff]
        %v6948 = vld [vmem:[%s49 + $0xe0] sm:$0xff]
        %v6949 = vld [vmem:[%s49 + $0xe8] sm:$0xff]
        %v6950 = vld [vmem:[%s49 + $0xf0] sm:$0xff]
        %v6951 = vld [vmem:[%s49 + $0xf8] sm:$0xff]
        %s6952 = scalar_lea.vmem %s49, 256
        %v6953 = vld [vmem:[%s6952] sm:$0xff]
        %v6954 = vld [vmem:[%s6952 + $0x8] sm:$0xff]
        %v6955 = vld [vmem:[%s6952 + $0x10] sm:$0xff]
        %v6956 = vld [vmem:[%s6952 + $0x18] sm:$0xff]
        %v6957 = vld [vmem:[%s6952 + $0x20] sm:$0xff]
        %v6958 = vld [vmem:[%s6952 + $0x28] sm:$0xff]
        %v6959 = vld [vmem:[%s6952 + $0x30] sm:$0xff]
        %v6960 = vld [vmem:[%s6952 + $0x38] sm:$0xff]
        %v6961 = vld [vmem:[%s6952 + $0x40] sm:$0xff]
        %v6962 = vld [vmem:[%s6952 + $0x48] sm:$0xff]
        %v6963 = vld [vmem:[%s6952 + $0x50] sm:$0xff]
        %v6964 = vld [vmem:[%s6952 + $0x58] sm:$0xff]
        %v6965 = vld [vmem:[%s6952 + $0x60] sm:$0xff]
        %v6966 = vld [vmem:[%s6952 + $0x68] sm:$0xff]
        %v6967 = vld [vmem:[%s6952 + $0x70] sm:$0xff]
        %v6968 = vld [vmem:[%s6952 + $0x78] sm:$0xff]
        %v6969 = vld [vmem:[%s6952 + $0x80] sm:$0xff]
        %v6970 = vld [vmem:[%s6952 + $0x88] sm:$0xff]
        %v6971 = vld [vmem:[%s6952 + $0x90] sm:$0xff]
        %v6972 = vld [vmem:[%s6952 + $0x98] sm:$0xff]
        %v6973 = vld [vmem:[%s6952 + $0xa0] sm:$0xff]
        %v6974 = vld [vmem:[%s6952 + $0xa8] sm:$0xff]
        %v6975 = vld [vmem:[%s6952 + $0xb0] sm:$0xff]
        %v6976 = vld [vmem:[%s6952 + $0xb8] sm:$0xff]
        %v6977 = vld [vmem:[%s6952 + $0xc0] sm:$0xff]
        %v6978 = vld [vmem:[%s6952 + $0xc8] sm:$0xff]
        %v6979 = vld [vmem:[%s6952 + $0xd0] sm:$0xff]
        %v6980 = vld [vmem:[%s6952 + $0xd8] sm:$0xff]
        %v6981 = vld [vmem:[%s6952 + $0xe0] sm:$0xff]
        %v6982 = vld [vmem:[%s6952 + $0xe8] sm:$0xff]
        %v6983 = vld [vmem:[%s6952 + $0xf0] sm:$0xff]
        %v6984 = vld [vmem:[%s6952 + $0xf8] sm:$0xff]
        %v7017 = vunpack.c.l.b16 %v6953
        %v7018 = vunpack.c.h.b16 %v6953
        %v7019 = vunpack.c.l.b16 %v6954
        %v7020 = vunpack.c.h.b16 %v6954
        %v7021 = vunpack.c.l.b16 %v6955
        %v7022 = vunpack.c.h.b16 %v6955
        %v7023 = vunpack.c.l.b16 %v6956
        %v7024 = vunpack.c.h.b16 %v6956
        %v7025 = vunpack.c.l.b16 %v6957
        %v7026 = vunpack.c.h.b16 %v6957
        %v7027 = vunpack.c.l.b16 %v6958
        %v7028 = vunpack.c.h.b16 %v6958
        %v7029 = vunpack.c.l.b16 %v6959
        %v7030 = vunpack.c.h.b16 %v6959
        %v7031 = vunpack.c.l.b16 %v6960
        %v7032 = vunpack.c.h.b16 %v6960
        %v7033 = vunpack.c.l.b16 %v6961
        %v7034 = vunpack.c.h.b16 %v6961
        %v7035 = vunpack.c.l.b16 %v6962
        %v7036 = vunpack.c.h.b16 %v6962
        %v7037 = vunpack.c.l.b16 %v6963
        %v7038 = vunpack.c.h.b16 %v6963
        %v7039 = vunpack.c.l.b16 %v6964
        %v7040 = vunpack.c.h.b16 %v6964
        %v7041 = vunpack.c.l.b16 %v6965
        %v7042 = vunpack.c.h.b16 %v6965
        %v7043 = vunpack.c.l.b16 %v6966
        %v7044 = vunpack.c.h.b16 %v6966
        %v7045 = vunpack.c.l.b16 %v6967
        %v7046 = vunpack.c.h.b16 %v6967
        %v7047 = vunpack.c.l.b16 %v6968
        %v7048 = vunpack.c.h.b16 %v6968
        %v7049 = vunpack.c.l.b16 %v6969
        %v7050 = vunpack.c.h.b16 %v6969
        %v7051 = vunpack.c.l.b16 %v6970
        %v7052 = vunpack.c.h.b16 %v6970
        %v7053 = vunpack.c.l.b16 %v6971
        %v7054 = vunpack.c.h.b16 %v6971
        %v7055 = vunpack.c.l.b16 %v6972
        %v7056 = vunpack.c.h.b16 %v6972
        %v7057 = vunpack.c.l.b16 %v6973
        %v7058 = vunpack.c.h.b16 %v6973
        %v7059 = vunpack.c.l.b16 %v6974
        %v7060 = vunpack.c.h.b16 %v6974
        %v7061 = vunpack.c.l.b16 %v6975
        %v7062 = vunpack.c.h.b16 %v6975
        %v7063 = vunpack.c.l.b16 %v6976
        %v7064 = vunpack.c.h.b16 %v6976
        %v7065 = vunpack.c.l.b16 %v6977
        %v7066 = vunpack.c.h.b16 %v6977
        %v7067 = vunpack.c.l.b16 %v6978
        %v7068 = vunpack.c.h.b16 %v6978
        %v7069 = vunpack.c.l.b16 %v6979
        %v7070 = vunpack.c.h.b16 %v6979
        %v7071 = vunpack.c.l.b16 %v6980
        %v7072 = vunpack.c.h.b16 %v6980
        %v7073 = vunpack.c.l.b16 %v6981
        %v7074 = vunpack.c.h.b16 %v6981
        %v7075 = vunpack.c.l.b16 %v6982
        %v7076 = vunpack.c.h.b16 %v6982
        %v7077 = vunpack.c.l.b16 %v6983
        %v7078 = vunpack.c.h.b16 %v6983
        %v7079 = vunpack.c.l.b16 %v6984
        %v7080 = vunpack.c.h.b16 %v6984
        %v7081 = vpack.c.b16 %v7019, %v7017
        %v7082 = vpack.c.b16 %v7020, %v7018
        %v7083 = vpack.c.b16 %v7023, %v7021
        %v7084 = vpack.c.b16 %v7024, %v7022
        %v7085 = vpack.c.b16 %v7027, %v7025
        %v7086 = vpack.c.b16 %v7028, %v7026
        %v7087 = vpack.c.b16 %v7031, %v7029
        %v7088 = vpack.c.b16 %v7032, %v7030
        %v7089 = vpack.c.b16 %v7035, %v7033
        %v7090 = vpack.c.b16 %v7036, %v7034
        %v7091 = vpack.c.b16 %v7039, %v7037
        %v7092 = vpack.c.b16 %v7040, %v7038
        %v7093 = vpack.c.b16 %v7043, %v7041
        %v7094 = vpack.c.b16 %v7044, %v7042
        %v7095 = vpack.c.b16 %v7047, %v7045
        %v7096 = vpack.c.b16 %v7048, %v7046
        %v7097 = vpack.c.b16 %v7051, %v7049
        %v7098 = vpack.c.b16 %v7052, %v7050
        %v7099 = vpack.c.b16 %v7055, %v7053
        %v7100 = vpack.c.b16 %v7056, %v7054
        %v7101 = vpack.c.b16 %v7059, %v7057
        %v7102 = vpack.c.b16 %v7060, %v7058
        %v7103 = vpack.c.b16 %v7063, %v7061
        %v7104 = vpack.c.b16 %v7064, %v7062
        %v7105 = vpack.c.b16 %v7067, %v7065
        %v7106 = vpack.c.b16 %v7068, %v7066
        %v7107 = vpack.c.b16 %v7071, %v7069
        %v7108 = vpack.c.b16 %v7072, %v7070
        %v7109 = vpack.c.b16 %v7075, %v7073
        %v7110 = vpack.c.b16 %v7076, %v7074
        %v7111 = vpack.c.b16 %v7079, %v7077
        %v7112 = vpack.c.b16 %v7080, %v7078
        %7145 = vmatprep.subr.bf16.mxu0 %v7082
        %7146 = vmatpush1.bf16.msra.mxu0 %v7081
        %7147 = vmatprep.subr.bf16.mxu0 %v7084
        %7148 = vmatpush1.bf16.msra.mxu0 %v7083
        %7149 = vmatprep.subr.bf16.mxu0 %v7086
        %7150 = vmatpush1.bf16.msra.mxu0 %v7085
        %7151 = vmatprep.subr.bf16.mxu0 %v7088
        %7152 = vmatpush1.bf16.msra.mxu0 %v7087
        %7153 = vmatprep.subr.bf16.mxu0 %v7090
        %7154 = vmatpush1.bf16.msra.mxu0 %v7089
        %7155 = vmatprep.subr.bf16.mxu0 %v7092
        %7156 = vmatpush1.bf16.msra.mxu0 %v7091
        %7157 = vmatprep.subr.bf16.mxu0 %v7094
        %7158 = vmatpush1.bf16.msra.mxu0 %v7093
        %7159 = vmatprep.subr.bf16.mxu0 %v7096
        %7160 = vmatpush1.bf16.msra.mxu0 %v7095
        %7161 = vmatprep.subr.bf16.mxu0 %v7098
        %7162 = vmatpush1.bf16.msra.mxu0 %v7097
        %7163 = vmatprep.subr.bf16.mxu0 %v7100
        %7164 = vmatpush1.bf16.msra.mxu0 %v7099
        %7165 = vmatprep.subr.bf16.mxu0 %v7102
        %7166 = vmatpush1.bf16.msra.mxu0 %v7101
        %7167 = vmatprep.subr.bf16.mxu0 %v7104
        %7168 = vmatpush1.bf16.msra.mxu0 %v7103
        %7169 = vmatprep.subr.bf16.mxu0 %v7106
        %7170 = vmatpush1.bf16.msra.mxu0 %v7105
        %7171 = vmatprep.subr.bf16.mxu0 %v7108
        %7172 = vmatpush1.bf16.msra.mxu0 %v7107
        %7173 = vmatprep.subr.bf16.mxu0 %v7110
        %7174 = vmatpush1.bf16.msra.mxu0 %v7109
        %7175 = vmatprep.subr.bf16.mxu0 %v7112
        %7176 = vmatpush1.bf16.msra.mxu0 %v7111
        %7177 = vmatprep.mubr.bf16.mxu0 %v6865
        %7178 = vmatmul.mubr.bf16.gmra.mrb[0].mxu0 %v6864
        %v7179 = vpop.f32.mrb[0].mxu0
        %v7180 = vadd.f32 0.0, %v7179
        %v7181 = vpop.f32.mrb[0].mxu0
        %v7182 = vadd.f32 0.0, %v7181
        %v7183 = vpop.f32.mrb[0].mxu0
        %v7184 = vpop.f32.mrb[0].mxu0
        %7185 = vdwg.mxu0
        %v7218 = vunpack.c.l.b16 %v6920
        %v7219 = vunpack.c.h.b16 %v6920
        %v7220 = vunpack.c.l.b16 %v6921
        %v7221 = vunpack.c.h.b16 %v6921
        %v7222 = vunpack.c.l.b16 %v6922
        %v7223 = vunpack.c.h.b16 %v6922
        %v7224 = vunpack.c.l.b16 %v6923
        %v7225 = vunpack.c.h.b16 %v6923
        %v7226 = vunpack.c.l.b16 %v6924
        %v7227 = vunpack.c.h.b16 %v6924
        %v7228 = vunpack.c.l.b16 %v6925
        %v7229 = vunpack.c.h.b16 %v6925
        %v7230 = vunpack.c.l.b16 %v6926
        %v7231 = vunpack.c.h.b16 %v6926
        %v7232 = vunpack.c.l.b16 %v6927
        %v7233 = vunpack.c.h.b16 %v6927
        %v7234 = vunpack.c.l.b16 %v6928
        %v7235 = vunpack.c.h.b16 %v6928
        %v7236 = vunpack.c.l.b16 %v6929
        %v7237 = vunpack.c.h.b16 %v6929
        %v7238 = vunpack.c.l.b16 %v6930
        %v7239 = vunpack.c.h.b16 %v6930
        %v7240 = vunpack.c.l.b16 %v6931
        %v7241 = vunpack.c.h.b16 %v6931
        %v7242 = vunpack.c.l.b16 %v6932
        %v7243 = vunpack.c.h.b16 %v6932
        %v7244 = vunpack.c.l.b16 %v6933
        %v7245 = vunpack.c.h.b16 %v6933
        %v7246 = vunpack.c.l.b16 %v6934
        %v7247 = vunpack.c.h.b16 %v6934
        %v7248 = vunpack.c.l.b16 %v6935
        %v7249 = vunpack.c.h.b16 %v6935
        %v7250 = vunpack.c.l.b16 %v6936
        %v7251 = vunpack.c.h.b16 %v6936
        %v7252 = vunpack.c.l.b16 %v6937
        %v7253 = vunpack.c.h.b16 %v6937
        %v7254 = vunpack.c.l.b16 %v6938
        %v7255 = vunpack.c.h.b16 %v6938
        %v7256 = vunpack.c.l.b16 %v6939
        %v7257 = vunpack.c.h.b16 %v6939
        %v7258 = vunpack.c.l.b16 %v6940
        %v7259 = vunpack.c.h.b16 %v6940
        %v7260 = vunpack.c.l.b16 %v6941
        %v7261 = vunpack.c.h.b16 %v6941
        %v7262 = vunpack.c.l.b16 %v6942
        %v7263 = vunpack.c.h.b16 %v6942
        %v7264 = vunpack.c.l.b16 %v6943
        %v7265 = vunpack.c.h.b16 %v6943
        %v7266 = vunpack.c.l.b16 %v6944
        %v7267 = vunpack.c.h.b16 %v6944
        %v7268 = vunpack.c.l.b16 %v6945
        %v7269 = vunpack.c.h.b16 %v6945
        %v7270 = vunpack.c.l.b16 %v6946
        %v7271 = vunpack.c.h.b16 %v6946
        %v7272 = vunpack.c.l.b16 %v6947
        %v7273 = vunpack.c.h.b16 %v6947
        %v7274 = vunpack.c.l.b16 %v6948
        %v7275 = vunpack.c.h.b16 %v6948
        %v7276 = vunpack.c.l.b16 %v6949
        %v7277 = vunpack.c.h.b16 %v6949
        %v7278 = vunpack.c.l.b16 %v6950
        %v7279 = vunpack.c.h.b16 %v6950
        %v7280 = vunpack.c.l.b16 %v6951
        %v7281 = vunpack.c.h.b16 %v6951
        %v7282 = vpack.c.b16 %v7220, %v7218
        %v7283 = vpack.c.b16 %v7221, %v7219
        %v7284 = vpack.c.b16 %v7224, %v7222
        %v7285 = vpack.c.b16 %v7225, %v7223
        %v7286 = vpack.c.b16 %v7228, %v7226
        %v7287 = vpack.c.b16 %v7229, %v7227
        %v7288 = vpack.c.b16 %v7232, %v7230
        %v7289 = vpack.c.b16 %v7233, %v7231
        %v7290 = vpack.c.b16 %v7236, %v7234
        %v7291 = vpack.c.b16 %v7237, %v7235
        %v7292 = vpack.c.b16 %v7240, %v7238
        %v7293 = vpack.c.b16 %v7241, %v7239
        %v7294 = vpack.c.b16 %v7244, %v7242
        %v7295 = vpack.c.b16 %v7245, %v7243
        %v7296 = vpack.c.b16 %v7248, %v7246
        %v7297 = vpack.c.b16 %v7249, %v7247
        %v7298 = vpack.c.b16 %v7252, %v7250
        %v7299 = vpack.c.b16 %v7253, %v7251
        %v7300 = vpack.c.b16 %v7256, %v7254
        %v7301 = vpack.c.b16 %v7257, %v7255
        %v7302 = vpack.c.b16 %v7260, %v7258
        %v7303 = vpack.c.b16 %v7261, %v7259
        %v7304 = vpack.c.b16 %v7264, %v7262
        %v7305 = vpack.c.b16 %v7265, %v7263
        %v7306 = vpack.c.b16 %v7268, %v7266
        %v7307 = vpack.c.b16 %v7269, %v7267
        %v7308 = vpack.c.b16 %v7272, %v7270
        %v7309 = vpack.c.b16 %v7273, %v7271
        %v7310 = vpack.c.b16 %v7276, %v7274
        %v7311 = vpack.c.b16 %v7277, %v7275
        %v7312 = vpack.c.b16 %v7280, %v7278
        %v7313 = vpack.c.b16 %v7281, %v7279
        %7346 = vmatprep.subr.bf16.mxu0 %v7283
        %7347 = vmatpush1.bf16.msra.mxu0 %v7282
        %7348 = vmatprep.subr.bf16.mxu0 %v7285
        %7349 = vmatpush1.bf16.msra.mxu0 %v7284
        %7350 = vmatprep.subr.bf16.mxu0 %v7287
        %7351 = vmatpush1.bf16.msra.mxu0 %v7286
        %7352 = vmatprep.subr.bf16.mxu0 %v7289
        %7353 = vmatpush1.bf16.msra.mxu0 %v7288
        %7354 = vmatprep.subr.bf16.mxu0 %v7291
        %7355 = vmatpush1.bf16.msra.mxu0 %v7290
        %7356 = vmatprep.subr.bf16.mxu0 %v7293
        %7357 = vmatpush1.bf16.msra.mxu0 %v7292
        %7358 = vmatprep.subr.bf16.mxu0 %v7295
        %7359 = vmatpush1.bf16.msra.mxu0 %v7294
        %7360 = vmatprep.subr.bf16.mxu0 %v7297
        %7361 = vmatpush1.bf16.msra.mxu0 %v7296
        %7362 = vmatprep.subr.bf16.mxu0 %v7299
        %7363 = vmatpush1.bf16.msra.mxu0 %v7298
        %7364 = vmatprep.subr.bf16.mxu0 %v7301
        %7365 = vmatpush1.bf16.msra.mxu0 %v7300
        %7366 = vmatprep.subr.bf16.mxu0 %v7303
        %7367 = vmatpush1.bf16.msra.mxu0 %v7302
        %7368 = vmatprep.subr.bf16.mxu0 %v7305
        %7369 = vmatpush1.bf16.msra.mxu0 %v7304
        %7370 = vmatprep.subr.bf16.mxu0 %v7307
        %7371 = vmatpush1.bf16.msra.mxu0 %v7306
        %7372 = vmatprep.subr.bf16.mxu0 %v7309
        %7373 = vmatpush1.bf16.msra.mxu0 %v7308
        %7374 = vmatprep.subr.bf16.mxu0 %v7311
        %7375 = vmatpush1.bf16.msra.mxu0 %v7310
        %7376 = vmatprep.subr.bf16.mxu0 %v7313
        %7377 = vmatpush1.bf16.msra.mxu0 %v7312
        %7378 = vmatprep.mubr.bf16.mxu0 %v6919
        %7379 = vmatmul.mubr.bf16.gmra.mrb[0].mxu0 %v6918
        %v7380 = vpop.f32.mrb[0].mxu0
        %v7381 = vadd.f32 %v7180, %v7380
        %v7382 = vpop.f32.mrb[0].mxu0
        %v7383 = vadd.f32 %v7182, %v7382
        %v7384 = vpop.f32.mrb[0].mxu0
        %v7385 = vpop.f32.mrb[0].mxu0
        %7386 = vdwg.mxu0
        %s7387 = scalar_lea.vmem %s47, 4
        %v7388 = vld [vmem:[%s7387] sm:$0x3]
        %v7390 = vsel %vm6867, %v7388, 0
        %7392 = vmatprep.subr.bf16.mxu0 %v6875
        %7393 = vmatpush1.bf16.msra.mxu0 %v6872
        %7394 = vmatprep.subr.bf16.mxu0 0
        %7395 = vmatpush1.bf16.msra.mxu0 0
        %7396 = vmatprep.subr.bf16.mxu0 0
        %7397 = vmatpush1.bf16.msra.mxu0 0
        %7398 = vmatprep.subr.bf16.mxu0 0
        %7399 = vmatpush1.bf16.msra.mxu0 0
        %7400 = vmatprep.subr.bf16.mxu0 0
        %7401 = vmatpush1.bf16.msra.mxu0 0
        %7402 = vmatprep.subr.bf16.mxu0 0
        %7403 = vmatpush1.bf16.msra.mxu0 0
        %7404 = vmatprep.subr.bf16.mxu0 0
        %7405 = vmatpush1.bf16.msra.mxu0 0
        %7406 = vmatprep.subr.bf16.mxu0 0
        %7407 = vmatpush1.bf16.msra.mxu0 0
        %7408 = vmatprep.subr.bf16.mxu0 0
        %7409 = vmatpush1.bf16.msra.mxu0 0
        %7410 = vmatprep.subr.bf16.mxu0 0
        %7411 = vmatpush1.bf16.msra.mxu0 0
        %7412 = vmatprep.subr.bf16.mxu0 0
        %7413 = vmatpush1.bf16.msra.mxu0 0
        %7414 = vmatprep.subr.bf16.mxu0 0
        %7415 = vmatpush1.bf16.msra.mxu0 0
        %7416 = vmatprep.subr.bf16.mxu0 0
        %7417 = vmatpush1.bf16.msra.mxu0 0
        %7418 = vmatprep.subr.bf16.mxu0 0
        %7419 = vmatpush1.bf16.msra.mxu0 0
        %7420 = vmatprep.subr.bf16.mxu0 0
        %7421 = vmatpush1.bf16.msra.mxu0 0
        %7422 = vmatprep.subr.bf16.mxu0 0
        %7423 = vmatpush1.bf16.msra.mxu0 0
        %7424 = vmatprep.mubr.bf16.mxu0 0
        %7425 = vmatmul.mubr.bf16.gmra.mrb[0].mxu0 %v7390
        %v7426 = vpop.f32.mrb[0].mxu0
        %v7427 = vadd.f32 0.0, %v7426
        %v7428 = vpop.f32.mrb[0].mxu0
        %v7429 = vadd.f32 0.0, %v7428
        %v7430 = vpop.f32.mrb[0].mxu0
        %v7431 = vpop.f32.mrb[0].mxu0
        %7432 = vdwg.mxu0
        %v7433 = vpack.c.bf16 %v7427, %v7427
        %v7434 = vpack.c.bf16 %v7429, %v7429
        %s7435 = scalar_lea.vmem %s49, 512
        %v7436 = vld [vmem:[%s7435] sm:$0xff]
        %v7437 = vld [vmem:[%s7435 + $0x8] sm:$0xff]
        %v7438 = vld [vmem:[%s7435 + $0x10] sm:$0xff]
        %v7439 = vld [vmem:[%s7435 + $0x18] sm:$0xff]
        %v7440 = vld [vmem:[%s7435 + $0x20] sm:$0xff]
        %v7441 = vld [vmem:[%s7435 + $0x28] sm:$0xff]
        %v7442 = vld [vmem:[%s7435 + $0x30] sm:$0xff]
        %v7443 = vld [vmem:[%s7435 + $0x38] sm:$0xff]
        %v7444 = vld [vmem:[%s7435 + $0x40] sm:$0xff]
        %v7445 = vld [vmem:[%s7435 + $0x48] sm:$0xff]
        %v7446 = vld [vmem:[%s7435 + $0x50] sm:$0xff]
        %v7447 = vld [vmem:[%s7435 + $0x58] sm:$0xff]
        %v7448 = vld [vmem:[%s7435 + $0x60] sm:$0xff]
        %v7449 = vld [vmem:[%s7435 + $0x68] sm:$0xff]
        %v7450 = vld [vmem:[%s7435 + $0x70] sm:$0xff]
        %v7451 = vld [vmem:[%s7435 + $0x78] sm:$0xff]
        %v7452 = vld [vmem:[%s7435 + $0x80] sm:$0xff]
        %v7453 = vld [vmem:[%s7435 + $0x88] sm:$0xff]
        %v7454 = vld [vmem:[%s7435 + $0x90] sm:$0xff]
        %v7455 = vld [vmem:[%s7435 + $0x98] sm:$0xff]
        %v7456 = vld [vmem:[%s7435 + $0xa0] sm:$0xff]
        %v7457 = vld [vmem:[%s7435 + $0xa8] sm:$0xff]
        %v7458 = vld [vmem:[%s7435 + $0xb0] sm:$0xff]
        %v7459 = vld [vmem:[%s7435 + $0xb8] sm:$0xff]
        %v7460 = vld [vmem:[%s7435 + $0xc0] sm:$0xff]
        %v7461 = vld [vmem:[%s7435 + $0xc8] sm:$0xff]
        %v7462 = vld [vmem:[%s7435 + $0xd0] sm:$0xff]
        %v7463 = vld [vmem:[%s7435 + $0xd8] sm:$0xff]
        %v7464 = vld [vmem:[%s7435 + $0xe0] sm:$0xff]
        %v7465 = vld [vmem:[%s7435 + $0xe8] sm:$0xff]
        %v7466 = vld [vmem:[%s7435 + $0xf0] sm:$0xff]
        %v7467 = vld [vmem:[%s7435 + $0xf8] sm:$0xff]
        %v7500 = vunpack.c.l.b16 %v7436
        %v7501 = vunpack.c.h.b16 %v7436
        %v7502 = vunpack.c.l.b16 %v7437
        %v7503 = vunpack.c.h.b16 %v7437
        %v7504 = vunpack.c.l.b16 %v7438
        %v7505 = vunpack.c.h.b16 %v7438
        %v7506 = vunpack.c.l.b16 %v7439
        %v7507 = vunpack.c.h.b16 %v7439
        %v7508 = vunpack.c.l.b16 %v7440
        %v7509 = vunpack.c.h.b16 %v7440
        %v7510 = vunpack.c.l.b16 %v7441
        %v7511 = vunpack.c.h.b16 %v7441
        %v7512 = vunpack.c.l.b16 %v7442
        %v7513 = vunpack.c.h.b16 %v7442
        %v7514 = vunpack.c.l.b16 %v7443
        %v7515 = vunpack.c.h.b16 %v7443
        %v7516 = vunpack.c.l.b16 %v7444
        %v7517 = vunpack.c.h.b16 %v7444
        %v7518 = vunpack.c.l.b16 %v7445
        %v7519 = vunpack.c.h.b16 %v7445
        %v7520 = vunpack.c.l.b16 %v7446
        %v7521 = vunpack.c.h.b16 %v7446
        %v7522 = vunpack.c.l.b16 %v7447
        %v7523 = vunpack.c.h.b16 %v7447
        %v7524 = vunpack.c.l.b16 %v7448
        %v7525 = vunpack.c.h.b16 %v7448
        %v7526 = vunpack.c.l.b16 %v7449
        %v7527 = vunpack.c.h.b16 %v7449
        %v7528 = vunpack.c.l.b16 %v7450
        %v7529 = vunpack.c.h.b16 %v7450
        %v7530 = vunpack.c.l.b16 %v7451
        %v7531 = vunpack.c.h.b16 %v7451
        %v7532 = vunpack.c.l.b16 %v7452
        %v7533 = vunpack.c.h.b16 %v7452
        %v7534 = vunpack.c.l.b16 %v7453
        %v7535 = vunpack.c.h.b16 %v7453
        %v7536 = vunpack.c.l.b16 %v7454
        %v7537 = vunpack.c.h.b16 %v7454
        %v7538 = vunpack.c.l.b16 %v7455
        %v7539 = vunpack.c.h.b16 %v7455
        %v7540 = vunpack.c.l.b16 %v7456
        %v7541 = vunpack.c.h.b16 %v7456
        %v7542 = vunpack.c.l.b16 %v7457
        %v7543 = vunpack.c.h.b16 %v7457
        %v7544 = vunpack.c.l.b16 %v7458
        %v7545 = vunpack.c.h.b16 %v7458
        %v7546 = vunpack.c.l.b16 %v7459
        %v7547 = vunpack.c.h.b16 %v7459
        %v7548 = vunpack.c.l.b16 %v7460
        %v7549 = vunpack.c.h.b16 %v7460
        %v7550 = vunpack.c.l.b16 %v7461
        %v7551 = vunpack.c.h.b16 %v7461
        %v7552 = vunpack.c.l.b16 %v7462
        %v7553 = vunpack.c.h.b16 %v7462
        %v7554 = vunpack.c.l.b16 %v7463
        %v7555 = vunpack.c.h.b16 %v7463
        %v7556 = vunpack.c.l.b16 %v7464
        %v7557 = vunpack.c.h.b16 %v7464
        %v7558 = vunpack.c.l.b16 %v7465
        %v7559 = vunpack.c.h.b16 %v7465
        %v7560 = vunpack.c.l.b16 %v7466
        %v7561 = vunpack.c.h.b16 %v7466
        %v7562 = vunpack.c.l.b16 %v7467
        %v7563 = vunpack.c.h.b16 %v7467
        %v7564 = vpack.c.b16 %v7502, %v7500
        %v7565 = vpack.c.b16 %v7503, %v7501
        %v7566 = vpack.c.b16 %v7506, %v7504
        %v7567 = vpack.c.b16 %v7507, %v7505
        %v7568 = vpack.c.b16 %v7510, %v7508
        %v7569 = vpack.c.b16 %v7511, %v7509
        %v7570 = vpack.c.b16 %v7514, %v7512
        %v7571 = vpack.c.b16 %v7515, %v7513
        %v7572 = vpack.c.b16 %v7518, %v7516
        %v7573 = vpack.c.b16 %v7519, %v7517
        %v7574 = vpack.c.b16 %v7522, %v7520
        %v7575 = vpack.c.b16 %v7523, %v7521
        %v7576 = vpack.c.b16 %v7526, %v7524
        %v7577 = vpack.c.b16 %v7527, %v7525
        %v7578 = vpack.c.b16 %v7530, %v7528
        %v7579 = vpack.c.b16 %v7531, %v7529
        %v7580 = vpack.c.b16 %v7534, %v7532
        %v7581 = vpack.c.b16 %v7535, %v7533
        %v7582 = vpack.c.b16 %v7538, %v7536
        %v7583 = vpack.c.b16 %v7539, %v7537
        %v7584 = vpack.c.b16 %v7542, %v7540
        %v7585 = vpack.c.b16 %v7543, %v7541
        %v7586 = vpack.c.b16 %v7546, %v7544
        %v7587 = vpack.c.b16 %v7547, %v7545
        %v7588 = vpack.c.b16 %v7550, %v7548
        %v7589 = vpack.c.b16 %v7551, %v7549
        %v7590 = vpack.c.b16 %v7554, %v7552
        %v7591 = vpack.c.b16 %v7555, %v7553
        %v7592 = vpack.c.b16 %v7558, %v7556
        %v7593 = vpack.c.b16 %v7559, %v7557
        %v7594 = vpack.c.b16 %v7562, %v7560
        %v7595 = vpack.c.b16 %v7563, %v7561
        %7628 = vmatprep.subr.bf16.mxu0 %v7565
        %7629 = vmatpush1.bf16.msra.mxu0 %v7564
        %7630 = vmatprep.subr.bf16.mxu0 %v7567
        %7631 = vmatpush1.bf16.msra.mxu0 %v7566
        %7632 = vmatprep.subr.bf16.mxu0 %v7569
        %7633 = vmatpush1.bf16.msra.mxu0 %v7568
        %7634 = vmatprep.subr.bf16.mxu0 %v7571
        %7635 = vmatpush1.bf16.msra.mxu0 %v7570
        %7636 = vmatprep.subr.bf16.mxu0 %v7573
        %7637 = vmatpush1.bf16.msra.mxu0 %v7572
        %7638 = vmatprep.subr.bf16.mxu0 %v7575
        %7639 = vmatpush1.bf16.msra.mxu0 %v7574
        %7640 = vmatprep.subr.bf16.mxu0 %v7577
        %7641 = vmatpush1.bf16.msra.mxu0 %v7576
        %7642 = vmatprep.subr.bf16.mxu0 %v7579
        %7643 = vmatpush1.bf16.msra.mxu0 %v7578
        %7644 = vmatprep.subr.bf16.mxu0 %v7581
        %7645 = vmatpush1.bf16.msra.mxu0 %v7580
        %7646 = vmatprep.subr.bf16.mxu0 %v7583
        %7647 = vmatpush1.bf16.msra.mxu0 %v7582
        %7648 = vmatprep.subr.bf16.mxu0 %v7585
        %7649 = vmatpush1.bf16.msra.mxu0 %v7584
        %7650 = vmatprep.subr.bf16.mxu0 %v7587
        %7651 = vmatpush1.bf16.msra.mxu0 %v7586
        %7652 = vmatprep.subr.bf16.mxu0 %v7589
        %7653 = vmatpush1.bf16.msra.mxu0 %v7588
        %7654 = vmatprep.subr.bf16.mxu0 %v7591
        %7655 = vmatpush1.bf16.msra.mxu0 %v7590
        %7656 = vmatprep.subr.bf16.mxu0 %v7593
        %7657 = vmatpush1.bf16.msra.mxu0 %v7592
        %7658 = vmatprep.subr.bf16.mxu0 %v7595
        %7659 = vmatpush1.bf16.msra.mxu0 %v7594
        %7660 = vmatprep.mubr.bf16.mxu0 %v7434
        %7661 = vmatmul.mubr.bf16.gmra.mrb[0].mxu0 %v7433
        %v7662 = vpop.f32.mrb[0].mxu0
        %v7663 = vadd.f32 0.0, %v7662
        %v7664 = vpop.f32.mrb[0].mxu0
        %v7665 = vadd.f32 0.0, %v7664
        %v7666 = vpop.f32.mrb[0].mxu0
        %v7667 = vpop.f32.mrb[0].mxu0
        %7668 = vdwg.mxu0
        %v7669 = vadd.f32 %v7381, %v7663
        %v7670 = vadd.f32 %v7383, %v7665
        %v7671 = vld [vmem:[%s51] sm:$0x3]
        %v7673 = vlaneseq
        %v7674 = vshrl.u32 %v7673, 7
        %v7675 = vsub.s32 0, %v7674
        %v7676 = vrot.slane %v7671, %v7675
        %v7677 = vlaneseq
        %v7678 = vshrl.u32 %v7677, 7
        %v7679 = vsub.s32 1, %v7678
        %v7680 = vrot.slane %v7671, %v7679
        %v7683 = vadd.f32 %v7669, %v7676
        %v7684 = vadd.f32 %v7670, %v7680
        %v7685 = vmax.f32 %v7683, 0.0
        %v7686 = vmax.f32 %v7684, 0.0
        %v7687 = vpack.c.bf16 %v7685, %v7685
        %v7688 = vpack.c.bf16 %v7686, %v7686
        %s7689 = scalar_lea.vmem %s53, 1
        %v7690 = vld [vmem:[%s7689] sm:$0x1]
        %v7692 = vsel %vm6867, %v7690, 0
        %v7695 = vsel %vm1091, %v7687, 0
        %v7698 = vsel %vm1091, %v7688, 0
        %7700 = vmatprep.subr.bf16.mxu0 %v7698
        %7701 = vmatpush1.bf16.msra.mxu0 %v7695
        %7702 = vmatprep.subr.bf16.mxu0 0
        %7703 = vmatpush1.bf16.msra.mxu0 0
        %7704 = vmatprep.subr.bf16.mxu0 0
        %7705 = vmatpush1.bf16.msra.mxu0 0
        %7706 = vmatprep.subr.bf16.mxu0 0
        %7707 = vmatpush1.bf16.msra.mxu0 0
        %7708 = vmatprep.subr.bf16.mxu0 0
        %7709 = vmatpush1.bf16.msra.mxu0 0
        %7710 = vmatprep.subr.bf16.mxu0 0
        %7711 = vmatpush1.bf16.msra.mxu0 0
        %7712 = vmatprep.subr.bf16.mxu0 0
        %7713 = vmatpush1.bf16.msra.mxu0 0
        %7714 = vmatprep.subr.bf16.mxu0 0
        %7715 = vmatpush1.bf16.msra.mxu0 0
        %7716 = vmatprep.subr.bf16.mxu0 0
        %7717 = vmatpush1.bf16.msra.mxu0 0
        %7718 = vmatprep.subr.bf16.mxu0 0
        %7719 = vmatpush1.bf16.msra.mxu0 0
        %7720 = vmatprep.subr.bf16.mxu0 0
        %7721 = vmatpush1.bf16.msra.mxu0 0
        %7722 = vmatprep.subr.bf16.mxu0 0
        %7723 = vmatpush1.bf16.msra.mxu0 0
        %7724 = vmatprep.subr.bf16.mxu0 0
        %7725 = vmatpush1.bf16.msra.mxu0 0
        %7726 = vmatprep.subr.bf16.mxu0 0
        %7727 = vmatpush1.bf16.msra.mxu0 0
        %7728 = vmatprep.subr.bf16.mxu0 0
        %7729 = vmatpush1.bf16.msra.mxu0 0
        %7730 = vmatprep.subr.bf16.mxu0 0
        %7731 = vmatpush1.bf16.msra.mxu0 0
        %7732 = vmatprep.mubr.bf16.mxu0 0
        %7733 = vmatmul.mubr.bf16.gmra.mrb[0].mxu0 %v7692
        %v7734 = vpop.f32.mrb[0].mxu0
        %v7735 = vadd.f32 0.0, %v7734
        %v7736 = vpop.f32.mrb[0].mxu0
        %v7737 = vadd.f32 0.0, %v7736
        %v7738 = vpop.f32.mrb[0].mxu0
        %v7739 = vpop.f32.mrb[0].mxu0
        %7740 = vdwg.mxu0
        %v7741 = vpack.c.bf16 %v7735, %v7735
        %v7742 = vpack.c.bf16 %v7737, %v7737
        %s7743 = scalar_lea.vmem %s55, 256
        %v7744 = vld [vmem:[%s7743] sm:$0xff]
        %v7745 = vld [vmem:[%s7743 + $0x8] sm:$0xff]
        %v7746 = vld [vmem:[%s7743 + $0x10] sm:$0xff]
        %v7747 = vld [vmem:[%s7743 + $0x18] sm:$0xff]
        %v7748 = vld [vmem:[%s7743 + $0x20] sm:$0xff]
        %v7749 = vld [vmem:[%s7743 + $0x28] sm:$0xff]
        %v7750 = vld [vmem:[%s7743 + $0x30] sm:$0xff]
        %v7751 = vld [vmem:[%s7743 + $0x38] sm:$0xff]
        %v7752 = vld [vmem:[%s7743 + $0x40] sm:$0xff]
        %v7753 = vld [vmem:[%s7743 + $0x48] sm:$0xff]
        %v7754 = vld [vmem:[%s7743 + $0x50] sm:$0xff]
        %v7755 = vld [vmem:[%s7743 + $0x58] sm:$0xff]
        %v7756 = vld [vmem:[%s7743 + $0x60] sm:$0xff]
        %v7757 = vld [vmem:[%s7743 + $0x68] sm:$0xff]
        %v7758 = vld [vmem:[%s7743 + $0x70] sm:$0xff]
        %v7759 = vld [vmem:[%s7743 + $0x78] sm:$0xff]
        %v7760 = vld [vmem:[%s7743 + $0x80] sm:$0xff]
        %v7761 = vld [vmem:[%s7743 + $0x88] sm:$0xff]
        %v7762 = vld [vmem:[%s7743 + $0x90] sm:$0xff]
        %v7763 = vld [vmem:[%s7743 + $0x98] sm:$0xff]
        %v7764 = vld [vmem:[%s7743 + $0xa0] sm:$0xff]
        %v7765 = vld [vmem:[%s7743 + $0xa8] sm:$0xff]
        %v7766 = vld [vmem:[%s7743 + $0xb0] sm:$0xff]
        %v7767 = vld [vmem:[%s7743 + $0xb8] sm:$0xff]
        %v7768 = vld [vmem:[%s7743 + $0xc0] sm:$0xff]
        %v7769 = vld [vmem:[%s7743 + $0xc8] sm:$0xff]
        %v7770 = vld [vmem:[%s7743 + $0xd0] sm:$0xff]
        %v7771 = vld [vmem:[%s7743 + $0xd8] sm:$0xff]
        %v7772 = vld [vmem:[%s7743 + $0xe0] sm:$0xff]
        %v7773 = vld [vmem:[%s7743 + $0xe8] sm:$0xff]
        %v7774 = vld [vmem:[%s7743 + $0xf0] sm:$0xff]
        %v7775 = vld [vmem:[%s7743 + $0xf8] sm:$0xff]
        %s7776 = scalar_lea.vmem %s53, 2
        %v7777 = vld [vmem:[%s7776] sm:$0x1]
        %v7779 = vsel %vm6867, %v7777, 0
        %7781 = vmatprep.subr.bf16.mxu0 %v7698
        %7782 = vmatpush1.bf16.msra.mxu0 %v7695
        %7783 = vmatprep.subr.bf16.mxu0 0
        %7784 = vmatpush1.bf16.msra.mxu0 0
        %7785 = vmatprep.subr.bf16.mxu0 0
        %7786 = vmatpush1.bf16.msra.mxu0 0
        %7787 = vmatprep.subr.bf16.mxu0 0
        %7788 = vmatpush1.bf16.msra.mxu0 0
        %7789 = vmatprep.subr.bf16.mxu0 0
        %7790 = vmatpush1.bf16.msra.mxu0 0
        %7791 = vmatprep.subr.bf16.mxu0 0
        %7792 = vmatpush1.bf16.msra.mxu0 0
        %7793 = vmatprep.subr.bf16.mxu0 0
        %7794 = vmatpush1.bf16.msra.mxu0 0
        %7795 = vmatprep.subr.bf16.mxu0 0
        %7796 = vmatpush1.bf16.msra.mxu0 0
        %7797 = vmatprep.subr.bf16.mxu0 0
        %7798 = vmatpush1.bf16.msra.mxu0 0
        %7799 = vmatprep.subr.bf16.mxu0 0
        %7800 = vmatpush1.bf16.msra.mxu0 0
        %7801 = vmatprep.subr.bf16.mxu0 0
        %7802 = vmatpush1.bf16.msra.mxu0 0
        %7803 = vmatprep.subr.bf16.mxu0 0
        %7804 = vmatpush1.bf16.msra.mxu0 0
        %7805 = vmatprep.subr.bf16.mxu0 0
        %7806 = vmatpush1.bf16.msra.mxu0 0
        %7807 = vmatprep.subr.bf16.mxu0 0
        %7808 = vmatpush1.bf16.msra.mxu0 0
        %7809 = vmatprep.subr.bf16.mxu0 0
        %7810 = vmatpush1.bf16.msra.mxu0 0
        %7811 = vmatprep.subr.bf16.mxu0 0
        %7812 = vmatpush1.bf16.msra.mxu0 0
        %7813 = vmatprep.mubr.bf16.mxu0 0
        %7814 = vmatmul.mubr.bf16.gmra.mrb[0].mxu0 %v7779
        %v7815 = vpop.f32.mrb[0].mxu0
        %v7816 = vadd.f32 0.0, %v7815
        %v7817 = vpop.f32.mrb[0].mxu0
        %v7818 = vadd.f32 0.0, %v7817
        %v7819 = vpop.f32.mrb[0].mxu0
        %v7820 = vpop.f32.mrb[0].mxu0
        %7821 = vdwg.mxu0
        %v7822 = vpack.c.bf16 %v7816, %v7816
        %v7823 = vpack.c.bf16 %v7818, %v7818
        %s7824 = scalar_lea.vmem %s55, 512
        %v7825 = vld [vmem:[%s7824] sm:$0xff]
        %v7826 = vld [vmem:[%s7824 + $0x8] sm:$0xff]
        %v7827 = vld [vmem:[%s7824 + $0x10] sm:$0xff]
        %v7828 = vld [vmem:[%s7824 + $0x18] sm:$0xff]
        %v7829 = vld [vmem:[%s7824 + $0x20] sm:$0xff]
        %v7830 = vld [vmem:[%s7824 + $0x28] sm:$0xff]
        %v7831 = vld [vmem:[%s7824 + $0x30] sm:$0xff]
        %v7832 = vld [vmem:[%s7824 + $0x38] sm:$0xff]
        %v7833 = vld [vmem:[%s7824 + $0x40] sm:$0xff]
        %v7834 = vld [vmem:[%s7824 + $0x48] sm:$0xff]
        %v7835 = vld [vmem:[%s7824 + $0x50] sm:$0xff]
        %v7836 = vld [vmem:[%s7824 + $0x58] sm:$0xff]
        %v7837 = vld [vmem:[%s7824 + $0x60] sm:$0xff]
        %v7838 = vld [vmem:[%s7824 + $0x68] sm:$0xff]
        %v7839 = vld [vmem:[%s7824 + $0x70] sm:$0xff]
        %v7840 = vld [vmem:[%s7824 + $0x78] sm:$0xff]
        %v7841 = vld [vmem:[%s7824 + $0x80] sm:$0xff]
        %v7842 = vld [vmem:[%s7824 + $0x88] sm:$0xff]
        %v7843 = vld [vmem:[%s7824 + $0x90] sm:$0xff]
        %v7844 = vld [vmem:[%s7824 + $0x98] sm:$0xff]
        %v7845 = vld [vmem:[%s7824 + $0xa0] sm:$0xff]
        %v7846 = vld [vmem:[%s7824 + $0xa8] sm:$0xff]
        %v7847 = vld [vmem:[%s7824 + $0xb0] sm:$0xff]
        %v7848 = vld [vmem:[%s7824 + $0xb8] sm:$0xff]
        %v7849 = vld [vmem:[%s7824 + $0xc0] sm:$0xff]
        %v7850 = vld [vmem:[%s7824 + $0xc8] sm:$0xff]
        %v7851 = vld [vmem:[%s7824 + $0xd0] sm:$0xff]
        %v7852 = vld [vmem:[%s7824 + $0xd8] sm:$0xff]
        %v7853 = vld [vmem:[%s7824 + $0xe0] sm:$0xff]
        %v7854 = vld [vmem:[%s7824 + $0xe8] sm:$0xff]
        %v7855 = vld [vmem:[%s7824 + $0xf0] sm:$0xff]
        %v7856 = vld [vmem:[%s7824 + $0xf8] sm:$0xff]
        %v7889 = vunpack.c.l.b16 %v7825
        %v7890 = vunpack.c.h.b16 %v7825
        %v7891 = vunpack.c.l.b16 %v7826
        %v7892 = vunpack.c.h.b16 %v7826
        %v7893 = vunpack.c.l.b16 %v7827
        %v7894 = vunpack.c.h.b16 %v7827
        %v7895 = vunpack.c.l.b16 %v7828
        %v7896 = vunpack.c.h.b16 %v7828
        %v7897 = vunpack.c.l.b16 %v7829
        %v7898 = vunpack.c.h.b16 %v7829
        %v7899 = vunpack.c.l.b16 %v7830
        %v7900 = vunpack.c.h.b16 %v7830
        %v7901 = vunpack.c.l.b16 %v7831
        %v7902 = vunpack.c.h.b16 %v7831
        %v7903 = vunpack.c.l.b16 %v7832
        %v7904 = vunpack.c.h.b16 %v7832
        %v7905 = vunpack.c.l.b16 %v7833
        %v7906 = vunpack.c.h.b16 %v7833
        %v7907 = vunpack.c.l.b16 %v7834
        %v7908 = vunpack.c.h.b16 %v7834
        %v7909 = vunpack.c.l.b16 %v7835
        %v7910 = vunpack.c.h.b16 %v7835
        %v7911 = vunpack.c.l.b16 %v7836
        %v7912 = vunpack.c.h.b16 %v7836
        %v7913 = vunpack.c.l.b16 %v7837
        %v7914 = vunpack.c.h.b16 %v7837
        %v7915 = vunpack.c.l.b16 %v7838
        %v7916 = vunpack.c.h.b16 %v7838
        %v7917 = vunpack.c.l.b16 %v7839
        %v7918 = vunpack.c.h.b16 %v7839
        %v7919 = vunpack.c.l.b16 %v7840
        %v7920 = vunpack.c.h.b16 %v7840
        %v7921 = vunpack.c.l.b16 %v7841
        %v7922 = vunpack.c.h.b16 %v7841
        %v7923 = vunpack.c.l.b16 %v7842
        %v7924 = vunpack.c.h.b16 %v7842
        %v7925 = vunpack.c.l.b16 %v7843
        %v7926 = vunpack.c.h.b16 %v7843
        %v7927 = vunpack.c.l.b16 %v7844
        %v7928 = vunpack.c.h.b16 %v7844
        %v7929 = vunpack.c.l.b16 %v7845
        %v7930 = vunpack.c.h.b16 %v7845
        %v7931 = vunpack.c.l.b16 %v7846
        %v7932 = vunpack.c.h.b16 %v7846
        %v7933 = vunpack.c.l.b16 %v7847
        %v7934 = vunpack.c.h.b16 %v7847
        %v7935 = vunpack.c.l.b16 %v7848
        %v7936 = vunpack.c.h.b16 %v7848
        %v7937 = vunpack.c.l.b16 %v7849
        %v7938 = vunpack.c.h.b16 %v7849
        %v7939 = vunpack.c.l.b16 %v7850
        %v7940 = vunpack.c.h.b16 %v7850
        %v7941 = vunpack.c.l.b16 %v7851
        %v7942 = vunpack.c.h.b16 %v7851
        %v7943 = vunpack.c.l.b16 %v7852
        %v7944 = vunpack.c.h.b16 %v7852
        %v7945 = vunpack.c.l.b16 %v7853
        %v7946 = vunpack.c.h.b16 %v7853
        %v7947 = vunpack.c.l.b16 %v7854
        %v7948 = vunpack.c.h.b16 %v7854
        %v7949 = vunpack.c.l.b16 %v7855
        %v7950 = vunpack.c.h.b16 %v7855
        %v7951 = vunpack.c.l.b16 %v7856
        %v7952 = vunpack.c.h.b16 %v7856
        %v7953 = vpack.c.b16 %v7891, %v7889
        %v7954 = vpack.c.b16 %v7892, %v7890
        %v7955 = vpack.c.b16 %v7895, %v7893
        %v7956 = vpack.c.b16 %v7896, %v7894
        %v7957 = vpack.c.b16 %v7899, %v7897
        %v7958 = vpack.c.b16 %v7900, %v7898
        %v7959 = vpack.c.b16 %v7903, %v7901
        %v7960 = vpack.c.b16 %v7904, %v7902
        %v7961 = vpack.c.b16 %v7907, %v7905
        %v7962 = vpack.c.b16 %v7908, %v7906
        %v7963 = vpack.c.b16 %v7911, %v7909
        %v7964 = vpack.c.b16 %v7912, %v7910
        %v7965 = vpack.c.b16 %v7915, %v7913
        %v7966 = vpack.c.b16 %v7916, %v7914
        %v7967 = vpack.c.b16 %v7919, %v7917
        %v7968 = vpack.c.b16 %v7920, %v7918
        %v7969 = vpack.c.b16 %v7923, %v7921
        %v7970 = vpack.c.b16 %v7924, %v7922
        %v7971 = vpack.c.b16 %v7927, %v7925
        %v7972 = vpack.c.b16 %v7928, %v7926
        %v7973 = vpack.c.b16 %v7931, %v7929
        %v7974 = vpack.c.b16 %v7932, %v7930
        %v7975 = vpack.c.b16 %v7935, %v7933
        %v7976 = vpack.c.b16 %v7936, %v7934
        %v7977 = vpack.c.b16 %v7939, %v7937
        %v7978 = vpack.c.b16 %v7940, %v7938
        %v7979 = vpack.c.b16 %v7943, %v7941
        %v7980 = vpack.c.b16 %v7944, %v7942
        %v7981 = vpack.c.b16 %v7947, %v7945
        %v7982 = vpack.c.b16 %v7948, %v7946
        %v7983 = vpack.c.b16 %v7951, %v7949
        %v7984 = vpack.c.b16 %v7952, %v7950
        %8017 = vmatprep.subr.bf16.mxu0 %v7954
        %8018 = vmatpush1.bf16.msra.mxu0 %v7953
        %8019 = vmatprep.subr.bf16.mxu0 %v7956
        %8020 = vmatpush1.bf16.msra.mxu0 %v7955
        %8021 = vmatprep.subr.bf16.mxu0 %v7958
        %8022 = vmatpush1.bf16.msra.mxu0 %v7957
        %8023 = vmatprep.subr.bf16.mxu0 %v7960
        %8024 = vmatpush1.bf16.msra.mxu0 %v7959
        %8025 = vmatprep.subr.bf16.mxu0 %v7962
        %8026 = vmatpush1.bf16.msra.mxu0 %v7961
        %8027 = vmatprep.subr.bf16.mxu0 %v7964
        %8028 = vmatpush1.bf16.msra.mxu0 %v7963
        %8029 = vmatprep.subr.bf16.mxu0 %v7966
        %8030 = vmatpush1.bf16.msra.mxu0 %v7965
        %8031 = vmatprep.subr.bf16.mxu0 %v7968
        %8032 = vmatpush1.bf16.msra.mxu0 %v7967
        %8033 = vmatprep.subr.bf16.mxu0 %v7970
        %8034 = vmatpush1.bf16.msra.mxu0 %v7969
        %8035 = vmatprep.subr.bf16.mxu0 %v7972
        %8036 = vmatpush1.bf16.msra.mxu0 %v7971
        %8037 = vmatprep.subr.bf16.mxu0 %v7974
        %8038 = vmatpush1.bf16.msra.mxu0 %v7973
        %8039 = vmatprep.subr.bf16.mxu0 %v7976
        %8040 = vmatpush1.bf16.msra.mxu0 %v7975
        %8041 = vmatprep.subr.bf16.mxu0 %v7978
        %8042 = vmatpush1.bf16.msra.mxu0 %v7977
        %8043 = vmatprep.subr.bf16.mxu0 %v7980
        %8044 = vmatpush1.bf16.msra.mxu0 %v7979
        %8045 = vmatprep.subr.bf16.mxu0 %v7982
        %8046 = vmatpush1.bf16.msra.mxu0 %v7981
        %8047 = vmatprep.subr.bf16.mxu0 %v7984
        %8048 = vmatpush1.bf16.msra.mxu0 %v7983
        %8049 = vmatprep.mubr.bf16.mxu0 %v7823
        %8050 = vmatmul.mubr.bf16.gmra.mrb[0].mxu0 %v7822
        %v8051 = vpop.f32.mrb[0].mxu0
        %v8052 = vadd.f32 0.0, %v8051
        %v8053 = vpop.f32.mrb[0].mxu0
        %v8054 = vadd.f32 0.0, %v8053
        %v8055 = vpop.f32.mrb[0].mxu0
        %v8056 = vpop.f32.mrb[0].mxu0
        %8057 = vdwg.mxu0
        %v8090 = vunpack.c.l.b16 %v7744
        %v8091 = vunpack.c.h.b16 %v7744
        %v8092 = vunpack.c.l.b16 %v7745
        %v8093 = vunpack.c.h.b16 %v7745
        %v8094 = vunpack.c.l.b16 %v7746
        %v8095 = vunpack.c.h.b16 %v7746
        %v8096 = vunpack.c.l.b16 %v7747
        %v8097 = vunpack.c.h.b16 %v7747
        %v8098 = vunpack.c.l.b16 %v7748
        %v8099 = vunpack.c.h.b16 %v7748
        %v8100 = vunpack.c.l.b16 %v7749
        %v8101 = vunpack.c.h.b16 %v7749
        %v8102 = vunpack.c.l.b16 %v7750
        %v8103 = vunpack.c.h.b16 %v7750
        %v8104 = vunpack.c.l.b16 %v7751
        %v8105 = vunpack.c.h.b16 %v7751
        %v8106 = vunpack.c.l.b16 %v7752
        %v8107 = vunpack.c.h.b16 %v7752
        %v8108 = vunpack.c.l.b16 %v7753
        %v8109 = vunpack.c.h.b16 %v7753
        %v8110 = vunpack.c.l.b16 %v7754
        %v8111 = vunpack.c.h.b16 %v7754
        %v8112 = vunpack.c.l.b16 %v7755
        %v8113 = vunpack.c.h.b16 %v7755
        %v8114 = vunpack.c.l.b16 %v7756
        %v8115 = vunpack.c.h.b16 %v7756
        %v8116 = vunpack.c.l.b16 %v7757
        %v8117 = vunpack.c.h.b16 %v7757
        %v8118 = vunpack.c.l.b16 %v7758
        %v8119 = vunpack.c.h.b16 %v7758
        %v8120 = vunpack.c.l.b16 %v7759
        %v8121 = vunpack.c.h.b16 %v7759
        %v8122 = vunpack.c.l.b16 %v7760
        %v8123 = vunpack.c.h.b16 %v7760
        %v8124 = vunpack.c.l.b16 %v7761
        %v8125 = vunpack.c.h.b16 %v7761
        %v8126 = vunpack.c.l.b16 %v7762
        %v8127 = vunpack.c.h.b16 %v7762
        %v8128 = vunpack.c.l.b16 %v7763
        %v8129 = vunpack.c.h.b16 %v7763
        %v8130 = vunpack.c.l.b16 %v7764
        %v8131 = vunpack.c.h.b16 %v7764
        %v8132 = vunpack.c.l.b16 %v7765
        %v8133 = vunpack.c.h.b16 %v7765
        %v8134 = vunpack.c.l.b16 %v7766
        %v8135 = vunpack.c.h.b16 %v7766
        %v8136 = vunpack.c.l.b16 %v7767
        %v8137 = vunpack.c.h.b16 %v7767
        %v8138 = vunpack.c.l.b16 %v7768
        %v8139 = vunpack.c.h.b16 %v7768
        %v8140 = vunpack.c.l.b16 %v7769
        %v8141 = vunpack.c.h.b16 %v7769
        %v8142 = vunpack.c.l.b16 %v7770
        %v8143 = vunpack.c.h.b16 %v7770
        %v8144 = vunpack.c.l.b16 %v7771
        %v8145 = vunpack.c.h.b16 %v7771
        %v8146 = vunpack.c.l.b16 %v7772
        %v8147 = vunpack.c.h.b16 %v7772
        %v8148 = vunpack.c.l.b16 %v7773
        %v8149 = vunpack.c.h.b16 %v7773
        %v8150 = vunpack.c.l.b16 %v7774
        %v8151 = vunpack.c.h.b16 %v7774
        %v8152 = vunpack.c.l.b16 %v7775
        %v8153 = vunpack.c.h.b16 %v7775
        %v8154 = vpack.c.b16 %v8092, %v8090
        %v8155 = vpack.c.b16 %v8093, %v8091
        %v8156 = vpack.c.b16 %v8096, %v8094
        %v8157 = vpack.c.b16 %v8097, %v8095
        %v8158 = vpack.c.b16 %v8100, %v8098
        %v8159 = vpack.c.b16 %v8101, %v8099
        %v8160 = vpack.c.b16 %v8104, %v8102
        %v8161 = vpack.c.b16 %v8105, %v8103
        %v8162 = vpack.c.b16 %v8108, %v8106
        %v8163 = vpack.c.b16 %v8109, %v8107
        %v8164 = vpack.c.b16 %v8112, %v8110
        %v8165 = vpack.c.b16 %v8113, %v8111
        %v8166 = vpack.c.b16 %v8116, %v8114
        %v8167 = vpack.c.b16 %v8117, %v8115
        %v8168 = vpack.c.b16 %v8120, %v8118
        %v8169 = vpack.c.b16 %v8121, %v8119
        %v8170 = vpack.c.b16 %v8124, %v8122
        %v8171 = vpack.c.b16 %v8125, %v8123
        %v8172 = vpack.c.b16 %v8128, %v8126
        %v8173 = vpack.c.b16 %v8129, %v8127
        %v8174 = vpack.c.b16 %v8132, %v8130
        %v8175 = vpack.c.b16 %v8133, %v8131
        %v8176 = vpack.c.b16 %v8136, %v8134
        %v8177 = vpack.c.b16 %v8137, %v8135
        %v8178 = vpack.c.b16 %v8140, %v8138
        %v8179 = vpack.c.b16 %v8141, %v8139
        %v8180 = vpack.c.b16 %v8144, %v8142
        %v8181 = vpack.c.b16 %v8145, %v8143
        %v8182 = vpack.c.b16 %v8148, %v8146
        %v8183 = vpack.c.b16 %v8149, %v8147
        %v8184 = vpack.c.b16 %v8152, %v8150
        %v8185 = vpack.c.b16 %v8153, %v8151
        %8218 = vmatprep.subr.bf16.mxu0 %v8155
        %8219 = vmatpush1.bf16.msra.mxu0 %v8154
        %8220 = vmatprep.subr.bf16.mxu0 %v8157
        %8221 = vmatpush1.bf16.msra.mxu0 %v8156
        %8222 = vmatprep.subr.bf16.mxu0 %v8159
        %8223 = vmatpush1.bf16.msra.mxu0 %v8158
        %8224 = vmatprep.subr.bf16.mxu0 %v8161
        %8225 = vmatpush1.bf16.msra.mxu0 %v8160
        %8226 = vmatprep.subr.bf16.mxu0 %v8163
        %8227 = vmatpush1.bf16.msra.mxu0 %v8162
        %8228 = vmatprep.subr.bf16.mxu0 %v8165
        %8229 = vmatpush1.bf16.msra.mxu0 %v8164
        %8230 = vmatprep.subr.bf16.mxu0 %v8167
        %8231 = vmatpush1.bf16.msra.mxu0 %v8166
        %8232 = vmatprep.subr.bf16.mxu0 %v8169
        %8233 = vmatpush1.bf16.msra.mxu0 %v8168
        %8234 = vmatprep.subr.bf16.mxu0 %v8171
        %8235 = vmatpush1.bf16.msra.mxu0 %v8170
        %8236 = vmatprep.subr.bf16.mxu0 %v8173
        %8237 = vmatpush1.bf16.msra.mxu0 %v8172
        %8238 = vmatprep.subr.bf16.mxu0 %v8175
        %8239 = vmatpush1.bf16.msra.mxu0 %v8174
        %8240 = vmatprep.subr.bf16.mxu0 %v8177
        %8241 = vmatpush1.bf16.msra.mxu0 %v8176
        %8242 = vmatprep.subr.bf16.mxu0 %v8179
        %8243 = vmatpush1.bf16.msra.mxu0 %v8178
        %8244 = vmatprep.subr.bf16.mxu0 %v8181
        %8245 = vmatpush1.bf16.msra.mxu0 %v8180
        %8246 = vmatprep.subr.bf16.mxu0 %v8183
        %8247 = vmatpush1.bf16.msra.mxu0 %v8182
        %8248 = vmatprep.subr.bf16.mxu0 %v8185
        %8249 = vmatpush1.bf16.msra.mxu0 %v8184
        %8250 = vmatprep.mubr.bf16.mxu0 %v7742
        %8251 = vmatmul.mubr.bf16.gmra.mrb[0].mxu0 %v7741
        %v8252 = vpop.f32.mrb[0].mxu0
        %v8253 = vadd.f32 %v8052, %v8252
        %v8254 = vpop.f32.mrb[0].mxu0
        %v8255 = vadd.f32 %v8054, %v8254
        %v8256 = vpop.f32.mrb[0].mxu0
        %v8257 = vpop.f32.mrb[0].mxu0
        %8258 = vdwg.mxu0
        %v8259 = vld [vmem:[%s57] sm:$0x3]
        %v8261 = vlaneseq
        %v8262 = vshrl.u32 %v8261, 7
        %v8263 = vsub.s32 0, %v8262
        %v8264 = vrot.slane %v8259, %v8263
        %v8265 = vlaneseq
        %v8266 = vshrl.u32 %v8265, 7
        %v8267 = vsub.s32 1, %v8266
        %v8268 = vrot.slane %v8259, %v8267
        %v8271 = vadd.f32 %v8253, %v8264
        %v8272 = vadd.f32 %v8255, %v8268
        %v8273 = vmax.f32 %v8271, 0.0
        %v8274 = vmax.f32 %v8272, 0.0
        %v8275 = vpack.c.bf16 %v8273, %v8273
        %v8276 = vpack.c.bf16 %v8274, %v8274
        %s8277 = scalar_lea.vmem %s61, 256
        %v8278 = vld [vmem:[%s8277] sm:$0xff]
        %v8279 = vld [vmem:[%s8277 + $0x8] sm:$0xff]
        %v8280 = vld [vmem:[%s8277 + $0x10] sm:$0xff]
        %v8281 = vld [vmem:[%s8277 + $0x18] sm:$0xff]
        %v8282 = vld [vmem:[%s8277 + $0x20] sm:$0xff]
        %v8283 = vld [vmem:[%s8277 + $0x28] sm:$0xff]
        %v8284 = vld [vmem:[%s8277 + $0x30] sm:$0xff]
        %v8285 = vld [vmem:[%s8277 + $0x38] sm:$0xff]
        %v8286 = vld [vmem:[%s8277 + $0x40] sm:$0xff]
        %v8287 = vld [vmem:[%s8277 + $0x48] sm:$0xff]
        %v8288 = vld [vmem:[%s8277 + $0x50] sm:$0xff]
        %v8289 = vld [vmem:[%s8277 + $0x58] sm:$0xff]
        %v8290 = vld [vmem:[%s8277 + $0x60] sm:$0xff]
        %v8291 = vld [vmem:[%s8277 + $0x68] sm:$0xff]
        %v8292 = vld [vmem:[%s8277 + $0x70] sm:$0xff]
        %v8293 = vld [vmem:[%s8277 + $0x78] sm:$0xff]
        %v8294 = vld [vmem:[%s8277 + $0x80] sm:$0xff]
        %v8295 = vld [vmem:[%s8277 + $0x88] sm:$0xff]
        %v8296 = vld [vmem:[%s8277 + $0x90] sm:$0xff]
        %v8297 = vld [vmem:[%s8277 + $0x98] sm:$0xff]
        %v8298 = vld [vmem:[%s8277 + $0xa0] sm:$0xff]
        %v8299 = vld [vmem:[%s8277 + $0xa8] sm:$0xff]
        %v8300 = vld [vmem:[%s8277 + $0xb0] sm:$0xff]
        %v8301 = vld [vmem:[%s8277 + $0xb8] sm:$0xff]
        %v8302 = vld [vmem:[%s8277 + $0xc0] sm:$0xff]
        %v8303 = vld [vmem:[%s8277 + $0xc8] sm:$0xff]
        %v8304 = vld [vmem:[%s8277 + $0xd0] sm:$0xff]
        %v8305 = vld [vmem:[%s8277 + $0xd8] sm:$0xff]
        %v8306 = vld [vmem:[%s8277 + $0xe0] sm:$0xff]
        %v8307 = vld [vmem:[%s8277 + $0xe8] sm:$0xff]
        %v8308 = vld [vmem:[%s8277 + $0xf0] sm:$0xff]
        %v8309 = vld [vmem:[%s8277 + $0xf8] sm:$0xff]
        %v8310 = vld [vmem:[%s63] sm:$0x3]
        %v8312 = vlaneseq
        %v8313 = vshrl.u32 %v8312, 7
        %v8314 = vsub.s32 0, %v8313
        %v8315 = vrot.slane %v8310, %v8314
        %v8316 = vlaneseq
        %v8317 = vshrl.u32 %v8316, 7
        %v8318 = vsub.s32 1, %v8317
        %v8319 = vrot.slane %v8310, %v8318
        %v8354 = vunpack.c.l.b16 %v8278
        %v8355 = vunpack.c.h.b16 %v8278
        %v8356 = vunpack.c.l.b16 %v8279
        %v8357 = vunpack.c.h.b16 %v8279
        %v8358 = vunpack.c.l.b16 %v8280
        %v8359 = vunpack.c.h.b16 %v8280
        %v8360 = vunpack.c.l.b16 %v8281
        %v8361 = vunpack.c.h.b16 %v8281
        %v8362 = vunpack.c.l.b16 %v8282
        %v8363 = vunpack.c.h.b16 %v8282
        %v8364 = vunpack.c.l.b16 %v8283
        %v8365 = vunpack.c.h.b16 %v8283
        %v8366 = vunpack.c.l.b16 %v8284
        %v8367 = vunpack.c.h.b16 %v8284
        %v8368 = vunpack.c.l.b16 %v8285
        %v8369 = vunpack.c.h.b16 %v8285
        %v8370 = vunpack.c.l.b16 %v8286
        %v8371 = vunpack.c.h.b16 %v8286
        %v8372 = vunpack.c.l.b16 %v8287
        %v8373 = vunpack.c.h.b16 %v8287
        %v8374 = vunpack.c.l.b16 %v8288
        %v8375 = vunpack.c.h.b16 %v8288
        %v8376 = vunpack.c.l.b16 %v8289
        %v8377 = vunpack.c.h.b16 %v8289
        %v8378 = vunpack.c.l.b16 %v8290
        %v8379 = vunpack.c.h.b16 %v8290
        %v8380 = vunpack.c.l.b16 %v8291
        %v8381 = vunpack.c.h.b16 %v8291
        %v8382 = vunpack.c.l.b16 %v8292
        %v8383 = vunpack.c.h.b16 %v8292
        %v8384 = vunpack.c.l.b16 %v8293
        %v8385 = vunpack.c.h.b16 %v8293
        %v8386 = vunpack.c.l.b16 %v8294
        %v8387 = vunpack.c.h.b16 %v8294
        %v8388 = vunpack.c.l.b16 %v8295
        %v8389 = vunpack.c.h.b16 %v8295
        %v8390 = vunpack.c.l.b16 %v8296
        %v8391 = vunpack.c.h.b16 %v8296
        %v8392 = vunpack.c.l.b16 %v8297
        %v8393 = vunpack.c.h.b16 %v8297
        %v8394 = vunpack.c.l.b16 %v8298
        %v8395 = vunpack.c.h.b16 %v8298
        %v8396 = vunpack.c.l.b16 %v8299
        %v8397 = vunpack.c.h.b16 %v8299
        %v8398 = vunpack.c.l.b16 %v8300
        %v8399 = vunpack.c.h.b16 %v8300
        %v8400 = vunpack.c.l.b16 %v8301
        %v8401 = vunpack.c.h.b16 %v8301
        %v8402 = vunpack.c.l.b16 %v8302
        %v8403 = vunpack.c.h.b16 %v8302
        %v8404 = vunpack.c.l.b16 %v8303
        %v8405 = vunpack.c.h.b16 %v8303
        %v8406 = vunpack.c.l.b16 %v8304
        %v8407 = vunpack.c.h.b16 %v8304
        %v8408 = vunpack.c.l.b16 %v8305
        %v8409 = vunpack.c.h.b16 %v8305
        %v8410 = vunpack.c.l.b16 %v8306
        %v8411 = vunpack.c.h.b16 %v8306
        %v8412 = vunpack.c.l.b16 %v8307
        %v8413 = vunpack.c.h.b16 %v8307
        %v8414 = vunpack.c.l.b16 %v8308
        %v8415 = vunpack.c.h.b16 %v8308
        %v8416 = vunpack.c.l.b16 %v8309
        %v8417 = vunpack.c.h.b16 %v8309
        %v8418 = vpack.c.b16 %v8356, %v8354
        %v8419 = vpack.c.b16 %v8357, %v8355
        %v8420 = vpack.c.b16 %v8360, %v8358
        %v8421 = vpack.c.b16 %v8361, %v8359
        %v8422 = vpack.c.b16 %v8364, %v8362
        %v8423 = vpack.c.b16 %v8365, %v8363
        %v8424 = vpack.c.b16 %v8368, %v8366
        %v8425 = vpack.c.b16 %v8369, %v8367
        %v8426 = vpack.c.b16 %v8372, %v8370
        %v8427 = vpack.c.b16 %v8373, %v8371
        %v8428 = vpack.c.b16 %v8376, %v8374
        %v8429 = vpack.c.b16 %v8377, %v8375
        %v8430 = vpack.c.b16 %v8380, %v8378
        %v8431 = vpack.c.b16 %v8381, %v8379
        %v8432 = vpack.c.b16 %v8384, %v8382
        %v8433 = vpack.c.b16 %v8385, %v8383
        %v8434 = vpack.c.b16 %v8388, %v8386
        %v8435 = vpack.c.b16 %v8389, %v8387
        %v8436 = vpack.c.b16 %v8392, %v8390
        %v8437 = vpack.c.b16 %v8393, %v8391
        %v8438 = vpack.c.b16 %v8396, %v8394
        %v8439 = vpack.c.b16 %v8397, %v8395
        %v8440 = vpack.c.b16 %v8400, %v8398
        %v8441 = vpack.c.b16 %v8401, %v8399
        %v8442 = vpack.c.b16 %v8404, %v8402
        %v8443 = vpack.c.b16 %v8405, %v8403
        %v8444 = vpack.c.b16 %v8408, %v8406
        %v8445 = vpack.c.b16 %v8409, %v8407
        %v8446 = vpack.c.b16 %v8412, %v8410
        %v8447 = vpack.c.b16 %v8413, %v8411
        %v8448 = vpack.c.b16 %v8416, %v8414
        %v8449 = vpack.c.b16 %v8417, %v8415
        %8482 = vmatprep.subr.bf16.mxu0 %v8419
        %8483 = vmatpush1.bf16.msra.mxu0 %v8418
        %8484 = vmatprep.subr.bf16.mxu0 %v8421
        %8485 = vmatpush1.bf16.msra.mxu0 %v8420
        %8486 = vmatprep.subr.bf16.mxu0 %v8423
        %8487 = vmatpush1.bf16.msra.mxu0 %v8422
        %8488 = vmatprep.subr.bf16.mxu0 %v8425
        %8489 = vmatpush1.bf16.msra.mxu0 %v8424
        %8490 = vmatprep.subr.bf16.mxu0 %v8427
        %8491 = vmatpush1.bf16.msra.mxu0 %v8426
        %8492 = vmatprep.subr.bf16.mxu0 %v8429
        %8493 = vmatpush1.bf16.msra.mxu0 %v8428
        %8494 = vmatprep.subr.bf16.mxu0 %v8431
        %8495 = vmatpush1.bf16.msra.mxu0 %v8430
        %8496 = vmatprep.subr.bf16.mxu0 %v8433
        %8497 = vmatpush1.bf16.msra.mxu0 %v8432
        %8498 = vmatprep.subr.bf16.mxu0 %v8435
        %8499 = vmatpush1.bf16.msra.mxu0 %v8434
        %8500 = vmatprep.subr.bf16.mxu0 %v8437
        %8501 = vmatpush1.bf16.msra.mxu0 %v8436
        %8502 = vmatprep.subr.bf16.mxu0 %v8439
        %8503 = vmatpush1.bf16.msra.mxu0 %v8438
        %8504 = vmatprep.subr.bf16.mxu0 %v8441
        %8505 = vmatpush1.bf16.msra.mxu0 %v8440
        %8506 = vmatprep.subr.bf16.mxu0 %v8443
        %8507 = vmatpush1.bf16.msra.mxu0 %v8442
        %8508 = vmatprep.subr.bf16.mxu0 %v8445
        %8509 = vmatpush1.bf16.msra.mxu0 %v8444
        %8510 = vmatprep.subr.bf16.mxu0 %v8447
        %8511 = vmatpush1.bf16.msra.mxu0 %v8446
        %8512 = vmatprep.subr.bf16.mxu0 %v8449
        %8513 = vmatpush1.bf16.msra.mxu0 %v8448
        %8514 = vmatprep.mubr.bf16.mxu0 %v8276
        %8515 = vmatmul.mubr.bf16.gmra.mrb[0].mxu0 %v8275
        %v8516 = vpop.f32.mrb[0].mxu0
        %v8517 = vadd.f32 %v8315, %v8516
        %v8518 = vpop.f32.mrb[0].mxu0
        %v8519 = vadd.f32 %v8319, %v8518
        %v8520 = vpop.f32.mrb[0].mxu0
        %v8521 = vpop.f32.mrb[0].mxu0
        %8522 = vdwg.mxu0
        %v8523 = vmax.f32 %v8517, 0.0
        %v8524 = vmax.f32 %v8519, 0.0
        %v8527 = vcombine.low %v8523, %v8524
        %v8529 = vunpack.c.l.s4 1983009808
        %v8530 = vunpack.c.0.s8 %v8529
        %v8531 = vlaneseq
        %v8532 = vshrl.u32 %v8531, 7
        %v8533 = vsub.s32 %v8530, %v8532
        %v8534 = vrot.slane %v8527, %v8533
        %8536 = vst [vmem:[%s1023] sm:$0xf] %v8534
        %s8537 = sand.u32 %s772, 1
        %s8538 = scalar_lea.sflag [#allocation3], %s8537
        %s8539 = sand.u32 %s772, 1
        %s8540 = smul.addr %s8539, 4
        %s8541 = scalar_lea.vmem [#allocation2], %s8540
        %p8542 = scmp.lt.s32.totalorder %s82, 1
        %s8543 = scalar_select %p8542, %s82, 1
        %s8544 = smul.addr %s8543, 2
        %s8545 = scalar_lea.vmem %s67, %s8544
        // Predicated region
        $region149: #{_lambda_.1} parent=147 // pred_check
          %p8546 = pneg %p782
        $region150: #{_lambda_.1} parent=147 // pred_check_branch
          %8548 = sbr.rel (%p8546) target = $region152
        $region151: #{_lambda_.1} parent=147 // pred_region
          %s8550 = ssub.s32 64, 64
          %8551 = vsyncadd %s8538, %s8550
          %s8552 = smul.addr %s82, 2
          %s8553 = smul.addr %s8552, 32
          %s8554 = scalar_lea.hbm %s65, %s8553
          %s8556 = sshll.u32 %s8541, 4
          %s8557 = int_to_ptr.vmem [resolvable:$true] %s8556
          %8559 = dma.vmem_to_hbm [thread:$0]  %s8557, 64, %s8554, %s8538
        $region152: #{_lambda_.1} parent=147 // pred_fallthru
          _
        // Predicated region
        $region153: #{_lambda_.1} parent=147 // pred_check
          %p8560 = pneg %p808
        $region154: #{_lambda_.1} parent=147 // pred_check_branch
          %8562 = sbr.rel (%p8560) target = $region156
        $region155: #{_lambda_.1} parent=147 // pred_region
          _
        $region156: #{_lambda_.1} parent=147 // pred_fallthru
          _
      $region148: #{_lambda_.1} parent=5 // pred_fallthru
        _
      %p8563 = scmp.le.s32.totalorder 2, %s77
      // Predicated region
      $region157: #{_lambda_.1} parent=5 // pred_check
        %p8564 = pneg %p8563
      $region158: #{_lambda_.1} parent=5 // pred_check_branch
        %8566 = sbr.rel (%p8564) target = $region160
      $region159: #{_lambda_.1} parent=5 // pred_region
        %s8567 = ssub.s32 %s77, 2
        // Predicated region
        $region161: #{_lambda_.1} parent=159 // pred_check
          %p8568 = pneg %p788
        $region162: #{_lambda_.1} parent=159 // pred_check_branch
          %8570 = sbr.rel (%p8568) target = $region164
        $region163: #{_lambda_.1} parent=159 // pred_region
          %s8571 = sand.u32 %s773, 1
          %s8572 = scalar_lea.sflag [#allocation3], %s8571
          %s8573 = sand.u32 %s773, 1
          %s8574 = smul.addr %s8573, 4
          %s8575 = scalar_lea.vmem [#allocation2], %s8574
          %8576 = dma.done %s8572, 64
        $region164: #{_lambda_.1} parent=159 // pred_fallthru
          _
        // Predicated region
        $region165: #{_lambda_.1} parent=159 // pred_check
          %p8577 = pneg %p814
        $region166: #{_lambda_.1} parent=159 // pred_check_branch
          %8579 = sbr.rel (%p8577) target = $region168
        $region167: #{_lambda_.1} parent=159 // pred_region
          %p8580 = scmp.lt.s32.totalorder %s83, 1
          %s8581 = scalar_select %p8580, %s83, 1
          %s8582 = smul.addr %s8581, 2
          %s8583 = scalar_lea.vmem %s67, %s8582
        $region168: #{_lambda_.1} parent=159 // pred_fallthru
          _
      $region160: #{_lambda_.1} parent=5 // pred_fallthru
        _
    $region6: #{_lambda_.1} parent=1 // loop_footer
      %s81 = sadd.s32 1, %s77
    $region7: #{_lambda_.1} parent=1 // loop_footer_branch
      %76 = sbr.rel target = $region3
    $region8: #{_lambda_.1} parent=1 // loop_exit
      _
    %8584 = vsyncpa [#allocation3], 1
    %s8585 = scalar_lea.sflag [#allocation3], 1
    %8586 = vsyncpa %s8585, 1

</llo_original>
